<compile_context>
chip_gen: v7x
topology: tpu7x:2x2x1
jax: 0.10.0
libtpu: 0.0.40
codegen_flags: <defaults>
</compile_context>

<pallas_src>
import functools

import numpy as np
import jax
import jax.numpy as jnp
from jax.experimental import pallas as pl
from jax.experimental.pallas import tpu as pltpu

BN_EPS = 1e-5
NPAD = 128          # lane-dense channel padding for conv outputs / fc3
TM_CONV = 2048      # max M tile for the conv passes
TK_FC = 1024        # K-tile for streaming fc1's 4096-wide contraction


def _cdiv(a, b):
    return (a + b - 1) // b


def _kpad(taps, c):
    """Smallest (tap_pad, chan_pad) so (taps+tp)*(c+cp) is a multiple of 128."""
    best = None
    for tp in range(4):
        for cp in range(129):
            K = (taps + tp) * (c + cp)
            if K % 128 == 0:
                if best is None or K < best[0]:
                    best = (K, tp, cp)
                break
    return best[1], best[2]


# ----------------------------- Pallas kernels -----------------------------

def _matmul_stats_kernel(p_ref, w_ref, b_ref, y_ref, s_ref, *, tm, m_real):
    # p_ref: (TM, Kp) bf16 patches, w_ref: (Kp, NPAD) bf16, b_ref: (1, NPAD) f32
    # y_ref: (TM, NPAD) bf16 pre-BN activations (stats below use the f32 MXU result)
    # s_ref: (1, 8, NPAD) f32 per-tile stats (row 0 = sum, row 1 = sum of squares)
    y = jnp.dot(p_ref[...], w_ref[...], preferred_element_type=jnp.float32) + b_ref[...]
    y_ref[...] = y.astype(y_ref.dtype)

    # Mask out rows >= m_real (ragged last tile) so BN stats only cover real samples.
    rows = jax.lax.broadcasted_iota(jnp.int32, y.shape, 0) + pl.program_id(0) * tm
    ym = jnp.where(rows < m_real, y, 0.0)
    s = jnp.sum(ym, axis=0, keepdims=True)           # (1, NPAD)
    ss = jnp.sum(ym * ym, axis=0, keepdims=True)     # (1, NPAD)

    rid = jax.lax.broadcasted_iota(jnp.int32, (8, y.shape[1]), 0)
    s_ref[0] = jnp.where(rid == 0, s, jnp.where(rid == 1, ss, 0.0))


def _bn_relu_kernel(y_ref, s_ref, g_ref, beta_ref, o_ref, *, inv_m):
    # y_ref: (TM, NPAD) bf16, s_ref: (grid_m, 8, NPAD) f32 partial stats (resident),
    # g/beta: (1, NPAD) f32, o_ref: (TM, NPAD) bf16.
    st = s_ref[...]
    ssum = jnp.sum(st[:, 0, :], axis=0, keepdims=True)   # (1, NPAD)
    ssq = jnp.sum(st[:, 1, :], axis=0, keepdims=True)    # (1, NPAD)
    mean = ssum * inv_m
    var = jnp.maximum(ssq * inv_m - mean * mean, 0.0)    # biased (training-mode) variance
    scale = g_ref[...] * jax.lax.rsqrt(var + BN_EPS)
    shift = beta_ref[...] - mean * scale
    y = y_ref[...].astype(jnp.float32)
    o_ref[...] = jnp.maximum(y * scale + shift, 0.0).astype(o_ref.dtype)


def _fc_fused_kernel(x_ref, w1_ref, b1_ref, w2_ref, b2_ref, w3_ref, b3_ref,
                     o_ref, acc_ref, *, tk):
    # fc1 (K streamed over the grid, activations resident) -> fc2 -> fc3, one kernel.
    k = pl.program_id(0)

    @pl.when(k == 0)
    def _():
        acc_ref[...] = jnp.zeros_like(acc_ref)

    kk = pl.multiple_of(k * tk, tk)
    acc_ref[...] += jnp.dot(x_ref[:, pl.ds(kk, tk)], w1_ref[...],
                            preferred_element_type=jnp.float32)

    @pl.when(k == pl.num_programs(0) - 1)
    def _():
        h1 = jnp.maximum(acc_ref[...] + b1_ref[...], 0.0)
        h2 = jnp.dot(h1.astype(jnp.bfloat16), w2_ref[...],
                     preferred_element_type=jnp.float32) + b2_ref[...]
        h2 = jnp.maximum(h2, 0.0)
        q = jnp.dot(h2.astype(jnp.bfloat16), w3_ref[...],
                    preferred_element_type=jnp.float32) + b3_ref[...]
        o_ref[...] = q


# ------------------------------- glue (JAX) -------------------------------

def im2col_nhwc(x, kh, kw, stride, pad_taps=0, pad_c=0):
    # x: (B, H, W, C) -> (B*Ho*Wo, (kh*kw+pad_taps)*(C+pad_c)), column order (tap, c).
    # K zero-padding is folded in here (pad the small axes before the final reshape).
    B, H, W, C = x.shape
    Ho = (H - kh) // stride + 1
    Wo = (W - kw) // stride + 1
    cols = []
    for i in range(kh):
        for j in range(kw):
            cols.append(x[:, i:i + stride * Ho:stride, j:j + stride * Wo:stride, :])
    p = jnp.stack(cols, axis=3)                       # (B, Ho, Wo, kh*kw, C)
    if pad_taps or pad_c:
        p = jnp.pad(p, ((0, 0), (0, 0), (0, 0), (0, pad_taps), (0, pad_c)))
    Kp = (kh * kw + pad_taps) * (C + pad_c)
    return p.reshape(B * Ho * Wo, Kp), Ho, Wo


def conv_bn_relu(x_nhwc, cfg):
    B = x_nhwc.shape[0]
    patches, Ho, Wo = im2col_nhwc(x_nhwc, cfg['k'], cfg['k'], cfg['s'],
                                  cfg['pad_taps'], cfg['pad_c'])   # (M, Kp) bf16
    M, Kp = patches.shape

    TM = M if M <= TM_CONV else TM_CONV
    grid_m = _cdiv(M, TM)

    # Pass 1: matmul + bias -> bf16 y, plus per-tile BN partial sums (from the f32 result).
    y, stats = pl.pallas_call(
        functools.partial(_matmul_stats_kernel, tm=TM, m_real=M),
        out_shape=(jax.ShapeDtypeStruct((M, NPAD), jnp.bfloat16),
                   jax.ShapeDtypeStruct((grid_m, 8, NPAD), jnp.float32)),
        grid=(grid_m,),
        in_specs=[pl.BlockSpec((TM, Kp), lambda i: (i, 0)),
                  pl.BlockSpec((Kp, NPAD), lambda i: (0, 0)),
                  pl.BlockSpec((1, NPAD), lambda i: (0, 0))],
        out_specs=(pl.BlockSpec((TM, NPAD), lambda i: (i, 0)),
                   pl.BlockSpec((1, 8, NPAD), lambda i: (i, 0, 0))),
        compiler_params=pltpu.CompilerParams(dimension_semantics=("parallel",)),
    )(patches, cfg['w'], cfg['b'])

    # Pass 2: reduce partial stats + normalize(+ReLU), all in-kernel (no host glue).
    z = pl.pallas_call(
        functools.partial(_bn_relu_kernel, inv_m=1.0 / M),
        out_shape=jax.ShapeDtypeStruct((M, NPAD), jnp.bfloat16),
        grid=(grid_m,),
        in_specs=[pl.BlockSpec((TM, NPAD), lambda i: (i, 0)),
                  pl.BlockSpec((grid_m, 8, NPAD), lambda i: (0, 0, 0)),
                  pl.BlockSpec((1, NPAD), lambda i: (0, 0)),
                  pl.BlockSpec((1, NPAD), lambda i: (0, 0))],
        out_specs=pl.BlockSpec((TM, NPAD), lambda i: (i, 0)),
        compiler_params=pltpu.CompilerParams(dimension_semantics=("parallel",)),
    )(y, stats, cfg['g'], cfg['beta'])

    return z[:, :cfg['cout']].reshape(B, Ho, Wo, cfg['cout'])      # NHWC, bf16


def fc_fused(flat_bf16, prep):
    B, Kin = flat_bf16.shape                          # Kin == 4096, divisible by TK_FC
    nk = Kin // TK_FC

    out = pl.pallas_call(
        functools.partial(_fc_fused_kernel, tk=TK_FC),
        out_shape=jax.ShapeDtypeStruct((B, NPAD), jnp.float32),
        grid=(nk,),
        in_specs=[pl.BlockSpec((B, Kin), lambda k: (0, 0)),        # activations resident
                  pl.BlockSpec((TK_FC, 512), lambda k: (k, 0)),    # streamed fc1 weight
                  pl.BlockSpec((1, 512), lambda k: (0, 0)),
                  pl.BlockSpec((512, 256), lambda k: (0, 0)),
                  pl.BlockSpec((1, 256), lambda k: (0, 0)),
                  pl.BlockSpec((256, NPAD), lambda k: (0, 0)),
                  pl.BlockSpec((1, NPAD), lambda k: (0, 0))],
        out_specs=pl.BlockSpec((B, NPAD), lambda k: (0, 0)),
        scratch_shapes=[pltpu.VMEM((B, 512), jnp.float32)],
        compiler_params=pltpu.CompilerParams(dimension_semantics=("arbitrary",)),
    )(flat_bf16, prep['fc1_w'], prep['fc1_b'], prep['fc2_w'], prep['fc2_b'],
      prep['fc3_w'], prep['fc3_b'])

    return out[:, :prep['action_size']]


# ------------------------- parameter prep (one-time) -----------------------

def init_params(key, action_size=5):
    ks = jax.random.split(key, 9)

    def w(k, shape, scale=0.05):
        return jax.random.normal(k, shape, jnp.float32) * scale

    return {
        # conv weights in torch layout (Cout, Cin, kh, kw)
        'conv1_w': w(ks[0], (32, 3, 8, 8)),  'conv1_b': w(ks[1], (32,)),
        'bn1_g': jnp.ones((32,), jnp.float32), 'bn1_b': jnp.zeros((32,), jnp.float32),
        'conv2_w': w(ks[2], (64, 32, 4, 4)), 'conv2_b': w(ks[3], (64,)),
        'bn2_g': jnp.ones((64,), jnp.float32), 'bn2_b': jnp.zeros((64,), jnp.float32),
        'conv3_w': w(ks[4], (64, 64, 3, 3)), 'conv3_b': w(ks[5], (64,)),
        'bn3_g': jnp.ones((64,), jnp.float32), 'bn3_b': jnp.zeros((64,), jnp.float32),
        # fc weights in torch layout (out, in)
        'fc1_w': w(ks[6], (512, 8 * 8 * 64)), 'fc1_b': jnp.zeros((512,), jnp.float32),
        'fc2_w': w(ks[7], (256, 512)),        'fc2_b': jnp.zeros((256,), jnp.float32),
        'fc3_w': w(ks[8], (action_size, 256)), 'fc3_b': jnp.zeros((action_size,), jnp.float32),
    }


def prepare_params(p):
    """One-time weight re-layout: (tap, chan) matmul layout with the same K zero-padding
    im2col uses, Cout zero-padded to 128, bf16 cast, fc1 column permutation CHW->HWC.
    Called outside jit."""
    bf16 = jnp.bfloat16

    def prep_conv(w, b, g, be, stride):
        cout, cin, kh, kw = w.shape
        pt, pc = _kpad(kh * kw, cin)
        cinp = cin + pc
        w4 = jnp.pad(w.transpose(2, 3, 1, 0), ((0, 0), (0, 0), (0, pc), (0, 0)))
        w3 = jnp.pad(w4.reshape(kh * kw, cinp, cout), ((0, pt), (0, 0), (0, 0)))
        Kp = (kh * kw + pt) * cinp
        w2d = jnp.pad(w3.reshape(Kp, cout), ((0, 0), (0, NPAD - cout))).astype(bf16)
        return dict(
            w=w2d,
            b=jnp.pad(b, (0, NPAD - cout)).reshape(1, NPAD).astype(jnp.float32),
            g=jnp.pad(g, (0, NPAD - cout)).reshape(1, NPAD).astype(jnp.float32),
            beta=jnp.pad(be, (0, NPAD - cout)).reshape(1, NPAD).astype(jnp.float32),
            k=kh, s=stride, cout=cout, pad_taps=pt, pad_c=pc)

    prep = {
        'c1': prep_conv(p['conv1_w'], p['conv1_b'], p['bn1_g'], p['bn1_b'], 4),
        'c2': prep_conv(p['conv2_w'], p['conv2_b'], p['bn2_g'], p['bn2_b'], 2),
        'c3': prep_conv(p['conv3_w'], p['conv3_b'], p['bn3_g'], p['bn3_b'], 1),
    }

    # fc1: permute input columns from torch CHW flatten order to our HWC flatten order.
    a = p['fc3_w'].shape[0]
    fc1_w = p['fc1_w'].reshape(512, 64, 8, 8).transpose(0, 2, 3, 1).reshape(512, 4096)
    prep['fc1_w'] = fc1_w.T.astype(bf16)                         # (4096, 512)
    prep['fc1_b'] = p['fc1_b'].reshape(1, 512).astype(jnp.float32)
    prep['fc2_w'] = p['fc2_w'].T.astype(bf16)                    # (512, 256)
    prep['fc2_b'] = p['fc2_b'].reshape(1, 256).astype(jnp.float32)
    prep['fc3_w'] = jnp.pad(p['fc3_w'].T, ((0, 0), (0, NPAD - a))).astype(bf16)   # (256, 128)
    prep['fc3_b'] = jnp.pad(p['fc3_b'], (0, NPAD - a)).reshape(1, NPAD).astype(jnp.float32)
    prep['action_size'] = a
    return prep


def qnetwork_forward(x_nchw, prep):
    # x: (B, 3, 96, 96) f32 NCHW (torch layout) -> NHWC bf16 once; NHWC kept throughout.
    B = x_nchw.shape[0]
    h = x_nchw.transpose(0, 2, 3, 1).astype(jnp.bfloat16)        # (B, 96, 96, 3)
    h = conv_bn_relu(h, prep['c1'])                              # (B, 23, 23, 32)
    h = conv_bn_relu(h, prep['c2'])                              # (B, 10, 10, 64)
    h = conv_bn_relu(h, prep['c3'])                              # (B,  8,  8, 64)
    flat = h.reshape(B, -1)                                      # (B, 4096) HWC order (fc1_w permuted to match)
    return fc_fused(flat, prep)                                  # (B, action_size) f32


# --------------------------- pure-JAX reference ----------------------------

def reference_forward(x_nchw, p):
    # Mirrors the kernels' bf16 input/weight/intermediate rounding (f32 accumulation,
    # HIGHEST precision); otherwise plain torch-semantics math (training-mode BN,
    # biased variance).
    B = x_nchw.shape[0]
    f32, bf16 = jnp.float32, jnp.bfloat16
    hp = jax.lax.Precision.HIGHEST
    x = x_nchw.transpose(0, 2, 3, 1).astype(bf16)

    def conv_block(x, wk, bk, gk, bek, k, s):
        patches, Ho, Wo = im2col_nhwc(x, k, k, s)
        cout = p[wk].shape[0]
        w2d = p[wk].transpose(2, 3, 1, 0).reshape(-1, cout).astype(bf16)
        y = jnp.dot(patches.astype(f32), w2d.astype(f32), precision=hp) + p[bk][None, :]
        mean = jnp.mean(y, axis=0, keepdims=True)
        var = jnp.mean((y - mean) ** 2, axis=0, keepdims=True)
        # mirror the kernels' bf16 HBM round-trip of the pre-BN activations
        # (stats themselves come from the f32 MXU result, as in the kernel)
        yq = y.astype(bf16).astype(f32)
        y = (yq - mean) * jax.lax.rsqrt(var + BN_EPS) * p[gk][None, :] + p[bek][None, :]
        return jnp.maximum(y, 0.0).astype(bf16).reshape(B, Ho, Wo, cout)

    x = conv_block(x, 'conv1_w', 'conv1_b', 'bn1_g', 'bn1_b', 8, 4)
    x = conv_block(x, 'conv2_w', 'conv2_b', 'bn2_g', 'bn2_b', 4, 2)
    x = conv_block(x, 'conv3_w', 'conv3_b', 'bn3_g', 'bn3_b', 3, 1)
    flat = x.transpose(0, 3, 1, 2).reshape(B, -1)                # torch NCHW flatten order

    def lin(h, wk, bk, relu):
        y = jnp.dot(h.astype(f32), p[wk].T.astype(bf16).astype(f32), precision=hp) + p[bk][None, :]
        return jnp.maximum(y, 0.0) if relu else y

    h = lin(flat, 'fc1_w', 'fc1_b', True).astype(bf16)
    h = lin(h, 'fc2_w', 'fc2_b', True).astype(bf16)
    return lin(h, 'fc3_w', 'fc3_b', False)


# TODO(synk): replay buffer, Adam optimizer, epsilon-greedy act(), soft_update and the
# training loop are host-side / stateful control flow with no Pallas equivalent; only the
# network forward pass (the compute hot path) is implemented as TPU kernels.

if __name__ == "__main__":
    key = jax.random.PRNGKey(0)
    pkey, xkey = jax.random.split(key)
    params = init_params(pkey, action_size=5)
    prep = prepare_params(params)        # one-time layout/padding/bf16 prep, outside jit

    # batch=2 image states, already scaled to [0,1] (as in act(): state / 255.0), NCHW
    x = jax.random.uniform(xkey, (2, 3, 96, 96), jnp.float32)

    fwd = jax.jit(lambda inp: qnetwork_forward(inp, prep))
    q = jax.block_until_ready(fwd(x))
    assert q.shape == (2, 5) and q.dtype == jnp.float32

    q_ref = jax.block_until_ready(reference_forward(x, params))
    np.testing.assert_allclose(np.asarray(q), np.asarray(q_ref, dtype=np.float32),
                               rtol=2e-2, atol=2e-2)

    print("KERNEL_OK")
</pallas_src>

<mosaic_0001>
module attributes {stable_mosaic.version = 11 : i64} {
  func.func @_matmul_stats_kernel(%arg0: i32, %arg1: memref<1058x256xbf16, #tpu.memory_space<vmem>>, %arg2: memref<256x128xbf16, #tpu.memory_space<vmem>>, %arg3: memref<1x128xf32, #tpu.memory_space<vmem>>, %arg4: memref<1058x128xbf16, #tpu.memory_space<vmem>>, %arg5: memref<1x8x128xf32, #tpu.memory_space<vmem>>) attributes {dimension_semantics = [#tpu.dimension_semantics<parallel>], iteration_bounds = array<i64: 1>, scalar_prefetch = 0 : i64, scratch_operands = 0 : i64, tpu.core_type = #tpu.core_type<tc>, window_params = [{transform_indices = @transform_0, window_bounds = array<i64: 1058, 256>}, {pipeline_mode = #tpu.pipeline_mode<synchronous>, transform_indices = @transform_1, window_bounds = array<i64: 256, 128>}, {pipeline_mode = #tpu.pipeline_mode<synchronous>, transform_indices = @transform_2, window_bounds = array<i64: 1, 128>}, {transform_indices = @transform_3, window_bounds = array<i64: 1058, 128>}, {transform_indices = @transform_4, window_bounds = array<i64: 1, 8, 128>}]} {
    %c0 = arith.constant 0 : index
    %c0_0 = arith.constant 0 : index
    %0 = vector.load %arg1[%c0, %c0_0] : memref<1058x256xbf16, #tpu.memory_space<vmem>>, vector<1058x256xbf16>
    %c0_1 = arith.constant 0 : index
    %c0_2 = arith.constant 0 : index
    %1 = vector.load %arg2[%c0_1, %c0_2] : memref<256x128xbf16, #tpu.memory_space<vmem>>, vector<256x128xbf16>
    %cst = arith.constant dense<0.000000e+00> : vector<1058x128xf32>
    %2 = tpu.matmul %0, %1, %cst {dimension_numbers = #tpu.dot_dimension_numbers<[1], [0], [0], [1], [0, 0, 1, 1], [], []>} : vector<1058x256xbf16>, vector<256x128xbf16>, vector<1058x128xf32> -> vector<1058x128xf32>
    %c0_3 = arith.constant 0 : index
    %c0_4 = arith.constant 0 : index
    %3 = vector.load %arg3[%c0_3, %c0_4] : memref<1x128xf32, #tpu.memory_space<vmem>>, vector<1x128xf32>
    %4 = vector.broadcast %3 : vector<1x128xf32> to vector<1058x128xf32>
    %5 = arith.addf %2, %4 : vector<1058x128xf32>
    %6 = arith.truncf %5 : vector<1058x128xf32> to vector<1058x128xbf16>
    %c0_5 = arith.constant 0 : index
    %c0_6 = arith.constant 0 : index
    %7 = vector.load %arg4[%c0_5, %c0_6] : memref<1058x128xbf16, #tpu.memory_space<vmem>>, vector<1058x128xbf16>
    tpu.vector_store %arg4[%c0_5, %c0_6], %6 {strides = array<i32>} : memref<1058x128xbf16, #tpu.memory_space<vmem>>, vector<1058x128xbf16>,
    %8 = tpu.iota {dimensions = array<i32: 0>} : vector<1058x128xi32>
    %c1058_i32 = arith.constant 1058 : i32
    %9 = arith.muli %arg0, %c1058_i32 : i32
    %10 = vector.broadcast %9 : i32 to vector<1058x128xi32>
    %11 = arith.addi %8, %10 : vector<1058x128xi32>
    %c1058_i32_7 = arith.constant 1058 : i32
    %12 = vector.broadcast %c1058_i32_7 : i32 to vector<1058x128xi32>
    %13 = arith.cmpi slt, %11, %12 : vector<1058x128xi32>
    %cst_8 = arith.constant 0.000000e+00 : f32
    %14 = vector.broadcast %cst_8 : f32 to vector<1058x128xf32>
    %15 = arith.select %13, %5, %14 : vector<1058x128xi1>, vector<1058x128xf32>
    %cst_9 = arith.constant dense<0.000000e+00> : vector<128xf32>
    %16 = vector.multi_reduction <add>, %15, %cst_9 [0] : vector<1058x128xf32> to vector<128xf32>
    %17 = vector.shape_cast %16 : vector<128xf32> to vector<1x128xf32>
    %18 = arith.mulf %15, %15 : vector<1058x128xf32>
    %cst_10 = arith.constant dense<0.000000e+00> : vector<128xf32>
    %19 = vector.multi_reduction <add>, %18, %cst_10 [0] : vector<1058x128xf32> to vector<128xf32>
    %20 = vector.shape_cast %19 : vector<128xf32> to vector<1x128xf32>
    %21 = tpu.iota {dimensions = array<i32: 0>} : vector<8x128xi32>
    %c0_i32 = arith.constant 0 : i32
    %22 = vector.broadcast %c0_i32 : i32 to vector<8x128xi32>
    %23 = arith.cmpi eq, %21, %22 : vector<8x128xi32>
    %c1_i32 = arith.constant 1 : i32
    %24 = vector.broadcast %c1_i32 : i32 to vector<8x128xi32>
    %25 = arith.cmpi eq, %21, %24 : vector<8x128xi32>
    %cst_11 = arith.constant 0.000000e+00 : f32
    %26 = vector.shape_cast %20 : vector<1x128xf32> to vector<1x128xf32>
    %27 = vector.broadcast %26 : vector<1x128xf32> to vector<8x128xf32>
    %28 = vector.broadcast %cst_11 : f32 to vector<8x128xf32>
    %29 = arith.select %25, %27, %28 : vector<8x128xi1>, vector<8x128xf32>
    %30 = vector.shape_cast %17 : vector<1x128xf32> to vector<1x128xf32>
    %31 = vector.broadcast %30 : vector<1x128xf32> to vector<8x128xf32>
    %32 = arith.select %23, %31, %29 : vector<8x128xi1>, vector<8x128xf32>
    %c0_12 = arith.constant 0 : index
    %c0_13 = arith.constant 0 : index
    %c0_14 = arith.constant 0 : index
    %33 = vector.load %arg5[%c0_12, %c0_13, %c0_14] : memref<1x8x128xf32, #tpu.memory_space<vmem>>, vector<1x8x128xf32>
    %34 = vector.shape_cast %33 : vector<1x8x128xf32> to vector<8x128xf32>
    %35 = vector.shape_cast %32 : vector<8x128xf32> to vector<1x8x128xf32>
    tpu.vector_store %arg5[%c0_12, %c0_13, %c0_14], %35 {strides = array<i32>} : memref<1x8x128xf32, #tpu.memory_space<vmem>>, vector<1x8x128xf32>,
    return
  }
  func.func @transform_0(%arg0: i32) -> (i32, i32) {
    %c0_i32 = arith.constant 0 : i32
    %c0_i32_0 = arith.constant 0 : i32
    return %arg0, %c0_i32 : i32, i32
  }
  func.func @transform_1(%arg0: i32) -> (i32, i32) {
    %c0_i32 = arith.constant 0 : i32
    %c0_i32_0 = arith.constant 0 : i32
    %c0_i32_1 = arith.constant 0 : i32
    return %c0_i32, %c0_i32_0 : i32, i32
  }
  func.func @transform_2(%arg0: i32) -> (i32, i32) {
    %c0_i32 = arith.constant 0 : i32
    %c0_i32_0 = arith.constant 0 : i32
    %c0_i32_1 = arith.constant 0 : i32
    return %c0_i32, %c0_i32_0 : i32, i32
  }
  func.func @transform_3(%arg0: i32) -> (i32, i32) {
    %c0_i32 = arith.constant 0 : i32
    %c0_i32_0 = arith.constant 0 : i32
    return %arg0, %c0_i32 : i32, i32
  }
  func.func @transform_4(%arg0: i32) -> (i32, i32, i32) {
    %c0_i32 = arith.constant 0 : i32
    %c0_i32_0 = arith.constant 0 : i32
    %c0_i32_1 = arith.constant 0 : i32
    return %arg0, %c0_i32, %c0_i32_0 : i32, i32, i32
  }
}

module attributes {stable_mosaic.version = 11 : i64} {
  func.func @_bn_relu_kernel(%arg0: i32, %arg1: memref<1058x128xbf16, #tpu.memory_space<vmem>>, %arg2: memref<1x8x128xf32, #tpu.memory_space<vmem>>, %arg3: memref<1x128xf32, #tpu.memory_space<vmem>>, %arg4: memref<1x128xf32, #tpu.memory_space<vmem>>, %arg5: memref<1058x128xbf16, #tpu.memory_space<vmem>>) attributes {dimension_semantics = [#tpu.dimension_semantics<parallel>], iteration_bounds = array<i64: 1>, scalar_prefetch = 0 : i64, scratch_operands = 0 : i64, tpu.core_type = #tpu.core_type<tc>, window_params = [{transform_indices = @transform_0, window_bounds = array<i64: 1058, 128>}, {pipeline_mode = #tpu.pipeline_mode<synchronous>, transform_indices = @transform_1, window_bounds = array<i64: 1, 8, 128>}, {pipeline_mode = #tpu.pipeline_mode<synchronous>, transform_indices = @transform_2, window_bounds = array<i64: 1, 128>}, {pipeline_mode = #tpu.pipeline_mode<synchronous>, transform_indices = @transform_3, window_bounds = array<i64: 1, 128>}, {transform_indices = @transform_4, window_bounds = array<i64: 1058, 128>}]} {
    %c0 = arith.constant 0 : index
    %c0_0 = arith.constant 0 : index
    %c0_1 = arith.constant 0 : index
    %0 = vector.load %arg2[%c0, %c0_0, %c0_1] : memref<1x8x128xf32, #tpu.memory_space<vmem>>, vector<1x8x128xf32>
    %1 = vector.extract_strided_slice %0 {offsets = [0, 0, 0], sizes = [1, 1, 128], strides = [1, 1, 1]} : vector<1x8x128xf32> to vector<1x1x128xf32>
    %2 = vector.shape_cast %1 : vector<1x1x128xf32> to vector<1x128xf32>
    %cst = arith.constant dense<0.000000e+00> : vector<128xf32>
    %3 = vector.multi_reduction <add>, %2, %cst [0] : vector<1x128xf32> to vector<128xf32>
    %4 = vector.shape_cast %3 : vector<128xf32> to vector<1x128xf32>
    %5 = vector.extract_strided_slice %0 {offsets = [0, 1, 0], sizes = [1, 1, 128], strides = [1, 1, 1]} : vector<1x8x128xf32> to vector<1x1x128xf32>
    %6 = vector.shape_cast %5 : vector<1x1x128xf32> to vector<1x128xf32>
    %cst_2 = arith.constant dense<0.000000e+00> : vector<128xf32>
    %7 = vector.multi_reduction <add>, %6, %cst_2 [0] : vector<1x128xf32> to vector<128xf32>
    %8 = vector.shape_cast %7 : vector<128xf32> to vector<1x128xf32>
    %cst_3 = arith.constant 9.45179606E-4 : f32
    %9 = vector.broadcast %cst_3 : f32 to vector<1x128xf32>
    %10 = arith.mulf %4, %9 : vector<1x128xf32>
    %cst_4 = arith.constant 9.45179606E-4 : f32
    %11 = vector.broadcast %cst_4 : f32 to vector<1x128xf32>
    %12 = arith.mulf %8, %11 : vector<1x128xf32>
    %13 = arith.mulf %10, %10 : vector<1x128xf32>
    %14 = arith.subf %12, %13 : vector<1x128xf32>
    %cst_5 = arith.constant 0.000000e+00 : f32
    %15 = vector.broadcast %cst_5 : f32 to vector<1x128xf32>
    %16 = arith.maximumf %14, %15 : vector<1x128xf32>
    %c0_6 = arith.constant 0 : index
    %c0_7 = arith.constant 0 : index
    %17 = vector.load %arg3[%c0_6, %c0_7] : memref<1x128xf32, #tpu.memory_space<vmem>>, vector<1x128xf32>
    %cst_8 = arith.constant 9.99999974E-6 : f32
    %18 = vector.broadcast %cst_8 : f32 to vector<1x128xf32>
    %19 = arith.addf %16, %18 : vector<1x128xf32>
    %20 = math.rsqrt %19 : vector<1x128xf32>
    %21 = arith.mulf %17, %20 : vector<1x128xf32>
    %c0_9 = arith.constant 0 : index
    %c0_10 = arith.constant 0 : index
    %22 = vector.load %arg4[%c0_9, %c0_10] : memref<1x128xf32, #tpu.memory_space<vmem>>, vector<1x128xf32>
    %23 = arith.mulf %10, %21 : vector<1x128xf32>
    %24 = arith.subf %22, %23 : vector<1x128xf32>
    %c0_11 = arith.constant 0 : index
    %c0_12 = arith.constant 0 : index
    %25 = vector.load %arg1[%c0_11, %c0_12] : memref<1058x128xbf16, #tpu.memory_space<vmem>>, vector<1058x128xbf16>
    %26 = arith.extf %25 : vector<1058x128xbf16> to vector<1058x128xf32>
    %27 = vector.broadcast %21 : vector<1x128xf32> to vector<1058x128xf32>
    %28 = arith.mulf %26, %27 : vector<1058x128xf32>
    %29 = vector.broadcast %24 : vector<1x128xf32> to vector<1058x128xf32>
    %30 = arith.addf %28, %29 : vector<1058x128xf32>
    %cst_13 = arith.constant 0.000000e+00 : f32
    %31 = vector.broadcast %cst_13 : f32 to vector<1058x128xf32>
    %32 = arith.maximumf %30, %31 : vector<1058x128xf32>
    %33 = arith.truncf %32 : vector<1058x128xf32> to vector<1058x128xbf16>
    %c0_14 = arith.constant 0 : index
    %c0_15 = arith.constant 0 : index
    %34 = vector.load %arg5[%c0_14, %c0_15] : memref<1058x128xbf16, #tpu.memory_space<vmem>>, vector<1058x128xbf16>
    tpu.vector_store %arg5[%c0_14, %c0_15], %33 {strides = array<i32>} : memref<1058x128xbf16, #tpu.memory_space<vmem>>, vector<1058x128xbf16>,
    return
  }
  func.func @transform_0(%arg0: i32) -> (i32, i32) {
    %c0_i32 = arith.constant 0 : i32
    %c0_i32_0 = arith.constant 0 : i32
    return %arg0, %c0_i32 : i32, i32
  }
  func.func @transform_1(%arg0: i32) -> (i32, i32, i32) {
    %c0_i32 = arith.constant 0 : i32
    %c0_i32_0 = arith.constant 0 : i32
    %c0_i32_1 = arith.constant 0 : i32
    %c0_i32_2 = arith.constant 0 : i32
    return %c0_i32, %c0_i32_0, %c0_i32_1 : i32, i32, i32
  }
  func.func @transform_2(%arg0: i32) -> (i32, i32) {
    %c0_i32 = arith.constant 0 : i32
    %c0_i32_0 = arith.constant 0 : i32
    %c0_i32_1 = arith.constant 0 : i32
    return %c0_i32, %c0_i32_0 : i32, i32
  }
  func.func @transform_3(%arg0: i32) -> (i32, i32) {
    %c0_i32 = arith.constant 0 : i32
    %c0_i32_0 = arith.constant 0 : i32
    %c0_i32_1 = arith.constant 0 : i32
    return %c0_i32, %c0_i32_0 : i32, i32
  }
  func.func @transform_4(%arg0: i32) -> (i32, i32) {
    %c0_i32 = arith.constant 0 : i32
    %c0_i32_0 = arith.constant 0 : i32
    return %arg0, %c0_i32 : i32, i32
  }
}

module attributes {stable_mosaic.version = 11 : i64} {
  func.func @_matmul_stats_kernel(%arg0: i32, %arg1: memref<200x512xbf16, #tpu.memory_space<vmem>>, %arg2: memref<512x128xbf16, #tpu.memory_space<vmem>>, %arg3: memref<1x128xf32, #tpu.memory_space<vmem>>, %arg4: memref<200x128xbf16, #tpu.memory_space<vmem>>, %arg5: memref<1x8x128xf32, #tpu.memory_space<vmem>>) attributes {dimension_semantics = [#tpu.dimension_semantics<parallel>], iteration_bounds = array<i64: 1>, scalar_prefetch = 0 : i64, scratch_operands = 0 : i64, tpu.core_type = #tpu.core_type<tc>, window_params = [{transform_indices = @transform_0, window_bounds = array<i64: 200, 512>}, {pipeline_mode = #tpu.pipeline_mode<synchronous>, transform_indices = @transform_1, window_bounds = array<i64: 512, 128>}, {pipeline_mode = #tpu.pipeline_mode<synchronous>, transform_indices = @transform_2, window_bounds = array<i64: 1, 128>}, {transform_indices = @transform_3, window_bounds = array<i64: 200, 128>}, {transform_indices = @transform_4, window_bounds = array<i64: 1, 8, 128>}]} {
    %c0 = arith.constant 0 : index
    %c0_0 = arith.constant 0 : index
    %0 = vector.load %arg1[%c0, %c0_0] : memref<200x512xbf16, #tpu.memory_space<vmem>>, vector<200x512xbf16>
    %c0_1 = arith.constant 0 : index
    %c0_2 = arith.constant 0 : index
    %1 = vector.load %arg2[%c0_1, %c0_2] : memref<512x128xbf16, #tpu.memory_space<vmem>>, vector<512x128xbf16>
    %cst = arith.constant dense<0.000000e+00> : vector<200x128xf32>
    %2 = tpu.matmul %0, %1, %cst {dimension_numbers = #tpu.dot_dimension_numbers<[1], [0], [0], [1], [0, 0, 1, 1], [], []>} : vector<200x512xbf16>, vector<512x128xbf16>, vector<200x128xf32> -> vector<200x128xf32>
    %c0_3 = arith.constant 0 : index
    %c0_4 = arith.constant 0 : index
    %3 = vector.load %arg3[%c0_3, %c0_4] : memref<1x128xf32, #tpu.memory_space<vmem>>, vector<1x128xf32>
    %4 = vector.broadcast %3 : vector<1x128xf32> to vector<200x128xf32>
    %5 = arith.addf %2, %4 : vector<200x128xf32>
    %6 = arith.truncf %5 : vector<200x128xf32> to vector<200x128xbf16>
    %c0_5 = arith.constant 0 : index
    %c0_6 = arith.constant 0 : index
    %7 = vector.load %arg4[%c0_5, %c0_6] : memref<200x128xbf16, #tpu.memory_space<vmem>>, vector<200x128xbf16>
    tpu.vector_store %arg4[%c0_5, %c0_6], %6 {strides = array<i32>} : memref<200x128xbf16, #tpu.memory_space<vmem>>, vector<200x128xbf16>,
    %8 = tpu.iota {dimensions = array<i32: 0>} : vector<200x128xi32>
    %c200_i32 = arith.constant 200 : i32
    %9 = arith.muli %arg0, %c200_i32 : i32
    %10 = vector.broadcast %9 : i32 to vector<200x128xi32>
    %11 = arith.addi %8, %10 : vector<200x128xi32>
    %c200_i32_7 = arith.constant 200 : i32
    %12 = vector.broadcast %c200_i32_7 : i32 to vector<200x128xi32>
    %13 = arith.cmpi slt, %11, %12 : vector<200x128xi32>
    %cst_8 = arith.constant 0.000000e+00 : f32
    %14 = vector.broadcast %cst_8 : f32 to vector<200x128xf32>
    %15 = arith.select %13, %5, %14 : vector<200x128xi1>, vector<200x128xf32>
    %cst_9 = arith.constant dense<0.000000e+00> : vector<128xf32>
    %16 = vector.multi_reduction <add>, %15, %cst_9 [0] : vector<200x128xf32> to vector<128xf32>
    %17 = vector.shape_cast %16 : vector<128xf32> to vector<1x128xf32>
    %18 = arith.mulf %15, %15 : vector<200x128xf32>
    %cst_10 = arith.constant dense<0.000000e+00> : vector<128xf32>
    %19 = vector.multi_reduction <add>, %18, %cst_10 [0] : vector<200x128xf32> to vector<128xf32>
    %20 = vector.shape_cast %19 : vector<128xf32> to vector<1x128xf32>
    %21 = tpu.iota {dimensions = array<i32: 0>} : vector<8x128xi32>
    %c0_i32 = arith.constant 0 : i32
    %22 = vector.broadcast %c0_i32 : i32 to vector<8x128xi32>
    %23 = arith.cmpi eq, %21, %22 : vector<8x128xi32>
    %c1_i32 = arith.constant 1 : i32
    %24 = vector.broadcast %c1_i32 : i32 to vector<8x128xi32>
    %25 = arith.cmpi eq, %21, %24 : vector<8x128xi32>
    %cst_11 = arith.constant 0.000000e+00 : f32
    %26 = vector.shape_cast %20 : vector<1x128xf32> to vector<1x128xf32>
    %27 = vector.broadcast %26 : vector<1x128xf32> to vector<8x128xf32>
    %28 = vector.broadcast %cst_11 : f32 to vector<8x128xf32>
    %29 = arith.select %25, %27, %28 : vector<8x128xi1>, vector<8x128xf32>
    %30 = vector.shape_cast %17 : vector<1x128xf32> to vector<1x128xf32>
    %31 = vector.broadcast %30 : vector<1x128xf32> to vector<8x128xf32>
    %32 = arith.select %23, %31, %29 : vector<8x128xi1>, vector<8x128xf32>
    %c0_12 = arith.constant 0 : index
    %c0_13 = arith.constant 0 : index
    %c0_14 = arith.constant 0 : index
    %33 = vector.load %arg5[%c0_12, %c0_13, %c0_14] : memref<1x8x128xf32, #tpu.memory_space<vmem>>, vector<1x8x128xf32>
    %34 = vector.shape_cast %33 : vector<1x8x128xf32> to vector<8x128xf32>
    %35 = vector.shape_cast %32 : vector<8x128xf32> to vector<1x8x128xf32>
    tpu.vector_store %arg5[%c0_12, %c0_13, %c0_14], %35 {strides = array<i32>} : memref<1x8x128xf32, #tpu.memory_space<vmem>>, vector<1x8x128xf32>,
    return
  }
  func.func @transform_0(%arg0: i32) -> (i32, i32) {
    %c0_i32 = arith.constant 0 : i32
    %c0_i32_0 = arith.constant 0 : i32
    return %arg0, %c0_i32 : i32, i32
  }
  func.func @transform_1(%arg0: i32) -> (i32, i32) {
    %c0_i32 = arith.constant 0 : i32
    %c0_i32_0 = arith.constant 0 : i32
    %c0_i32_1 = arith.constant 0 : i32
    return %c0_i32, %c0_i32_0 : i32, i32
  }
  func.func @transform_2(%arg0: i32) -> (i32, i32) {
    %c0_i32 = arith.constant 0 : i32
    %c0_i32_0 = arith.constant 0 : i32
    %c0_i32_1 = arith.constant 0 : i32
    return %c0_i32, %c0_i32_0 : i32, i32
  }
  func.func @transform_3(%arg0: i32) -> (i32, i32) {
    %c0_i32 = arith.constant 0 : i32
    %c0_i32_0 = arith.constant 0 : i32
    return %arg0, %c0_i32 : i32, i32
  }
  func.func @transform_4(%arg0: i32) -> (i32, i32, i32) {
    %c0_i32 = arith.constant 0 : i32
    %c0_i32_0 = arith.constant 0 : i32
    %c0_i32_1 = arith.constant 0 : i32
    return %arg0, %c0_i32, %c0_i32_0 : i32, i32, i32
  }
}

module attributes {stable_mosaic.version = 11 : i64} {
  func.func @_bn_relu_kernel(%arg0: i32, %arg1: memref<200x128xbf16, #tpu.memory_space<vmem>>, %arg2: memref<1x8x128xf32, #tpu.memory_space<vmem>>, %arg3: memref<1x128xf32, #tpu.memory_space<vmem>>, %arg4: memref<1x128xf32, #tpu.memory_space<vmem>>, %arg5: memref<200x128xbf16, #tpu.memory_space<vmem>>) attributes {dimension_semantics = [#tpu.dimension_semantics<parallel>], iteration_bounds = array<i64: 1>, scalar_prefetch = 0 : i64, scratch_operands = 0 : i64, tpu.core_type = #tpu.core_type<tc>, window_params = [{transform_indices = @transform_0, window_bounds = array<i64: 200, 128>}, {pipeline_mode = #tpu.pipeline_mode<synchronous>, transform_indices = @transform_1, window_bounds = array<i64: 1, 8, 128>}, {pipeline_mode = #tpu.pipeline_mode<synchronous>, transform_indices = @transform_2, window_bounds = array<i64: 1, 128>}, {pipeline_mode = #tpu.pipeline_mode<synchronous>, transform_indices = @transform_3, window_bounds = array<i64: 1, 128>}, {transform_indices = @transform_4, window_bounds = array<i64: 200, 128>}]} {
    %c0 = arith.constant 0 : index
    %c0_0 = arith.constant 0 : index
    %c0_1 = arith.constant 0 : index
    %0 = vector.load %arg2[%c0, %c0_0, %c0_1] : memref<1x8x128xf32, #tpu.memory_space<vmem>>, vector<1x8x128xf32>
    %1 = vector.extract_strided_slice %0 {offsets = [0, 0, 0], sizes = [1, 1, 128], strides = [1, 1, 1]} : vector<1x8x128xf32> to vector<1x1x128xf32>
    %2 = vector.shape_cast %1 : vector<1x1x128xf32> to vector<1x128xf32>
    %cst = arith.constant dense<0.000000e+00> : vector<128xf32>
    %3 = vector.multi_reduction <add>, %2, %cst [0] : vector<1x128xf32> to vector<128xf32>
    %4 = vector.shape_cast %3 : vector<128xf32> to vector<1x128xf32>
    %5 = vector.extract_strided_slice %0 {offsets = [0, 1, 0], sizes = [1, 1, 128], strides = [1, 1, 1]} : vector<1x8x128xf32> to vector<1x1x128xf32>
    %6 = vector.shape_cast %5 : vector<1x1x128xf32> to vector<1x128xf32>
    %cst_2 = arith.constant dense<0.000000e+00> : vector<128xf32>
    %7 = vector.multi_reduction <add>, %6, %cst_2 [0] : vector<1x128xf32> to vector<128xf32>
    %8 = vector.shape_cast %7 : vector<128xf32> to vector<1x128xf32>
    %cst_3 = arith.constant 5.000000e-03 : f32
    %9 = vector.broadcast %cst_3 : f32 to vector<1x128xf32>
    %10 = arith.mulf %4, %9 : vector<1x128xf32>
    %cst_4 = arith.constant 5.000000e-03 : f32
    %11 = vector.broadcast %cst_4 : f32 to vector<1x128xf32>
    %12 = arith.mulf %8, %11 : vector<1x128xf32>
    %13 = arith.mulf %10, %10 : vector<1x128xf32>
    %14 = arith.subf %12, %13 : vector<1x128xf32>
    %cst_5 = arith.constant 0.000000e+00 : f32
    %15 = vector.broadcast %cst_5 : f32 to vector<1x128xf32>
    %16 = arith.maximumf %14, %15 : vector<1x128xf32>
    %c0_6 = arith.constant 0 : index
    %c0_7 = arith.constant 0 : index
    %17 = vector.load %arg3[%c0_6, %c0_7] : memref<1x128xf32, #tpu.memory_space<vmem>>, vector<1x128xf32>
    %cst_8 = arith.constant 9.99999974E-6 : f32
    %18 = vector.broadcast %cst_8 : f32 to vector<1x128xf32>
    %19 = arith.addf %16, %18 : vector<1x128xf32>
    %20 = math.rsqrt %19 : vector<1x128xf32>
    %21 = arith.mulf %17, %20 : vector<1x128xf32>
    %c0_9 = arith.constant 0 : index
    %c0_10 = arith.constant 0 : index
    %22 = vector.load %arg4[%c0_9, %c0_10] : memref<1x128xf32, #tpu.memory_space<vmem>>, vector<1x128xf32>
    %23 = arith.mulf %10, %21 : vector<1x128xf32>
    %24 = arith.subf %22, %23 : vector<1x128xf32>
    %c0_11 = arith.constant 0 : index
    %c0_12 = arith.constant 0 : index
    %25 = vector.load %arg1[%c0_11, %c0_12] : memref<200x128xbf16, #tpu.memory_space<vmem>>, vector<200x128xbf16>
    %26 = arith.extf %25 : vector<200x128xbf16> to vector<200x128xf32>
    %27 = vector.broadcast %21 : vector<1x128xf32> to vector<200x128xf32>
    %28 = arith.mulf %26, %27 : vector<200x128xf32>
    %29 = vector.broadcast %24 : vector<1x128xf32> to vector<200x128xf32>
    %30 = arith.addf %28, %29 : vector<200x128xf32>
    %cst_13 = arith.constant 0.000000e+00 : f32
    %31 = vector.broadcast %cst_13 : f32 to vector<200x128xf32>
    %32 = arith.maximumf %30, %31 : vector<200x128xf32>
    %33 = arith.truncf %32 : vector<200x128xf32> to vector<200x128xbf16>
    %c0_14 = arith.constant 0 : index
    %c0_15 = arith.constant 0 : index
    %34 = vector.load %arg5[%c0_14, %c0_15] : memref<200x128xbf16, #tpu.memory_space<vmem>>, vector<200x128xbf16>
    tpu.vector_store %arg5[%c0_14, %c0_15], %33 {strides = array<i32>} : memref<200x128xbf16, #tpu.memory_space<vmem>>, vector<200x128xbf16>,
    return
  }
  func.func @transform_0(%arg0: i32) -> (i32, i32) {
    %c0_i32 = arith.constant 0 : i32
    %c0_i32_0 = arith.constant 0 : i32
    return %arg0, %c0_i32 : i32, i32
  }
  func.func @transform_1(%arg0: i32) -> (i32, i32, i32) {
    %c0_i32 = arith.constant 0 : i32
    %c0_i32_0 = arith.constant 0 : i32
    %c0_i32_1 = arith.constant 0 : i32
    %c0_i32_2 = arith.constant 0 : i32
    return %c0_i32, %c0_i32_0, %c0_i32_1 : i32, i32, i32
  }
  func.func @transform_2(%arg0: i32) -> (i32, i32) {
    %c0_i32 = arith.constant 0 : i32
    %c0_i32_0 = arith.constant 0 : i32
    %c0_i32_1 = arith.constant 0 : i32
    return %c0_i32, %c0_i32_0 : i32, i32
  }
  func.func @transform_3(%arg0: i32) -> (i32, i32) {
    %c0_i32 = arith.constant 0 : i32
    %c0_i32_0 = arith.constant 0 : i32
    %c0_i32_1 = arith.constant 0 : i32
    return %c0_i32, %c0_i32_0 : i32, i32
  }
  func.func @transform_4(%arg0: i32) -> (i32, i32) {
    %c0_i32 = arith.constant 0 : i32
    %c0_i32_0 = arith.constant 0 : i32
    return %arg0, %c0_i32 : i32, i32
  }
}

module attributes {stable_mosaic.version = 11 : i64} {
  func.func @_matmul_stats_kernel(%arg0: i32, %arg1: memref<128x640xbf16, #tpu.memory_space<vmem>>, %arg2: memref<640x128xbf16, #tpu.memory_space<vmem>>, %arg3: memref<1x128xf32, #tpu.memory_space<vmem>>, %arg4: memref<128x128xbf16, #tpu.memory_space<vmem>>, %arg5: memref<1x8x128xf32, #tpu.memory_space<vmem>>) attributes {dimension_semantics = [#tpu.dimension_semantics<parallel>], iteration_bounds = array<i64: 1>, scalar_prefetch = 0 : i64, scratch_operands = 0 : i64, tpu.core_type = #tpu.core_type<tc>, window_params = [{transform_indices = @transform_0, window_bounds = array<i64: 128, 640>}, {pipeline_mode = #tpu.pipeline_mode<synchronous>, transform_indices = @transform_1, window_bounds = array<i64: 640, 128>}, {pipeline_mode = #tpu.pipeline_mode<synchronous>, transform_indices = @transform_2, window_bounds = array<i64: 1, 128>}, {transform_indices = @transform_3, window_bounds = array<i64: 128, 128>}, {transform_indices = @transform_4, window_bounds = array<i64: 1, 8, 128>}]} {
    %c0 = arith.constant 0 : index
    %c0_0 = arith.constant 0 : index
    %0 = vector.load %arg1[%c0, %c0_0] : memref<128x640xbf16, #tpu.memory_space<vmem>>, vector<128x640xbf16>
    %c0_1 = arith.constant 0 : index
    %c0_2 = arith.constant 0 : index
    %1 = vector.load %arg2[%c0_1, %c0_2] : memref<640x128xbf16, #tpu.memory_space<vmem>>, vector<640x128xbf16>
    %cst = arith.constant dense<0.000000e+00> : vector<128x128xf32>
    %2 = tpu.matmul %0, %1, %cst {dimension_numbers = #tpu.dot_dimension_numbers<[1], [0], [0], [1], [0, 0, 1, 1], [], []>} : vector<128x640xbf16>, vector<640x128xbf16>, vector<128x128xf32> -> vector<128x128xf32>
    %c0_3 = arith.constant 0 : index
    %c0_4 = arith.constant 0 : index
    %3 = vector.load %arg3[%c0_3, %c0_4] : memref<1x128xf32, #tpu.memory_space<vmem>>, vector<1x128xf32>
    %4 = vector.broadcast %3 : vector<1x128xf32> to vector<128x128xf32>
    %5 = arith.addf %2, %4 : vector<128x128xf32>
    %6 = arith.truncf %5 : vector<128x128xf32> to vector<128x128xbf16>
    %c0_5 = arith.constant 0 : index
    %c0_6 = arith.constant 0 : index
    %7 = vector.load %arg4[%c0_5, %c0_6] : memref<128x128xbf16, #tpu.memory_space<vmem>>, vector<128x128xbf16>
    tpu.vector_store %arg4[%c0_5, %c0_6], %6 {strides = array<i32>} : memref<128x128xbf16, #tpu.memory_space<vmem>>, vector<128x128xbf16>,
    %8 = tpu.iota {dimensions = array<i32: 0>} : vector<128x128xi32>
    %c128_i32 = arith.constant 128 : i32
    %9 = arith.muli %arg0, %c128_i32 : i32
    %10 = vector.broadcast %9 : i32 to vector<128x128xi32>
    %11 = arith.addi %8, %10 : vector<128x128xi32>
    %c128_i32_7 = arith.constant 128 : i32
    %12 = vector.broadcast %c128_i32_7 : i32 to vector<128x128xi32>
    %13 = arith.cmpi slt, %11, %12 : vector<128x128xi32>
    %cst_8 = arith.constant 0.000000e+00 : f32
    %14 = vector.broadcast %cst_8 : f32 to vector<128x128xf32>
    %15 = arith.select %13, %5, %14 : vector<128x128xi1>, vector<128x128xf32>
    %cst_9 = arith.constant dense<0.000000e+00> : vector<128xf32>
    %16 = vector.multi_reduction <add>, %15, %cst_9 [0] : vector<128x128xf32> to vector<128xf32>
    %17 = vector.shape_cast %16 : vector<128xf32> to vector<1x128xf32>
    %18 = arith.mulf %15, %15 : vector<128x128xf32>
    %cst_10 = arith.constant dense<0.000000e+00> : vector<128xf32>
    %19 = vector.multi_reduction <add>, %18, %cst_10 [0] : vector<128x128xf32> to vector<128xf32>
    %20 = vector.shape_cast %19 : vector<128xf32> to vector<1x128xf32>
    %21 = tpu.iota {dimensions = array<i32: 0>} : vector<8x128xi32>
    %c0_i32 = arith.constant 0 : i32
    %22 = vector.broadcast %c0_i32 : i32 to vector<8x128xi32>
    %23 = arith.cmpi eq, %21, %22 : vector<8x128xi32>
    %c1_i32 = arith.constant 1 : i32
    %24 = vector.broadcast %c1_i32 : i32 to vector<8x128xi32>
    %25 = arith.cmpi eq, %21, %24 : vector<8x128xi32>
    %cst_11 = arith.constant 0.000000e+00 : f32
    %26 = vector.shape_cast %20 : vector<1x128xf32> to vector<1x128xf32>
    %27 = vector.broadcast %26 : vector<1x128xf32> to vector<8x128xf32>
    %28 = vector.broadcast %cst_11 : f32 to vector<8x128xf32>
    %29 = arith.select %25, %27, %28 : vector<8x128xi1>, vector<8x128xf32>
    %30 = vector.shape_cast %17 : vector<1x128xf32> to vector<1x128xf32>
    %31 = vector.broadcast %30 : vector<1x128xf32> to vector<8x128xf32>
    %32 = arith.select %23, %31, %29 : vector<8x128xi1>, vector<8x128xf32>
    %c0_12 = arith.constant 0 : index
    %c0_13 = arith.constant 0 : index
    %c0_14 = arith.constant 0 : index
    %33 = vector.load %arg5[%c0_12, %c0_13, %c0_14] : memref<1x8x128xf32, #tpu.memory_space<vmem>>, vector<1x8x128xf32>
    %34 = vector.shape_cast %33 : vector<1x8x128xf32> to vector<8x128xf32>
    %35 = vector.shape_cast %32 : vector<8x128xf32> to vector<1x8x128xf32>
    tpu.vector_store %arg5[%c0_12, %c0_13, %c0_14], %35 {strides = array<i32>} : memref<1x8x128xf32, #tpu.memory_space<vmem>>, vector<1x8x128xf32>,
    return
  }
  func.func @transform_0(%arg0: i32) -> (i32, i32) {
    %c0_i32 = arith.constant 0 : i32
    %c0_i32_0 = arith.constant 0 : i32
    return %arg0, %c0_i32 : i32, i32
  }
  func.func @transform_1(%arg0: i32) -> (i32, i32) {
    %c0_i32 = arith.constant 0 : i32
    %c0_i32_0 = arith.constant 0 : i32
    %c0_i32_1 = arith.constant 0 : i32
    return %c0_i32, %c0_i32_0 : i32, i32
  }
  func.func @transform_2(%arg0: i32) -> (i32, i32) {
    %c0_i32 = arith.constant 0 : i32
    %c0_i32_0 = arith.constant 0 : i32
    %c0_i32_1 = arith.constant 0 : i32
    return %c0_i32, %c0_i32_0 : i32, i32
  }
  func.func @transform_3(%arg0: i32) -> (i32, i32) {
    %c0_i32 = arith.constant 0 : i32
    %c0_i32_0 = arith.constant 0 : i32
    return %arg0, %c0_i32 : i32, i32
  }
  func.func @transform_4(%arg0: i32) -> (i32, i32, i32) {
    %c0_i32 = arith.constant 0 : i32
    %c0_i32_0 = arith.constant 0 : i32
    %c0_i32_1 = arith.constant 0 : i32
    return %arg0, %c0_i32, %c0_i32_0 : i32, i32, i32
  }
}

module attributes {stable_mosaic.version = 11 : i64} {
  func.func @_bn_relu_kernel(%arg0: i32, %arg1: memref<128x128xbf16, #tpu.memory_space<vmem>>, %arg2: memref<1x8x128xf32, #tpu.memory_space<vmem>>, %arg3: memref<1x128xf32, #tpu.memory_space<vmem>>, %arg4: memref<1x128xf32, #tpu.memory_space<vmem>>, %arg5: memref<128x128xbf16, #tpu.memory_space<vmem>>) attributes {dimension_semantics = [#tpu.dimension_semantics<parallel>], iteration_bounds = array<i64: 1>, scalar_prefetch = 0 : i64, scratch_operands = 0 : i64, tpu.core_type = #tpu.core_type<tc>, window_params = [{transform_indices = @transform_0, window_bounds = array<i64: 128, 128>}, {pipeline_mode = #tpu.pipeline_mode<synchronous>, transform_indices = @transform_1, window_bounds = array<i64: 1, 8, 128>}, {pipeline_mode = #tpu.pipeline_mode<synchronous>, transform_indices = @transform_2, window_bounds = array<i64: 1, 128>}, {pipeline_mode = #tpu.pipeline_mode<synchronous>, transform_indices = @transform_3, window_bounds = array<i64: 1, 128>}, {transform_indices = @transform_4, window_bounds = array<i64: 128, 128>}]} {
    %c0 = arith.constant 0 : index
    %c0_0 = arith.constant 0 : index
    %c0_1 = arith.constant 0 : index
    %0 = vector.load %arg2[%c0, %c0_0, %c0_1] : memref<1x8x128xf32, #tpu.memory_space<vmem>>, vector<1x8x128xf32>
    %1 = vector.extract_strided_slice %0 {offsets = [0, 0, 0], sizes = [1, 1, 128], strides = [1, 1, 1]} : vector<1x8x128xf32> to vector<1x1x128xf32>
    %2 = vector.shape_cast %1 : vector<1x1x128xf32> to vector<1x128xf32>
    %cst = arith.constant dense<0.000000e+00> : vector<128xf32>
    %3 = vector.multi_reduction <add>, %2, %cst [0] : vector<1x128xf32> to vector<128xf32>
    %4 = vector.shape_cast %3 : vector<128xf32> to vector<1x128xf32>
    %5 = vector.extract_strided_slice %0 {offsets = [0, 1, 0], sizes = [1, 1, 128], strides = [1, 1, 1]} : vector<1x8x128xf32> to vector<1x1x128xf32>
    %6 = vector.shape_cast %5 : vector<1x1x128xf32> to vector<1x128xf32>
    %cst_2 = arith.constant dense<0.000000e+00> : vector<128xf32>
    %7 = vector.multi_reduction <add>, %6, %cst_2 [0] : vector<1x128xf32> to vector<128xf32>
    %8 = vector.shape_cast %7 : vector<128xf32> to vector<1x128xf32>
    %cst_3 = arith.constant 7.812500e-03 : f32
    %9 = vector.broadcast %cst_3 : f32 to vector<1x128xf32>
    %10 = arith.mulf %4, %9 : vector<1x128xf32>
    %cst_4 = arith.constant 7.812500e-03 : f32
    %11 = vector.broadcast %cst_4 : f32 to vector<1x128xf32>
    %12 = arith.mulf %8, %11 : vector<1x128xf32>
    %13 = arith.mulf %10, %10 : vector<1x128xf32>
    %14 = arith.subf %12, %13 : vector<1x128xf32>
    %cst_5 = arith.constant 0.000000e+00 : f32
    %15 = vector.broadcast %cst_5 : f32 to vector<1x128xf32>
    %16 = arith.maximumf %14, %15 : vector<1x128xf32>
    %c0_6 = arith.constant 0 : index
    %c0_7 = arith.constant 0 : index
    %17 = vector.load %arg3[%c0_6, %c0_7] : memref<1x128xf32, #tpu.memory_space<vmem>>, vector<1x128xf32>
    %cst_8 = arith.constant 9.99999974E-6 : f32
    %18 = vector.broadcast %cst_8 : f32 to vector<1x128xf32>
    %19 = arith.addf %16, %18 : vector<1x128xf32>
    %20 = math.rsqrt %19 : vector<1x128xf32>
    %21 = arith.mulf %17, %20 : vector<1x128xf32>
    %c0_9 = arith.constant 0 : index
    %c0_10 = arith.constant 0 : index
    %22 = vector.load %arg4[%c0_9, %c0_10] : memref<1x128xf32, #tpu.memory_space<vmem>>, vector<1x128xf32>
    %23 = arith.mulf %10, %21 : vector<1x128xf32>
    %24 = arith.subf %22, %23 : vector<1x128xf32>
    %c0_11 = arith.constant 0 : index
    %c0_12 = arith.constant 0 : index
    %25 = vector.load %arg1[%c0_11, %c0_12] : memref<128x128xbf16, #tpu.memory_space<vmem>>, vector<128x128xbf16>
    %26 = arith.extf %25 : vector<128x128xbf16> to vector<128x128xf32>
    %27 = vector.broadcast %21 : vector<1x128xf32> to vector<128x128xf32>
    %28 = arith.mulf %26, %27 : vector<128x128xf32>
    %29 = vector.broadcast %24 : vector<1x128xf32> to vector<128x128xf32>
    %30 = arith.addf %28, %29 : vector<128x128xf32>
    %cst_13 = arith.constant 0.000000e+00 : f32
    %31 = vector.broadcast %cst_13 : f32 to vector<128x128xf32>
    %32 = arith.maximumf %30, %31 : vector<128x128xf32>
    %33 = arith.truncf %32 : vector<128x128xf32> to vector<128x128xbf16>
    %c0_14 = arith.constant 0 : index
    %c0_15 = arith.constant 0 : index
    %34 = vector.load %arg5[%c0_14, %c0_15] : memref<128x128xbf16, #tpu.memory_space<vmem>>, vector<128x128xbf16>
    tpu.vector_store %arg5[%c0_14, %c0_15], %33 {strides = array<i32>} : memref<128x128xbf16, #tpu.memory_space<vmem>>, vector<128x128xbf16>,
    return
  }
  func.func @transform_0(%arg0: i32) -> (i32, i32) {
    %c0_i32 = arith.constant 0 : i32
    %c0_i32_0 = arith.constant 0 : i32
    return %arg0, %c0_i32 : i32, i32
  }
  func.func @transform_1(%arg0: i32) -> (i32, i32, i32) {
    %c0_i32 = arith.constant 0 : i32
    %c0_i32_0 = arith.constant 0 : i32
    %c0_i32_1 = arith.constant 0 : i32
    %c0_i32_2 = arith.constant 0 : i32
    return %c0_i32, %c0_i32_0, %c0_i32_1 : i32, i32, i32
  }
  func.func @transform_2(%arg0: i32) -> (i32, i32) {
    %c0_i32 = arith.constant 0 : i32
    %c0_i32_0 = arith.constant 0 : i32
    %c0_i32_1 = arith.constant 0 : i32
    return %c0_i32, %c0_i32_0 : i32, i32
  }
  func.func @transform_3(%arg0: i32) -> (i32, i32) {
    %c0_i32 = arith.constant 0 : i32
    %c0_i32_0 = arith.constant 0 : i32
    %c0_i32_1 = arith.constant 0 : i32
    return %c0_i32, %c0_i32_0 : i32, i32
  }
  func.func @transform_4(%arg0: i32) -> (i32, i32) {
    %c0_i32 = arith.constant 0 : i32
    %c0_i32_0 = arith.constant 0 : i32
    return %arg0, %c0_i32 : i32, i32
  }
}

module attributes {stable_mosaic.version = 11 : i64} {
  func.func @_fc_fused_kernel(%arg0: i32, %arg1: memref<2x4096xbf16, #tpu.memory_space<vmem>>, %arg2: memref<1024x512xbf16, #tpu.memory_space<vmem>>, %arg3: memref<1x512xf32, #tpu.memory_space<vmem>>, %arg4: memref<512x256xbf16, #tpu.memory_space<vmem>>, %arg5: memref<1x256xf32, #tpu.memory_space<vmem>>, %arg6: memref<256x128xbf16, #tpu.memory_space<vmem>>, %arg7: memref<1x128xf32, #tpu.memory_space<vmem>>, %arg8: memref<2x128xf32, #tpu.memory_space<vmem>>, %arg9: memref<2x512xf32, #tpu.memory_space<vmem>>) attributes {dimension_semantics = [#tpu.dimension_semantics<arbitrary>], iteration_bounds = array<i64: 4>, scalar_prefetch = 0 : i64, scratch_operands = 1 : i64, tpu.core_type = #tpu.core_type<tc>, window_params = [{pipeline_mode = #tpu.pipeline_mode<synchronous>, transform_indices = @transform_0, window_bounds = array<i64: 2, 4096>}, {transform_indices = @transform_1, window_bounds = array<i64: 1024, 512>}, {pipeline_mode = #tpu.pipeline_mode<synchronous>, transform_indices = @transform_2, window_bounds = array<i64: 1, 512>}, {pipeline_mode = #tpu.pipeline_mode<synchronous>, transform_indices = @transform_3, window_bounds = array<i64: 512, 256>}, {pipeline_mode = #tpu.pipeline_mode<synchronous>, transform_indices = @transform_4, window_bounds = array<i64: 1, 256>}, {pipeline_mode = #tpu.pipeline_mode<synchronous>, transform_indices = @transform_5, window_bounds = array<i64: 256, 128>}, {pipeline_mode = #tpu.pipeline_mode<synchronous>, transform_indices = @transform_6, window_bounds = array<i64: 1, 128>}, {pipeline_mode = #tpu.pipeline_mode<synchronous>, transform_indices = @transform_7, window_bounds = array<i64: 2, 128>}]} {
    %c0_i32 = arith.constant 0 : i32
    %0 = arith.cmpi eq, %arg0, %c0_i32 : i32
    %1 = arith.extui %0 : i1 to i32
    %c0_i32_0 = arith.constant 0 : i32
    %2 = arith.cmpi ne, %1, %c0_i32_0 : i32
    scf.if %2 {
      %cst_8 = arith.constant 0.000000e+00 : f32
      %15 = vector.broadcast %cst_8 : f32 to vector<2x512xf32>
      %c0_9 = arith.constant 0 : index
      %c0_10 = arith.constant 0 : index
      %16 = vector.load %arg9[%c0_9, %c0_10] : memref<2x512xf32, #tpu.memory_space<vmem>>, vector<2x512xf32>
      tpu.vector_store %arg9[%c0_9, %c0_10], %15 {strides = array<i32>} : memref<2x512xf32, #tpu.memory_space<vmem>>, vector<2x512xf32>,
    } else {
    }
    %c1024_i32 = arith.constant 1024 : i32
    %3 = arith.muli %arg0, %c1024_i32 : i32
    %4 = tpu.assume_multiple %3, 1024 : i32
    %c0 = arith.constant 0 : index
    %c0_1 = arith.constant 0 : index
    %5 = vector.load %arg9[%c0, %c0_1] : memref<2x512xf32, #tpu.memory_space<vmem>>, vector<2x512xf32>
    %c0_2 = arith.constant 0 : index
    %6 = arith.index_cast %4 : i32 to index
    %7 = vector.load %arg1[%c0_2, %6] : memref<2x4096xbf16, #tpu.memory_space<vmem>>, vector<2x1024xbf16>
    %c0_3 = arith.constant 0 : index
    %c0_4 = arith.constant 0 : index
    %8 = vector.load %arg2[%c0_3, %c0_4] : memref<1024x512xbf16, #tpu.memory_space<vmem>>, vector<1024x512xbf16>
    %cst = arith.constant dense<0.000000e+00> : vector<2x512xf32>
    %9 = tpu.matmul %7, %8, %cst {dimension_numbers = #tpu.dot_dimension_numbers<[1], [0], [0], [1], [0, 0, 1, 1], [], []>} : vector<2x1024xbf16>, vector<1024x512xbf16>, vector<2x512xf32> -> vector<2x512xf32>
    %10 = arith.addf %5, %9 : vector<2x512xf32>
    %c0_5 = arith.constant 0 : index
    %c0_6 = arith.constant 0 : index
    %11 = vector.load %arg9[%c0_5, %c0_6] : memref<2x512xf32, #tpu.memory_space<vmem>>, vector<2x512xf32>
    tpu.vector_store %arg9[%c0_5, %c0_6], %10 {strides = array<i32>} : memref<2x512xf32, #tpu.memory_space<vmem>>, vector<2x512xf32>,
    %c3_i32 = arith.constant 3 : i32
    %12 = arith.cmpi eq, %arg0, %c3_i32 : i32
    %13 = arith.extui %12 : i1 to i32
    %c0_i32_7 = arith.constant 0 : i32
    %14 = arith.cmpi ne, %13, %c0_i32_7 : i32
    scf.if %14 {
      %c0_8 = arith.constant 0 : index
      %c0_9 = arith.constant 0 : index
      %15 = vector.load %arg9[%c0_8, %c0_9] : memref<2x512xf32, #tpu.memory_space<vmem>>, vector<2x512xf32>
      %c0_10 = arith.constant 0 : index
      %c0_11 = arith.constant 0 : index
      %16 = vector.load %arg3[%c0_10, %c0_11] : memref<1x512xf32, #tpu.memory_space<vmem>>, vector<1x512xf32>
      %17 = vector.broadcast %16 : vector<1x512xf32> to vector<2x512xf32>
      %18 = arith.addf %15, %17 : vector<2x512xf32>
      %cst_12 = arith.constant 0.000000e+00 : f32
      %19 = vector.broadcast %cst_12 : f32 to vector<2x512xf32>
      %20 = arith.maximumf %18, %19 : vector<2x512xf32>
      %21 = arith.truncf %20 : vector<2x512xf32> to vector<2x512xbf16>
      %c0_13 = arith.constant 0 : index
      %c0_14 = arith.constant 0 : index
      %22 = vector.load %arg4[%c0_13, %c0_14] : memref<512x256xbf16, #tpu.memory_space<vmem>>, vector<512x256xbf16>
      %cst_15 = arith.constant dense<0.000000e+00> : vector<2x256xf32>
      %23 = tpu.matmul %21, %22, %cst_15 {dimension_numbers = #tpu.dot_dimension_numbers<[1], [0], [0], [1], [0, 0, 1, 1], [], []>} : vector<2x512xbf16>, vector<512x256xbf16>, vector<2x256xf32> -> vector<2x256xf32>
      %c0_16 = arith.constant 0 : index
      %c0_17 = arith.constant 0 : index
      %24 = vector.load %arg5[%c0_16, %c0_17] : memref<1x256xf32, #tpu.memory_space<vmem>>, vector<1x256xf32>
      %25 = vector.broadcast %24 : vector<1x256xf32> to vector<2x256xf32>
      %26 = arith.addf %23, %25 : vector<2x256xf32>
      %cst_18 = arith.constant 0.000000e+00 : f32
      %27 = vector.broadcast %cst_18 : f32 to vector<2x256xf32>
      %28 = arith.maximumf %26, %27 : vector<2x256xf32>
      %29 = arith.truncf %28 : vector<2x256xf32> to vector<2x256xbf16>
      %c0_19 = arith.constant 0 : index
      %c0_20 = arith.constant 0 : index
      %30 = vector.load %arg6[%c0_19, %c0_20] : memref<256x128xbf16, #tpu.memory_space<vmem>>, vector<256x128xbf16>
      %cst_21 = arith.constant dense<0.000000e+00> : vector<2x128xf32>
      %31 = tpu.matmul %29, %30, %cst_21 {dimension_numbers = #tpu.dot_dimension_numbers<[1], [0], [0], [1], [0, 0, 1, 1], [], []>} : vector<2x256xbf16>, vector<256x128xbf16>, vector<2x128xf32> -> vector<2x128xf32>
      %c0_22 = arith.constant 0 : index
      %c0_23 = arith.constant 0 : index
      %32 = vector.load %arg7[%c0_22, %c0_23] : memref<1x128xf32, #tpu.memory_space<vmem>>, vector<1x128xf32>
      %33 = vector.broadcast %32 : vector<1x128xf32> to vector<2x128xf32>
      %34 = arith.addf %31, %33 : vector<2x128xf32>
      %c0_24 = arith.constant 0 : index
      %c0_25 = arith.constant 0 : index
      %35 = vector.load %arg8[%c0_24, %c0_25] : memref<2x128xf32, #tpu.memory_space<vmem>>, vector<2x128xf32>
      tpu.vector_store %arg8[%c0_24, %c0_25], %34 {strides = array<i32>} : memref<2x128xf32, #tpu.memory_space<vmem>>, vector<2x128xf32>,
    } else {
    }
    return
  }
  func.func @transform_0(%arg0: i32) -> (i32, i32) {
    %c0_i32 = arith.constant 0 : i32
    %c0_i32_0 = arith.constant 0 : i32
    %c0_i32_1 = arith.constant 0 : i32
    return %c0_i32, %c0_i32_0 : i32, i32
  }
  func.func @transform_1(%arg0: i32) -> (i32, i32) {
    %c0_i32 = arith.constant 0 : i32
    %c0_i32_0 = arith.constant 0 : i32
    return %arg0, %c0_i32 : i32, i32
  }
  func.func @transform_2(%arg0: i32) -> (i32, i32) {
    %c0_i32 = arith.constant 0 : i32
    %c0_i32_0 = arith.constant 0 : i32
    %c0_i32_1 = arith.constant 0 : i32
    return %c0_i32, %c0_i32_0 : i32, i32
  }
  func.func @transform_3(%arg0: i32) -> (i32, i32) {
    %c0_i32 = arith.constant 0 : i32
    %c0_i32_0 = arith.constant 0 : i32
    %c0_i32_1 = arith.constant 0 : i32
    return %c0_i32, %c0_i32_0 : i32, i32
  }
  func.func @transform_4(%arg0: i32) -> (i32, i32) {
    %c0_i32 = arith.constant 0 : i32
    %c0_i32_0 = arith.constant 0 : i32
    %c0_i32_1 = arith.constant 0 : i32
    return %c0_i32, %c0_i32_0 : i32, i32
  }
  func.func @transform_5(%arg0: i32) -> (i32, i32) {
    %c0_i32 = arith.constant 0 : i32
    %c0_i32_0 = arith.constant 0 : i32
    %c0_i32_1 = arith.constant 0 : i32
    return %c0_i32, %c0_i32_0 : i32, i32
  }
  func.func @transform_6(%arg0: i32) -> (i32, i32) {
    %c0_i32 = arith.constant 0 : i32
    %c0_i32_0 = arith.constant 0 : i32
    %c0_i32_1 = arith.constant 0 : i32
    return %c0_i32, %c0_i32_0 : i32, i32
  }
  func.func @transform_7(%arg0: i32) -> (i32, i32) {
    %c0_i32 = arith.constant 0 : i32
    %c0_i32_0 = arith.constant 0 : i32
    %c0_i32_1 = arith.constant 0 : i32
    return %c0_i32, %c0_i32_0 : i32, i32
  }
}

</mosaic_0001>

<llo_original>
// kernel: _lambda_.8
$region0: #{_lambda_.8}
  #allocation0 [shape = 'u32[]', space=smem, size = 0x4, offset = 0x4, fixed_abs, tag = 'smem constant byte address 0x4 - core index']
  #allocation1 [shape = 'u32[144,128]{1,0:T(1,128)}', space=vmem, size = 0x12000, scoped, tag = 'internal scratch']
  %s0 = inlined_call_operand.vmem [shape: bf16[1058,128], index: 0, kind: input, shape index: {}]
  %s1 = inlined_call_operand.vmem [shape: f32[1,8,128], index: 1, kind: input, shape index: {}]
  %s2 = inlined_call_operand.vmem [shape: f32[1,128], index: 2, kind: input, shape index: {}]
  %s3 = inlined_call_operand.vmem [shape: f32[1,128], index: 3, kind: input, shape index: {}]
  %s4 = inlined_call_operand.vmem [shape: bf16[1058,128], index: 4, kind: output, shape index: {}]
  %s5 = sld [smem:[#allocation0]]
  $region26: #{_lambda_.8} parent=0
    _
  %s7 = ssub.s32 1, %s5
  %s8 = scalar_select 0, %s7, %s5
  // Predicated region
  $region2: #{_lambda_.8} parent=0 // pred_check
    _
  $region3: #{_lambda_.8} parent=0 // pred_check_branch
    %10 = sbr.rel (0) target = $region5
  $region4: #{_lambda_.8} parent=0 // pred_region
    _
  $region5: #{_lambda_.8} parent=0 // pred_fallthru
    _
  // Predicated region
  $region6: #{_lambda_.8} parent=0 // pred_check
    _
  $region7: #{_lambda_.8} parent=0 // pred_check_branch
    %12 = sbr.rel (0) target = $region9
  $region8: #{_lambda_.8} parent=0 // pred_region
    _
  $region9: #{_lambda_.8} parent=0 // pred_fallthru
    _
  // Predicated region
  $region10: #{_lambda_.8} parent=0 // pred_check
    _
  $region11: #{_lambda_.8} parent=0 // pred_check_branch
    %14 = sbr.rel (0) target = $region13
  $region12: #{_lambda_.8} parent=0 // pred_region
    _
  $region13: #{_lambda_.8} parent=0 // pred_fallthru
    _
  // Predicated region
  $region14: #{_lambda_.8} parent=0 // pred_check
    _
  $region15: #{_lambda_.8} parent=0 // pred_check_branch
    %16 = sbr.rel (0) target = $region17
  $region16: #{_lambda_.8} parent=0 // pred_region
    _
  $region17: #{_lambda_.8} parent=0 // pred_fallthru
    _
  %v17 = vld [vmem:[%s1] sm:$0xff]
  %v18 = vadd.f32 %v17, 0.0
  %v19 = vmul.f32 %v18, 0.0009451796
  %v20 = vmul.f32 %v19, %v19
  %v22 = vrot.slane %v20, 7
  %v24 = vsub.f32 %v19, %v22
  %v25 = vmax.f32 %v24, 0.0
  %v26 = vld [vmem:[%s2] sm:$0x1]
  %v27 = vadd.f32 %v25, 1e-05
  %v28 = vrsqrt.pop %v27
  %v31 = vunpack.c.l.s4 1966171168
  %v32 = vunpack.c.0.s8 %v31
  %v33 = vlaneseq
  %v34 = vshrl.u32 %v33, 7
  %v35 = vsub.s32 %v32, %v34
  %v36 = vrot.slane %v28, %v35
  %v37 = vcombine.high %v36, %v36
  %v39 = vunpack.c.l.s4 1966171168
  %v40 = vunpack.c.0.s8 %v39
  %v41 = vlaneseq
  %v42 = vshrl.u32 %v41, 7
  %v43 = vsub.s32 %v40, %v42
  %v44 = vrot.slane %v37, %v43
  %v46 = vmul.f32 %v26, %v44
  %v47 = vld [vmem:[%s3] sm:$0x1]
  %v48 = vmul.f32 %v19, %v46
  %v49 = vsub.f32 %v47, %v48
  %v50 = vld [vmem:[%s0] sm:$0xf]
  %v51 = vld [vmem:[%s0 + $0x4] sm:$0xf]
  %v52 = vld [vmem:[%s0 + $0x8] sm:$0xf]
  %v53 = vld [vmem:[%s0 + $0xc] sm:$0xf]
  %v54 = vld [vmem:[%s0 + $0x10] sm:$0xf]
  %v55 = vld [vmem:[%s0 + $0x14] sm:$0xf]
  %v56 = vld [vmem:[%s0 + $0x18] sm:$0xf]
  %v57 = vld [vmem:[%s0 + $0x1c] sm:$0xf]
  %v58 = vld [vmem:[%s0 + $0x20] sm:$0xf]
  %v59 = vld [vmem:[%s0 + $0x24] sm:$0xf]
  %v60 = vld [vmem:[%s0 + $0x28] sm:$0xf]
  %v61 = vld [vmem:[%s0 + $0x2c] sm:$0xf]
  %v62 = vld [vmem:[%s0 + $0x30] sm:$0xf]
  %v63 = vld [vmem:[%s0 + $0x34] sm:$0xf]
  %v64 = vld [vmem:[%s0 + $0x38] sm:$0xf]
  %v65 = vld [vmem:[%s0 + $0x3c] sm:$0xf]
  %v66 = vld [vmem:[%s0 + $0x40] sm:$0xf]
  %v67 = vld [vmem:[%s0 + $0x44] sm:$0xf]
  %v68 = vld [vmem:[%s0 + $0x48] sm:$0xf]
  %v69 = vld [vmem:[%s0 + $0x4c] sm:$0xf]
  %v70 = vld [vmem:[%s0 + $0x50] sm:$0xf]
  %v71 = vld [vmem:[%s0 + $0x54] sm:$0xf]
  %v72 = vld [vmem:[%s0 + $0x58] sm:$0xf]
  %v73 = vld [vmem:[%s0 + $0x5c] sm:$0xf]
  %v74 = vld [vmem:[%s0 + $0x60] sm:$0xf]
  %v75 = vld [vmem:[%s0 + $0x64] sm:$0xf]
  %v76 = vld [vmem:[%s0 + $0x68] sm:$0xf]
  %v77 = vld [vmem:[%s0 + $0x6c] sm:$0xf]
  %v78 = vld [vmem:[%s0 + $0x70] sm:$0xf]
  %v79 = vld [vmem:[%s0 + $0x74] sm:$0xf]
  %v80 = vld [vmem:[%s0 + $0x78] sm:$0xf]
  %v81 = vld [vmem:[%s0 + $0x7c] sm:$0xf]
  %v82 = vld [vmem:[%s0 + $0x80] sm:$0xf]
  %v83 = vld [vmem:[%s0 + $0x84] sm:$0xf]
  %v84 = vld [vmem:[%s0 + $0x88] sm:$0xf]
  %v85 = vld [vmem:[%s0 + $0x8c] sm:$0xf]
  %v86 = vld [vmem:[%s0 + $0x90] sm:$0xf]
  %v87 = vld [vmem:[%s0 + $0x94] sm:$0xf]
  %v88 = vld [vmem:[%s0 + $0x98] sm:$0xf]
  %v89 = vld [vmem:[%s0 + $0x9c] sm:$0xf]
  %v90 = vld [vmem:[%s0 + $0xa0] sm:$0xf]
  %v91 = vld [vmem:[%s0 + $0xa4] sm:$0xf]
  %v92 = vld [vmem:[%s0 + $0xa8] sm:$0xf]
  %v93 = vld [vmem:[%s0 + $0xac] sm:$0xf]
  %v94 = vld [vmem:[%s0 + $0xb0] sm:$0xf]
  %v95 = vld [vmem:[%s0 + $0xb4] sm:$0xf]
  %v96 = vld [vmem:[%s0 + $0xb8] sm:$0xf]
  %v97 = vld [vmem:[%s0 + $0xbc] sm:$0xf]
  %v98 = vld [vmem:[%s0 + $0xc0] sm:$0xf]
  %v99 = vld [vmem:[%s0 + $0xc4] sm:$0xf]
  %v100 = vld [vmem:[%s0 + $0xc8] sm:$0xf]
  %v101 = vld [vmem:[%s0 + $0xcc] sm:$0xf]
  %v102 = vld [vmem:[%s0 + $0xd0] sm:$0xf]
  %v103 = vld [vmem:[%s0 + $0xd4] sm:$0xf]
  %v104 = vld [vmem:[%s0 + $0xd8] sm:$0xf]
  %v105 = vld [vmem:[%s0 + $0xdc] sm:$0xf]
  %v106 = vld [vmem:[%s0 + $0xe0] sm:$0xf]
  %v107 = vld [vmem:[%s0 + $0xe4] sm:$0xf]
  %v108 = vld [vmem:[%s0 + $0xe8] sm:$0xf]
  %v109 = vld [vmem:[%s0 + $0xec] sm:$0xf]
  %v110 = vld [vmem:[%s0 + $0xf0] sm:$0xf]
  %v111 = vld [vmem:[%s0 + $0xf4] sm:$0xf]
  %v112 = vld [vmem:[%s0 + $0xf8] sm:$0xf]
  %v113 = vld [vmem:[%s0 + $0xfc] sm:$0xf]
  %v114 = vld [vmem:[%s0 + $0x100] sm:$0xf]
  %v115 = vld [vmem:[%s0 + $0x104] sm:$0xf]
  %v116 = vld [vmem:[%s0 + $0x108] sm:$0xf]
  %v117 = vld [vmem:[%s0 + $0x10c] sm:$0xf]
  %v118 = vld [vmem:[%s0 + $0x110] sm:$0xf]
  %v119 = vld [vmem:[%s0 + $0x114] sm:$0xf]
  %v120 = vld [vmem:[%s0 + $0x118] sm:$0xf]
  %v121 = vld [vmem:[%s0 + $0x11c] sm:$0xf]
  %v122 = vld [vmem:[%s0 + $0x120] sm:$0xf]
  %v123 = vld [vmem:[%s0 + $0x124] sm:$0xf]
  %v124 = vld [vmem:[%s0 + $0x128] sm:$0xf]
  %v125 = vld [vmem:[%s0 + $0x12c] sm:$0xf]
  %v126 = vld [vmem:[%s0 + $0x130] sm:$0xf]
  %v127 = vld [vmem:[%s0 + $0x134] sm:$0xf]
  %v128 = vld [vmem:[%s0 + $0x138] sm:$0xf]
  %v129 = vld [vmem:[%s0 + $0x13c] sm:$0xf]
  %v130 = vld [vmem:[%s0 + $0x140] sm:$0xf]
  %v131 = vld [vmem:[%s0 + $0x144] sm:$0xf]
  %v132 = vld [vmem:[%s0 + $0x148] sm:$0xf]
  %v133 = vld [vmem:[%s0 + $0x14c] sm:$0xf]
  %v134 = vld [vmem:[%s0 + $0x150] sm:$0xf]
  %v135 = vld [vmem:[%s0 + $0x154] sm:$0xf]
  %v136 = vld [vmem:[%s0 + $0x158] sm:$0xf]
  %v137 = vld [vmem:[%s0 + $0x15c] sm:$0xf]
  %v138 = vld [vmem:[%s0 + $0x160] sm:$0xf]
  %v139 = vld [vmem:[%s0 + $0x164] sm:$0xf]
  %v140 = vld [vmem:[%s0 + $0x168] sm:$0xf]
  %v141 = vld [vmem:[%s0 + $0x16c] sm:$0xf]
  %v142 = vld [vmem:[%s0 + $0x170] sm:$0xf]
  %v143 = vld [vmem:[%s0 + $0x174] sm:$0xf]
  %v144 = vld [vmem:[%s0 + $0x178] sm:$0xf]
  %v145 = vld [vmem:[%s0 + $0x17c] sm:$0xf]
  %v146 = vld [vmem:[%s0 + $0x180] sm:$0xf]
  %v147 = vld [vmem:[%s0 + $0x184] sm:$0xf]
  %v148 = vld [vmem:[%s0 + $0x188] sm:$0xf]
  %v149 = vld [vmem:[%s0 + $0x18c] sm:$0xf]
  %v150 = vld [vmem:[%s0 + $0x190] sm:$0xf]
  %v151 = vld [vmem:[%s0 + $0x194] sm:$0xf]
  %v152 = vld [vmem:[%s0 + $0x198] sm:$0xf]
  %v153 = vld [vmem:[%s0 + $0x19c] sm:$0xf]
  %v154 = vld [vmem:[%s0 + $0x1a0] sm:$0xf]
  %v155 = vld [vmem:[%s0 + $0x1a4] sm:$0xf]
  %v156 = vld [vmem:[%s0 + $0x1a8] sm:$0xf]
  %v157 = vld [vmem:[%s0 + $0x1ac] sm:$0xf]
  %v158 = vld [vmem:[%s0 + $0x1b0] sm:$0xf]
  %v159 = vld [vmem:[%s0 + $0x1b4] sm:$0xf]
  %v160 = vld [vmem:[%s0 + $0x1b8] sm:$0xf]
  %v161 = vld [vmem:[%s0 + $0x1bc] sm:$0xf]
  %v162 = vld [vmem:[%s0 + $0x1c0] sm:$0xf]
  %v163 = vld [vmem:[%s0 + $0x1c4] sm:$0xf]
  %v164 = vld [vmem:[%s0 + $0x1c8] sm:$0xf]
  %v165 = vld [vmem:[%s0 + $0x1cc] sm:$0xf]
  %v166 = vld [vmem:[%s0 + $0x1d0] sm:$0xf]
  %v167 = vld [vmem:[%s0 + $0x1d4] sm:$0xf]
  %v168 = vld [vmem:[%s0 + $0x1d8] sm:$0xf]
  %v169 = vld [vmem:[%s0 + $0x1dc] sm:$0xf]
  %v170 = vld [vmem:[%s0 + $0x1e0] sm:$0xf]
  %v171 = vld [vmem:[%s0 + $0x1e4] sm:$0xf]
  %v172 = vld [vmem:[%s0 + $0x1e8] sm:$0xf]
  %v173 = vld [vmem:[%s0 + $0x1ec] sm:$0xf]
  %v174 = vld [vmem:[%s0 + $0x1f0] sm:$0xf]
  %v175 = vld [vmem:[%s0 + $0x1f4] sm:$0xf]
  %v176 = vld [vmem:[%s0 + $0x1f8] sm:$0xf]
  %v177 = vld [vmem:[%s0 + $0x1fc] sm:$0xf]
  %v178 = vld [vmem:[%s0 + $0x200] sm:$0xf]
  %v179 = vld [vmem:[%s0 + $0x204] sm:$0xf]
  %v180 = vld [vmem:[%s0 + $0x208] sm:$0xf]
  %v181 = vld [vmem:[%s0 + $0x20c] sm:$0xf]
  %v182 = vld [vmem:[%s0 + $0x210] sm:$0x1]
  %v183 = vunpack.c.l.bf16 %v50
  %v184 = vunpack.c.l.bf16 %v51
  %v185 = vunpack.c.l.bf16 %v52
  %v186 = vunpack.c.l.bf16 %v53
  %v187 = vunpack.c.l.bf16 %v54
  %v188 = vunpack.c.l.bf16 %v55
  %v189 = vunpack.c.l.bf16 %v56
  %v190 = vunpack.c.l.bf16 %v57
  %v191 = vunpack.c.l.bf16 %v58
  %v192 = vunpack.c.l.bf16 %v59
  %v193 = vunpack.c.l.bf16 %v60
  %v194 = vunpack.c.l.bf16 %v61
  %v195 = vunpack.c.l.bf16 %v62
  %v196 = vunpack.c.l.bf16 %v63
  %v197 = vunpack.c.l.bf16 %v64
  %v198 = vunpack.c.l.bf16 %v65
  %v199 = vunpack.c.l.bf16 %v66
  %v200 = vunpack.c.l.bf16 %v67
  %v201 = vunpack.c.l.bf16 %v68
  %v202 = vunpack.c.l.bf16 %v69
  %v203 = vunpack.c.l.bf16 %v70
  %v204 = vunpack.c.l.bf16 %v71
  %v205 = vunpack.c.l.bf16 %v72
  %v206 = vunpack.c.l.bf16 %v73
  %v207 = vunpack.c.l.bf16 %v74
  %v208 = vunpack.c.l.bf16 %v75
  %v209 = vunpack.c.l.bf16 %v76
  %v210 = vunpack.c.l.bf16 %v77
  %v211 = vunpack.c.l.bf16 %v78
  %v212 = vunpack.c.l.bf16 %v79
  %v213 = vunpack.c.l.bf16 %v80
  %v214 = vunpack.c.l.bf16 %v81
  %v215 = vunpack.c.l.bf16 %v82
  %v216 = vunpack.c.l.bf16 %v83
  %v217 = vunpack.c.l.bf16 %v84
  %v218 = vunpack.c.l.bf16 %v85
  %v219 = vunpack.c.l.bf16 %v86
  %v220 = vunpack.c.l.bf16 %v87
  %v221 = vunpack.c.l.bf16 %v88
  %v222 = vunpack.c.l.bf16 %v89
  %v223 = vunpack.c.l.bf16 %v90
  %v224 = vunpack.c.l.bf16 %v91
  %v225 = vunpack.c.l.bf16 %v92
  %v226 = vunpack.c.l.bf16 %v93
  %v227 = vunpack.c.l.bf16 %v94
  %v228 = vunpack.c.l.bf16 %v95
  %v229 = vunpack.c.l.bf16 %v96
  %v230 = vunpack.c.l.bf16 %v97
  %v231 = vunpack.c.l.bf16 %v98
  %v232 = vunpack.c.l.bf16 %v99
  %v233 = vunpack.c.l.bf16 %v100
  %v234 = vunpack.c.l.bf16 %v101
  %v235 = vunpack.c.l.bf16 %v102
  %v236 = vunpack.c.l.bf16 %v103
  %v237 = vunpack.c.l.bf16 %v104
  %v238 = vunpack.c.l.bf16 %v105
  %v239 = vunpack.c.l.bf16 %v106
  %v240 = vunpack.c.l.bf16 %v107
  %v241 = vunpack.c.l.bf16 %v108
  %v242 = vunpack.c.l.bf16 %v109
  %v243 = vunpack.c.l.bf16 %v110
  %v244 = vunpack.c.l.bf16 %v111
  %v245 = vunpack.c.l.bf16 %v112
  %v246 = vunpack.c.l.bf16 %v113
  %v247 = vunpack.c.l.bf16 %v114
  %v248 = vunpack.c.l.bf16 %v115
  %v249 = vunpack.c.l.bf16 %v116
  %v250 = vunpack.c.l.bf16 %v117
  %v251 = vunpack.c.l.bf16 %v118
  %v252 = vunpack.c.l.bf16 %v119
  %v253 = vunpack.c.l.bf16 %v120
  %v254 = vunpack.c.l.bf16 %v121
  %v255 = vunpack.c.l.bf16 %v122
  %v256 = vunpack.c.l.bf16 %v123
  %v257 = vunpack.c.l.bf16 %v124
  %v258 = vunpack.c.l.bf16 %v125
  %v259 = vunpack.c.l.bf16 %v126
  %v260 = vunpack.c.l.bf16 %v127
  %v261 = vunpack.c.l.bf16 %v128
  %v262 = vunpack.c.l.bf16 %v129
  %v263 = vunpack.c.l.bf16 %v130
  %v264 = vunpack.c.l.bf16 %v131
  %v265 = vunpack.c.l.bf16 %v132
  %v266 = vunpack.c.l.bf16 %v133
  %v267 = vunpack.c.l.bf16 %v134
  %v268 = vunpack.c.l.bf16 %v135
  %v269 = vunpack.c.l.bf16 %v136
  %v270 = vunpack.c.l.bf16 %v137
  %v271 = vunpack.c.l.bf16 %v138
  %v272 = vunpack.c.l.bf16 %v139
  %v273 = vunpack.c.l.bf16 %v140
  %v274 = vunpack.c.l.bf16 %v141
  %v275 = vunpack.c.l.bf16 %v142
  %v276 = vunpack.c.l.bf16 %v143
  %v277 = vunpack.c.l.bf16 %v144
  %v278 = vunpack.c.l.bf16 %v145
  %v279 = vunpack.c.l.bf16 %v146
  %v280 = vunpack.c.l.bf16 %v147
  %v281 = vunpack.c.l.bf16 %v148
  %v282 = vunpack.c.l.bf16 %v149
  %v283 = vunpack.c.l.bf16 %v150
  %v284 = vunpack.c.l.bf16 %v151
  %v285 = vunpack.c.l.bf16 %v152
  %v286 = vunpack.c.l.bf16 %v153
  %v287 = vunpack.c.l.bf16 %v154
  %v288 = vunpack.c.l.bf16 %v155
  %v289 = vunpack.c.l.bf16 %v156
  %v290 = vunpack.c.l.bf16 %v157
  %v291 = vunpack.c.l.bf16 %v158
  %v292 = vunpack.c.l.bf16 %v159
  %v293 = vunpack.c.l.bf16 %v160
  %v294 = vunpack.c.l.bf16 %v161
  %v295 = vunpack.c.l.bf16 %v162
  %v296 = vunpack.c.l.bf16 %v163
  %v297 = vunpack.c.l.bf16 %v164
  %v298 = vunpack.c.l.bf16 %v165
  %v299 = vunpack.c.l.bf16 %v166
  %v300 = vunpack.c.l.bf16 %v167
  %v301 = vunpack.c.l.bf16 %v168
  %v302 = vunpack.c.l.bf16 %v169
  %v303 = vunpack.c.l.bf16 %v170
  %v304 = vunpack.c.l.bf16 %v171
  %v305 = vunpack.c.l.bf16 %v172
  %v306 = vunpack.c.l.bf16 %v173
  %v307 = vunpack.c.l.bf16 %v174
  %v308 = vunpack.c.l.bf16 %v175
  %v309 = vunpack.c.l.bf16 %v176
  %v310 = vunpack.c.l.bf16 %v177
  %v311 = vunpack.c.l.bf16 %v178
  %v312 = vunpack.c.l.bf16 %v179
  %v313 = vunpack.c.l.bf16 %v180
  %v314 = vunpack.c.l.bf16 %v181
  %v315 = vunpack.c.l.bf16 %v182
  %v317 = vlaneseq
  %v318 = vshrl.u32 %v317, 7
  %v319 = vsub.s32 0, %v318
  %v320 = vrot.slane %v46, %v319
  %v322 = vmul.f32 %v183, %v320
  %v323 = vmul.f32 %v184, %v320
  %v324 = vmul.f32 %v185, %v320
  %v325 = vmul.f32 %v186, %v320
  %v326 = vmul.f32 %v187, %v320
  %v327 = vmul.f32 %v188, %v320
  %v328 = vmul.f32 %v189, %v320
  %v329 = vmul.f32 %v190, %v320
  %v330 = vmul.f32 %v191, %v320
  %v331 = vmul.f32 %v192, %v320
  %v332 = vmul.f32 %v193, %v320
  %v333 = vmul.f32 %v194, %v320
  %v334 = vmul.f32 %v195, %v320
  %v335 = vmul.f32 %v196, %v320
  %v336 = vmul.f32 %v197, %v320
  %v337 = vmul.f32 %v198, %v320
  %v338 = vmul.f32 %v199, %v320
  %v339 = vmul.f32 %v200, %v320
  %v340 = vmul.f32 %v201, %v320
  %v341 = vmul.f32 %v202, %v320
  %v342 = vmul.f32 %v203, %v320
  %v343 = vmul.f32 %v204, %v320
  %v344 = vmul.f32 %v205, %v320
  %v345 = vmul.f32 %v206, %v320
  %v346 = vmul.f32 %v207, %v320
  %v347 = vmul.f32 %v208, %v320
  %v348 = vmul.f32 %v209, %v320
  %v349 = vmul.f32 %v210, %v320
  %v350 = vmul.f32 %v211, %v320
  %v351 = vmul.f32 %v212, %v320
  %v352 = vmul.f32 %v213, %v320
  %v353 = vmul.f32 %v214, %v320
  %v354 = vmul.f32 %v215, %v320
  %v355 = vmul.f32 %v216, %v320
  %v356 = vmul.f32 %v217, %v320
  %v357 = vmul.f32 %v218, %v320
  %v358 = vmul.f32 %v219, %v320
  %v359 = vmul.f32 %v220, %v320
  %v360 = vmul.f32 %v221, %v320
  %v361 = vmul.f32 %v222, %v320
  %v362 = vmul.f32 %v223, %v320
  %v363 = vmul.f32 %v224, %v320
  %v364 = vmul.f32 %v225, %v320
  %v365 = vmul.f32 %v226, %v320
  %v366 = vmul.f32 %v227, %v320
  %v367 = vmul.f32 %v228, %v320
  %v368 = vmul.f32 %v229, %v320
  %v369 = vmul.f32 %v230, %v320
  %v370 = vmul.f32 %v231, %v320
  %v371 = vmul.f32 %v232, %v320
  %v372 = vmul.f32 %v233, %v320
  %v373 = vmul.f32 %v234, %v320
  %v374 = vmul.f32 %v235, %v320
  %v375 = vmul.f32 %v236, %v320
  %v376 = vmul.f32 %v237, %v320
  %v377 = vmul.f32 %v238, %v320
  %v378 = vmul.f32 %v239, %v320
  %v379 = vmul.f32 %v240, %v320
  %v380 = vmul.f32 %v241, %v320
  %v381 = vmul.f32 %v242, %v320
  %v382 = vmul.f32 %v243, %v320
  %v383 = vmul.f32 %v244, %v320
  %v384 = vmul.f32 %v245, %v320
  %v385 = vmul.f32 %v246, %v320
  %v386 = vmul.f32 %v247, %v320
  %v387 = vmul.f32 %v248, %v320
  %v388 = vmul.f32 %v249, %v320
  %v389 = vmul.f32 %v250, %v320
  %v390 = vmul.f32 %v251, %v320
  %v391 = vmul.f32 %v252, %v320
  %v392 = vmul.f32 %v253, %v320
  %v393 = vmul.f32 %v254, %v320
  %v394 = vmul.f32 %v255, %v320
  %v395 = vmul.f32 %v256, %v320
  %v396 = vmul.f32 %v257, %v320
  %v397 = vmul.f32 %v258, %v320
  %v398 = vmul.f32 %v259, %v320
  %v399 = vmul.f32 %v260, %v320
  %v400 = vmul.f32 %v261, %v320
  %v401 = vmul.f32 %v262, %v320
  %v402 = vmul.f32 %v263, %v320
  %v403 = vmul.f32 %v264, %v320
  %v404 = vmul.f32 %v265, %v320
  %v405 = vmul.f32 %v266, %v320
  %v406 = vmul.f32 %v267, %v320
  %v407 = vmul.f32 %v268, %v320
  %v408 = vmul.f32 %v269, %v320
  %v409 = vmul.f32 %v270, %v320
  %v410 = vmul.f32 %v271, %v320
  %v411 = vmul.f32 %v272, %v320
  %v412 = vmul.f32 %v273, %v320
  %v413 = vmul.f32 %v274, %v320
  %v414 = vmul.f32 %v275, %v320
  %v415 = vmul.f32 %v276, %v320
  %v416 = vmul.f32 %v277, %v320
  %v417 = vmul.f32 %v278, %v320
  %v418 = vmul.f32 %v279, %v320
  %v419 = vmul.f32 %v280, %v320
  %v420 = vmul.f32 %v281, %v320
  %v421 = vmul.f32 %v282, %v320
  %v422 = vmul.f32 %v283, %v320
  %v423 = vmul.f32 %v284, %v320
  %v424 = vmul.f32 %v285, %v320
  %v425 = vmul.f32 %v286, %v320
  %v426 = vmul.f32 %v287, %v320
  %v427 = vmul.f32 %v288, %v320
  %v428 = vmul.f32 %v289, %v320
  %v429 = vmul.f32 %v290, %v320
  %v430 = vmul.f32 %v291, %v320
  %v431 = vmul.f32 %v292, %v320
  %v432 = vmul.f32 %v293, %v320
  %v433 = vmul.f32 %v294, %v320
  %v434 = vmul.f32 %v295, %v320
  %v435 = vmul.f32 %v296, %v320
  %v436 = vmul.f32 %v297, %v320
  %v437 = vmul.f32 %v298, %v320
  %v438 = vmul.f32 %v299, %v320
  %v439 = vmul.f32 %v300, %v320
  %v440 = vmul.f32 %v301, %v320
  %v441 = vmul.f32 %v302, %v320
  %v442 = vmul.f32 %v303, %v320
  %v443 = vmul.f32 %v304, %v320
  %v444 = vmul.f32 %v305, %v320
  %v445 = vmul.f32 %v306, %v320
  %v446 = vmul.f32 %v307, %v320
  %v447 = vmul.f32 %v308, %v320
  %v448 = vmul.f32 %v309, %v320
  %v449 = vmul.f32 %v310, %v320
  %v450 = vmul.f32 %v311, %v320
  %v451 = vmul.f32 %v312, %v320
  %v452 = vmul.f32 %v313, %v320
  %v453 = vmul.f32 %v314, %v320
  %v454 = vmul.f32 %v315, %v320
  %v456 = vlaneseq
  %v457 = vshrl.u32 %v456, 7
  %v458 = vsub.s32 0, %v457
  %v459 = vrot.slane %v49, %v458
  %v461 = vadd.f32 %v322, %v459
  %v462 = vadd.f32 %v323, %v459
  %v463 = vadd.f32 %v324, %v459
  %v464 = vadd.f32 %v325, %v459
  %v465 = vadd.f32 %v326, %v459
  %v466 = vadd.f32 %v327, %v459
  %v467 = vadd.f32 %v328, %v459
  %v468 = vadd.f32 %v329, %v459
  %v469 = vadd.f32 %v330, %v459
  %v470 = vadd.f32 %v331, %v459
  %v471 = vadd.f32 %v332, %v459
  %v472 = vadd.f32 %v333, %v459
  %v473 = vadd.f32 %v334, %v459
  %v474 = vadd.f32 %v335, %v459
  %v475 = vadd.f32 %v336, %v459
  %v476 = vadd.f32 %v337, %v459
  %v477 = vadd.f32 %v338, %v459
  %v478 = vadd.f32 %v339, %v459
  %v479 = vadd.f32 %v340, %v459
  %v480 = vadd.f32 %v341, %v459
  %v481 = vadd.f32 %v342, %v459
  %v482 = vadd.f32 %v343, %v459
  %v483 = vadd.f32 %v344, %v459
  %v484 = vadd.f32 %v345, %v459
  %v485 = vadd.f32 %v346, %v459
  %v486 = vadd.f32 %v347, %v459
  %v487 = vadd.f32 %v348, %v459
  %v488 = vadd.f32 %v349, %v459
  %v489 = vadd.f32 %v350, %v459
  %v490 = vadd.f32 %v351, %v459
  %v491 = vadd.f32 %v352, %v459
  %v492 = vadd.f32 %v353, %v459
  %v493 = vadd.f32 %v354, %v459
  %v494 = vadd.f32 %v355, %v459
  %v495 = vadd.f32 %v356, %v459
  %v496 = vadd.f32 %v357, %v459
  %v497 = vadd.f32 %v358, %v459
  %v498 = vadd.f32 %v359, %v459
  %v499 = vadd.f32 %v360, %v459
  %v500 = vadd.f32 %v361, %v459
  %v501 = vadd.f32 %v362, %v459
  %v502 = vadd.f32 %v363, %v459
  %v503 = vadd.f32 %v364, %v459
  %v504 = vadd.f32 %v365, %v459
  %v505 = vadd.f32 %v366, %v459
  %v506 = vadd.f32 %v367, %v459
  %v507 = vadd.f32 %v368, %v459
  %v508 = vadd.f32 %v369, %v459
  %v509 = vadd.f32 %v370, %v459
  %v510 = vadd.f32 %v371, %v459
  %v511 = vadd.f32 %v372, %v459
  %v512 = vadd.f32 %v373, %v459
  %v513 = vadd.f32 %v374, %v459
  %v514 = vadd.f32 %v375, %v459
  %v515 = vadd.f32 %v376, %v459
  %v516 = vadd.f32 %v377, %v459
  %v517 = vadd.f32 %v378, %v459
  %v518 = vadd.f32 %v379, %v459
  %v519 = vadd.f32 %v380, %v459
  %v520 = vadd.f32 %v381, %v459
  %v521 = vadd.f32 %v382, %v459
  %v522 = vadd.f32 %v383, %v459
  %v523 = vadd.f32 %v384, %v459
  %v524 = vadd.f32 %v385, %v459
  %v525 = vadd.f32 %v386, %v459
  %v526 = vadd.f32 %v387, %v459
  %v527 = vadd.f32 %v388, %v459
  %v528 = vadd.f32 %v389, %v459
  %v529 = vadd.f32 %v390, %v459
  %v530 = vadd.f32 %v391, %v459
  %v531 = vadd.f32 %v392, %v459
  %v532 = vadd.f32 %v393, %v459
  %v533 = vadd.f32 %v394, %v459
  %v534 = vadd.f32 %v395, %v459
  %v535 = vadd.f32 %v396, %v459
  %v536 = vadd.f32 %v397, %v459
  %v537 = vadd.f32 %v398, %v459
  %v538 = vadd.f32 %v399, %v459
  %v539 = vadd.f32 %v400, %v459
  %v540 = vadd.f32 %v401, %v459
  %v541 = vadd.f32 %v402, %v459
  %v542 = vadd.f32 %v403, %v459
  %v543 = vadd.f32 %v404, %v459
  %v544 = vadd.f32 %v405, %v459
  %v545 = vadd.f32 %v406, %v459
  %v546 = vadd.f32 %v407, %v459
  %v547 = vadd.f32 %v408, %v459
  %v548 = vadd.f32 %v409, %v459
  %v549 = vadd.f32 %v410, %v459
  %v550 = vadd.f32 %v411, %v459
  %v551 = vadd.f32 %v412, %v459
  %v552 = vadd.f32 %v413, %v459
  %v553 = vadd.f32 %v414, %v459
  %v554 = vadd.f32 %v415, %v459
  %v555 = vadd.f32 %v416, %v459
  %v556 = vadd.f32 %v417, %v459
  %v557 = vadd.f32 %v418, %v459
  %v558 = vadd.f32 %v419, %v459
  %v559 = vadd.f32 %v420, %v459
  %v560 = vadd.f32 %v421, %v459
  %v561 = vadd.f32 %v422, %v459
  %v562 = vadd.f32 %v423, %v459
  %v563 = vadd.f32 %v424, %v459
  %v564 = vadd.f32 %v425, %v459
  %v565 = vadd.f32 %v426, %v459
  %v566 = vadd.f32 %v427, %v459
  %v567 = vadd.f32 %v428, %v459
  %v568 = vadd.f32 %v429, %v459
  %v569 = vadd.f32 %v430, %v459
  %v570 = vadd.f32 %v431, %v459
  %v571 = vadd.f32 %v432, %v459
  %v572 = vadd.f32 %v433, %v459
  %v573 = vadd.f32 %v434, %v459
  %v574 = vadd.f32 %v435, %v459
  %v575 = vadd.f32 %v436, %v459
  %v576 = vadd.f32 %v437, %v459
  %v577 = vadd.f32 %v438, %v459
  %v578 = vadd.f32 %v439, %v459
  %v579 = vadd.f32 %v440, %v459
  %v580 = vadd.f32 %v441, %v459
  %v581 = vadd.f32 %v442, %v459
  %v582 = vadd.f32 %v443, %v459
  %v583 = vadd.f32 %v444, %v459
  %v584 = vadd.f32 %v445, %v459
  %v585 = vadd.f32 %v446, %v459
  %v586 = vadd.f32 %v447, %v459
  %v587 = vadd.f32 %v448, %v459
  %v588 = vadd.f32 %v449, %v459
  %v589 = vadd.f32 %v450, %v459
  %v590 = vadd.f32 %v451, %v459
  %v591 = vadd.f32 %v452, %v459
  %v592 = vadd.f32 %v453, %v459
  %v593 = vadd.f32 %v454, %v459
  %v594 = vmax.f32 %v461, 0.0
  %v595 = vmax.f32 %v462, 0.0
  %v596 = vmax.f32 %v463, 0.0
  %v597 = vmax.f32 %v464, 0.0
  %v598 = vmax.f32 %v465, 0.0
  %v599 = vmax.f32 %v466, 0.0
  %v600 = vmax.f32 %v467, 0.0
  %v601 = vmax.f32 %v468, 0.0
  %v602 = vmax.f32 %v469, 0.0
  %v603 = vmax.f32 %v470, 0.0
  %v604 = vmax.f32 %v471, 0.0
  %v605 = vmax.f32 %v472, 0.0
  %v606 = vmax.f32 %v473, 0.0
  %v607 = vmax.f32 %v474, 0.0
  %v608 = vmax.f32 %v475, 0.0
  %v609 = vmax.f32 %v476, 0.0
  %v610 = vmax.f32 %v477, 0.0
  %v611 = vmax.f32 %v478, 0.0
  %v612 = vmax.f32 %v479, 0.0
  %v613 = vmax.f32 %v480, 0.0
  %v614 = vmax.f32 %v481, 0.0
  %v615 = vmax.f32 %v482, 0.0
  %v616 = vmax.f32 %v483, 0.0
  %v617 = vmax.f32 %v484, 0.0
  %v618 = vmax.f32 %v485, 0.0
  %v619 = vmax.f32 %v486, 0.0
  %v620 = vmax.f32 %v487, 0.0
  %v621 = vmax.f32 %v488, 0.0
  %v622 = vmax.f32 %v489, 0.0
  %v623 = vmax.f32 %v490, 0.0
  %v624 = vmax.f32 %v491, 0.0
  %v625 = vmax.f32 %v492, 0.0
  %v626 = vmax.f32 %v493, 0.0
  %v627 = vmax.f32 %v494, 0.0
  %v628 = vmax.f32 %v495, 0.0
  %v629 = vmax.f32 %v496, 0.0
  %v630 = vmax.f32 %v497, 0.0
  %v631 = vmax.f32 %v498, 0.0
  %v632 = vmax.f32 %v499, 0.0
  %v633 = vmax.f32 %v500, 0.0
  %v634 = vmax.f32 %v501, 0.0
  %v635 = vmax.f32 %v502, 0.0
  %v636 = vmax.f32 %v503, 0.0
  %v637 = vmax.f32 %v504, 0.0
  %v638 = vmax.f32 %v505, 0.0
  %v639 = vmax.f32 %v506, 0.0
  %v640 = vmax.f32 %v507, 0.0
  %v641 = vmax.f32 %v508, 0.0
  %v642 = vmax.f32 %v509, 0.0
  %v643 = vmax.f32 %v510, 0.0
  %v644 = vmax.f32 %v511, 0.0
  %v645 = vmax.f32 %v512, 0.0
  %v646 = vmax.f32 %v513, 0.0
  %v647 = vmax.f32 %v514, 0.0
  %v648 = vmax.f32 %v515, 0.0
  %v649 = vmax.f32 %v516, 0.0
  %v650 = vmax.f32 %v517, 0.0
  %v651 = vmax.f32 %v518, 0.0
  %v652 = vmax.f32 %v519, 0.0
  %v653 = vmax.f32 %v520, 0.0
  %v654 = vmax.f32 %v521, 0.0
  %v655 = vmax.f32 %v522, 0.0
  %v656 = vmax.f32 %v523, 0.0
  %v657 = vmax.f32 %v524, 0.0
  %v658 = vmax.f32 %v525, 0.0
  %v659 = vmax.f32 %v526, 0.0
  %v660 = vmax.f32 %v527, 0.0
  %v661 = vmax.f32 %v528, 0.0
  %v662 = vmax.f32 %v529, 0.0
  %v663 = vmax.f32 %v530, 0.0
  %v664 = vmax.f32 %v531, 0.0
  %v665 = vmax.f32 %v532, 0.0
  %v666 = vmax.f32 %v533, 0.0
  %v667 = vmax.f32 %v534, 0.0
  %v668 = vmax.f32 %v535, 0.0
  %v669 = vmax.f32 %v536, 0.0
  %v670 = vmax.f32 %v537, 0.0
  %v671 = vmax.f32 %v538, 0.0
  %v672 = vmax.f32 %v539, 0.0
  %v673 = vmax.f32 %v540, 0.0
  %v674 = vmax.f32 %v541, 0.0
  %v675 = vmax.f32 %v542, 0.0
  %v676 = vmax.f32 %v543, 0.0
  %v677 = vmax.f32 %v544, 0.0
  %v678 = vmax.f32 %v545, 0.0
  %v679 = vmax.f32 %v546, 0.0
  %v680 = vmax.f32 %v547, 0.0
  %v681 = vmax.f32 %v548, 0.0
  %v682 = vmax.f32 %v549, 0.0
  %v683 = vmax.f32 %v550, 0.0
  %v684 = vmax.f32 %v551, 0.0
  %v685 = vmax.f32 %v552, 0.0
  %v686 = vmax.f32 %v553, 0.0
  %v687 = vmax.f32 %v554, 0.0
  %v688 = vmax.f32 %v555, 0.0
  %v689 = vmax.f32 %v556, 0.0
  %v690 = vmax.f32 %v557, 0.0
  %v691 = vmax.f32 %v558, 0.0
  %v692 = vmax.f32 %v559, 0.0
  %v693 = vmax.f32 %v560, 0.0
  %v694 = vmax.f32 %v561, 0.0
  %v695 = vmax.f32 %v562, 0.0
  %v696 = vmax.f32 %v563, 0.0
  %v697 = vmax.f32 %v564, 0.0
  %v698 = vmax.f32 %v565, 0.0
  %v699 = vmax.f32 %v566, 0.0
  %v700 = vmax.f32 %v567, 0.0
  %v701 = vmax.f32 %v568, 0.0
  %v702 = vmax.f32 %v569, 0.0
  %v703 = vmax.f32 %v570, 0.0
  %v704 = vmax.f32 %v571, 0.0
  %v705 = vmax.f32 %v572, 0.0
  %v706 = vmax.f32 %v573, 0.0
  %v707 = vmax.f32 %v574, 0.0
  %v708 = vmax.f32 %v575, 0.0
  %v709 = vmax.f32 %v576, 0.0
  %v710 = vmax.f32 %v577, 0.0
  %v711 = vmax.f32 %v578, 0.0
  %v712 = vmax.f32 %v579, 0.0
  %v713 = vmax.f32 %v580, 0.0
  %v714 = vmax.f32 %v581, 0.0
  %v715 = vmax.f32 %v582, 0.0
  %v716 = vmax.f32 %v583, 0.0
  %v717 = vmax.f32 %v584, 0.0
  %v718 = vmax.f32 %v585, 0.0
  %v719 = vmax.f32 %v586, 0.0
  %v720 = vmax.f32 %v587, 0.0
  %v721 = vmax.f32 %v588, 0.0
  %v722 = vmax.f32 %v589, 0.0
  %v723 = vmax.f32 %v590, 0.0
  %v724 = vmax.f32 %v591, 0.0
  %v725 = vmax.f32 %v592, 0.0
  %v726 = vmax.f32 %v593, 0.0
  %v727 = vpack.c.bf16 %v595, %v594
  %v728 = vpack.c.bf16 %v597, %v596
  %v729 = vpack.c.bf16 %v599, %v598
  %v730 = vpack.c.bf16 %v601, %v600
  %v731 = vpack.c.bf16 %v603, %v602
  %v732 = vpack.c.bf16 %v605, %v604
  %v733 = vpack.c.bf16 %v607, %v606
  %v734 = vpack.c.bf16 %v609, %v608
  %v735 = vpack.c.bf16 %v611, %v610
  %v736 = vpack.c.bf16 %v613, %v612
  %v737 = vpack.c.bf16 %v615, %v614
  %v738 = vpack.c.bf16 %v617, %v616
  %v739 = vpack.c.bf16 %v619, %v618
  %v740 = vpack.c.bf16 %v621, %v620
  %v741 = vpack.c.bf16 %v623, %v622
  %v742 = vpack.c.bf16 %v625, %v624
  %v743 = vpack.c.bf16 %v627, %v626
  %v744 = vpack.c.bf16 %v629, %v628
  %v745 = vpack.c.bf16 %v631, %v630
  %v746 = vpack.c.bf16 %v633, %v632
  %v747 = vpack.c.bf16 %v635, %v634
  %v748 = vpack.c.bf16 %v637, %v636
  %v749 = vpack.c.bf16 %v639, %v638
  %v750 = vpack.c.bf16 %v641, %v640
  %v751 = vpack.c.bf16 %v643, %v642
  %v752 = vpack.c.bf16 %v645, %v644
  %v753 = vpack.c.bf16 %v647, %v646
  %v754 = vpack.c.bf16 %v649, %v648
  %v755 = vpack.c.bf16 %v651, %v650
  %v756 = vpack.c.bf16 %v653, %v652
  %v757 = vpack.c.bf16 %v655, %v654
  %v758 = vpack.c.bf16 %v657, %v656
  %v759 = vpack.c.bf16 %v659, %v658
  %v760 = vpack.c.bf16 %v661, %v660
  %v761 = vpack.c.bf16 %v663, %v662
  %v762 = vpack.c.bf16 %v665, %v664
  %v763 = vpack.c.bf16 %v667, %v666
  %v764 = vpack.c.bf16 %v669, %v668
  %v765 = vpack.c.bf16 %v671, %v670
  %v766 = vpack.c.bf16 %v673, %v672
  %v767 = vpack.c.bf16 %v675, %v674
  %v768 = vpack.c.bf16 %v677, %v676
  %v769 = vpack.c.bf16 %v679, %v678
  %v770 = vpack.c.bf16 %v681, %v680
  %v771 = vpack.c.bf16 %v683, %v682
  %v772 = vpack.c.bf16 %v685, %v684
  %v773 = vpack.c.bf16 %v687, %v686
  %v774 = vpack.c.bf16 %v689, %v688
  %v775 = vpack.c.bf16 %v691, %v690
  %v776 = vpack.c.bf16 %v693, %v692
  %v777 = vpack.c.bf16 %v695, %v694
  %v778 = vpack.c.bf16 %v697, %v696
  %v779 = vpack.c.bf16 %v699, %v698
  %v780 = vpack.c.bf16 %v701, %v700
  %v781 = vpack.c.bf16 %v703, %v702
  %v782 = vpack.c.bf16 %v705, %v704
  %v783 = vpack.c.bf16 %v707, %v706
  %v784 = vpack.c.bf16 %v709, %v708
  %v785 = vpack.c.bf16 %v711, %v710
  %v786 = vpack.c.bf16 %v713, %v712
  %v787 = vpack.c.bf16 %v715, %v714
  %v788 = vpack.c.bf16 %v717, %v716
  %v789 = vpack.c.bf16 %v719, %v718
  %v790 = vpack.c.bf16 %v721, %v720
  %v791 = vpack.c.bf16 %v723, %v722
  %v792 = vpack.c.bf16 %v725, %v724
  %v793 = vpack.c.bf16 %v726, %v726
  %v861 = vunpack.c.l.b16 %v727
  %v862 = vunpack.c.h.b16 %v727
  %v863 = vunpack.c.l.b16 %v728
  %v864 = vunpack.c.h.b16 %v728
  %v865 = vunpack.c.l.b16 %v729
  %v866 = vunpack.c.h.b16 %v729
  %v867 = vunpack.c.l.b16 %v730
  %v868 = vunpack.c.h.b16 %v730
  %v869 = vunpack.c.l.b16 %v731
  %v870 = vunpack.c.h.b16 %v731
  %v871 = vunpack.c.l.b16 %v732
  %v872 = vunpack.c.h.b16 %v732
  %v873 = vunpack.c.l.b16 %v733
  %v874 = vunpack.c.h.b16 %v733
  %v875 = vunpack.c.l.b16 %v734
  %v876 = vunpack.c.h.b16 %v734
  %v877 = vunpack.c.l.b16 %v735
  %v878 = vunpack.c.h.b16 %v735
  %v879 = vunpack.c.l.b16 %v736
  %v880 = vunpack.c.h.b16 %v736
  %v881 = vunpack.c.l.b16 %v737
  %v882 = vunpack.c.h.b16 %v737
  %v883 = vunpack.c.l.b16 %v738
  %v884 = vunpack.c.h.b16 %v738
  %v885 = vunpack.c.l.b16 %v739
  %v886 = vunpack.c.h.b16 %v739
  %v887 = vunpack.c.l.b16 %v740
  %v888 = vunpack.c.h.b16 %v740
  %v889 = vunpack.c.l.b16 %v741
  %v890 = vunpack.c.h.b16 %v741
  %v891 = vunpack.c.l.b16 %v742
  %v892 = vunpack.c.h.b16 %v742
  %v893 = vunpack.c.l.b16 %v743
  %v894 = vunpack.c.h.b16 %v743
  %v895 = vunpack.c.l.b16 %v744
  %v896 = vunpack.c.h.b16 %v744
  %v897 = vunpack.c.l.b16 %v745
  %v898 = vunpack.c.h.b16 %v745
  %v899 = vunpack.c.l.b16 %v746
  %v900 = vunpack.c.h.b16 %v746
  %v901 = vunpack.c.l.b16 %v747
  %v902 = vunpack.c.h.b16 %v747
  %v903 = vunpack.c.l.b16 %v748
  %v904 = vunpack.c.h.b16 %v748
  %v905 = vunpack.c.l.b16 %v749
  %v906 = vunpack.c.h.b16 %v749
  %v907 = vunpack.c.l.b16 %v750
  %v908 = vunpack.c.h.b16 %v750
  %v909 = vunpack.c.l.b16 %v751
  %v910 = vunpack.c.h.b16 %v751
  %v911 = vunpack.c.l.b16 %v752
  %v912 = vunpack.c.h.b16 %v752
  %v913 = vunpack.c.l.b16 %v753
  %v914 = vunpack.c.h.b16 %v753
  %v915 = vunpack.c.l.b16 %v754
  %v916 = vunpack.c.h.b16 %v754
  %v917 = vunpack.c.l.b16 %v755
  %v918 = vunpack.c.h.b16 %v755
  %v919 = vunpack.c.l.b16 %v756
  %v920 = vunpack.c.h.b16 %v756
  %v921 = vunpack.c.l.b16 %v757
  %v922 = vunpack.c.h.b16 %v757
  %v923 = vunpack.c.l.b16 %v758
  %v924 = vunpack.c.h.b16 %v758
  %v925 = vunpack.c.l.b16 %v759
  %v926 = vunpack.c.h.b16 %v759
  %v927 = vunpack.c.l.b16 %v760
  %v928 = vunpack.c.h.b16 %v760
  %v929 = vunpack.c.l.b16 %v761
  %v930 = vunpack.c.h.b16 %v761
  %v931 = vunpack.c.l.b16 %v762
  %v932 = vunpack.c.h.b16 %v762
  %v933 = vunpack.c.l.b16 %v763
  %v934 = vunpack.c.h.b16 %v763
  %v935 = vunpack.c.l.b16 %v764
  %v936 = vunpack.c.h.b16 %v764
  %v937 = vunpack.c.l.b16 %v765
  %v938 = vunpack.c.h.b16 %v765
  %v939 = vunpack.c.l.b16 %v766
  %v940 = vunpack.c.h.b16 %v766
  %v941 = vunpack.c.l.b16 %v767
  %v942 = vunpack.c.h.b16 %v767
  %v943 = vunpack.c.l.b16 %v768
  %v944 = vunpack.c.h.b16 %v768
  %v945 = vunpack.c.l.b16 %v769
  %v946 = vunpack.c.h.b16 %v769
  %v947 = vunpack.c.l.b16 %v770
  %v948 = vunpack.c.h.b16 %v770
  %v949 = vunpack.c.l.b16 %v771
  %v950 = vunpack.c.h.b16 %v771
  %v951 = vunpack.c.l.b16 %v772
  %v952 = vunpack.c.h.b16 %v772
  %v953 = vunpack.c.l.b16 %v773
  %v954 = vunpack.c.h.b16 %v773
  %v955 = vunpack.c.l.b16 %v774
  %v956 = vunpack.c.h.b16 %v774
  %v957 = vunpack.c.l.b16 %v775
  %v958 = vunpack.c.h.b16 %v775
  %v959 = vunpack.c.l.b16 %v776
  %v960 = vunpack.c.h.b16 %v776
  %v961 = vunpack.c.l.b16 %v777
  %v962 = vunpack.c.h.b16 %v777
  %v963 = vunpack.c.l.b16 %v778
  %v964 = vunpack.c.h.b16 %v778
  %v965 = vunpack.c.l.b16 %v779
  %v966 = vunpack.c.h.b16 %v779
  %v967 = vunpack.c.l.b16 %v780
  %v968 = vunpack.c.h.b16 %v780
  %v969 = vunpack.c.l.b16 %v781
  %v970 = vunpack.c.h.b16 %v781
  %v971 = vunpack.c.l.b16 %v782
  %v972 = vunpack.c.h.b16 %v782
  %v973 = vunpack.c.l.b16 %v783
  %v974 = vunpack.c.h.b16 %v783
  %v975 = vunpack.c.l.b16 %v784
  %v976 = vunpack.c.h.b16 %v784
  %v977 = vunpack.c.l.b16 %v785
  %v978 = vunpack.c.h.b16 %v785
  %v979 = vunpack.c.l.b16 %v786
  %v980 = vunpack.c.h.b16 %v786
  %v981 = vunpack.c.l.b16 %v787
  %v982 = vunpack.c.h.b16 %v787
  %v983 = vunpack.c.l.b16 %v788
  %v984 = vunpack.c.h.b16 %v788
  %v985 = vunpack.c.l.b16 %v789
  %v986 = vunpack.c.h.b16 %v789
  %v987 = vunpack.c.l.b16 %v790
  %v988 = vunpack.c.h.b16 %v790
  %v989 = vunpack.c.l.b16 %v791
  %v990 = vunpack.c.h.b16 %v791
  %v991 = vunpack.c.l.b16 %v792
  %v992 = vunpack.c.h.b16 %v792
  %v993 = vunpack.c.l.b16 %v793
  %v994 = vpack.c.b16 %v861, %v861
  %v995 = vpack.c.b16 %v862, %v862
  %v996 = vpack.c.b16 %v863, %v863
  %v997 = vpack.c.b16 %v864, %v864
  %v998 = vpack.c.b16 %v865, %v865
  %v999 = vpack.c.b16 %v866, %v866
  %v1000 = vpack.c.b16 %v867, %v867
  %v1001 = vpack.c.b16 %v868, %v868
  %v1002 = vpack.c.b16 %v869, %v869
  %v1003 = vpack.c.b16 %v870, %v870
  %v1004 = vpack.c.b16 %v871, %v871
  %v1005 = vpack.c.b16 %v872, %v872
  %v1006 = vpack.c.b16 %v873, %v873
  %v1007 = vpack.c.b16 %v874, %v874
  %v1008 = vpack.c.b16 %v875, %v875
  %v1009 = vpack.c.b16 %v876, %v876
  %v1010 = vpack.c.b16 %v877, %v877
  %v1011 = vpack.c.b16 %v878, %v878
  %v1012 = vpack.c.b16 %v879, %v879
  %v1013 = vpack.c.b16 %v880, %v880
  %v1014 = vpack.c.b16 %v881, %v881
  %v1015 = vpack.c.b16 %v882, %v882
  %v1016 = vpack.c.b16 %v883, %v883
  %v1017 = vpack.c.b16 %v884, %v884
  %v1018 = vpack.c.b16 %v885, %v885
  %v1019 = vpack.c.b16 %v886, %v886
  %v1020 = vpack.c.b16 %v887, %v887
  %v1021 = vpack.c.b16 %v888, %v888
  %v1022 = vpack.c.b16 %v889, %v889
  %v1023 = vpack.c.b16 %v890, %v890
  %v1024 = vpack.c.b16 %v891, %v891
  %v1025 = vpack.c.b16 %v892, %v892
  %v1026 = vpack.c.b16 %v893, %v893
  %v1027 = vpack.c.b16 %v894, %v894
  %v1028 = vpack.c.b16 %v895, %v895
  %v1029 = vpack.c.b16 %v896, %v896
  %v1030 = vpack.c.b16 %v897, %v897
  %v1031 = vpack.c.b16 %v898, %v898
  %v1032 = vpack.c.b16 %v899, %v899
  %v1033 = vpack.c.b16 %v900, %v900
  %v1034 = vpack.c.b16 %v901, %v901
  %v1035 = vpack.c.b16 %v902, %v902
  %v1036 = vpack.c.b16 %v903, %v903
  %v1037 = vpack.c.b16 %v904, %v904
  %v1038 = vpack.c.b16 %v905, %v905
  %v1039 = vpack.c.b16 %v906, %v906
  %v1040 = vpack.c.b16 %v907, %v907
  %v1041 = vpack.c.b16 %v908, %v908
  %v1042 = vpack.c.b16 %v909, %v909
  %v1043 = vpack.c.b16 %v910, %v910
  %v1044 = vpack.c.b16 %v911, %v911
  %v1045 = vpack.c.b16 %v912, %v912
  %v1046 = vpack.c.b16 %v913, %v913
  %v1047 = vpack.c.b16 %v914, %v914
  %v1048 = vpack.c.b16 %v915, %v915
  %v1049 = vpack.c.b16 %v916, %v916
  %v1050 = vpack.c.b16 %v917, %v917
  %v1051 = vpack.c.b16 %v918, %v918
  %v1052 = vpack.c.b16 %v919, %v919
  %v1053 = vpack.c.b16 %v920, %v920
  %v1054 = vpack.c.b16 %v921, %v921
  %v1055 = vpack.c.b16 %v922, %v922
  %v1056 = vpack.c.b16 %v923, %v923
  %v1057 = vpack.c.b16 %v924, %v924
  %v1058 = vpack.c.b16 %v925, %v925
  %v1059 = vpack.c.b16 %v926, %v926
  %v1060 = vpack.c.b16 %v927, %v927
  %v1061 = vpack.c.b16 %v928, %v928
  %v1062 = vpack.c.b16 %v929, %v929
  %v1063 = vpack.c.b16 %v930, %v930
  %v1064 = vpack.c.b16 %v931, %v931
  %v1065 = vpack.c.b16 %v932, %v932
  %v1066 = vpack.c.b16 %v933, %v933
  %v1067 = vpack.c.b16 %v934, %v934
  %v1068 = vpack.c.b16 %v935, %v935
  %v1069 = vpack.c.b16 %v936, %v936
  %v1070 = vpack.c.b16 %v937, %v937
  %v1071 = vpack.c.b16 %v938, %v938
  %v1072 = vpack.c.b16 %v939, %v939
  %v1073 = vpack.c.b16 %v940, %v940
  %v1074 = vpack.c.b16 %v941, %v941
  %v1075 = vpack.c.b16 %v942, %v942
  %v1076 = vpack.c.b16 %v943, %v943
  %v1077 = vpack.c.b16 %v944, %v944
  %v1078 = vpack.c.b16 %v945, %v945
  %v1079 = vpack.c.b16 %v946, %v946
  %v1080 = vpack.c.b16 %v947, %v947
  %v1081 = vpack.c.b16 %v948, %v948
  %v1082 = vpack.c.b16 %v949, %v949
  %v1083 = vpack.c.b16 %v950, %v950
  %v1084 = vpack.c.b16 %v951, %v951
  %v1085 = vpack.c.b16 %v952, %v952
  %v1086 = vpack.c.b16 %v953, %v953
  %v1087 = vpack.c.b16 %v954, %v954
  %v1088 = vpack.c.b16 %v955, %v955
  %v1089 = vpack.c.b16 %v956, %v956
  %v1090 = vpack.c.b16 %v957, %v957
  %v1091 = vpack.c.b16 %v958, %v958
  %v1092 = vpack.c.b16 %v959, %v959
  %v1093 = vpack.c.b16 %v960, %v960
  %v1094 = vpack.c.b16 %v961, %v961
  %v1095 = vpack.c.b16 %v962, %v962
  %v1096 = vpack.c.b16 %v963, %v963
  %v1097 = vpack.c.b16 %v964, %v964
  %v1098 = vpack.c.b16 %v965, %v965
  %v1099 = vpack.c.b16 %v966, %v966
  %v1100 = vpack.c.b16 %v967, %v967
  %v1101 = vpack.c.b16 %v968, %v968
  %v1102 = vpack.c.b16 %v969, %v969
  %v1103 = vpack.c.b16 %v970, %v970
  %v1104 = vpack.c.b16 %v971, %v971
  %v1105 = vpack.c.b16 %v972, %v972
  %v1106 = vpack.c.b16 %v973, %v973
  %v1107 = vpack.c.b16 %v974, %v974
  %v1108 = vpack.c.b16 %v975, %v975
  %v1109 = vpack.c.b16 %v976, %v976
  %v1110 = vpack.c.b16 %v977, %v977
  %v1111 = vpack.c.b16 %v978, %v978
  %v1112 = vpack.c.b16 %v979, %v979
  %v1113 = vpack.c.b16 %v980, %v980
  %v1114 = vpack.c.b16 %v981, %v981
  %v1115 = vpack.c.b16 %v982, %v982
  %v1116 = vpack.c.b16 %v983, %v983
  %v1117 = vpack.c.b16 %v984, %v984
  %v1118 = vpack.c.b16 %v985, %v985
  %v1119 = vpack.c.b16 %v986, %v986
  %v1120 = vpack.c.b16 %v987, %v987
  %v1121 = vpack.c.b16 %v988, %v988
  %v1122 = vpack.c.b16 %v989, %v989
  %v1123 = vpack.c.b16 %v990, %v990
  %v1124 = vpack.c.b16 %v991, %v991
  %v1125 = vpack.c.b16 %v992, %v992
  %v1126 = vpack.c.b16 %v993, %v993
  %1260 = vst [vmem:[%s4] sm:$0xf] %v994
  %1261 = vst [vmem:[%s4 + $0x4] sm:$0xf] %v995
  %1262 = vst [vmem:[%s4 + $0x8] sm:$0xf] %v996
  %1263 = vst [vmem:[%s4 + $0xc] sm:$0xf] %v997
  %1264 = vst [vmem:[%s4 + $0x10] sm:$0xf] %v998
  %1265 = vst [vmem:[%s4 + $0x14] sm:$0xf] %v999
  %1266 = vst [vmem:[%s4 + $0x18] sm:$0xf] %v1000
  %1267 = vst [vmem:[%s4 + $0x1c] sm:$0xf] %v1001
  %1268 = vst [vmem:[%s4 + $0x20] sm:$0xf] %v1002
  %1269 = vst [vmem:[%s4 + $0x24] sm:$0xf] %v1003
  %1270 = vst [vmem:[%s4 + $0x28] sm:$0xf] %v1004
  %1271 = vst [vmem:[%s4 + $0x2c] sm:$0xf] %v1005
  %1272 = vst [vmem:[%s4 + $0x30] sm:$0xf] %v1006
  %1273 = vst [vmem:[%s4 + $0x34] sm:$0xf] %v1007
  %1274 = vst [vmem:[%s4 + $0x38] sm:$0xf] %v1008
  %1275 = vst [vmem:[%s4 + $0x3c] sm:$0xf] %v1009
  %1276 = vst [vmem:[%s4 + $0x40] sm:$0xf] %v1010
  %1277 = vst [vmem:[%s4 + $0x44] sm:$0xf] %v1011
  %1278 = vst [vmem:[%s4 + $0x48] sm:$0xf] %v1012
  %1279 = vst [vmem:[%s4 + $0x4c] sm:$0xf] %v1013
  %1280 = vst [vmem:[%s4 + $0x50] sm:$0xf] %v1014
  %1281 = vst [vmem:[%s4 + $0x54] sm:$0xf] %v1015
  %1282 = vst [vmem:[%s4 + $0x58] sm:$0xf] %v1016
  %1283 = vst [vmem:[%s4 + $0x5c] sm:$0xf] %v1017
  %1284 = vst [vmem:[%s4 + $0x60] sm:$0xf] %v1018
  %1285 = vst [vmem:[%s4 + $0x64] sm:$0xf] %v1019
  %1286 = vst [vmem:[%s4 + $0x68] sm:$0xf] %v1020
  %1287 = vst [vmem:[%s4 + $0x6c] sm:$0xf] %v1021
  %1288 = vst [vmem:[%s4 + $0x70] sm:$0xf] %v1022
  %1289 = vst [vmem:[%s4 + $0x74] sm:$0xf] %v1023
  %1290 = vst [vmem:[%s4 + $0x78] sm:$0xf] %v1024
  %1291 = vst [vmem:[%s4 + $0x7c] sm:$0xf] %v1025
  %1292 = vst [vmem:[%s4 + $0x80] sm:$0xf] %v1026
  %1293 = vst [vmem:[%s4 + $0x84] sm:$0xf] %v1027
  %1294 = vst [vmem:[%s4 + $0x88] sm:$0xf] %v1028
  %1295 = vst [vmem:[%s4 + $0x8c] sm:$0xf] %v1029
  %1296 = vst [vmem:[%s4 + $0x90] sm:$0xf] %v1030
  %1297 = vst [vmem:[%s4 + $0x94] sm:$0xf] %v1031
  %1298 = vst [vmem:[%s4 + $0x98] sm:$0xf] %v1032
  %1299 = vst [vmem:[%s4 + $0x9c] sm:$0xf] %v1033
  %1300 = vst [vmem:[%s4 + $0xa0] sm:$0xf] %v1034
  %1301 = vst [vmem:[%s4 + $0xa4] sm:$0xf] %v1035
  %1302 = vst [vmem:[%s4 + $0xa8] sm:$0xf] %v1036
  %1303 = vst [vmem:[%s4 + $0xac] sm:$0xf] %v1037
  %1304 = vst [vmem:[%s4 + $0xb0] sm:$0xf] %v1038
  %1305 = vst [vmem:[%s4 + $0xb4] sm:$0xf] %v1039
  %1306 = vst [vmem:[%s4 + $0xb8] sm:$0xf] %v1040
  %1307 = vst [vmem:[%s4 + $0xbc] sm:$0xf] %v1041
  %1308 = vst [vmem:[%s4 + $0xc0] sm:$0xf] %v1042
  %1309 = vst [vmem:[%s4 + $0xc4] sm:$0xf] %v1043
  %1310 = vst [vmem:[%s4 + $0xc8] sm:$0xf] %v1044
  %1311 = vst [vmem:[%s4 + $0xcc] sm:$0xf] %v1045
  %1312 = vst [vmem:[%s4 + $0xd0] sm:$0xf] %v1046
  %1313 = vst [vmem:[%s4 + $0xd4] sm:$0xf] %v1047
  %1314 = vst [vmem:[%s4 + $0xd8] sm:$0xf] %v1048
  %1315 = vst [vmem:[%s4 + $0xdc] sm:$0xf] %v1049
  %1316 = vst [vmem:[%s4 + $0xe0] sm:$0xf] %v1050
  %1317 = vst [vmem:[%s4 + $0xe4] sm:$0xf] %v1051
  %1318 = vst [vmem:[%s4 + $0xe8] sm:$0xf] %v1052
  %1319 = vst [vmem:[%s4 + $0xec] sm:$0xf] %v1053
  %1320 = vst [vmem:[%s4 + $0xf0] sm:$0xf] %v1054
  %1321 = vst [vmem:[%s4 + $0xf4] sm:$0xf] %v1055
  %1322 = vst [vmem:[%s4 + $0xf8] sm:$0xf] %v1056
  %1323 = vst [vmem:[%s4 + $0xfc] sm:$0xf] %v1057
  %1324 = vst [vmem:[%s4 + $0x100] sm:$0xf] %v1058
  %1325 = vst [vmem:[%s4 + $0x104] sm:$0xf] %v1059
  %1326 = vst [vmem:[%s4 + $0x108] sm:$0xf] %v1060
  %1327 = vst [vmem:[%s4 + $0x10c] sm:$0xf] %v1061
  %1328 = vst [vmem:[%s4 + $0x110] sm:$0xf] %v1062
  %1329 = vst [vmem:[%s4 + $0x114] sm:$0xf] %v1063
  %1330 = vst [vmem:[%s4 + $0x118] sm:$0xf] %v1064
  %1331 = vst [vmem:[%s4 + $0x11c] sm:$0xf] %v1065
  %1332 = vst [vmem:[%s4 + $0x120] sm:$0xf] %v1066
  %1333 = vst [vmem:[%s4 + $0x124] sm:$0xf] %v1067
  %1334 = vst [vmem:[%s4 + $0x128] sm:$0xf] %v1068
  %1335 = vst [vmem:[%s4 + $0x12c] sm:$0xf] %v1069
  %1336 = vst [vmem:[%s4 + $0x130] sm:$0xf] %v1070
  %1337 = vst [vmem:[%s4 + $0x134] sm:$0xf] %v1071
  %1338 = vst [vmem:[%s4 + $0x138] sm:$0xf] %v1072
  %1339 = vst [vmem:[%s4 + $0x13c] sm:$0xf] %v1073
  %1340 = vst [vmem:[%s4 + $0x140] sm:$0xf] %v1074
  %1341 = vst [vmem:[%s4 + $0x144] sm:$0xf] %v1075
  %1342 = vst [vmem:[%s4 + $0x148] sm:$0xf] %v1076
  %1343 = vst [vmem:[%s4 + $0x14c] sm:$0xf] %v1077
  %1344 = vst [vmem:[%s4 + $0x150] sm:$0xf] %v1078
  %1345 = vst [vmem:[%s4 + $0x154] sm:$0xf] %v1079
  %1346 = vst [vmem:[%s4 + $0x158] sm:$0xf] %v1080
  %1347 = vst [vmem:[%s4 + $0x15c] sm:$0xf] %v1081
  %1348 = vst [vmem:[%s4 + $0x160] sm:$0xf] %v1082
  %1349 = vst [vmem:[%s4 + $0x164] sm:$0xf] %v1083
  %1350 = vst [vmem:[%s4 + $0x168] sm:$0xf] %v1084
  %1351 = vst [vmem:[%s4 + $0x16c] sm:$0xf] %v1085
  %1352 = vst [vmem:[%s4 + $0x170] sm:$0xf] %v1086
  %1353 = vst [vmem:[%s4 + $0x174] sm:$0xf] %v1087
  %1354 = vst [vmem:[%s4 + $0x178] sm:$0xf] %v1088
  %1355 = vst [vmem:[%s4 + $0x17c] sm:$0xf] %v1089
  %1356 = vst [vmem:[%s4 + $0x180] sm:$0xf] %v1090
  %1357 = vst [vmem:[%s4 + $0x184] sm:$0xf] %v1091
  %1358 = vst [vmem:[%s4 + $0x188] sm:$0xf] %v1092
  %1359 = vst [vmem:[%s4 + $0x18c] sm:$0xf] %v1093
  %1360 = vst [vmem:[%s4 + $0x190] sm:$0xf] %v1094
  %1361 = vst [vmem:[%s4 + $0x194] sm:$0xf] %v1095
  %1362 = vst [vmem:[%s4 + $0x198] sm:$0xf] %v1096
  %1363 = vst [vmem:[%s4 + $0x19c] sm:$0xf] %v1097
  %1364 = vst [vmem:[%s4 + $0x1a0] sm:$0xf] %v1098
  %1365 = vst [vmem:[%s4 + $0x1a4] sm:$0xf] %v1099
  %1366 = vst [vmem:[%s4 + $0x1a8] sm:$0xf] %v1100
  %1367 = vst [vmem:[%s4 + $0x1ac] sm:$0xf] %v1101
  %1368 = vst [vmem:[%s4 + $0x1b0] sm:$0xf] %v1102
  %1369 = vst [vmem:[%s4 + $0x1b4] sm:$0xf] %v1103
  %1370 = vst [vmem:[%s4 + $0x1b8] sm:$0xf] %v1104
  %1371 = vst [vmem:[%s4 + $0x1bc] sm:$0xf] %v1105
  %1372 = vst [vmem:[%s4 + $0x1c0] sm:$0xf] %v1106
  %1373 = vst [vmem:[%s4 + $0x1c4] sm:$0xf] %v1107
  %1374 = vst [vmem:[%s4 + $0x1c8] sm:$0xf] %v1108
  %1375 = vst [vmem:[%s4 + $0x1cc] sm:$0xf] %v1109
  %1376 = vst [vmem:[%s4 + $0x1d0] sm:$0xf] %v1110
  %1377 = vst [vmem:[%s4 + $0x1d4] sm:$0xf] %v1111
  %1378 = vst [vmem:[%s4 + $0x1d8] sm:$0xf] %v1112
  %1379 = vst [vmem:[%s4 + $0x1dc] sm:$0xf] %v1113
  %1380 = vst [vmem:[%s4 + $0x1e0] sm:$0xf] %v1114
  %1381 = vst [vmem:[%s4 + $0x1e4] sm:$0xf] %v1115
  %1382 = vst [vmem:[%s4 + $0x1e8] sm:$0xf] %v1116
  %1383 = vst [vmem:[%s4 + $0x1ec] sm:$0xf] %v1117
  %1384 = vst [vmem:[%s4 + $0x1f0] sm:$0xf] %v1118
  %1385 = vst [vmem:[%s4 + $0x1f4] sm:$0xf] %v1119
  %1386 = vst [vmem:[%s4 + $0x1f8] sm:$0xf] %v1120
  %1387 = vst [vmem:[%s4 + $0x1fc] sm:$0xf] %v1121
  %1388 = vst [vmem:[%s4 + $0x200] sm:$0xf] %v1122
  %1389 = vst [vmem:[%s4 + $0x204] sm:$0xf] %v1123
  %1390 = vst [vmem:[%s4 + $0x208] sm:$0xf] %v1124
  %1391 = vst [vmem:[%s4 + $0x20c] sm:$0xf] %v1125
  %1392 = vst [vmem:[%s4 + $0x210] sm:$0x1] %v1126
  // Predicated region
  $region18: #{_lambda_.8} parent=0 // pred_check
    _
  $region19: #{_lambda_.8} parent=0 // pred_check_branch
    %1394 = sbr.rel (0) target = $region21
  $region20: #{_lambda_.8} parent=0 // pred_region
    _
  $region21: #{_lambda_.8} parent=0 // pred_fallthru
    _
  // Predicated region
  $region22: #{_lambda_.8} parent=0 // pred_check
    _
  $region23: #{_lambda_.8} parent=0 // pred_check_branch
    %1396 = sbr.rel (0) target = $region25
  $region24: #{_lambda_.8} parent=0 // pred_region
    _
  $region25: #{_lambda_.8} parent=0 // pred_fallthru
    _

// kernel: _lambda_.7
$region0: #{_lambda_.7}
  #allocation0 [shape = 'u32[]', space=smem, size = 0x4, offset = 0x4, fixed_abs, tag = 'smem constant byte address 0x4 - core index']
  #allocation1 [shape = 'u32[144,128]{1,0:T(1,128)}', space=vmem, size = 0x12000, scoped, tag = 'internal scratch']
  %s0 = inlined_call_operand.vmem [shape: bf16[1058,256], index: 0, kind: input, shape index: {}]
  %s1 = inlined_call_operand.vmem [shape: bf16[256,128], index: 1, kind: input, shape index: {}]
  %s2 = inlined_call_operand.vmem [shape: f32[1,128], index: 2, kind: input, shape index: {}]
  %s3 = inlined_call_operand.vmem [shape: bf16[1058,128], index: 3, kind: output, shape index: {0}]
  %s4 = inlined_call_operand.vmem [shape: f32[1,8,128], index: 4, kind: output, shape index: {1}]
  %5 = xla_tuple %s3, %s4
  %s6 = sld [smem:[#allocation0]]
  $region30: #{_lambda_.7} parent=0
    _
  %s8 = ssub.s32 1, %s6
  %s9 = scalar_select 0, %s8, %s6
  // Predicated region
  $region2: #{_lambda_.7} parent=0 // pred_check
    _
  $region3: #{_lambda_.7} parent=0 // pred_check_branch
    %11 = sbr.rel (0) target = $region5
  $region4: #{_lambda_.7} parent=0 // pred_region
    _
  $region5: #{_lambda_.7} parent=0 // pred_fallthru
    _
  // Predicated region
  $region6: #{_lambda_.7} parent=0 // pred_check
    _
  $region7: #{_lambda_.7} parent=0 // pred_check_branch
    %13 = sbr.rel (0) target = $region9
  $region8: #{_lambda_.7} parent=0 // pred_region
    _
  $region9: #{_lambda_.7} parent=0 // pred_fallthru
    _
  // Predicated region
  $region10: #{_lambda_.7} parent=0 // pred_check
    _
  $region11: #{_lambda_.7} parent=0 // pred_check_branch
    %15 = sbr.rel (0) target = $region13
  $region12: #{_lambda_.7} parent=0 // pred_region
    _
  $region13: #{_lambda_.7} parent=0 // pred_fallthru
    _
  %v17 = vld [vmem:[%s0] sm:$0xff]
  %v18 = vld [vmem:[%s0 + $0x8] sm:$0xff]
  %v19 = vld [vmem:[%s0 + $0x10] sm:$0xff]
  %v20 = vld [vmem:[%s0 + $0x18] sm:$0xff]
  %v21 = vld [vmem:[%s0 + $0x20] sm:$0xff]
  %v22 = vld [vmem:[%s0 + $0x28] sm:$0xff]
  %v23 = vld [vmem:[%s0 + $0x30] sm:$0xff]
  %v24 = vld [vmem:[%s0 + $0x38] sm:$0xff]
  %v25 = vld [vmem:[%s0 + $0x40] sm:$0xff]
  %v26 = vld [vmem:[%s0 + $0x48] sm:$0xff]
  %v27 = vld [vmem:[%s0 + $0x50] sm:$0xff]
  %v28 = vld [vmem:[%s0 + $0x58] sm:$0xff]
  %v29 = vld [vmem:[%s0 + $0x60] sm:$0xff]
  %v30 = vld [vmem:[%s0 + $0x68] sm:$0xff]
  %v31 = vld [vmem:[%s0 + $0x70] sm:$0xff]
  %v32 = vld [vmem:[%s0 + $0x78] sm:$0xff]
  %v33 = vld [vmem:[%s0 + $0x80] sm:$0xff]
  %v34 = vld [vmem:[%s0 + $0x88] sm:$0xff]
  %v35 = vld [vmem:[%s0 + $0x90] sm:$0xff]
  %v36 = vld [vmem:[%s0 + $0x98] sm:$0xff]
  %v37 = vld [vmem:[%s0 + $0xa0] sm:$0xff]
  %v38 = vld [vmem:[%s0 + $0xa8] sm:$0xff]
  %v39 = vld [vmem:[%s0 + $0xb0] sm:$0xff]
  %v40 = vld [vmem:[%s0 + $0xb8] sm:$0xff]
  %v41 = vld [vmem:[%s0 + $0xc0] sm:$0xff]
  %v42 = vld [vmem:[%s0 + $0xc8] sm:$0xff]
  %v43 = vld [vmem:[%s0 + $0xd0] sm:$0xff]
  %v44 = vld [vmem:[%s0 + $0xd8] sm:$0xff]
  %v45 = vld [vmem:[%s0 + $0xe0] sm:$0xff]
  %v46 = vld [vmem:[%s0 + $0xe8] sm:$0xff]
  %v47 = vld [vmem:[%s0 + $0xf0] sm:$0xff]
  %v48 = vld [vmem:[%s0 + $0xf8] sm:$0xff]
  %v49 = vld [vmem:[%s0 + $0x100] sm:$0xff]
  %v50 = vld [vmem:[%s0 + $0x108] sm:$0xff]
  %v51 = vld [vmem:[%s0 + $0x110] sm:$0xff]
  %v52 = vld [vmem:[%s0 + $0x118] sm:$0xff]
  %v53 = vld [vmem:[%s0 + $0x120] sm:$0xff]
  %v54 = vld [vmem:[%s0 + $0x128] sm:$0xff]
  %v55 = vld [vmem:[%s0 + $0x130] sm:$0xff]
  %v56 = vld [vmem:[%s0 + $0x138] sm:$0xff]
  %v57 = vld [vmem:[%s0 + $0x140] sm:$0xff]
  %v58 = vld [vmem:[%s0 + $0x148] sm:$0xff]
  %v59 = vld [vmem:[%s0 + $0x150] sm:$0xff]
  %v60 = vld [vmem:[%s0 + $0x158] sm:$0xff]
  %v61 = vld [vmem:[%s0 + $0x160] sm:$0xff]
  %v62 = vld [vmem:[%s0 + $0x168] sm:$0xff]
  %v63 = vld [vmem:[%s0 + $0x170] sm:$0xff]
  %v64 = vld [vmem:[%s0 + $0x178] sm:$0xff]
  %v65 = vld [vmem:[%s0 + $0x180] sm:$0xff]
  %v66 = vld [vmem:[%s0 + $0x188] sm:$0xff]
  %v67 = vld [vmem:[%s0 + $0x190] sm:$0xff]
  %v68 = vld [vmem:[%s0 + $0x198] sm:$0xff]
  %v69 = vld [vmem:[%s0 + $0x1a0] sm:$0xff]
  %v70 = vld [vmem:[%s0 + $0x1a8] sm:$0xff]
  %v71 = vld [vmem:[%s0 + $0x1b0] sm:$0xff]
  %v72 = vld [vmem:[%s0 + $0x1b8] sm:$0xff]
  %v73 = vld [vmem:[%s0 + $0x1c0] sm:$0xff]
  %v74 = vld [vmem:[%s0 + $0x1c8] sm:$0xff]
  %v75 = vld [vmem:[%s0 + $0x1d0] sm:$0xff]
  %v76 = vld [vmem:[%s0 + $0x1d8] sm:$0xff]
  %v77 = vld [vmem:[%s0 + $0x1e0] sm:$0xff]
  %v78 = vld [vmem:[%s0 + $0x1e8] sm:$0xff]
  %v79 = vld [vmem:[%s0 + $0x1f0] sm:$0xff]
  %v80 = vld [vmem:[%s0 + $0x1f8] sm:$0xff]
  %v81 = vld [vmem:[%s0 + $0x200] sm:$0xff]
  %v82 = vld [vmem:[%s0 + $0x208] sm:$0xff]
  %v83 = vld [vmem:[%s0 + $0x210] sm:$0xff]
  %v84 = vld [vmem:[%s0 + $0x218] sm:$0xff]
  %v85 = vld [vmem:[%s0 + $0x220] sm:$0xff]
  %v86 = vld [vmem:[%s0 + $0x228] sm:$0xff]
  %v87 = vld [vmem:[%s0 + $0x230] sm:$0xff]
  %v88 = vld [vmem:[%s0 + $0x238] sm:$0xff]
  %v89 = vld [vmem:[%s0 + $0x240] sm:$0xff]
  %v90 = vld [vmem:[%s0 + $0x248] sm:$0xff]
  %v91 = vld [vmem:[%s0 + $0x250] sm:$0xff]
  %v92 = vld [vmem:[%s0 + $0x258] sm:$0xff]
  %v93 = vld [vmem:[%s0 + $0x260] sm:$0xff]
  %v94 = vld [vmem:[%s0 + $0x268] sm:$0xff]
  %v95 = vld [vmem:[%s0 + $0x270] sm:$0xff]
  %v96 = vld [vmem:[%s0 + $0x278] sm:$0xff]
  %v97 = vld [vmem:[%s0 + $0x280] sm:$0xff]
  %v98 = vld [vmem:[%s0 + $0x288] sm:$0xff]
  %v99 = vld [vmem:[%s0 + $0x290] sm:$0xff]
  %v100 = vld [vmem:[%s0 + $0x298] sm:$0xff]
  %v101 = vld [vmem:[%s0 + $0x2a0] sm:$0xff]
  %v102 = vld [vmem:[%s0 + $0x2a8] sm:$0xff]
  %v103 = vld [vmem:[%s0 + $0x2b0] sm:$0xff]
  %v104 = vld [vmem:[%s0 + $0x2b8] sm:$0xff]
  %v105 = vld [vmem:[%s0 + $0x2c0] sm:$0xff]
  %v106 = vld [vmem:[%s0 + $0x2c8] sm:$0xff]
  %v107 = vld [vmem:[%s0 + $0x2d0] sm:$0xff]
  %v108 = vld [vmem:[%s0 + $0x2d8] sm:$0xff]
  %v109 = vld [vmem:[%s0 + $0x2e0] sm:$0xff]
  %v110 = vld [vmem:[%s0 + $0x2e8] sm:$0xff]
  %v111 = vld [vmem:[%s0 + $0x2f0] sm:$0xff]
  %v112 = vld [vmem:[%s0 + $0x2f8] sm:$0xff]
  %v113 = vld [vmem:[%s0 + $0x300] sm:$0xff]
  %v114 = vld [vmem:[%s0 + $0x308] sm:$0xff]
  %v115 = vld [vmem:[%s0 + $0x310] sm:$0xff]
  %v116 = vld [vmem:[%s0 + $0x318] sm:$0xff]
  %v117 = vld [vmem:[%s0 + $0x320] sm:$0xff]
  %v118 = vld [vmem:[%s0 + $0x328] sm:$0xff]
  %v119 = vld [vmem:[%s0 + $0x330] sm:$0xff]
  %v120 = vld [vmem:[%s0 + $0x338] sm:$0xff]
  %v121 = vld [vmem:[%s0 + $0x340] sm:$0xff]
  %v122 = vld [vmem:[%s0 + $0x348] sm:$0xff]
  %v123 = vld [vmem:[%s0 + $0x350] sm:$0xff]
  %v124 = vld [vmem:[%s0 + $0x358] sm:$0xff]
  %v125 = vld [vmem:[%s0 + $0x360] sm:$0xff]
  %v126 = vld [vmem:[%s0 + $0x368] sm:$0xff]
  %v127 = vld [vmem:[%s0 + $0x370] sm:$0xff]
  %v128 = vld [vmem:[%s0 + $0x378] sm:$0xff]
  %v129 = vld [vmem:[%s0 + $0x380] sm:$0xff]
  %v130 = vld [vmem:[%s0 + $0x388] sm:$0xff]
  %v131 = vld [vmem:[%s0 + $0x390] sm:$0xff]
  %v132 = vld [vmem:[%s0 + $0x398] sm:$0xff]
  %v133 = vld [vmem:[%s0 + $0x3a0] sm:$0xff]
  %v134 = vld [vmem:[%s0 + $0x3a8] sm:$0xff]
  %v135 = vld [vmem:[%s0 + $0x3b0] sm:$0xff]
  %v136 = vld [vmem:[%s0 + $0x3b8] sm:$0xff]
  %v137 = vld [vmem:[%s0 + $0x3c0] sm:$0xff]
  %v138 = vld [vmem:[%s0 + $0x3c8] sm:$0xff]
  %v139 = vld [vmem:[%s0 + $0x3d0] sm:$0xff]
  %v140 = vld [vmem:[%s0 + $0x3d8] sm:$0xff]
  %v141 = vld [vmem:[%s0 + $0x3e0] sm:$0xff]
  %v142 = vld [vmem:[%s0 + $0x3e8] sm:$0xff]
  %v143 = vld [vmem:[%s0 + $0x3f0] sm:$0xff]
  %v144 = vld [vmem:[%s0 + $0x3f8] sm:$0xff]
  %v145 = vld [vmem:[%s0 + $0x400] sm:$0xff]
  %v146 = vld [vmem:[%s0 + $0x408] sm:$0xff]
  %v147 = vld [vmem:[%s0 + $0x410] sm:$0xff]
  %v148 = vld [vmem:[%s0 + $0x418] sm:$0xff]
  %v149 = vld [vmem:[%s0 + $0x420] sm:$0x11]
  %v150 = vld [vmem:[%s1] sm:$0xf]
  %v151 = vld [vmem:[%s1 + $0x4] sm:$0xf]
  %v152 = vld [vmem:[%s1 + $0x8] sm:$0xf]
  %v153 = vld [vmem:[%s1 + $0xc] sm:$0xf]
  %v154 = vld [vmem:[%s1 + $0x10] sm:$0xf]
  %v155 = vld [vmem:[%s1 + $0x14] sm:$0xf]
  %v156 = vld [vmem:[%s1 + $0x18] sm:$0xf]
  %v157 = vld [vmem:[%s1 + $0x1c] sm:$0xf]
  %v158 = vld [vmem:[%s1 + $0x20] sm:$0xf]
  %v159 = vld [vmem:[%s1 + $0x24] sm:$0xf]
  %v160 = vld [vmem:[%s1 + $0x28] sm:$0xf]
  %v161 = vld [vmem:[%s1 + $0x2c] sm:$0xf]
  %v162 = vld [vmem:[%s1 + $0x30] sm:$0xf]
  %v163 = vld [vmem:[%s1 + $0x34] sm:$0xf]
  %v164 = vld [vmem:[%s1 + $0x38] sm:$0xf]
  %v165 = vld [vmem:[%s1 + $0x3c] sm:$0xf]
  %v166 = vld [vmem:[%s1 + $0x40] sm:$0xf]
  %v167 = vld [vmem:[%s1 + $0x44] sm:$0xf]
  %v168 = vld [vmem:[%s1 + $0x48] sm:$0xf]
  %v169 = vld [vmem:[%s1 + $0x4c] sm:$0xf]
  %v170 = vld [vmem:[%s1 + $0x50] sm:$0xf]
  %v171 = vld [vmem:[%s1 + $0x54] sm:$0xf]
  %v172 = vld [vmem:[%s1 + $0x58] sm:$0xf]
  %v173 = vld [vmem:[%s1 + $0x5c] sm:$0xf]
  %v174 = vld [vmem:[%s1 + $0x60] sm:$0xf]
  %v175 = vld [vmem:[%s1 + $0x64] sm:$0xf]
  %v176 = vld [vmem:[%s1 + $0x68] sm:$0xf]
  %v177 = vld [vmem:[%s1 + $0x6c] sm:$0xf]
  %v178 = vld [vmem:[%s1 + $0x70] sm:$0xf]
  %v179 = vld [vmem:[%s1 + $0x74] sm:$0xf]
  %v180 = vld [vmem:[%s1 + $0x78] sm:$0xf]
  %v181 = vld [vmem:[%s1 + $0x7c] sm:$0xf]
  %v182 = vld [vmem:[%s2] sm:$0x1]
  %v184 = vlaneseq
  %v185 = vshrl.u32 %v184, 7
  %v186 = vsub.s32 0, %v185
  %v187 = vrot.slane %v182, %v186
  %v322 = vunpack.c.l.b16 %v17
  %v323 = vunpack.c.h.b16 %v17
  %v324 = vunpack.c.l.b16 %v18
  %v325 = vunpack.c.h.b16 %v18
  %v326 = vunpack.c.l.b16 %v19
  %v327 = vunpack.c.h.b16 %v19
  %v328 = vunpack.c.l.b16 %v20
  %v329 = vunpack.c.h.b16 %v20
  %v330 = vunpack.c.l.b16 %v21
  %v331 = vunpack.c.h.b16 %v21
  %v332 = vunpack.c.l.b16 %v22
  %v333 = vunpack.c.h.b16 %v22
  %v334 = vunpack.c.l.b16 %v23
  %v335 = vunpack.c.h.b16 %v23
  %v336 = vunpack.c.l.b16 %v24
  %v337 = vunpack.c.h.b16 %v24
  %v338 = vunpack.c.l.b16 %v25
  %v339 = vunpack.c.h.b16 %v25
  %v340 = vunpack.c.l.b16 %v26
  %v341 = vunpack.c.h.b16 %v26
  %v342 = vunpack.c.l.b16 %v27
  %v343 = vunpack.c.h.b16 %v27
  %v344 = vunpack.c.l.b16 %v28
  %v345 = vunpack.c.h.b16 %v28
  %v346 = vunpack.c.l.b16 %v29
  %v347 = vunpack.c.h.b16 %v29
  %v348 = vunpack.c.l.b16 %v30
  %v349 = vunpack.c.h.b16 %v30
  %v350 = vunpack.c.l.b16 %v31
  %v351 = vunpack.c.h.b16 %v31
  %v352 = vunpack.c.l.b16 %v32
  %v353 = vunpack.c.h.b16 %v32
  %v354 = vunpack.c.l.b16 %v33
  %v355 = vunpack.c.h.b16 %v33
  %v356 = vunpack.c.l.b16 %v34
  %v357 = vunpack.c.h.b16 %v34
  %v358 = vunpack.c.l.b16 %v35
  %v359 = vunpack.c.h.b16 %v35
  %v360 = vunpack.c.l.b16 %v36
  %v361 = vunpack.c.h.b16 %v36
  %v362 = vunpack.c.l.b16 %v37
  %v363 = vunpack.c.h.b16 %v37
  %v364 = vunpack.c.l.b16 %v38
  %v365 = vunpack.c.h.b16 %v38
  %v366 = vunpack.c.l.b16 %v39
  %v367 = vunpack.c.h.b16 %v39
  %v368 = vunpack.c.l.b16 %v40
  %v369 = vunpack.c.h.b16 %v40
  %v370 = vunpack.c.l.b16 %v41
  %v371 = vunpack.c.h.b16 %v41
  %v372 = vunpack.c.l.b16 %v42
  %v373 = vunpack.c.h.b16 %v42
  %v374 = vunpack.c.l.b16 %v43
  %v375 = vunpack.c.h.b16 %v43
  %v376 = vunpack.c.l.b16 %v44
  %v377 = vunpack.c.h.b16 %v44
  %v378 = vunpack.c.l.b16 %v45
  %v379 = vunpack.c.h.b16 %v45
  %v380 = vunpack.c.l.b16 %v46
  %v381 = vunpack.c.h.b16 %v46
  %v382 = vunpack.c.l.b16 %v47
  %v383 = vunpack.c.h.b16 %v47
  %v384 = vunpack.c.l.b16 %v48
  %v385 = vunpack.c.h.b16 %v48
  %v386 = vunpack.c.l.b16 %v49
  %v387 = vunpack.c.h.b16 %v49
  %v388 = vunpack.c.l.b16 %v50
  %v389 = vunpack.c.h.b16 %v50
  %v390 = vunpack.c.l.b16 %v51
  %v391 = vunpack.c.h.b16 %v51
  %v392 = vunpack.c.l.b16 %v52
  %v393 = vunpack.c.h.b16 %v52
  %v394 = vunpack.c.l.b16 %v53
  %v395 = vunpack.c.h.b16 %v53
  %v396 = vunpack.c.l.b16 %v54
  %v397 = vunpack.c.h.b16 %v54
  %v398 = vunpack.c.l.b16 %v55
  %v399 = vunpack.c.h.b16 %v55
  %v400 = vunpack.c.l.b16 %v56
  %v401 = vunpack.c.h.b16 %v56
  %v402 = vunpack.c.l.b16 %v57
  %v403 = vunpack.c.h.b16 %v57
  %v404 = vunpack.c.l.b16 %v58
  %v405 = vunpack.c.h.b16 %v58
  %v406 = vunpack.c.l.b16 %v59
  %v407 = vunpack.c.h.b16 %v59
  %v408 = vunpack.c.l.b16 %v60
  %v409 = vunpack.c.h.b16 %v60
  %v410 = vunpack.c.l.b16 %v61
  %v411 = vunpack.c.h.b16 %v61
  %v412 = vunpack.c.l.b16 %v62
  %v413 = vunpack.c.h.b16 %v62
  %v414 = vunpack.c.l.b16 %v63
  %v415 = vunpack.c.h.b16 %v63
  %v416 = vunpack.c.l.b16 %v64
  %v417 = vunpack.c.h.b16 %v64
  %v418 = vunpack.c.l.b16 %v65
  %v419 = vunpack.c.h.b16 %v65
  %v420 = vunpack.c.l.b16 %v66
  %v421 = vunpack.c.h.b16 %v66
  %v422 = vunpack.c.l.b16 %v67
  %v423 = vunpack.c.h.b16 %v67
  %v424 = vunpack.c.l.b16 %v68
  %v425 = vunpack.c.h.b16 %v68
  %v426 = vunpack.c.l.b16 %v69
  %v427 = vunpack.c.h.b16 %v69
  %v428 = vunpack.c.l.b16 %v70
  %v429 = vunpack.c.h.b16 %v70
  %v430 = vunpack.c.l.b16 %v71
  %v431 = vunpack.c.h.b16 %v71
  %v432 = vunpack.c.l.b16 %v72
  %v433 = vunpack.c.h.b16 %v72
  %v434 = vunpack.c.l.b16 %v73
  %v435 = vunpack.c.h.b16 %v73
  %v436 = vunpack.c.l.b16 %v74
  %v437 = vunpack.c.h.b16 %v74
  %v438 = vunpack.c.l.b16 %v75
  %v439 = vunpack.c.h.b16 %v75
  %v440 = vunpack.c.l.b16 %v76
  %v441 = vunpack.c.h.b16 %v76
  %v442 = vunpack.c.l.b16 %v77
  %v443 = vunpack.c.h.b16 %v77
  %v444 = vunpack.c.l.b16 %v78
  %v445 = vunpack.c.h.b16 %v78
  %v446 = vunpack.c.l.b16 %v79
  %v447 = vunpack.c.h.b16 %v79
  %v448 = vunpack.c.l.b16 %v80
  %v449 = vunpack.c.h.b16 %v80
  %v450 = vunpack.c.l.b16 %v81
  %v451 = vunpack.c.h.b16 %v81
  %v452 = vunpack.c.l.b16 %v82
  %v453 = vunpack.c.h.b16 %v82
  %v454 = vunpack.c.l.b16 %v83
  %v455 = vunpack.c.h.b16 %v83
  %v456 = vunpack.c.l.b16 %v84
  %v457 = vunpack.c.h.b16 %v84
  %v458 = vunpack.c.l.b16 %v85
  %v459 = vunpack.c.h.b16 %v85
  %v460 = vunpack.c.l.b16 %v86
  %v461 = vunpack.c.h.b16 %v86
  %v462 = vunpack.c.l.b16 %v87
  %v463 = vunpack.c.h.b16 %v87
  %v464 = vunpack.c.l.b16 %v88
  %v465 = vunpack.c.h.b16 %v88
  %v466 = vunpack.c.l.b16 %v89
  %v467 = vunpack.c.h.b16 %v89
  %v468 = vunpack.c.l.b16 %v90
  %v469 = vunpack.c.h.b16 %v90
  %v470 = vunpack.c.l.b16 %v91
  %v471 = vunpack.c.h.b16 %v91
  %v472 = vunpack.c.l.b16 %v92
  %v473 = vunpack.c.h.b16 %v92
  %v474 = vunpack.c.l.b16 %v93
  %v475 = vunpack.c.h.b16 %v93
  %v476 = vunpack.c.l.b16 %v94
  %v477 = vunpack.c.h.b16 %v94
  %v478 = vunpack.c.l.b16 %v95
  %v479 = vunpack.c.h.b16 %v95
  %v480 = vunpack.c.l.b16 %v96
  %v481 = vunpack.c.h.b16 %v96
  %v482 = vunpack.c.l.b16 %v97
  %v483 = vunpack.c.h.b16 %v97
  %v484 = vunpack.c.l.b16 %v98
  %v485 = vunpack.c.h.b16 %v98
  %v486 = vunpack.c.l.b16 %v99
  %v487 = vunpack.c.h.b16 %v99
  %v488 = vunpack.c.l.b16 %v100
  %v489 = vunpack.c.h.b16 %v100
  %v490 = vunpack.c.l.b16 %v101
  %v491 = vunpack.c.h.b16 %v101
  %v492 = vunpack.c.l.b16 %v102
  %v493 = vunpack.c.h.b16 %v102
  %v494 = vunpack.c.l.b16 %v103
  %v495 = vunpack.c.h.b16 %v103
  %v496 = vunpack.c.l.b16 %v104
  %v497 = vunpack.c.h.b16 %v104
  %v498 = vunpack.c.l.b16 %v105
  %v499 = vunpack.c.h.b16 %v105
  %v500 = vunpack.c.l.b16 %v106
  %v501 = vunpack.c.h.b16 %v106
  %v502 = vunpack.c.l.b16 %v107
  %v503 = vunpack.c.h.b16 %v107
  %v504 = vunpack.c.l.b16 %v108
  %v505 = vunpack.c.h.b16 %v108
  %v506 = vunpack.c.l.b16 %v109
  %v507 = vunpack.c.h.b16 %v109
  %v508 = vunpack.c.l.b16 %v110
  %v509 = vunpack.c.h.b16 %v110
  %v510 = vunpack.c.l.b16 %v111
  %v511 = vunpack.c.h.b16 %v111
  %v512 = vunpack.c.l.b16 %v112
  %v513 = vunpack.c.h.b16 %v112
  %v514 = vunpack.c.l.b16 %v113
  %v515 = vunpack.c.h.b16 %v113
  %v516 = vunpack.c.l.b16 %v114
  %v517 = vunpack.c.h.b16 %v114
  %v518 = vunpack.c.l.b16 %v115
  %v519 = vunpack.c.h.b16 %v115
  %v520 = vunpack.c.l.b16 %v116
  %v521 = vunpack.c.h.b16 %v116
  %v522 = vunpack.c.l.b16 %v117
  %v523 = vunpack.c.h.b16 %v117
  %v524 = vunpack.c.l.b16 %v118
  %v525 = vunpack.c.h.b16 %v118
  %v526 = vunpack.c.l.b16 %v119
  %v527 = vunpack.c.h.b16 %v119
  %v528 = vunpack.c.l.b16 %v120
  %v529 = vunpack.c.h.b16 %v120
  %v530 = vunpack.c.l.b16 %v121
  %v531 = vunpack.c.h.b16 %v121
  %v532 = vunpack.c.l.b16 %v122
  %v533 = vunpack.c.h.b16 %v122
  %v534 = vunpack.c.l.b16 %v123
  %v535 = vunpack.c.h.b16 %v123
  %v536 = vunpack.c.l.b16 %v124
  %v537 = vunpack.c.h.b16 %v124
  %v538 = vunpack.c.l.b16 %v125
  %v539 = vunpack.c.h.b16 %v125
  %v540 = vunpack.c.l.b16 %v126
  %v541 = vunpack.c.h.b16 %v126
  %v542 = vunpack.c.l.b16 %v127
  %v543 = vunpack.c.h.b16 %v127
  %v544 = vunpack.c.l.b16 %v128
  %v545 = vunpack.c.h.b16 %v128
  %v546 = vunpack.c.l.b16 %v129
  %v547 = vunpack.c.h.b16 %v129
  %v548 = vunpack.c.l.b16 %v130
  %v549 = vunpack.c.h.b16 %v130
  %v550 = vunpack.c.l.b16 %v131
  %v551 = vunpack.c.h.b16 %v131
  %v552 = vunpack.c.l.b16 %v132
  %v553 = vunpack.c.h.b16 %v132
  %v554 = vunpack.c.l.b16 %v133
  %v555 = vunpack.c.h.b16 %v133
  %v556 = vunpack.c.l.b16 %v134
  %v557 = vunpack.c.h.b16 %v134
  %v558 = vunpack.c.l.b16 %v135
  %v559 = vunpack.c.h.b16 %v135
  %v560 = vunpack.c.l.b16 %v136
  %v561 = vunpack.c.h.b16 %v136
  %v562 = vunpack.c.l.b16 %v137
  %v563 = vunpack.c.h.b16 %v137
  %v564 = vunpack.c.l.b16 %v138
  %v565 = vunpack.c.h.b16 %v138
  %v566 = vunpack.c.l.b16 %v139
  %v567 = vunpack.c.h.b16 %v139
  %v568 = vunpack.c.l.b16 %v140
  %v569 = vunpack.c.h.b16 %v140
  %v570 = vunpack.c.l.b16 %v141
  %v571 = vunpack.c.h.b16 %v141
  %v572 = vunpack.c.l.b16 %v142
  %v573 = vunpack.c.h.b16 %v142
  %v574 = vunpack.c.l.b16 %v143
  %v575 = vunpack.c.h.b16 %v143
  %v576 = vunpack.c.l.b16 %v144
  %v577 = vunpack.c.h.b16 %v144
  %v578 = vunpack.c.l.b16 %v145
  %v579 = vunpack.c.h.b16 %v145
  %v580 = vunpack.c.l.b16 %v146
  %v581 = vunpack.c.h.b16 %v146
  %v582 = vunpack.c.l.b16 %v147
  %v583 = vunpack.c.h.b16 %v147
  %v584 = vunpack.c.l.b16 %v148
  %v585 = vunpack.c.h.b16 %v148
  %v586 = vunpack.c.l.b16 %v149
  %v587 = vunpack.c.h.b16 %v149
  %v588 = vpack.c.b16 %v324, %v322
  %v589 = vpack.c.b16 %v325, %v323
  %v590 = vpack.c.b16 %v328, %v326
  %v591 = vpack.c.b16 %v329, %v327
  %v592 = vpack.c.b16 %v332, %v330
  %v593 = vpack.c.b16 %v333, %v331
  %v594 = vpack.c.b16 %v336, %v334
  %v595 = vpack.c.b16 %v337, %v335
  %v596 = vpack.c.b16 %v340, %v338
  %v597 = vpack.c.b16 %v341, %v339
  %v598 = vpack.c.b16 %v344, %v342
  %v599 = vpack.c.b16 %v345, %v343
  %v600 = vpack.c.b16 %v348, %v346
  %v601 = vpack.c.b16 %v349, %v347
  %v602 = vpack.c.b16 %v352, %v350
  %v603 = vpack.c.b16 %v353, %v351
  %v604 = vpack.c.b16 %v356, %v354
  %v605 = vpack.c.b16 %v357, %v355
  %v606 = vpack.c.b16 %v360, %v358
  %v607 = vpack.c.b16 %v361, %v359
  %v608 = vpack.c.b16 %v364, %v362
  %v609 = vpack.c.b16 %v365, %v363
  %v610 = vpack.c.b16 %v368, %v366
  %v611 = vpack.c.b16 %v369, %v367
  %v612 = vpack.c.b16 %v372, %v370
  %v613 = vpack.c.b16 %v373, %v371
  %v614 = vpack.c.b16 %v376, %v374
  %v615 = vpack.c.b16 %v377, %v375
  %v616 = vpack.c.b16 %v380, %v378
  %v617 = vpack.c.b16 %v381, %v379
  %v618 = vpack.c.b16 %v384, %v382
  %v619 = vpack.c.b16 %v385, %v383
  %v620 = vpack.c.b16 %v388, %v386
  %v621 = vpack.c.b16 %v389, %v387
  %v622 = vpack.c.b16 %v392, %v390
  %v623 = vpack.c.b16 %v393, %v391
  %v624 = vpack.c.b16 %v396, %v394
  %v625 = vpack.c.b16 %v397, %v395
  %v626 = vpack.c.b16 %v400, %v398
  %v627 = vpack.c.b16 %v401, %v399
  %v628 = vpack.c.b16 %v404, %v402
  %v629 = vpack.c.b16 %v405, %v403
  %v630 = vpack.c.b16 %v408, %v406
  %v631 = vpack.c.b16 %v409, %v407
  %v632 = vpack.c.b16 %v412, %v410
  %v633 = vpack.c.b16 %v413, %v411
  %v634 = vpack.c.b16 %v416, %v414
  %v635 = vpack.c.b16 %v417, %v415
  %v636 = vpack.c.b16 %v420, %v418
  %v637 = vpack.c.b16 %v421, %v419
  %v638 = vpack.c.b16 %v424, %v422
  %v639 = vpack.c.b16 %v425, %v423
  %v640 = vpack.c.b16 %v428, %v426
  %v641 = vpack.c.b16 %v429, %v427
  %v642 = vpack.c.b16 %v432, %v430
  %v643 = vpack.c.b16 %v433, %v431
  %v644 = vpack.c.b16 %v436, %v434
  %v645 = vpack.c.b16 %v437, %v435
  %v646 = vpack.c.b16 %v440, %v438
  %v647 = vpack.c.b16 %v441, %v439
  %v648 = vpack.c.b16 %v444, %v442
  %v649 = vpack.c.b16 %v445, %v443
  %v650 = vpack.c.b16 %v448, %v446
  %v651 = vpack.c.b16 %v449, %v447
  %v652 = vpack.c.b16 %v452, %v450
  %v653 = vpack.c.b16 %v453, %v451
  %v654 = vpack.c.b16 %v456, %v454
  %v655 = vpack.c.b16 %v457, %v455
  %v656 = vpack.c.b16 %v460, %v458
  %v657 = vpack.c.b16 %v461, %v459
  %v658 = vpack.c.b16 %v464, %v462
  %v659 = vpack.c.b16 %v465, %v463
  %v660 = vpack.c.b16 %v468, %v466
  %v661 = vpack.c.b16 %v469, %v467
  %v662 = vpack.c.b16 %v472, %v470
  %v663 = vpack.c.b16 %v473, %v471
  %v664 = vpack.c.b16 %v476, %v474
  %v665 = vpack.c.b16 %v477, %v475
  %v666 = vpack.c.b16 %v480, %v478
  %v667 = vpack.c.b16 %v481, %v479
  %v668 = vpack.c.b16 %v484, %v482
  %v669 = vpack.c.b16 %v485, %v483
  %v670 = vpack.c.b16 %v488, %v486
  %v671 = vpack.c.b16 %v489, %v487
  %v672 = vpack.c.b16 %v492, %v490
  %v673 = vpack.c.b16 %v493, %v491
  %v674 = vpack.c.b16 %v496, %v494
  %v675 = vpack.c.b16 %v497, %v495
  %v676 = vpack.c.b16 %v500, %v498
  %v677 = vpack.c.b16 %v501, %v499
  %v678 = vpack.c.b16 %v504, %v502
  %v679 = vpack.c.b16 %v505, %v503
  %v680 = vpack.c.b16 %v508, %v506
  %v681 = vpack.c.b16 %v509, %v507
  %v682 = vpack.c.b16 %v512, %v510
  %v683 = vpack.c.b16 %v513, %v511
  %v684 = vpack.c.b16 %v516, %v514
  %v685 = vpack.c.b16 %v517, %v515
  %v686 = vpack.c.b16 %v520, %v518
  %v687 = vpack.c.b16 %v521, %v519
  %v688 = vpack.c.b16 %v524, %v522
  %v689 = vpack.c.b16 %v525, %v523
  %v690 = vpack.c.b16 %v528, %v526
  %v691 = vpack.c.b16 %v529, %v527
  %v692 = vpack.c.b16 %v532, %v530
  %v693 = vpack.c.b16 %v533, %v531
  %v694 = vpack.c.b16 %v536, %v534
  %v695 = vpack.c.b16 %v537, %v535
  %v696 = vpack.c.b16 %v540, %v538
  %v697 = vpack.c.b16 %v541, %v539
  %v698 = vpack.c.b16 %v544, %v542
  %v699 = vpack.c.b16 %v545, %v543
  %v700 = vpack.c.b16 %v548, %v546
  %v701 = vpack.c.b16 %v549, %v547
  %v702 = vpack.c.b16 %v552, %v550
  %v703 = vpack.c.b16 %v553, %v551
  %v704 = vpack.c.b16 %v556, %v554
  %v705 = vpack.c.b16 %v557, %v555
  %v706 = vpack.c.b16 %v560, %v558
  %v707 = vpack.c.b16 %v561, %v559
  %v708 = vpack.c.b16 %v564, %v562
  %v709 = vpack.c.b16 %v565, %v563
  %v710 = vpack.c.b16 %v568, %v566
  %v711 = vpack.c.b16 %v569, %v567
  %v712 = vpack.c.b16 %v572, %v570
  %v713 = vpack.c.b16 %v573, %v571
  %v714 = vpack.c.b16 %v576, %v574
  %v715 = vpack.c.b16 %v577, %v575
  %v716 = vpack.c.b16 %v580, %v578
  %v717 = vpack.c.b16 %v581, %v579
  %v718 = vpack.c.b16 %v584, %v582
  %v719 = vpack.c.b16 %v585, %v583
  %v720 = vpack.c.b16 %v586, %v586
  %v721 = vpack.c.b16 %v587, %v587
  %v888 = vunpack.c.l.b16 %v150
  %v889 = vunpack.c.l.b16 %v151
  %v890 = vunpack.c.l.b16 %v152
  %v891 = vunpack.c.l.b16 %v153
  %v892 = vunpack.c.l.b16 %v154
  %v893 = vunpack.c.l.b16 %v155
  %v894 = vunpack.c.l.b16 %v156
  %v895 = vunpack.c.l.b16 %v157
  %v896 = vunpack.c.l.b16 %v158
  %v897 = vunpack.c.l.b16 %v159
  %v898 = vunpack.c.l.b16 %v160
  %v899 = vunpack.c.l.b16 %v161
  %v900 = vunpack.c.l.b16 %v162
  %v901 = vunpack.c.l.b16 %v163
  %v902 = vunpack.c.l.b16 %v164
  %v903 = vunpack.c.l.b16 %v165
  %v904 = vunpack.c.l.b16 %v166
  %v905 = vunpack.c.l.b16 %v167
  %v906 = vunpack.c.l.b16 %v168
  %v907 = vunpack.c.l.b16 %v169
  %v908 = vunpack.c.l.b16 %v170
  %v909 = vunpack.c.l.b16 %v171
  %v910 = vunpack.c.l.b16 %v172
  %v911 = vunpack.c.l.b16 %v173
  %v912 = vunpack.c.l.b16 %v174
  %v913 = vunpack.c.l.b16 %v175
  %v914 = vunpack.c.l.b16 %v176
  %v915 = vunpack.c.l.b16 %v177
  %v916 = vunpack.c.l.b16 %v178
  %v917 = vunpack.c.l.b16 %v179
  %v918 = vunpack.c.l.b16 %v180
  %v919 = vunpack.c.l.b16 %v181
  %v920 = vpack.c.b16 %v889, %v888
  %v921 = vpack.c.b16 %v891, %v890
  %v922 = vpack.c.b16 %v893, %v892
  %v923 = vpack.c.b16 %v895, %v894
  %v924 = vpack.c.b16 %v897, %v896
  %v925 = vpack.c.b16 %v899, %v898
  %v926 = vpack.c.b16 %v901, %v900
  %v927 = vpack.c.b16 %v903, %v902
  %v928 = vpack.c.b16 %v905, %v904
  %v929 = vpack.c.b16 %v907, %v906
  %v930 = vpack.c.b16 %v909, %v908
  %v931 = vpack.c.b16 %v911, %v910
  %v932 = vpack.c.b16 %v913, %v912
  %v933 = vpack.c.b16 %v915, %v914
  %v934 = vpack.c.b16 %v917, %v916
  %v935 = vpack.c.b16 %v919, %v918
  %952 = vmatprep.subr.bf16.mxu0 0
  %953 = vmatpush1.bf16.msra.mxu0 %v920
  %954 = vmatprep.subr.bf16.mxu0 0
  %955 = vmatpush1.bf16.msra.mxu0 %v921
  %956 = vmatprep.subr.bf16.mxu0 0
  %957 = vmatpush1.bf16.msra.mxu0 %v922
  %958 = vmatprep.subr.bf16.mxu0 0
  %959 = vmatpush1.bf16.msra.mxu0 %v923
  %960 = vmatprep.subr.bf16.mxu0 0
  %961 = vmatpush1.bf16.msra.mxu0 %v924
  %962 = vmatprep.subr.bf16.mxu0 0
  %963 = vmatpush1.bf16.msra.mxu0 %v925
  %964 = vmatprep.subr.bf16.mxu0 0
  %965 = vmatpush1.bf16.msra.mxu0 %v926
  %966 = vmatprep.subr.bf16.mxu0 0
  %967 = vmatpush1.bf16.msra.mxu0 %v927
  %968 = vmatprep.subr.bf16.mxu0 0
  %969 = vmatpush1.bf16.msra.mxu0 %v928
  %970 = vmatprep.subr.bf16.mxu0 0
  %971 = vmatpush1.bf16.msra.mxu0 %v929
  %972 = vmatprep.subr.bf16.mxu0 0
  %973 = vmatpush1.bf16.msra.mxu0 %v930
  %974 = vmatprep.subr.bf16.mxu0 0
  %975 = vmatpush1.bf16.msra.mxu0 %v931
  %976 = vmatprep.subr.bf16.mxu0 0
  %977 = vmatpush1.bf16.msra.mxu0 %v932
  %978 = vmatprep.subr.bf16.mxu0 0
  %979 = vmatpush1.bf16.msra.mxu0 %v933
  %980 = vmatprep.subr.bf16.mxu0 0
  %981 = vmatpush1.bf16.msra.mxu0 %v934
  %982 = vmatprep.subr.bf16.mxu0 0
  %983 = vmatpush1.bf16.msra.mxu0 %v935
  %984 = vmatprep.mubr.bf16.mxu0 %v589
  %985 = vmatmul.mubr.bf16.gmra.mrb[0].mxu0 %v588
  %v986 = vpop.f32.mrb[0].mxu0
  %v987 = vadd.f32 %v187, %v986
  %v988 = vpop.f32.mrb[0].mxu0
  %v989 = vpop.f32.mrb[0].mxu0
  %v990 = vadd.f32 %v187, %v989
  %v991 = vpop.f32.mrb[0].mxu0
  %992 = vmatprep.mubr.bf16.mxu0 %v591
  %993 = vmatmul.mubr.bf16.gmra.mrb[0].mxu0 %v590
  %v994 = vpop.f32.mrb[0].mxu0
  %v995 = vadd.f32 %v187, %v994
  %v996 = vpop.f32.mrb[0].mxu0
  %v997 = vpop.f32.mrb[0].mxu0
  %v998 = vadd.f32 %v187, %v997
  %v999 = vpop.f32.mrb[0].mxu0
  %1000 = vmatprep.mubr.bf16.mxu0 %v593
  %1001 = vmatmul.mubr.bf16.gmra.mrb[0].mxu0 %v592
  %v1002 = vpop.f32.mrb[0].mxu0
  %v1003 = vadd.f32 %v187, %v1002
  %v1004 = vpop.f32.mrb[0].mxu0
  %v1005 = vpop.f32.mrb[0].mxu0
  %v1006 = vadd.f32 %v187, %v1005
  %v1007 = vpop.f32.mrb[0].mxu0
  %1008 = vmatprep.mubr.bf16.mxu0 %v595
  %1009 = vmatmul.mubr.bf16.gmra.mrb[0].mxu0 %v594
  %v1010 = vpop.f32.mrb[0].mxu0
  %v1011 = vadd.f32 %v187, %v1010
  %v1012 = vpop.f32.mrb[0].mxu0
  %v1013 = vpop.f32.mrb[0].mxu0
  %v1014 = vadd.f32 %v187, %v1013
  %v1015 = vpop.f32.mrb[0].mxu0
  %1016 = vmatprep.mubr.bf16.mxu0 %v597
  %1017 = vmatmul.mubr.bf16.gmra.mrb[0].mxu0 %v596
  %v1018 = vpop.f32.mrb[0].mxu0
  %v1019 = vadd.f32 %v187, %v1018
  %v1020 = vpop.f32.mrb[0].mxu0
  %v1021 = vpop.f32.mrb[0].mxu0
  %v1022 = vadd.f32 %v187, %v1021
  %v1023 = vpop.f32.mrb[0].mxu0
  %1024 = vmatprep.mubr.bf16.mxu0 %v599
  %1025 = vmatmul.mubr.bf16.gmra.mrb[0].mxu0 %v598
  %v1026 = vpop.f32.mrb[0].mxu0
  %v1027 = vadd.f32 %v187, %v1026
  %v1028 = vpop.f32.mrb[0].mxu0
  %v1029 = vpop.f32.mrb[0].mxu0
  %v1030 = vadd.f32 %v187, %v1029
  %v1031 = vpop.f32.mrb[0].mxu0
  %1032 = vmatprep.mubr.bf16.mxu0 %v601
  %1033 = vmatmul.mubr.bf16.gmra.mrb[0].mxu0 %v600
  %v1034 = vpop.f32.mrb[0].mxu0
  %v1035 = vadd.f32 %v187, %v1034
  %v1036 = vpop.f32.mrb[0].mxu0
  %v1037 = vpop.f32.mrb[0].mxu0
  %v1038 = vadd.f32 %v187, %v1037
  %v1039 = vpop.f32.mrb[0].mxu0
  %1040 = vmatprep.mubr.bf16.mxu0 %v603
  %1041 = vmatmul.mubr.bf16.gmra.mrb[0].mxu0 %v602
  %v1042 = vpop.f32.mrb[0].mxu0
  %v1043 = vadd.f32 %v187, %v1042
  %v1044 = vpop.f32.mrb[0].mxu0
  %v1045 = vpop.f32.mrb[0].mxu0
  %v1046 = vadd.f32 %v187, %v1045
  %v1047 = vpop.f32.mrb[0].mxu0
  %1048 = vmatprep.mubr.bf16.mxu0 %v605
  %1049 = vmatmul.mubr.bf16.gmra.mrb[0].mxu0 %v604
  %v1050 = vpop.f32.mrb[0].mxu0
  %v1051 = vadd.f32 %v187, %v1050
  %v1052 = vpop.f32.mrb[0].mxu0
  %v1053 = vpop.f32.mrb[0].mxu0
  %v1054 = vadd.f32 %v187, %v1053
  %v1055 = vpop.f32.mrb[0].mxu0
  %1056 = vmatprep.mubr.bf16.mxu0 %v607
  %1057 = vmatmul.mubr.bf16.gmra.mrb[0].mxu0 %v606
  %v1058 = vpop.f32.mrb[0].mxu0
  %v1059 = vadd.f32 %v187, %v1058
  %v1060 = vpop.f32.mrb[0].mxu0
  %v1061 = vpop.f32.mrb[0].mxu0
  %v1062 = vadd.f32 %v187, %v1061
  %v1063 = vpop.f32.mrb[0].mxu0
  %1064 = vmatprep.mubr.bf16.mxu0 %v609
  %1065 = vmatmul.mubr.bf16.gmra.mrb[0].mxu0 %v608
  %v1066 = vpop.f32.mrb[0].mxu0
  %v1067 = vadd.f32 %v187, %v1066
  %v1068 = vpop.f32.mrb[0].mxu0
  %v1069 = vpop.f32.mrb[0].mxu0
  %v1070 = vadd.f32 %v187, %v1069
  %v1071 = vpop.f32.mrb[0].mxu0
  %1072 = vmatprep.mubr.bf16.mxu0 %v611
  %1073 = vmatmul.mubr.bf16.gmra.mrb[0].mxu0 %v610
  %v1074 = vpop.f32.mrb[0].mxu0
  %v1075 = vadd.f32 %v187, %v1074
  %v1076 = vpop.f32.mrb[0].mxu0
  %v1077 = vpop.f32.mrb[0].mxu0
  %v1078 = vadd.f32 %v187, %v1077
  %v1079 = vpop.f32.mrb[0].mxu0
  %1080 = vmatprep.mubr.bf16.mxu0 %v613
  %1081 = vmatmul.mubr.bf16.gmra.mrb[0].mxu0 %v612
  %v1082 = vpop.f32.mrb[0].mxu0
  %v1083 = vadd.f32 %v187, %v1082
  %v1084 = vpop.f32.mrb[0].mxu0
  %v1085 = vpop.f32.mrb[0].mxu0
  %v1086 = vadd.f32 %v187, %v1085
  %v1087 = vpop.f32.mrb[0].mxu0
  %1088 = vmatprep.mubr.bf16.mxu0 %v615
  %1089 = vmatmul.mubr.bf16.gmra.mrb[0].mxu0 %v614
  %v1090 = vpop.f32.mrb[0].mxu0
  %v1091 = vadd.f32 %v187, %v1090
  %v1092 = vpop.f32.mrb[0].mxu0
  %v1093 = vpop.f32.mrb[0].mxu0
  %v1094 = vadd.f32 %v187, %v1093
  %v1095 = vpop.f32.mrb[0].mxu0
  %1096 = vmatprep.mubr.bf16.mxu0 %v617
  %1097 = vmatmul.mubr.bf16.gmra.mrb[0].mxu0 %v616
  %v1098 = vpop.f32.mrb[0].mxu0
  %v1099 = vadd.f32 %v187, %v1098
  %v1100 = vpop.f32.mrb[0].mxu0
  %v1101 = vpop.f32.mrb[0].mxu0
  %v1102 = vadd.f32 %v187, %v1101
  %v1103 = vpop.f32.mrb[0].mxu0
  %1104 = vmatprep.mubr.bf16.mxu0 %v619
  %1105 = vmatmul.mubr.bf16.gmra.mrb[0].mxu0 %v618
  %v1106 = vpop.f32.mrb[0].mxu0
  %v1107 = vadd.f32 %v187, %v1106
  %v1108 = vpop.f32.mrb[0].mxu0
  %v1109 = vpop.f32.mrb[0].mxu0
  %v1110 = vadd.f32 %v187, %v1109
  %v1111 = vpop.f32.mrb[0].mxu0
  %1112 = vmatprep.mubr.bf16.mxu0 %v621
  %1113 = vmatmul.mubr.bf16.gmra.mrb[0].mxu0 %v620
  %v1114 = vpop.f32.mrb[0].mxu0
  %v1115 = vadd.f32 %v187, %v1114
  %v1116 = vpop.f32.mrb[0].mxu0
  %v1117 = vpop.f32.mrb[0].mxu0
  %v1118 = vadd.f32 %v187, %v1117
  %v1119 = vpop.f32.mrb[0].mxu0
  %1120 = vmatprep.mubr.bf16.mxu0 %v623
  %1121 = vmatmul.mubr.bf16.gmra.mrb[0].mxu0 %v622
  %v1122 = vpop.f32.mrb[0].mxu0
  %v1123 = vadd.f32 %v187, %v1122
  %v1124 = vpop.f32.mrb[0].mxu0
  %v1125 = vpop.f32.mrb[0].mxu0
  %v1126 = vadd.f32 %v187, %v1125
  %v1127 = vpop.f32.mrb[0].mxu0
  %1128 = vmatprep.mubr.bf16.mxu0 %v625
  %1129 = vmatmul.mubr.bf16.gmra.mrb[0].mxu0 %v624
  %v1130 = vpop.f32.mrb[0].mxu0
  %v1131 = vadd.f32 %v187, %v1130
  %v1132 = vpop.f32.mrb[0].mxu0
  %v1133 = vpop.f32.mrb[0].mxu0
  %v1134 = vadd.f32 %v187, %v1133
  %v1135 = vpop.f32.mrb[0].mxu0
  %1136 = vmatprep.mubr.bf16.mxu0 %v627
  %1137 = vmatmul.mubr.bf16.gmra.mrb[0].mxu0 %v626
  %v1138 = vpop.f32.mrb[0].mxu0
  %v1139 = vadd.f32 %v187, %v1138
  %v1140 = vpop.f32.mrb[0].mxu0
  %v1141 = vpop.f32.mrb[0].mxu0
  %v1142 = vadd.f32 %v187, %v1141
  %v1143 = vpop.f32.mrb[0].mxu0
  %1144 = vmatprep.mubr.bf16.mxu0 %v629
  %1145 = vmatmul.mubr.bf16.gmra.mrb[0].mxu0 %v628
  %v1146 = vpop.f32.mrb[0].mxu0
  %v1147 = vadd.f32 %v187, %v1146
  %v1148 = vpop.f32.mrb[0].mxu0
  %v1149 = vpop.f32.mrb[0].mxu0
  %v1150 = vadd.f32 %v187, %v1149
  %v1151 = vpop.f32.mrb[0].mxu0
  %1152 = vmatprep.mubr.bf16.mxu0 %v631
  %1153 = vmatmul.mubr.bf16.gmra.mrb[0].mxu0 %v630
  %v1154 = vpop.f32.mrb[0].mxu0
  %v1155 = vadd.f32 %v187, %v1154
  %v1156 = vpop.f32.mrb[0].mxu0
  %v1157 = vpop.f32.mrb[0].mxu0
  %v1158 = vadd.f32 %v187, %v1157
  %v1159 = vpop.f32.mrb[0].mxu0
  %1160 = vmatprep.mubr.bf16.mxu0 %v633
  %1161 = vmatmul.mubr.bf16.gmra.mrb[0].mxu0 %v632
  %v1162 = vpop.f32.mrb[0].mxu0
  %v1163 = vadd.f32 %v187, %v1162
  %v1164 = vpop.f32.mrb[0].mxu0
  %v1165 = vpop.f32.mrb[0].mxu0
  %v1166 = vadd.f32 %v187, %v1165
  %v1167 = vpop.f32.mrb[0].mxu0
  %1168 = vmatprep.mubr.bf16.mxu0 %v635
  %1169 = vmatmul.mubr.bf16.gmra.mrb[0].mxu0 %v634
  %v1170 = vpop.f32.mrb[0].mxu0
  %v1171 = vadd.f32 %v187, %v1170
  %v1172 = vpop.f32.mrb[0].mxu0
  %v1173 = vpop.f32.mrb[0].mxu0
  %v1174 = vadd.f32 %v187, %v1173
  %v1175 = vpop.f32.mrb[0].mxu0
  %1176 = vmatprep.mubr.bf16.mxu0 %v637
  %1177 = vmatmul.mubr.bf16.gmra.mrb[0].mxu0 %v636
  %v1178 = vpop.f32.mrb[0].mxu0
  %v1179 = vadd.f32 %v187, %v1178
  %v1180 = vpop.f32.mrb[0].mxu0
  %v1181 = vpop.f32.mrb[0].mxu0
  %v1182 = vadd.f32 %v187, %v1181
  %v1183 = vpop.f32.mrb[0].mxu0
  %1184 = vmatprep.mubr.bf16.mxu0 %v639
  %1185 = vmatmul.mubr.bf16.gmra.mrb[0].mxu0 %v638
  %v1186 = vpop.f32.mrb[0].mxu0
  %v1187 = vadd.f32 %v187, %v1186
  %v1188 = vpop.f32.mrb[0].mxu0
  %v1189 = vpop.f32.mrb[0].mxu0
  %v1190 = vadd.f32 %v187, %v1189
  %v1191 = vpop.f32.mrb[0].mxu0
  %1192 = vmatprep.mubr.bf16.mxu0 %v641
  %1193 = vmatmul.mubr.bf16.gmra.mrb[0].mxu0 %v640
  %v1194 = vpop.f32.mrb[0].mxu0
  %v1195 = vadd.f32 %v187, %v1194
  %v1196 = vpop.f32.mrb[0].mxu0
  %v1197 = vpop.f32.mrb[0].mxu0
  %v1198 = vadd.f32 %v187, %v1197
  %v1199 = vpop.f32.mrb[0].mxu0
  %1200 = vmatprep.mubr.bf16.mxu0 %v643
  %1201 = vmatmul.mubr.bf16.gmra.mrb[0].mxu0 %v642
  %v1202 = vpop.f32.mrb[0].mxu0
  %v1203 = vadd.f32 %v187, %v1202
  %v1204 = vpop.f32.mrb[0].mxu0
  %v1205 = vpop.f32.mrb[0].mxu0
  %v1206 = vadd.f32 %v187, %v1205
  %v1207 = vpop.f32.mrb[0].mxu0
  %1208 = vmatprep.mubr.bf16.mxu0 %v645
  %1209 = vmatmul.mubr.bf16.gmra.mrb[0].mxu0 %v644
  %v1210 = vpop.f32.mrb[0].mxu0
  %v1211 = vadd.f32 %v187, %v1210
  %v1212 = vpop.f32.mrb[0].mxu0
  %v1213 = vpop.f32.mrb[0].mxu0
  %v1214 = vadd.f32 %v187, %v1213
  %v1215 = vpop.f32.mrb[0].mxu0
  %1216 = vmatprep.mubr.bf16.mxu0 %v647
  %1217 = vmatmul.mubr.bf16.gmra.mrb[0].mxu0 %v646
  %v1218 = vpop.f32.mrb[0].mxu0
  %v1219 = vadd.f32 %v187, %v1218
  %v1220 = vpop.f32.mrb[0].mxu0
  %v1221 = vpop.f32.mrb[0].mxu0
  %v1222 = vadd.f32 %v187, %v1221
  %v1223 = vpop.f32.mrb[0].mxu0
  %1224 = vmatprep.mubr.bf16.mxu0 %v649
  %1225 = vmatmul.mubr.bf16.gmra.mrb[0].mxu0 %v648
  %v1226 = vpop.f32.mrb[0].mxu0
  %v1227 = vadd.f32 %v187, %v1226
  %v1228 = vpop.f32.mrb[0].mxu0
  %v1229 = vpop.f32.mrb[0].mxu0
  %v1230 = vadd.f32 %v187, %v1229
  %v1231 = vpop.f32.mrb[0].mxu0
  %1232 = vmatprep.mubr.bf16.mxu0 %v651
  %1233 = vmatmul.mubr.bf16.gmra.mrb[0].mxu0 %v650
  %v1234 = vpop.f32.mrb[0].mxu0
  %v1235 = vadd.f32 %v187, %v1234
  %v1236 = vpop.f32.mrb[0].mxu0
  %v1237 = vpop.f32.mrb[0].mxu0
  %v1238 = vadd.f32 %v187, %v1237
  %v1239 = vpop.f32.mrb[0].mxu0
  %1240 = vmatprep.mubr.bf16.mxu0 %v653
  %1241 = vmatmul.mubr.bf16.gmra.mrb[0].mxu0 %v652
  %v1242 = vpop.f32.mrb[0].mxu0
  %v1243 = vadd.f32 %v187, %v1242
  %v1244 = vpop.f32.mrb[0].mxu0
  %v1245 = vpop.f32.mrb[0].mxu0
  %v1246 = vadd.f32 %v187, %v1245
  %v1247 = vpop.f32.mrb[0].mxu0
  %1248 = vmatprep.mubr.bf16.mxu0 %v655
  %1249 = vmatmul.mubr.bf16.gmra.mrb[0].mxu0 %v654
  %v1250 = vpop.f32.mrb[0].mxu0
  %v1251 = vadd.f32 %v187, %v1250
  %v1252 = vpop.f32.mrb[0].mxu0
  %v1253 = vpop.f32.mrb[0].mxu0
  %v1254 = vadd.f32 %v187, %v1253
  %v1255 = vpop.f32.mrb[0].mxu0
  %1256 = vmatprep.mubr.bf16.mxu0 %v657
  %1257 = vmatmul.mubr.bf16.gmra.mrb[0].mxu0 %v656
  %v1258 = vpop.f32.mrb[0].mxu0
  %v1259 = vadd.f32 %v187, %v1258
  %v1260 = vpop.f32.mrb[0].mxu0
  %v1261 = vpop.f32.mrb[0].mxu0
  %v1262 = vadd.f32 %v187, %v1261
  %v1263 = vpop.f32.mrb[0].mxu0
  %1264 = vmatprep.mubr.bf16.mxu0 %v659
  %1265 = vmatmul.mubr.bf16.gmra.mrb[0].mxu0 %v658
  %v1266 = vpop.f32.mrb[0].mxu0
  %v1267 = vadd.f32 %v187, %v1266
  %v1268 = vpop.f32.mrb[0].mxu0
  %v1269 = vpop.f32.mrb[0].mxu0
  %v1270 = vadd.f32 %v187, %v1269
  %v1271 = vpop.f32.mrb[0].mxu0
  %1272 = vmatprep.mubr.bf16.mxu0 %v661
  %1273 = vmatmul.mubr.bf16.gmra.mrb[0].mxu0 %v660
  %v1274 = vpop.f32.mrb[0].mxu0
  %v1275 = vadd.f32 %v187, %v1274
  %v1276 = vpop.f32.mrb[0].mxu0
  %v1277 = vpop.f32.mrb[0].mxu0
  %v1278 = vadd.f32 %v187, %v1277
  %v1279 = vpop.f32.mrb[0].mxu0
  %1280 = vmatprep.mubr.bf16.mxu0 %v663
  %1281 = vmatmul.mubr.bf16.gmra.mrb[0].mxu0 %v662
  %v1282 = vpop.f32.mrb[0].mxu0
  %v1283 = vadd.f32 %v187, %v1282
  %v1284 = vpop.f32.mrb[0].mxu0
  %v1285 = vpop.f32.mrb[0].mxu0
  %v1286 = vadd.f32 %v187, %v1285
  %v1287 = vpop.f32.mrb[0].mxu0
  %1288 = vmatprep.mubr.bf16.mxu0 %v665
  %1289 = vmatmul.mubr.bf16.gmra.mrb[0].mxu0 %v664
  %v1290 = vpop.f32.mrb[0].mxu0
  %v1291 = vadd.f32 %v187, %v1290
  %v1292 = vpop.f32.mrb[0].mxu0
  %v1293 = vpop.f32.mrb[0].mxu0
  %v1294 = vadd.f32 %v187, %v1293
  %v1295 = vpop.f32.mrb[0].mxu0
  %1296 = vmatprep.mubr.bf16.mxu0 %v667
  %1297 = vmatmul.mubr.bf16.gmra.mrb[0].mxu0 %v666
  %v1298 = vpop.f32.mrb[0].mxu0
  %v1299 = vadd.f32 %v187, %v1298
  %v1300 = vpop.f32.mrb[0].mxu0
  %v1301 = vpop.f32.mrb[0].mxu0
  %v1302 = vadd.f32 %v187, %v1301
  %v1303 = vpop.f32.mrb[0].mxu0
  %1304 = vmatprep.mubr.bf16.mxu0 %v669
  %1305 = vmatmul.mubr.bf16.gmra.mrb[0].mxu0 %v668
  %v1306 = vpop.f32.mrb[0].mxu0
  %v1307 = vadd.f32 %v187, %v1306
  %v1308 = vpop.f32.mrb[0].mxu0
  %v1309 = vpop.f32.mrb[0].mxu0
  %v1310 = vadd.f32 %v187, %v1309
  %v1311 = vpop.f32.mrb[0].mxu0
  %1312 = vmatprep.mubr.bf16.mxu0 %v671
  %1313 = vmatmul.mubr.bf16.gmra.mrb[0].mxu0 %v670
  %v1314 = vpop.f32.mrb[0].mxu0
  %v1315 = vadd.f32 %v187, %v1314
  %v1316 = vpop.f32.mrb[0].mxu0
  %v1317 = vpop.f32.mrb[0].mxu0
  %v1318 = vadd.f32 %v187, %v1317
  %v1319 = vpop.f32.mrb[0].mxu0
  %1320 = vmatprep.mubr.bf16.mxu0 %v673
  %1321 = vmatmul.mubr.bf16.gmra.mrb[0].mxu0 %v672
  %v1322 = vpop.f32.mrb[0].mxu0
  %v1323 = vadd.f32 %v187, %v1322
  %v1324 = vpop.f32.mrb[0].mxu0
  %v1325 = vpop.f32.mrb[0].mxu0
  %v1326 = vadd.f32 %v187, %v1325
  %v1327 = vpop.f32.mrb[0].mxu0
  %1328 = vmatprep.mubr.bf16.mxu0 %v675
  %1329 = vmatmul.mubr.bf16.gmra.mrb[0].mxu0 %v674
  %v1330 = vpop.f32.mrb[0].mxu0
  %v1331 = vadd.f32 %v187, %v1330
  %v1332 = vpop.f32.mrb[0].mxu0
  %v1333 = vpop.f32.mrb[0].mxu0
  %v1334 = vadd.f32 %v187, %v1333
  %v1335 = vpop.f32.mrb[0].mxu0
  %1336 = vmatprep.mubr.bf16.mxu0 %v677
  %1337 = vmatmul.mubr.bf16.gmra.mrb[0].mxu0 %v676
  %v1338 = vpop.f32.mrb[0].mxu0
  %v1339 = vadd.f32 %v187, %v1338
  %v1340 = vpop.f32.mrb[0].mxu0
  %v1341 = vpop.f32.mrb[0].mxu0
  %v1342 = vadd.f32 %v187, %v1341
  %v1343 = vpop.f32.mrb[0].mxu0
  %1344 = vmatprep.mubr.bf16.mxu0 %v679
  %1345 = vmatmul.mubr.bf16.gmra.mrb[0].mxu0 %v678
  %v1346 = vpop.f32.mrb[0].mxu0
  %v1347 = vadd.f32 %v187, %v1346
  %v1348 = vpop.f32.mrb[0].mxu0
  %v1349 = vpop.f32.mrb[0].mxu0
  %v1350 = vadd.f32 %v187, %v1349
  %v1351 = vpop.f32.mrb[0].mxu0
  %1352 = vmatprep.mubr.bf16.mxu0 %v681
  %1353 = vmatmul.mubr.bf16.gmra.mrb[0].mxu0 %v680
  %v1354 = vpop.f32.mrb[0].mxu0
  %v1355 = vadd.f32 %v187, %v1354
  %v1356 = vpop.f32.mrb[0].mxu0
  %v1357 = vpop.f32.mrb[0].mxu0
  %v1358 = vadd.f32 %v187, %v1357
  %v1359 = vpop.f32.mrb[0].mxu0
  %1360 = vmatprep.mubr.bf16.mxu0 %v683
  %1361 = vmatmul.mubr.bf16.gmra.mrb[0].mxu0 %v682
  %v1362 = vpop.f32.mrb[0].mxu0
  %v1363 = vadd.f32 %v187, %v1362
  %v1364 = vpop.f32.mrb[0].mxu0
  %v1365 = vpop.f32.mrb[0].mxu0
  %v1366 = vadd.f32 %v187, %v1365
  %v1367 = vpop.f32.mrb[0].mxu0
  %1368 = vmatprep.mubr.bf16.mxu0 %v685
  %1369 = vmatmul.mubr.bf16.gmra.mrb[0].mxu0 %v684
  %v1370 = vpop.f32.mrb[0].mxu0
  %v1371 = vadd.f32 %v187, %v1370
  %v1372 = vpop.f32.mrb[0].mxu0
  %v1373 = vpop.f32.mrb[0].mxu0
  %v1374 = vadd.f32 %v187, %v1373
  %v1375 = vpop.f32.mrb[0].mxu0
  %1376 = vmatprep.mubr.bf16.mxu0 %v687
  %1377 = vmatmul.mubr.bf16.gmra.mrb[0].mxu0 %v686
  %v1378 = vpop.f32.mrb[0].mxu0
  %v1379 = vadd.f32 %v187, %v1378
  %v1380 = vpop.f32.mrb[0].mxu0
  %v1381 = vpop.f32.mrb[0].mxu0
  %v1382 = vadd.f32 %v187, %v1381
  %v1383 = vpop.f32.mrb[0].mxu0
  %1384 = vmatprep.mubr.bf16.mxu0 %v689
  %1385 = vmatmul.mubr.bf16.gmra.mrb[0].mxu0 %v688
  %v1386 = vpop.f32.mrb[0].mxu0
  %v1387 = vadd.f32 %v187, %v1386
  %v1388 = vpop.f32.mrb[0].mxu0
  %v1389 = vpop.f32.mrb[0].mxu0
  %v1390 = vadd.f32 %v187, %v1389
  %v1391 = vpop.f32.mrb[0].mxu0
  %1392 = vmatprep.mubr.bf16.mxu0 %v691
  %1393 = vmatmul.mubr.bf16.gmra.mrb[0].mxu0 %v690
  %v1394 = vpop.f32.mrb[0].mxu0
  %v1395 = vadd.f32 %v187, %v1394
  %v1396 = vpop.f32.mrb[0].mxu0
  %v1397 = vpop.f32.mrb[0].mxu0
  %v1398 = vadd.f32 %v187, %v1397
  %v1399 = vpop.f32.mrb[0].mxu0
  %1400 = vmatprep.mubr.bf16.mxu0 %v693
  %1401 = vmatmul.mubr.bf16.gmra.mrb[0].mxu0 %v692
  %v1402 = vpop.f32.mrb[0].mxu0
  %v1403 = vadd.f32 %v187, %v1402
  %v1404 = vpop.f32.mrb[0].mxu0
  %v1405 = vpop.f32.mrb[0].mxu0
  %v1406 = vadd.f32 %v187, %v1405
  %v1407 = vpop.f32.mrb[0].mxu0
  %1408 = vmatprep.mubr.bf16.mxu0 %v695
  %1409 = vmatmul.mubr.bf16.gmra.mrb[0].mxu0 %v694
  %v1410 = vpop.f32.mrb[0].mxu0
  %v1411 = vadd.f32 %v187, %v1410
  %v1412 = vpop.f32.mrb[0].mxu0
  %v1413 = vpop.f32.mrb[0].mxu0
  %v1414 = vadd.f32 %v187, %v1413
  %v1415 = vpop.f32.mrb[0].mxu0
  %1416 = vmatprep.mubr.bf16.mxu0 %v697
  %1417 = vmatmul.mubr.bf16.gmra.mrb[0].mxu0 %v696
  %v1418 = vpop.f32.mrb[0].mxu0
  %v1419 = vadd.f32 %v187, %v1418
  %v1420 = vpop.f32.mrb[0].mxu0
  %v1421 = vpop.f32.mrb[0].mxu0
  %v1422 = vadd.f32 %v187, %v1421
  %v1423 = vpop.f32.mrb[0].mxu0
  %1424 = vmatprep.mubr.bf16.mxu0 %v699
  %1425 = vmatmul.mubr.bf16.gmra.mrb[0].mxu0 %v698
  %v1426 = vpop.f32.mrb[0].mxu0
  %v1427 = vadd.f32 %v187, %v1426
  %v1428 = vpop.f32.mrb[0].mxu0
  %v1429 = vpop.f32.mrb[0].mxu0
  %v1430 = vadd.f32 %v187, %v1429
  %v1431 = vpop.f32.mrb[0].mxu0
  %1432 = vmatprep.mubr.bf16.mxu0 %v701
  %1433 = vmatmul.mubr.bf16.gmra.mrb[0].mxu0 %v700
  %v1434 = vpop.f32.mrb[0].mxu0
  %v1435 = vadd.f32 %v187, %v1434
  %v1436 = vpop.f32.mrb[0].mxu0
  %v1437 = vpop.f32.mrb[0].mxu0
  %v1438 = vadd.f32 %v187, %v1437
  %v1439 = vpop.f32.mrb[0].mxu0
  %1440 = vmatprep.mubr.bf16.mxu0 %v703
  %1441 = vmatmul.mubr.bf16.gmra.mrb[0].mxu0 %v702
  %v1442 = vpop.f32.mrb[0].mxu0
  %v1443 = vadd.f32 %v187, %v1442
  %v1444 = vpop.f32.mrb[0].mxu0
  %v1445 = vpop.f32.mrb[0].mxu0
  %v1446 = vadd.f32 %v187, %v1445
  %v1447 = vpop.f32.mrb[0].mxu0
  %1448 = vmatprep.mubr.bf16.mxu0 %v705
  %1449 = vmatmul.mubr.bf16.gmra.mrb[0].mxu0 %v704
  %v1450 = vpop.f32.mrb[0].mxu0
  %v1451 = vadd.f32 %v187, %v1450
  %v1452 = vpop.f32.mrb[0].mxu0
  %v1453 = vpop.f32.mrb[0].mxu0
  %v1454 = vadd.f32 %v187, %v1453
  %v1455 = vpop.f32.mrb[0].mxu0
  %1456 = vmatprep.mubr.bf16.mxu0 %v707
  %1457 = vmatmul.mubr.bf16.gmra.mrb[0].mxu0 %v706
  %v1458 = vpop.f32.mrb[0].mxu0
  %v1459 = vadd.f32 %v187, %v1458
  %v1460 = vpop.f32.mrb[0].mxu0
  %v1461 = vpop.f32.mrb[0].mxu0
  %v1462 = vadd.f32 %v187, %v1461
  %v1463 = vpop.f32.mrb[0].mxu0
  %1464 = vmatprep.mubr.bf16.mxu0 %v709
  %1465 = vmatmul.mubr.bf16.gmra.mrb[0].mxu0 %v708
  %v1466 = vpop.f32.mrb[0].mxu0
  %v1467 = vadd.f32 %v187, %v1466
  %v1468 = vpop.f32.mrb[0].mxu0
  %v1469 = vpop.f32.mrb[0].mxu0
  %v1470 = vadd.f32 %v187, %v1469
  %v1471 = vpop.f32.mrb[0].mxu0
  %1472 = vmatprep.mubr.bf16.mxu0 %v711
  %1473 = vmatmul.mubr.bf16.gmra.mrb[0].mxu0 %v710
  %v1474 = vpop.f32.mrb[0].mxu0
  %v1475 = vadd.f32 %v187, %v1474
  %v1476 = vpop.f32.mrb[0].mxu0
  %v1477 = vpop.f32.mrb[0].mxu0
  %v1478 = vadd.f32 %v187, %v1477
  %v1479 = vpop.f32.mrb[0].mxu0
  %1480 = vmatprep.mubr.bf16.mxu0 %v713
  %1481 = vmatmul.mubr.bf16.gmra.mrb[0].mxu0 %v712
  %v1482 = vpop.f32.mrb[0].mxu0
  %v1483 = vadd.f32 %v187, %v1482
  %v1484 = vpop.f32.mrb[0].mxu0
  %v1485 = vpop.f32.mrb[0].mxu0
  %v1486 = vadd.f32 %v187, %v1485
  %v1487 = vpop.f32.mrb[0].mxu0
  %1488 = vmatprep.mubr.bf16.mxu0 %v715
  %1489 = vmatmul.mubr.bf16.gmra.mrb[0].mxu0 %v714
  %v1490 = vpop.f32.mrb[0].mxu0
  %v1491 = vadd.f32 %v187, %v1490
  %v1492 = vpop.f32.mrb[0].mxu0
  %v1493 = vpop.f32.mrb[0].mxu0
  %v1494 = vadd.f32 %v187, %v1493
  %v1495 = vpop.f32.mrb[0].mxu0
  %1496 = vmatprep.mubr.bf16.mxu0 %v717
  %1497 = vmatmul.mubr.bf16.gmra.mrb[0].mxu0 %v716
  %v1498 = vpop.f32.mrb[0].mxu0
  %v1499 = vadd.f32 %v187, %v1498
  %v1500 = vpop.f32.mrb[0].mxu0
  %v1501 = vpop.f32.mrb[0].mxu0
  %v1502 = vadd.f32 %v187, %v1501
  %v1503 = vpop.f32.mrb[0].mxu0
  %1504 = vmatprep.mubr.bf16.mxu0 %v719
  %1505 = vmatmul.mubr.bf16.gmra.mrb[0].mxu0 %v718
  %v1506 = vpop.f32.mrb[0].mxu0
  %v1507 = vadd.f32 %v187, %v1506
  %v1508 = vpop.f32.mrb[0].mxu0
  %v1509 = vpop.f32.mrb[0].mxu0
  %v1510 = vadd.f32 %v187, %v1509
  %v1511 = vpop.f32.mrb[0].mxu0
  %1512 = vmatprep.mubr.bf16.mxu0 %v721
  %1513 = vmatmul.mubr.bf16.gmra.mrb[0].mxu0 %v720
  %v1514 = vpop.f32.mrb[0].mxu0
  %v1515 = vadd.f32 %v187, %v1514
  %v1516 = vpop.f32.mrb[0].mxu0
  %v1517 = vpop.f32.mrb[0].mxu0
  %v1518 = vpop.f32.mrb[0].mxu0
  %1519 = vdwg.mxu0
  %v1520 = vpack.c.bf16 %v990, %v987
  %v1521 = vpack.c.bf16 %v998, %v995
  %v1522 = vpack.c.bf16 %v1006, %v1003
  %v1523 = vpack.c.bf16 %v1014, %v1011
  %v1524 = vpack.c.bf16 %v1022, %v1019
  %v1525 = vpack.c.bf16 %v1030, %v1027
  %v1526 = vpack.c.bf16 %v1038, %v1035
  %v1527 = vpack.c.bf16 %v1046, %v1043
  %v1528 = vpack.c.bf16 %v1054, %v1051
  %v1529 = vpack.c.bf16 %v1062, %v1059
  %v1530 = vpack.c.bf16 %v1070, %v1067
  %v1531 = vpack.c.bf16 %v1078, %v1075
  %v1532 = vpack.c.bf16 %v1086, %v1083
  %v1533 = vpack.c.bf16 %v1094, %v1091
  %v1534 = vpack.c.bf16 %v1102, %v1099
  %v1535 = vpack.c.bf16 %v1110, %v1107
  %v1536 = vpack.c.bf16 %v1118, %v1115
  %v1537 = vpack.c.bf16 %v1126, %v1123
  %v1538 = vpack.c.bf16 %v1134, %v1131
  %v1539 = vpack.c.bf16 %v1142, %v1139
  %v1540 = vpack.c.bf16 %v1150, %v1147
  %v1541 = vpack.c.bf16 %v1158, %v1155
  %v1542 = vpack.c.bf16 %v1166, %v1163
  %v1543 = vpack.c.bf16 %v1174, %v1171
  %v1544 = vpack.c.bf16 %v1182, %v1179
  %v1545 = vpack.c.bf16 %v1190, %v1187
  %v1546 = vpack.c.bf16 %v1198, %v1195
  %v1547 = vpack.c.bf16 %v1206, %v1203
  %v1548 = vpack.c.bf16 %v1214, %v1211
  %v1549 = vpack.c.bf16 %v1222, %v1219
  %v1550 = vpack.c.bf16 %v1230, %v1227
  %v1551 = vpack.c.bf16 %v1238, %v1235
  %v1552 = vpack.c.bf16 %v1246, %v1243
  %v1553 = vpack.c.bf16 %v1254, %v1251
  %v1554 = vpack.c.bf16 %v1262, %v1259
  %v1555 = vpack.c.bf16 %v1270, %v1267
  %v1556 = vpack.c.bf16 %v1278, %v1275
  %v1557 = vpack.c.bf16 %v1286, %v1283
  %v1558 = vpack.c.bf16 %v1294, %v1291
  %v1559 = vpack.c.bf16 %v1302, %v1299
  %v1560 = vpack.c.bf16 %v1310, %v1307
  %v1561 = vpack.c.bf16 %v1318, %v1315
  %v1562 = vpack.c.bf16 %v1326, %v1323
  %v1563 = vpack.c.bf16 %v1334, %v1331
  %v1564 = vpack.c.bf16 %v1342, %v1339
  %v1565 = vpack.c.bf16 %v1350, %v1347
  %v1566 = vpack.c.bf16 %v1358, %v1355
  %v1567 = vpack.c.bf16 %v1366, %v1363
  %v1568 = vpack.c.bf16 %v1374, %v1371
  %v1569 = vpack.c.bf16 %v1382, %v1379
  %v1570 = vpack.c.bf16 %v1390, %v1387
  %v1571 = vpack.c.bf16 %v1398, %v1395
  %v1572 = vpack.c.bf16 %v1406, %v1403
  %v1573 = vpack.c.bf16 %v1414, %v1411
  %v1574 = vpack.c.bf16 %v1422, %v1419
  %v1575 = vpack.c.bf16 %v1430, %v1427
  %v1576 = vpack.c.bf16 %v1438, %v1435
  %v1577 = vpack.c.bf16 %v1446, %v1443
  %v1578 = vpack.c.bf16 %v1454, %v1451
  %v1579 = vpack.c.bf16 %v1462, %v1459
  %v1580 = vpack.c.bf16 %v1470, %v1467
  %v1581 = vpack.c.bf16 %v1478, %v1475
  %v1582 = vpack.c.bf16 %v1486, %v1483
  %v1583 = vpack.c.bf16 %v1494, %v1491
  %v1584 = vpack.c.bf16 %v1502, %v1499
  %v1585 = vpack.c.bf16 %v1510, %v1507
  %v1586 = vpack.c.bf16 %v1515, %v1515
  %v1654 = vunpack.c.l.b16 %v1520
  %v1655 = vunpack.c.h.b16 %v1520
  %v1656 = vunpack.c.l.b16 %v1521
  %v1657 = vunpack.c.h.b16 %v1521
  %v1658 = vunpack.c.l.b16 %v1522
  %v1659 = vunpack.c.h.b16 %v1522
  %v1660 = vunpack.c.l.b16 %v1523
  %v1661 = vunpack.c.h.b16 %v1523
  %v1662 = vunpack.c.l.b16 %v1524
  %v1663 = vunpack.c.h.b16 %v1524
  %v1664 = vunpack.c.l.b16 %v1525
  %v1665 = vunpack.c.h.b16 %v1525
  %v1666 = vunpack.c.l.b16 %v1526
  %v1667 = vunpack.c.h.b16 %v1526
  %v1668 = vunpack.c.l.b16 %v1527
  %v1669 = vunpack.c.h.b16 %v1527
  %v1670 = vunpack.c.l.b16 %v1528
  %v1671 = vunpack.c.h.b16 %v1528
  %v1672 = vunpack.c.l.b16 %v1529
  %v1673 = vunpack.c.h.b16 %v1529
  %v1674 = vunpack.c.l.b16 %v1530
  %v1675 = vunpack.c.h.b16 %v1530
  %v1676 = vunpack.c.l.b16 %v1531
  %v1677 = vunpack.c.h.b16 %v1531
  %v1678 = vunpack.c.l.b16 %v1532
  %v1679 = vunpack.c.h.b16 %v1532
  %v1680 = vunpack.c.l.b16 %v1533
  %v1681 = vunpack.c.h.b16 %v1533
  %v1682 = vunpack.c.l.b16 %v1534
  %v1683 = vunpack.c.h.b16 %v1534
  %v1684 = vunpack.c.l.b16 %v1535
  %v1685 = vunpack.c.h.b16 %v1535
  %v1686 = vunpack.c.l.b16 %v1536
  %v1687 = vunpack.c.h.b16 %v1536
  %v1688 = vunpack.c.l.b16 %v1537
  %v1689 = vunpack.c.h.b16 %v1537
  %v1690 = vunpack.c.l.b16 %v1538
  %v1691 = vunpack.c.h.b16 %v1538
  %v1692 = vunpack.c.l.b16 %v1539
  %v1693 = vunpack.c.h.b16 %v1539
  %v1694 = vunpack.c.l.b16 %v1540
  %v1695 = vunpack.c.h.b16 %v1540
  %v1696 = vunpack.c.l.b16 %v1541
  %v1697 = vunpack.c.h.b16 %v1541
  %v1698 = vunpack.c.l.b16 %v1542
  %v1699 = vunpack.c.h.b16 %v1542
  %v1700 = vunpack.c.l.b16 %v1543
  %v1701 = vunpack.c.h.b16 %v1543
  %v1702 = vunpack.c.l.b16 %v1544
  %v1703 = vunpack.c.h.b16 %v1544
  %v1704 = vunpack.c.l.b16 %v1545
  %v1705 = vunpack.c.h.b16 %v1545
  %v1706 = vunpack.c.l.b16 %v1546
  %v1707 = vunpack.c.h.b16 %v1546
  %v1708 = vunpack.c.l.b16 %v1547
  %v1709 = vunpack.c.h.b16 %v1547
  %v1710 = vunpack.c.l.b16 %v1548
  %v1711 = vunpack.c.h.b16 %v1548
  %v1712 = vunpack.c.l.b16 %v1549
  %v1713 = vunpack.c.h.b16 %v1549
  %v1714 = vunpack.c.l.b16 %v1550
  %v1715 = vunpack.c.h.b16 %v1550
  %v1716 = vunpack.c.l.b16 %v1551
  %v1717 = vunpack.c.h.b16 %v1551
  %v1718 = vunpack.c.l.b16 %v1552
  %v1719 = vunpack.c.h.b16 %v1552
  %v1720 = vunpack.c.l.b16 %v1553
  %v1721 = vunpack.c.h.b16 %v1553
  %v1722 = vunpack.c.l.b16 %v1554
  %v1723 = vunpack.c.h.b16 %v1554
  %v1724 = vunpack.c.l.b16 %v1555
  %v1725 = vunpack.c.h.b16 %v1555
  %v1726 = vunpack.c.l.b16 %v1556
  %v1727 = vunpack.c.h.b16 %v1556
  %v1728 = vunpack.c.l.b16 %v1557
  %v1729 = vunpack.c.h.b16 %v1557
  %v1730 = vunpack.c.l.b16 %v1558
  %v1731 = vunpack.c.h.b16 %v1558
  %v1732 = vunpack.c.l.b16 %v1559
  %v1733 = vunpack.c.h.b16 %v1559
  %v1734 = vunpack.c.l.b16 %v1560
  %v1735 = vunpack.c.h.b16 %v1560
  %v1736 = vunpack.c.l.b16 %v1561
  %v1737 = vunpack.c.h.b16 %v1561
  %v1738 = vunpack.c.l.b16 %v1562
  %v1739 = vunpack.c.h.b16 %v1562
  %v1740 = vunpack.c.l.b16 %v1563
  %v1741 = vunpack.c.h.b16 %v1563
  %v1742 = vunpack.c.l.b16 %v1564
  %v1743 = vunpack.c.h.b16 %v1564
  %v1744 = vunpack.c.l.b16 %v1565
  %v1745 = vunpack.c.h.b16 %v1565
  %v1746 = vunpack.c.l.b16 %v1566
  %v1747 = vunpack.c.h.b16 %v1566
  %v1748 = vunpack.c.l.b16 %v1567
  %v1749 = vunpack.c.h.b16 %v1567
  %v1750 = vunpack.c.l.b16 %v1568
  %v1751 = vunpack.c.h.b16 %v1568
  %v1752 = vunpack.c.l.b16 %v1569
  %v1753 = vunpack.c.h.b16 %v1569
  %v1754 = vunpack.c.l.b16 %v1570
  %v1755 = vunpack.c.h.b16 %v1570
  %v1756 = vunpack.c.l.b16 %v1571
  %v1757 = vunpack.c.h.b16 %v1571
  %v1758 = vunpack.c.l.b16 %v1572
  %v1759 = vunpack.c.h.b16 %v1572
  %v1760 = vunpack.c.l.b16 %v1573
  %v1761 = vunpack.c.h.b16 %v1573
  %v1762 = vunpack.c.l.b16 %v1574
  %v1763 = vunpack.c.h.b16 %v1574
  %v1764 = vunpack.c.l.b16 %v1575
  %v1765 = vunpack.c.h.b16 %v1575
  %v1766 = vunpack.c.l.b16 %v1576
  %v1767 = vunpack.c.h.b16 %v1576
  %v1768 = vunpack.c.l.b16 %v1577
  %v1769 = vunpack.c.h.b16 %v1577
  %v1770 = vunpack.c.l.b16 %v1578
  %v1771 = vunpack.c.h.b16 %v1578
  %v1772 = vunpack.c.l.b16 %v1579
  %v1773 = vunpack.c.h.b16 %v1579
  %v1774 = vunpack.c.l.b16 %v1580
  %v1775 = vunpack.c.h.b16 %v1580
  %v1776 = vunpack.c.l.b16 %v1581
  %v1777 = vunpack.c.h.b16 %v1581
  %v1778 = vunpack.c.l.b16 %v1582
  %v1779 = vunpack.c.h.b16 %v1582
  %v1780 = vunpack.c.l.b16 %v1583
  %v1781 = vunpack.c.h.b16 %v1583
  %v1782 = vunpack.c.l.b16 %v1584
  %v1783 = vunpack.c.h.b16 %v1584
  %v1784 = vunpack.c.l.b16 %v1585
  %v1785 = vunpack.c.h.b16 %v1585
  %v1786 = vunpack.c.l.b16 %v1586
  %v1787 = vpack.c.b16 %v1654, %v1654
  %v1788 = vpack.c.b16 %v1655, %v1655
  %v1789 = vpack.c.b16 %v1656, %v1656
  %v1790 = vpack.c.b16 %v1657, %v1657
  %v1791 = vpack.c.b16 %v1658, %v1658
  %v1792 = vpack.c.b16 %v1659, %v1659
  %v1793 = vpack.c.b16 %v1660, %v1660
  %v1794 = vpack.c.b16 %v1661, %v1661
  %v1795 = vpack.c.b16 %v1662, %v1662
  %v1796 = vpack.c.b16 %v1663, %v1663
  %v1797 = vpack.c.b16 %v1664, %v1664
  %v1798 = vpack.c.b16 %v1665, %v1665
  %v1799 = vpack.c.b16 %v1666, %v1666
  %v1800 = vpack.c.b16 %v1667, %v1667
  %v1801 = vpack.c.b16 %v1668, %v1668
  %v1802 = vpack.c.b16 %v1669, %v1669
  %v1803 = vpack.c.b16 %v1670, %v1670
  %v1804 = vpack.c.b16 %v1671, %v1671
  %v1805 = vpack.c.b16 %v1672, %v1672
  %v1806 = vpack.c.b16 %v1673, %v1673
  %v1807 = vpack.c.b16 %v1674, %v1674
  %v1808 = vpack.c.b16 %v1675, %v1675
  %v1809 = vpack.c.b16 %v1676, %v1676
  %v1810 = vpack.c.b16 %v1677, %v1677
  %v1811 = vpack.c.b16 %v1678, %v1678
  %v1812 = vpack.c.b16 %v1679, %v1679
  %v1813 = vpack.c.b16 %v1680, %v1680
  %v1814 = vpack.c.b16 %v1681, %v1681
  %v1815 = vpack.c.b16 %v1682, %v1682
  %v1816 = vpack.c.b16 %v1683, %v1683
  %v1817 = vpack.c.b16 %v1684, %v1684
  %v1818 = vpack.c.b16 %v1685, %v1685
  %v1819 = vpack.c.b16 %v1686, %v1686
  %v1820 = vpack.c.b16 %v1687, %v1687
  %v1821 = vpack.c.b16 %v1688, %v1688
  %v1822 = vpack.c.b16 %v1689, %v1689
  %v1823 = vpack.c.b16 %v1690, %v1690
  %v1824 = vpack.c.b16 %v1691, %v1691
  %v1825 = vpack.c.b16 %v1692, %v1692
  %v1826 = vpack.c.b16 %v1693, %v1693
  %v1827 = vpack.c.b16 %v1694, %v1694
  %v1828 = vpack.c.b16 %v1695, %v1695
  %v1829 = vpack.c.b16 %v1696, %v1696
  %v1830 = vpack.c.b16 %v1697, %v1697
  %v1831 = vpack.c.b16 %v1698, %v1698
  %v1832 = vpack.c.b16 %v1699, %v1699
  %v1833 = vpack.c.b16 %v1700, %v1700
  %v1834 = vpack.c.b16 %v1701, %v1701
  %v1835 = vpack.c.b16 %v1702, %v1702
  %v1836 = vpack.c.b16 %v1703, %v1703
  %v1837 = vpack.c.b16 %v1704, %v1704
  %v1838 = vpack.c.b16 %v1705, %v1705
  %v1839 = vpack.c.b16 %v1706, %v1706
  %v1840 = vpack.c.b16 %v1707, %v1707
  %v1841 = vpack.c.b16 %v1708, %v1708
  %v1842 = vpack.c.b16 %v1709, %v1709
  %v1843 = vpack.c.b16 %v1710, %v1710
  %v1844 = vpack.c.b16 %v1711, %v1711
  %v1845 = vpack.c.b16 %v1712, %v1712
  %v1846 = vpack.c.b16 %v1713, %v1713
  %v1847 = vpack.c.b16 %v1714, %v1714
  %v1848 = vpack.c.b16 %v1715, %v1715
  %v1849 = vpack.c.b16 %v1716, %v1716
  %v1850 = vpack.c.b16 %v1717, %v1717
  %v1851 = vpack.c.b16 %v1718, %v1718
  %v1852 = vpack.c.b16 %v1719, %v1719
  %v1853 = vpack.c.b16 %v1720, %v1720
  %v1854 = vpack.c.b16 %v1721, %v1721
  %v1855 = vpack.c.b16 %v1722, %v1722
  %v1856 = vpack.c.b16 %v1723, %v1723
  %v1857 = vpack.c.b16 %v1724, %v1724
  %v1858 = vpack.c.b16 %v1725, %v1725
  %v1859 = vpack.c.b16 %v1726, %v1726
  %v1860 = vpack.c.b16 %v1727, %v1727
  %v1861 = vpack.c.b16 %v1728, %v1728
  %v1862 = vpack.c.b16 %v1729, %v1729
  %v1863 = vpack.c.b16 %v1730, %v1730
  %v1864 = vpack.c.b16 %v1731, %v1731
  %v1865 = vpack.c.b16 %v1732, %v1732
  %v1866 = vpack.c.b16 %v1733, %v1733
  %v1867 = vpack.c.b16 %v1734, %v1734
  %v1868 = vpack.c.b16 %v1735, %v1735
  %v1869 = vpack.c.b16 %v1736, %v1736
  %v1870 = vpack.c.b16 %v1737, %v1737
  %v1871 = vpack.c.b16 %v1738, %v1738
  %v1872 = vpack.c.b16 %v1739, %v1739
  %v1873 = vpack.c.b16 %v1740, %v1740
  %v1874 = vpack.c.b16 %v1741, %v1741
  %v1875 = vpack.c.b16 %v1742, %v1742
  %v1876 = vpack.c.b16 %v1743, %v1743
  %v1877 = vpack.c.b16 %v1744, %v1744
  %v1878 = vpack.c.b16 %v1745, %v1745
  %v1879 = vpack.c.b16 %v1746, %v1746
  %v1880 = vpack.c.b16 %v1747, %v1747
  %v1881 = vpack.c.b16 %v1748, %v1748
  %v1882 = vpack.c.b16 %v1749, %v1749
  %v1883 = vpack.c.b16 %v1750, %v1750
  %v1884 = vpack.c.b16 %v1751, %v1751
  %v1885 = vpack.c.b16 %v1752, %v1752
  %v1886 = vpack.c.b16 %v1753, %v1753
  %v1887 = vpack.c.b16 %v1754, %v1754
  %v1888 = vpack.c.b16 %v1755, %v1755
  %v1889 = vpack.c.b16 %v1756, %v1756
  %v1890 = vpack.c.b16 %v1757, %v1757
  %v1891 = vpack.c.b16 %v1758, %v1758
  %v1892 = vpack.c.b16 %v1759, %v1759
  %v1893 = vpack.c.b16 %v1760, %v1760
  %v1894 = vpack.c.b16 %v1761, %v1761
  %v1895 = vpack.c.b16 %v1762, %v1762
  %v1896 = vpack.c.b16 %v1763, %v1763
  %v1897 = vpack.c.b16 %v1764, %v1764
  %v1898 = vpack.c.b16 %v1765, %v1765
  %v1899 = vpack.c.b16 %v1766, %v1766
  %v1900 = vpack.c.b16 %v1767, %v1767
  %v1901 = vpack.c.b16 %v1768, %v1768
  %v1902 = vpack.c.b16 %v1769, %v1769
  %v1903 = vpack.c.b16 %v1770, %v1770
  %v1904 = vpack.c.b16 %v1771, %v1771
  %v1905 = vpack.c.b16 %v1772, %v1772
  %v1906 = vpack.c.b16 %v1773, %v1773
  %v1907 = vpack.c.b16 %v1774, %v1774
  %v1908 = vpack.c.b16 %v1775, %v1775
  %v1909 = vpack.c.b16 %v1776, %v1776
  %v1910 = vpack.c.b16 %v1777, %v1777
  %v1911 = vpack.c.b16 %v1778, %v1778
  %v1912 = vpack.c.b16 %v1779, %v1779
  %v1913 = vpack.c.b16 %v1780, %v1780
  %v1914 = vpack.c.b16 %v1781, %v1781
  %v1915 = vpack.c.b16 %v1782, %v1782
  %v1916 = vpack.c.b16 %v1783, %v1783
  %v1917 = vpack.c.b16 %v1784, %v1784
  %v1918 = vpack.c.b16 %v1785, %v1785
  %v1919 = vpack.c.b16 %v1786, %v1786
  %2053 = vst [vmem:[%s3] sm:$0xf] %v1787
  %2054 = vst [vmem:[%s3 + $0x4] sm:$0xf] %v1788
  %2055 = vst [vmem:[%s3 + $0x8] sm:$0xf] %v1789
  %2056 = vst [vmem:[%s3 + $0xc] sm:$0xf] %v1790
  %2057 = vst [vmem:[%s3 + $0x10] sm:$0xf] %v1791
  %2058 = vst [vmem:[%s3 + $0x14] sm:$0xf] %v1792
  %2059 = vst [vmem:[%s3 + $0x18] sm:$0xf] %v1793
  %2060 = vst [vmem:[%s3 + $0x1c] sm:$0xf] %v1794
  %2061 = vst [vmem:[%s3 + $0x20] sm:$0xf] %v1795
  %2062 = vst [vmem:[%s3 + $0x24] sm:$0xf] %v1796
  %2063 = vst [vmem:[%s3 + $0x28] sm:$0xf] %v1797
  %2064 = vst [vmem:[%s3 + $0x2c] sm:$0xf] %v1798
  %2065 = vst [vmem:[%s3 + $0x30] sm:$0xf] %v1799
  %2066 = vst [vmem:[%s3 + $0x34] sm:$0xf] %v1800
  %2067 = vst [vmem:[%s3 + $0x38] sm:$0xf] %v1801
  %2068 = vst [vmem:[%s3 + $0x3c] sm:$0xf] %v1802
  %2069 = vst [vmem:[%s3 + $0x40] sm:$0xf] %v1803
  %2070 = vst [vmem:[%s3 + $0x44] sm:$0xf] %v1804
  %2071 = vst [vmem:[%s3 + $0x48] sm:$0xf] %v1805
  %2072 = vst [vmem:[%s3 + $0x4c] sm:$0xf] %v1806
  %2073 = vst [vmem:[%s3 + $0x50] sm:$0xf] %v1807
  %2074 = vst [vmem:[%s3 + $0x54] sm:$0xf] %v1808
  %2075 = vst [vmem:[%s3 + $0x58] sm:$0xf] %v1809
  %2076 = vst [vmem:[%s3 + $0x5c] sm:$0xf] %v1810
  %2077 = vst [vmem:[%s3 + $0x60] sm:$0xf] %v1811
  %2078 = vst [vmem:[%s3 + $0x64] sm:$0xf] %v1812
  %2079 = vst [vmem:[%s3 + $0x68] sm:$0xf] %v1813
  %2080 = vst [vmem:[%s3 + $0x6c] sm:$0xf] %v1814
  %2081 = vst [vmem:[%s3 + $0x70] sm:$0xf] %v1815
  %2082 = vst [vmem:[%s3 + $0x74] sm:$0xf] %v1816
  %2083 = vst [vmem:[%s3 + $0x78] sm:$0xf] %v1817
  %2084 = vst [vmem:[%s3 + $0x7c] sm:$0xf] %v1818
  %2085 = vst [vmem:[%s3 + $0x80] sm:$0xf] %v1819
  %2086 = vst [vmem:[%s3 + $0x84] sm:$0xf] %v1820
  %2087 = vst [vmem:[%s3 + $0x88] sm:$0xf] %v1821
  %2088 = vst [vmem:[%s3 + $0x8c] sm:$0xf] %v1822
  %2089 = vst [vmem:[%s3 + $0x90] sm:$0xf] %v1823
  %2090 = vst [vmem:[%s3 + $0x94] sm:$0xf] %v1824
  %2091 = vst [vmem:[%s3 + $0x98] sm:$0xf] %v1825
  %2092 = vst [vmem:[%s3 + $0x9c] sm:$0xf] %v1826
  %2093 = vst [vmem:[%s3 + $0xa0] sm:$0xf] %v1827
  %2094 = vst [vmem:[%s3 + $0xa4] sm:$0xf] %v1828
  %2095 = vst [vmem:[%s3 + $0xa8] sm:$0xf] %v1829
  %2096 = vst [vmem:[%s3 + $0xac] sm:$0xf] %v1830
  %2097 = vst [vmem:[%s3 + $0xb0] sm:$0xf] %v1831
  %2098 = vst [vmem:[%s3 + $0xb4] sm:$0xf] %v1832
  %2099 = vst [vmem:[%s3 + $0xb8] sm:$0xf] %v1833
  %2100 = vst [vmem:[%s3 + $0xbc] sm:$0xf] %v1834
  %2101 = vst [vmem:[%s3 + $0xc0] sm:$0xf] %v1835
  %2102 = vst [vmem:[%s3 + $0xc4] sm:$0xf] %v1836
  %2103 = vst [vmem:[%s3 + $0xc8] sm:$0xf] %v1837
  %2104 = vst [vmem:[%s3 + $0xcc] sm:$0xf] %v1838
  %2105 = vst [vmem:[%s3 + $0xd0] sm:$0xf] %v1839
  %2106 = vst [vmem:[%s3 + $0xd4] sm:$0xf] %v1840
  %2107 = vst [vmem:[%s3 + $0xd8] sm:$0xf] %v1841
  %2108 = vst [vmem:[%s3 + $0xdc] sm:$0xf] %v1842
  %2109 = vst [vmem:[%s3 + $0xe0] sm:$0xf] %v1843
  %2110 = vst [vmem:[%s3 + $0xe4] sm:$0xf] %v1844
  %2111 = vst [vmem:[%s3 + $0xe8] sm:$0xf] %v1845
  %2112 = vst [vmem:[%s3 + $0xec] sm:$0xf] %v1846
  %2113 = vst [vmem:[%s3 + $0xf0] sm:$0xf] %v1847
  %2114 = vst [vmem:[%s3 + $0xf4] sm:$0xf] %v1848
  %2115 = vst [vmem:[%s3 + $0xf8] sm:$0xf] %v1849
  %2116 = vst [vmem:[%s3 + $0xfc] sm:$0xf] %v1850
  %2117 = vst [vmem:[%s3 + $0x100] sm:$0xf] %v1851
  %2118 = vst [vmem:[%s3 + $0x104] sm:$0xf] %v1852
  %2119 = vst [vmem:[%s3 + $0x108] sm:$0xf] %v1853
  %2120 = vst [vmem:[%s3 + $0x10c] sm:$0xf] %v1854
  %2121 = vst [vmem:[%s3 + $0x110] sm:$0xf] %v1855
  %2122 = vst [vmem:[%s3 + $0x114] sm:$0xf] %v1856
  %2123 = vst [vmem:[%s3 + $0x118] sm:$0xf] %v1857
  %2124 = vst [vmem:[%s3 + $0x11c] sm:$0xf] %v1858
  %2125 = vst [vmem:[%s3 + $0x120] sm:$0xf] %v1859
  %2126 = vst [vmem:[%s3 + $0x124] sm:$0xf] %v1860
  %2127 = vst [vmem:[%s3 + $0x128] sm:$0xf] %v1861
  %2128 = vst [vmem:[%s3 + $0x12c] sm:$0xf] %v1862
  %2129 = vst [vmem:[%s3 + $0x130] sm:$0xf] %v1863
  %2130 = vst [vmem:[%s3 + $0x134] sm:$0xf] %v1864
  %2131 = vst [vmem:[%s3 + $0x138] sm:$0xf] %v1865
  %2132 = vst [vmem:[%s3 + $0x13c] sm:$0xf] %v1866
  %2133 = vst [vmem:[%s3 + $0x140] sm:$0xf] %v1867
  %2134 = vst [vmem:[%s3 + $0x144] sm:$0xf] %v1868
  %2135 = vst [vmem:[%s3 + $0x148] sm:$0xf] %v1869
  %2136 = vst [vmem:[%s3 + $0x14c] sm:$0xf] %v1870
  %2137 = vst [vmem:[%s3 + $0x150] sm:$0xf] %v1871
  %2138 = vst [vmem:[%s3 + $0x154] sm:$0xf] %v1872
  %2139 = vst [vmem:[%s3 + $0x158] sm:$0xf] %v1873
  %2140 = vst [vmem:[%s3 + $0x15c] sm:$0xf] %v1874
  %2141 = vst [vmem:[%s3 + $0x160] sm:$0xf] %v1875
  %2142 = vst [vmem:[%s3 + $0x164] sm:$0xf] %v1876
  %2143 = vst [vmem:[%s3 + $0x168] sm:$0xf] %v1877
  %2144 = vst [vmem:[%s3 + $0x16c] sm:$0xf] %v1878
  %2145 = vst [vmem:[%s3 + $0x170] sm:$0xf] %v1879
  %2146 = vst [vmem:[%s3 + $0x174] sm:$0xf] %v1880
  %2147 = vst [vmem:[%s3 + $0x178] sm:$0xf] %v1881
  %2148 = vst [vmem:[%s3 + $0x17c] sm:$0xf] %v1882
  %2149 = vst [vmem:[%s3 + $0x180] sm:$0xf] %v1883
  %2150 = vst [vmem:[%s3 + $0x184] sm:$0xf] %v1884
  %2151 = vst [vmem:[%s3 + $0x188] sm:$0xf] %v1885
  %2152 = vst [vmem:[%s3 + $0x18c] sm:$0xf] %v1886
  %2153 = vst [vmem:[%s3 + $0x190] sm:$0xf] %v1887
  %2154 = vst [vmem:[%s3 + $0x194] sm:$0xf] %v1888
  %2155 = vst [vmem:[%s3 + $0x198] sm:$0xf] %v1889
  %2156 = vst [vmem:[%s3 + $0x19c] sm:$0xf] %v1890
  %2157 = vst [vmem:[%s3 + $0x1a0] sm:$0xf] %v1891
  %2158 = vst [vmem:[%s3 + $0x1a4] sm:$0xf] %v1892
  %2159 = vst [vmem:[%s3 + $0x1a8] sm:$0xf] %v1893
  %2160 = vst [vmem:[%s3 + $0x1ac] sm:$0xf] %v1894
  %2161 = vst [vmem:[%s3 + $0x1b0] sm:$0xf] %v1895
  %2162 = vst [vmem:[%s3 + $0x1b4] sm:$0xf] %v1896
  %2163 = vst [vmem:[%s3 + $0x1b8] sm:$0xf] %v1897
  %2164 = vst [vmem:[%s3 + $0x1bc] sm:$0xf] %v1898
  %2165 = vst [vmem:[%s3 + $0x1c0] sm:$0xf] %v1899
  %2166 = vst [vmem:[%s3 + $0x1c4] sm:$0xf] %v1900
  %2167 = vst [vmem:[%s3 + $0x1c8] sm:$0xf] %v1901
  %2168 = vst [vmem:[%s3 + $0x1cc] sm:$0xf] %v1902
  %2169 = vst [vmem:[%s3 + $0x1d0] sm:$0xf] %v1903
  %2170 = vst [vmem:[%s3 + $0x1d4] sm:$0xf] %v1904
  %2171 = vst [vmem:[%s3 + $0x1d8] sm:$0xf] %v1905
  %2172 = vst [vmem:[%s3 + $0x1dc] sm:$0xf] %v1906
  %2173 = vst [vmem:[%s3 + $0x1e0] sm:$0xf] %v1907
  %2174 = vst [vmem:[%s3 + $0x1e4] sm:$0xf] %v1908
  %2175 = vst [vmem:[%s3 + $0x1e8] sm:$0xf] %v1909
  %2176 = vst [vmem:[%s3 + $0x1ec] sm:$0xf] %v1910
  %2177 = vst [vmem:[%s3 + $0x1f0] sm:$0xf] %v1911
  %2178 = vst [vmem:[%s3 + $0x1f4] sm:$0xf] %v1912
  %2179 = vst [vmem:[%s3 + $0x1f8] sm:$0xf] %v1913
  %2180 = vst [vmem:[%s3 + $0x1fc] sm:$0xf] %v1914
  %2181 = vst [vmem:[%s3 + $0x200] sm:$0xf] %v1915
  %2182 = vst [vmem:[%s3 + $0x204] sm:$0xf] %v1916
  %2183 = vst [vmem:[%s3 + $0x208] sm:$0xf] %v1917
  %2184 = vst [vmem:[%s3 + $0x20c] sm:$0xf] %v1918
  %2185 = vst [vmem:[%s3 + $0x210] sm:$0x1] %v1919
  %v2186 = vlaneseq
  %v2187 = vshrl.u32 %v2186, 7
  %v2188 = vadd.s32 %v2187, 8
  %v2189 = vadd.s32 %v2187, 16
  %v2190 = vadd.s32 %v2187, 24
  %v2191 = vadd.s32 %v2187, 32
  %v2192 = vadd.s32 %v2187, 40
  %v2193 = vadd.s32 %v2187, 48
  %v2194 = vadd.s32 %v2187, 56
  %v2195 = vadd.s32 %v2187, 64
  %v2196 = vadd.s32 %v2187, 72
  %v2197 = vadd.s32 %v2187, 80
  %v2198 = vadd.s32 %v2187, 88
  %v2199 = vadd.s32 %v2187, 96
  %v2200 = vadd.s32 %v2187, 104
  %v2201 = vadd.s32 %v2187, 112
  %v2202 = vadd.s32 %v2187, 120
  %v2203 = vadd.s32 %v2187, 128
  %v2204 = vadd.s32 %v2187, 136
  %v2205 = vadd.s32 %v2187, 144
  %v2206 = vadd.s32 %v2187, 152
  %v2207 = vadd.s32 %v2187, 160
  %v2208 = vadd.s32 %v2187, 168
  %v2209 = vadd.s32 %v2187, 176
  %v2210 = vadd.s32 %v2187, 184
  %v2211 = vadd.s32 %v2187, 192
  %v2212 = vadd.s32 %v2187, 200
  %v2213 = vadd.s32 %v2187, 208
  %v2214 = vadd.s32 %v2187, 216
  %v2215 = vadd.s32 %v2187, 224
  %v2216 = vadd.s32 %v2187, 232
  %v2217 = vadd.s32 %v2187, 240
  %v2218 = vadd.s32 %v2187, 248
  %v2219 = vadd.s32 %v2187, 256
  %v2220 = vadd.s32 %v2187, 264
  %v2221 = vadd.s32 %v2187, 272
  %v2222 = vadd.s32 %v2187, 280
  %v2223 = vadd.s32 %v2187, 288
  %v2224 = vadd.s32 %v2187, 296
  %v2225 = vadd.s32 %v2187, 304
  %v2226 = vadd.s32 %v2187, 312
  %v2227 = vadd.s32 %v2187, 320
  %v2228 = vadd.s32 %v2187, 328
  %v2229 = vadd.s32 %v2187, 336
  %v2230 = vadd.s32 %v2187, 344
  %v2231 = vadd.s32 %v2187, 352
  %v2232 = vadd.s32 %v2187, 360
  %v2233 = vadd.s32 %v2187, 368
  %v2234 = vadd.s32 %v2187, 376
  %v2235 = vadd.s32 %v2187, 384
  %v2236 = vadd.s32 %v2187, 392
  %v2237 = vadd.s32 %v2187, 400
  %v2238 = vadd.s32 %v2187, 408
  %v2239 = vadd.s32 %v2187, 416
  %v2240 = vadd.s32 %v2187, 424
  %v2241 = vadd.s32 %v2187, 432
  %v2242 = vadd.s32 %v2187, 440
  %v2243 = vadd.s32 %v2187, 448
  %v2244 = vadd.s32 %v2187, 456
  %v2245 = vadd.s32 %v2187, 464
  %v2246 = vadd.s32 %v2187, 472
  %v2247 = vadd.s32 %v2187, 480
  %v2248 = vadd.s32 %v2187, 488
  %v2249 = vadd.s32 %v2187, 496
  %v2250 = vadd.s32 %v2187, 504
  %v2251 = vadd.s32 %v2187, 512
  %v2252 = vadd.s32 %v2187, 520
  %v2253 = vadd.s32 %v2187, 528
  %v2254 = vadd.s32 %v2187, 536
  %v2255 = vadd.s32 %v2187, 544
  %v2256 = vadd.s32 %v2187, 552
  %v2257 = vadd.s32 %v2187, 560
  %v2258 = vadd.s32 %v2187, 568
  %v2259 = vadd.s32 %v2187, 576
  %v2260 = vadd.s32 %v2187, 584
  %v2261 = vadd.s32 %v2187, 592
  %v2262 = vadd.s32 %v2187, 600
  %v2263 = vadd.s32 %v2187, 608
  %v2264 = vadd.s32 %v2187, 616
  %v2265 = vadd.s32 %v2187, 624
  %v2266 = vadd.s32 %v2187, 632
  %v2267 = vadd.s32 %v2187, 640
  %v2268 = vadd.s32 %v2187, 648
  %v2269 = vadd.s32 %v2187, 656
  %v2270 = vadd.s32 %v2187, 664
  %v2271 = vadd.s32 %v2187, 672
  %v2272 = vadd.s32 %v2187, 680
  %v2273 = vadd.s32 %v2187, 688
  %v2274 = vadd.s32 %v2187, 696
  %v2275 = vadd.s32 %v2187, 704
  %v2276 = vadd.s32 %v2187, 712
  %v2277 = vadd.s32 %v2187, 720
  %v2278 = vadd.s32 %v2187, 728
  %v2279 = vadd.s32 %v2187, 736
  %v2280 = vadd.s32 %v2187, 744
  %v2281 = vadd.s32 %v2187, 752
  %v2282 = vadd.s32 %v2187, 760
  %v2283 = vadd.s32 %v2187, 768
  %v2284 = vadd.s32 %v2187, 776
  %v2285 = vadd.s32 %v2187, 784
  %v2286 = vadd.s32 %v2187, 792
  %v2287 = vadd.s32 %v2187, 800
  %v2288 = vadd.s32 %v2187, 808
  %v2289 = vadd.s32 %v2187, 816
  %v2290 = vadd.s32 %v2187, 824
  %v2291 = vadd.s32 %v2187, 832
  %v2292 = vadd.s32 %v2187, 840
  %v2293 = vadd.s32 %v2187, 848
  %v2294 = vadd.s32 %v2187, 856
  %v2295 = vadd.s32 %v2187, 864
  %v2296 = vadd.s32 %v2187, 872
  %v2297 = vadd.s32 %v2187, 880
  %v2298 = vadd.s32 %v2187, 888
  %v2299 = vadd.s32 %v2187, 896
  %v2300 = vadd.s32 %v2187, 904
  %v2301 = vadd.s32 %v2187, 912
  %v2302 = vadd.s32 %v2187, 920
  %v2303 = vadd.s32 %v2187, 928
  %v2304 = vadd.s32 %v2187, 936
  %v2305 = vadd.s32 %v2187, 944
  %v2306 = vadd.s32 %v2187, 952
  %v2307 = vadd.s32 %v2187, 960
  %v2308 = vadd.s32 %v2187, 968
  %v2309 = vadd.s32 %v2187, 976
  %v2310 = vadd.s32 %v2187, 984
  %v2311 = vadd.s32 %v2187, 992
  %v2312 = vadd.s32 %v2187, 1000
  %v2313 = vadd.s32 %v2187, 1008
  %v2314 = vadd.s32 %v2187, 1016
  %v2315 = vadd.s32 %v2187, 1024
  %v2316 = vadd.s32 %v2187, 1032
  %v2317 = vadd.s32 %v2187, 1040
  %v2318 = vadd.s32 %v2187, 1048
  %v2319 = vadd.s32 %v2187, 1056
  %s2320 = smul.u32 0, 1058
  %v2321 = vstv %s2320
  %v2322 = vadd.s32 %v2187, %v2321
  %v2323 = vadd.s32 %v2188, %v2321
  %v2324 = vadd.s32 %v2189, %v2321
  %v2325 = vadd.s32 %v2190, %v2321
  %v2326 = vadd.s32 %v2191, %v2321
  %v2327 = vadd.s32 %v2192, %v2321
  %v2328 = vadd.s32 %v2193, %v2321
  %v2329 = vadd.s32 %v2194, %v2321
  %v2330 = vadd.s32 %v2195, %v2321
  %v2331 = vadd.s32 %v2196, %v2321
  %v2332 = vadd.s32 %v2197, %v2321
  %v2333 = vadd.s32 %v2198, %v2321
  %v2334 = vadd.s32 %v2199, %v2321
  %v2335 = vadd.s32 %v2200, %v2321
  %v2336 = vadd.s32 %v2201, %v2321
  %v2337 = vadd.s32 %v2202, %v2321
  %v2338 = vadd.s32 %v2203, %v2321
  %v2339 = vadd.s32 %v2204, %v2321
  %v2340 = vadd.s32 %v2205, %v2321
  %v2341 = vadd.s32 %v2206, %v2321
  %v2342 = vadd.s32 %v2207, %v2321
  %v2343 = vadd.s32 %v2208, %v2321
  %v2344 = vadd.s32 %v2209, %v2321
  %v2345 = vadd.s32 %v2210, %v2321
  %v2346 = vadd.s32 %v2211, %v2321
  %v2347 = vadd.s32 %v2212, %v2321
  %v2348 = vadd.s32 %v2213, %v2321
  %v2349 = vadd.s32 %v2214, %v2321
  %v2350 = vadd.s32 %v2215, %v2321
  %v2351 = vadd.s32 %v2216, %v2321
  %v2352 = vadd.s32 %v2217, %v2321
  %v2353 = vadd.s32 %v2218, %v2321
  %v2354 = vadd.s32 %v2219, %v2321
  %v2355 = vadd.s32 %v2220, %v2321
  %v2356 = vadd.s32 %v2221, %v2321
  %v2357 = vadd.s32 %v2222, %v2321
  %v2358 = vadd.s32 %v2223, %v2321
  %v2359 = vadd.s32 %v2224, %v2321
  %v2360 = vadd.s32 %v2225, %v2321
  %v2361 = vadd.s32 %v2226, %v2321
  %v2362 = vadd.s32 %v2227, %v2321
  %v2363 = vadd.s32 %v2228, %v2321
  %v2364 = vadd.s32 %v2229, %v2321
  %v2365 = vadd.s32 %v2230, %v2321
  %v2366 = vadd.s32 %v2231, %v2321
  %v2367 = vadd.s32 %v2232, %v2321
  %v2368 = vadd.s32 %v2233, %v2321
  %v2369 = vadd.s32 %v2234, %v2321
  %v2370 = vadd.s32 %v2235, %v2321
  %v2371 = vadd.s32 %v2236, %v2321
  %v2372 = vadd.s32 %v2237, %v2321
  %v2373 = vadd.s32 %v2238, %v2321
  %v2374 = vadd.s32 %v2239, %v2321
  %v2375 = vadd.s32 %v2240, %v2321
  %v2376 = vadd.s32 %v2241, %v2321
  %v2377 = vadd.s32 %v2242, %v2321
  %v2378 = vadd.s32 %v2243, %v2321
  %v2379 = vadd.s32 %v2244, %v2321
  %v2380 = vadd.s32 %v2245, %v2321
  %v2381 = vadd.s32 %v2246, %v2321
  %v2382 = vadd.s32 %v2247, %v2321
  %v2383 = vadd.s32 %v2248, %v2321
  %v2384 = vadd.s32 %v2249, %v2321
  %v2385 = vadd.s32 %v2250, %v2321
  %v2386 = vadd.s32 %v2251, %v2321
  %v2387 = vadd.s32 %v2252, %v2321
  %v2388 = vadd.s32 %v2253, %v2321
  %v2389 = vadd.s32 %v2254, %v2321
  %v2390 = vadd.s32 %v2255, %v2321
  %v2391 = vadd.s32 %v2256, %v2321
  %v2392 = vadd.s32 %v2257, %v2321
  %v2393 = vadd.s32 %v2258, %v2321
  %v2394 = vadd.s32 %v2259, %v2321
  %v2395 = vadd.s32 %v2260, %v2321
  %v2396 = vadd.s32 %v2261, %v2321
  %v2397 = vadd.s32 %v2262, %v2321
  %v2398 = vadd.s32 %v2263, %v2321
  %v2399 = vadd.s32 %v2264, %v2321
  %v2400 = vadd.s32 %v2265, %v2321
  %v2401 = vadd.s32 %v2266, %v2321
  %v2402 = vadd.s32 %v2267, %v2321
  %v2403 = vadd.s32 %v2268, %v2321
  %v2404 = vadd.s32 %v2269, %v2321
  %v2405 = vadd.s32 %v2270, %v2321
  %v2406 = vadd.s32 %v2271, %v2321
  %v2407 = vadd.s32 %v2272, %v2321
  %v2408 = vadd.s32 %v2273, %v2321
  %v2409 = vadd.s32 %v2274, %v2321
  %v2410 = vadd.s32 %v2275, %v2321
  %v2411 = vadd.s32 %v2276, %v2321
  %v2412 = vadd.s32 %v2277, %v2321
  %v2413 = vadd.s32 %v2278, %v2321
  %v2414 = vadd.s32 %v2279, %v2321
  %v2415 = vadd.s32 %v2280, %v2321
  %v2416 = vadd.s32 %v2281, %v2321
  %v2417 = vadd.s32 %v2282, %v2321
  %v2418 = vadd.s32 %v2283, %v2321
  %v2419 = vadd.s32 %v2284, %v2321
  %v2420 = vadd.s32 %v2285, %v2321
  %v2421 = vadd.s32 %v2286, %v2321
  %v2422 = vadd.s32 %v2287, %v2321
  %v2423 = vadd.s32 %v2288, %v2321
  %v2424 = vadd.s32 %v2289, %v2321
  %v2425 = vadd.s32 %v2290, %v2321
  %v2426 = vadd.s32 %v2291, %v2321
  %v2427 = vadd.s32 %v2292, %v2321
  %v2428 = vadd.s32 %v2293, %v2321
  %v2429 = vadd.s32 %v2294, %v2321
  %v2430 = vadd.s32 %v2295, %v2321
  %v2431 = vadd.s32 %v2296, %v2321
  %v2432 = vadd.s32 %v2297, %v2321
  %v2433 = vadd.s32 %v2298, %v2321
  %v2434 = vadd.s32 %v2299, %v2321
  %v2435 = vadd.s32 %v2300, %v2321
  %v2436 = vadd.s32 %v2301, %v2321
  %v2437 = vadd.s32 %v2302, %v2321
  %v2438 = vadd.s32 %v2303, %v2321
  %v2439 = vadd.s32 %v2304, %v2321
  %v2440 = vadd.s32 %v2305, %v2321
  %v2441 = vadd.s32 %v2306, %v2321
  %v2442 = vadd.s32 %v2307, %v2321
  %v2443 = vadd.s32 %v2308, %v2321
  %v2444 = vadd.s32 %v2309, %v2321
  %v2445 = vadd.s32 %v2310, %v2321
  %v2446 = vadd.s32 %v2311, %v2321
  %v2447 = vadd.s32 %v2312, %v2321
  %v2448 = vadd.s32 %v2313, %v2321
  %v2449 = vadd.s32 %v2314, %v2321
  %v2450 = vadd.s32 %v2315, %v2321
  %v2451 = vadd.s32 %v2316, %v2321
  %v2452 = vadd.s32 %v2317, %v2321
  %v2453 = vadd.s32 %v2318, %v2321
  %v2454 = vadd.s32 %v2319, %v2321
  %vm2455 = vcmp.lt.s32.totalorder %v2322, 1058
  %vm2456 = vcmp.lt.s32.totalorder %v2323, 1058
  %vm2457 = vcmp.lt.s32.totalorder %v2324, 1058
  %vm2458 = vcmp.lt.s32.totalorder %v2325, 1058
  %vm2459 = vcmp.lt.s32.totalorder %v2326, 1058
  %vm2460 = vcmp.lt.s32.totalorder %v2327, 1058
  %vm2461 = vcmp.lt.s32.totalorder %v2328, 1058
  %vm2462 = vcmp.lt.s32.totalorder %v2329, 1058
  %vm2463 = vcmp.lt.s32.totalorder %v2330, 1058
  %vm2464 = vcmp.lt.s32.totalorder %v2331, 1058
  %vm2465 = vcmp.lt.s32.totalorder %v2332, 1058
  %vm2466 = vcmp.lt.s32.totalorder %v2333, 1058
  %vm2467 = vcmp.lt.s32.totalorder %v2334, 1058
  %vm2468 = vcmp.lt.s32.totalorder %v2335, 1058
  %vm2469 = vcmp.lt.s32.totalorder %v2336, 1058
  %vm2470 = vcmp.lt.s32.totalorder %v2337, 1058
  %vm2471 = vcmp.lt.s32.totalorder %v2338, 1058
  %vm2472 = vcmp.lt.s32.totalorder %v2339, 1058
  %vm2473 = vcmp.lt.s32.totalorder %v2340, 1058
  %vm2474 = vcmp.lt.s32.totalorder %v2341, 1058
  %vm2475 = vcmp.lt.s32.totalorder %v2342, 1058
  %vm2476 = vcmp.lt.s32.totalorder %v2343, 1058
  %vm2477 = vcmp.lt.s32.totalorder %v2344, 1058
  %vm2478 = vcmp.lt.s32.totalorder %v2345, 1058
  %vm2479 = vcmp.lt.s32.totalorder %v2346, 1058
  %vm2480 = vcmp.lt.s32.totalorder %v2347, 1058
  %vm2481 = vcmp.lt.s32.totalorder %v2348, 1058
  %vm2482 = vcmp.lt.s32.totalorder %v2349, 1058
  %vm2483 = vcmp.lt.s32.totalorder %v2350, 1058
  %vm2484 = vcmp.lt.s32.totalorder %v2351, 1058
  %vm2485 = vcmp.lt.s32.totalorder %v2352, 1058
  %vm2486 = vcmp.lt.s32.totalorder %v2353, 1058
  %vm2487 = vcmp.lt.s32.totalorder %v2354, 1058
  %vm2488 = vcmp.lt.s32.totalorder %v2355, 1058
  %vm2489 = vcmp.lt.s32.totalorder %v2356, 1058
  %vm2490 = vcmp.lt.s32.totalorder %v2357, 1058
  %vm2491 = vcmp.lt.s32.totalorder %v2358, 1058
  %vm2492 = vcmp.lt.s32.totalorder %v2359, 1058
  %vm2493 = vcmp.lt.s32.totalorder %v2360, 1058
  %vm2494 = vcmp.lt.s32.totalorder %v2361, 1058
  %vm2495 = vcmp.lt.s32.totalorder %v2362, 1058
  %vm2496 = vcmp.lt.s32.totalorder %v2363, 1058
  %vm2497 = vcmp.lt.s32.totalorder %v2364, 1058
  %vm2498 = vcmp.lt.s32.totalorder %v2365, 1058
  %vm2499 = vcmp.lt.s32.totalorder %v2366, 1058
  %vm2500 = vcmp.lt.s32.totalorder %v2367, 1058
  %vm2501 = vcmp.lt.s32.totalorder %v2368, 1058
  %vm2502 = vcmp.lt.s32.totalorder %v2369, 1058
  %vm2503 = vcmp.lt.s32.totalorder %v2370, 1058
  %vm2504 = vcmp.lt.s32.totalorder %v2371, 1058
  %vm2505 = vcmp.lt.s32.totalorder %v2372, 1058
  %vm2506 = vcmp.lt.s32.totalorder %v2373, 1058
  %vm2507 = vcmp.lt.s32.totalorder %v2374, 1058
  %vm2508 = vcmp.lt.s32.totalorder %v2375, 1058
  %vm2509 = vcmp.lt.s32.totalorder %v2376, 1058
  %vm2510 = vcmp.lt.s32.totalorder %v2377, 1058
  %vm2511 = vcmp.lt.s32.totalorder %v2378, 1058
  %vm2512 = vcmp.lt.s32.totalorder %v2379, 1058
  %vm2513 = vcmp.lt.s32.totalorder %v2380, 1058
  %vm2514 = vcmp.lt.s32.totalorder %v2381, 1058
  %vm2515 = vcmp.lt.s32.totalorder %v2382, 1058
  %vm2516 = vcmp.lt.s32.totalorder %v2383, 1058
  %vm2517 = vcmp.lt.s32.totalorder %v2384, 1058
  %vm2518 = vcmp.lt.s32.totalorder %v2385, 1058
  %vm2519 = vcmp.lt.s32.totalorder %v2386, 1058
  %vm2520 = vcmp.lt.s32.totalorder %v2387, 1058
  %vm2521 = vcmp.lt.s32.totalorder %v2388, 1058
  %vm2522 = vcmp.lt.s32.totalorder %v2389, 1058
  %vm2523 = vcmp.lt.s32.totalorder %v2390, 1058
  %vm2524 = vcmp.lt.s32.totalorder %v2391, 1058
  %vm2525 = vcmp.lt.s32.totalorder %v2392, 1058
  %vm2526 = vcmp.lt.s32.totalorder %v2393, 1058
  %vm2527 = vcmp.lt.s32.totalorder %v2394, 1058
  %vm2528 = vcmp.lt.s32.totalorder %v2395, 1058
  %vm2529 = vcmp.lt.s32.totalorder %v2396, 1058
  %vm2530 = vcmp.lt.s32.totalorder %v2397, 1058
  %vm2531 = vcmp.lt.s32.totalorder %v2398, 1058
  %vm2532 = vcmp.lt.s32.totalorder %v2399, 1058
  %vm2533 = vcmp.lt.s32.totalorder %v2400, 1058
  %vm2534 = vcmp.lt.s32.totalorder %v2401, 1058
  %vm2535 = vcmp.lt.s32.totalorder %v2402, 1058
  %vm2536 = vcmp.lt.s32.totalorder %v2403, 1058
  %vm2537 = vcmp.lt.s32.totalorder %v2404, 1058
  %vm2538 = vcmp.lt.s32.totalorder %v2405, 1058
  %vm2539 = vcmp.lt.s32.totalorder %v2406, 1058
  %vm2540 = vcmp.lt.s32.totalorder %v2407, 1058
  %vm2541 = vcmp.lt.s32.totalorder %v2408, 1058
  %vm2542 = vcmp.lt.s32.totalorder %v2409, 1058
  %vm2543 = vcmp.lt.s32.totalorder %v2410, 1058
  %vm2544 = vcmp.lt.s32.totalorder %v2411, 1058
  %vm2545 = vcmp.lt.s32.totalorder %v2412, 1058
  %vm2546 = vcmp.lt.s32.totalorder %v2413, 1058
  %vm2547 = vcmp.lt.s32.totalorder %v2414, 1058
  %vm2548 = vcmp.lt.s32.totalorder %v2415, 1058
  %vm2549 = vcmp.lt.s32.totalorder %v2416, 1058
  %vm2550 = vcmp.lt.s32.totalorder %v2417, 1058
  %vm2551 = vcmp.lt.s32.totalorder %v2418, 1058
  %vm2552 = vcmp.lt.s32.totalorder %v2419, 1058
  %vm2553 = vcmp.lt.s32.totalorder %v2420, 1058
  %vm2554 = vcmp.lt.s32.totalorder %v2421, 1058
  %vm2555 = vcmp.lt.s32.totalorder %v2422, 1058
  %vm2556 = vcmp.lt.s32.totalorder %v2423, 1058
  %vm2557 = vcmp.lt.s32.totalorder %v2424, 1058
  %vm2558 = vcmp.lt.s32.totalorder %v2425, 1058
  %vm2559 = vcmp.lt.s32.totalorder %v2426, 1058
  %vm2560 = vcmp.lt.s32.totalorder %v2427, 1058
  %vm2561 = vcmp.lt.s32.totalorder %v2428, 1058
  %vm2562 = vcmp.lt.s32.totalorder %v2429, 1058
  %vm2563 = vcmp.lt.s32.totalorder %v2430, 1058
  %vm2564 = vcmp.lt.s32.totalorder %v2431, 1058
  %vm2565 = vcmp.lt.s32.totalorder %v2432, 1058
  %vm2566 = vcmp.lt.s32.totalorder %v2433, 1058
  %vm2567 = vcmp.lt.s32.totalorder %v2434, 1058
  %vm2568 = vcmp.lt.s32.totalorder %v2435, 1058
  %vm2569 = vcmp.lt.s32.totalorder %v2436, 1058
  %vm2570 = vcmp.lt.s32.totalorder %v2437, 1058
  %vm2571 = vcmp.lt.s32.totalorder %v2438, 1058
  %vm2572 = vcmp.lt.s32.totalorder %v2439, 1058
  %vm2573 = vcmp.lt.s32.totalorder %v2440, 1058
  %vm2574 = vcmp.lt.s32.totalorder %v2441, 1058
  %vm2575 = vcmp.lt.s32.totalorder %v2442, 1058
  %vm2576 = vcmp.lt.s32.totalorder %v2443, 1058
  %vm2577 = vcmp.lt.s32.totalorder %v2444, 1058
  %vm2578 = vcmp.lt.s32.totalorder %v2445, 1058
  %vm2579 = vcmp.lt.s32.totalorder %v2446, 1058
  %vm2580 = vcmp.lt.s32.totalorder %v2447, 1058
  %vm2581 = vcmp.lt.s32.totalorder %v2448, 1058
  %vm2582 = vcmp.lt.s32.totalorder %v2449, 1058
  %vm2583 = vcmp.lt.s32.totalorder %v2450, 1058
  %vm2584 = vcmp.lt.s32.totalorder %v2451, 1058
  %vm2585 = vcmp.lt.s32.totalorder %v2452, 1058
  %vm2586 = vcmp.lt.s32.totalorder %v2453, 1058
  %vm2587 = vcmp.lt.s32.totalorder %v2454, 1058
  %v2588 = vsel %vm2455, %v987, 0.0
  %v2589 = vsel %vm2456, %v990, 0.0
  %v2590 = vsel %vm2457, %v995, 0.0
  %v2591 = vsel %vm2458, %v998, 0.0
  %v2592 = vsel %vm2459, %v1003, 0.0
  %v2593 = vsel %vm2460, %v1006, 0.0
  %v2594 = vsel %vm2461, %v1011, 0.0
  %v2595 = vsel %vm2462, %v1014, 0.0
  %v2596 = vsel %vm2463, %v1019, 0.0
  %v2597 = vsel %vm2464, %v1022, 0.0
  %v2598 = vsel %vm2465, %v1027, 0.0
  %v2599 = vsel %vm2466, %v1030, 0.0
  %v2600 = vsel %vm2467, %v1035, 0.0
  %v2601 = vsel %vm2468, %v1038, 0.0
  %v2602 = vsel %vm2469, %v1043, 0.0
  %v2603 = vsel %vm2470, %v1046, 0.0
  %v2604 = vsel %vm2471, %v1051, 0.0
  %v2605 = vsel %vm2472, %v1054, 0.0
  %v2606 = vsel %vm2473, %v1059, 0.0
  %v2607 = vsel %vm2474, %v1062, 0.0
  %v2608 = vsel %vm2475, %v1067, 0.0
  %v2609 = vsel %vm2476, %v1070, 0.0
  %v2610 = vsel %vm2477, %v1075, 0.0
  %v2611 = vsel %vm2478, %v1078, 0.0
  %v2612 = vsel %vm2479, %v1083, 0.0
  %v2613 = vsel %vm2480, %v1086, 0.0
  %v2614 = vsel %vm2481, %v1091, 0.0
  %v2615 = vsel %vm2482, %v1094, 0.0
  %v2616 = vsel %vm2483, %v1099, 0.0
  %v2617 = vsel %vm2484, %v1102, 0.0
  %v2618 = vsel %vm2485, %v1107, 0.0
  %v2619 = vsel %vm2486, %v1110, 0.0
  %v2620 = vsel %vm2487, %v1115, 0.0
  %v2621 = vsel %vm2488, %v1118, 0.0
  %v2622 = vsel %vm2489, %v1123, 0.0
  %v2623 = vsel %vm2490, %v1126, 0.0
  %v2624 = vsel %vm2491, %v1131, 0.0
  %v2625 = vsel %vm2492, %v1134, 0.0
  %v2626 = vsel %vm2493, %v1139, 0.0
  %v2627 = vsel %vm2494, %v1142, 0.0
  %v2628 = vsel %vm2495, %v1147, 0.0
  %v2629 = vsel %vm2496, %v1150, 0.0
  %v2630 = vsel %vm2497, %v1155, 0.0
  %v2631 = vsel %vm2498, %v1158, 0.0
  %v2632 = vsel %vm2499, %v1163, 0.0
  %v2633 = vsel %vm2500, %v1166, 0.0
  %v2634 = vsel %vm2501, %v1171, 0.0
  %v2635 = vsel %vm2502, %v1174, 0.0
  %v2636 = vsel %vm2503, %v1179, 0.0
  %v2637 = vsel %vm2504, %v1182, 0.0
  %v2638 = vsel %vm2505, %v1187, 0.0
  %v2639 = vsel %vm2506, %v1190, 0.0
  %v2640 = vsel %vm2507, %v1195, 0.0
  %v2641 = vsel %vm2508, %v1198, 0.0
  %v2642 = vsel %vm2509, %v1203, 0.0
  %v2643 = vsel %vm2510, %v1206, 0.0
  %v2644 = vsel %vm2511, %v1211, 0.0
  %v2645 = vsel %vm2512, %v1214, 0.0
  %v2646 = vsel %vm2513, %v1219, 0.0
  %v2647 = vsel %vm2514, %v1222, 0.0
  %v2648 = vsel %vm2515, %v1227, 0.0
  %v2649 = vsel %vm2516, %v1230, 0.0
  %v2650 = vsel %vm2517, %v1235, 0.0
  %v2651 = vsel %vm2518, %v1238, 0.0
  %v2652 = vsel %vm2519, %v1243, 0.0
  %v2653 = vsel %vm2520, %v1246, 0.0
  %v2654 = vsel %vm2521, %v1251, 0.0
  %v2655 = vsel %vm2522, %v1254, 0.0
  %v2656 = vsel %vm2523, %v1259, 0.0
  %v2657 = vsel %vm2524, %v1262, 0.0
  %v2658 = vsel %vm2525, %v1267, 0.0
  %v2659 = vsel %vm2526, %v1270, 0.0
  %v2660 = vsel %vm2527, %v1275, 0.0
  %v2661 = vsel %vm2528, %v1278, 0.0
  %v2662 = vsel %vm2529, %v1283, 0.0
  %v2663 = vsel %vm2530, %v1286, 0.0
  %v2664 = vsel %vm2531, %v1291, 0.0
  %v2665 = vsel %vm2532, %v1294, 0.0
  %v2666 = vsel %vm2533, %v1299, 0.0
  %v2667 = vsel %vm2534, %v1302, 0.0
  %v2668 = vsel %vm2535, %v1307, 0.0
  %v2669 = vsel %vm2536, %v1310, 0.0
  %v2670 = vsel %vm2537, %v1315, 0.0
  %v2671 = vsel %vm2538, %v1318, 0.0
  %v2672 = vsel %vm2539, %v1323, 0.0
  %v2673 = vsel %vm2540, %v1326, 0.0
  %v2674 = vsel %vm2541, %v1331, 0.0
  %v2675 = vsel %vm2542, %v1334, 0.0
  %v2676 = vsel %vm2543, %v1339, 0.0
  %v2677 = vsel %vm2544, %v1342, 0.0
  %v2678 = vsel %vm2545, %v1347, 0.0
  %v2679 = vsel %vm2546, %v1350, 0.0
  %v2680 = vsel %vm2547, %v1355, 0.0
  %v2681 = vsel %vm2548, %v1358, 0.0
  %v2682 = vsel %vm2549, %v1363, 0.0
  %v2683 = vsel %vm2550, %v1366, 0.0
  %v2684 = vsel %vm2551, %v1371, 0.0
  %v2685 = vsel %vm2552, %v1374, 0.0
  %v2686 = vsel %vm2553, %v1379, 0.0
  %v2687 = vsel %vm2554, %v1382, 0.0
  %v2688 = vsel %vm2555, %v1387, 0.0
  %v2689 = vsel %vm2556, %v1390, 0.0
  %v2690 = vsel %vm2557, %v1395, 0.0
  %v2691 = vsel %vm2558, %v1398, 0.0
  %v2692 = vsel %vm2559, %v1403, 0.0
  %v2693 = vsel %vm2560, %v1406, 0.0
  %v2694 = vsel %vm2561, %v1411, 0.0
  %v2695 = vsel %vm2562, %v1414, 0.0
  %v2696 = vsel %vm2563, %v1419, 0.0
  %v2697 = vsel %vm2564, %v1422, 0.0
  %v2698 = vsel %vm2565, %v1427, 0.0
  %v2699 = vsel %vm2566, %v1430, 0.0
  %v2700 = vsel %vm2567, %v1435, 0.0
  %v2701 = vsel %vm2568, %v1438, 0.0
  %v2702 = vsel %vm2569, %v1443, 0.0
  %v2703 = vsel %vm2570, %v1446, 0.0
  %v2704 = vsel %vm2571, %v1451, 0.0
  %v2705 = vsel %vm2572, %v1454, 0.0
  %v2706 = vsel %vm2573, %v1459, 0.0
  %v2707 = vsel %vm2574, %v1462, 0.0
  %v2708 = vsel %vm2575, %v1467, 0.0
  %v2709 = vsel %vm2576, %v1470, 0.0
  %v2710 = vsel %vm2577, %v1475, 0.0
  %v2711 = vsel %vm2578, %v1478, 0.0
  %v2712 = vsel %vm2579, %v1483, 0.0
  %v2713 = vsel %vm2580, %v1486, 0.0
  %v2714 = vsel %vm2581, %v1491, 0.0
  %v2715 = vsel %vm2582, %v1494, 0.0
  %v2716 = vsel %vm2583, %v1499, 0.0
  %v2717 = vsel %vm2584, %v1502, 0.0
  %v2718 = vsel %vm2585, %v1507, 0.0
  %v2719 = vsel %vm2586, %v1510, 0.0
  %v2720 = vsel %vm2587, %v1515, 0.0
  %v2721 = vadd.f32 %v2588, %v2589
  %v2722 = vadd.f32 %v2721, %v2590
  %v2723 = vadd.f32 %v2722, %v2591
  %v2724 = vadd.f32 %v2723, %v2592
  %v2725 = vadd.f32 %v2724, %v2593
  %v2726 = vadd.f32 %v2725, %v2594
  %v2727 = vadd.f32 %v2726, %v2595
  %v2728 = vadd.f32 %v2727, %v2596
  %v2729 = vadd.f32 %v2728, %v2597
  %v2730 = vadd.f32 %v2729, %v2598
  %v2731 = vadd.f32 %v2730, %v2599
  %v2732 = vadd.f32 %v2731, %v2600
  %v2733 = vadd.f32 %v2732, %v2601
  %v2734 = vadd.f32 %v2733, %v2602
  %v2735 = vadd.f32 %v2734, %v2603
  %v2736 = vadd.f32 %v2735, %v2604
  %v2737 = vadd.f32 %v2736, %v2605
  %v2738 = vadd.f32 %v2737, %v2606
  %v2739 = vadd.f32 %v2738, %v2607
  %v2740 = vadd.f32 %v2739, %v2608
  %v2741 = vadd.f32 %v2740, %v2609
  %v2742 = vadd.f32 %v2741, %v2610
  %v2743 = vadd.f32 %v2742, %v2611
  %v2744 = vadd.f32 %v2743, %v2612
  %v2745 = vadd.f32 %v2744, %v2613
  %v2746 = vadd.f32 %v2745, %v2614
  %v2747 = vadd.f32 %v2746, %v2615
  %v2748 = vadd.f32 %v2747, %v2616
  %v2749 = vadd.f32 %v2748, %v2617
  %v2750 = vadd.f32 %v2749, %v2618
  %v2751 = vadd.f32 %v2750, %v2619
  %v2752 = vadd.f32 %v2751, %v2620
  %v2753 = vadd.f32 %v2752, %v2621
  %v2754 = vadd.f32 %v2753, %v2622
  %v2755 = vadd.f32 %v2754, %v2623
  %v2756 = vadd.f32 %v2755, %v2624
  %v2757 = vadd.f32 %v2756, %v2625
  %v2758 = vadd.f32 %v2757, %v2626
  %v2759 = vadd.f32 %v2758, %v2627
  %v2760 = vadd.f32 %v2759, %v2628
  %v2761 = vadd.f32 %v2760, %v2629
  %v2762 = vadd.f32 %v2761, %v2630
  %v2763 = vadd.f32 %v2762, %v2631
  %v2764 = vadd.f32 %v2763, %v2632
  %v2765 = vadd.f32 %v2764, %v2633
  %v2766 = vadd.f32 %v2765, %v2634
  %v2767 = vadd.f32 %v2766, %v2635
  %v2768 = vadd.f32 %v2767, %v2636
  %v2769 = vadd.f32 %v2768, %v2637
  %v2770 = vadd.f32 %v2769, %v2638
  %v2771 = vadd.f32 %v2770, %v2639
  %v2772 = vadd.f32 %v2771, %v2640
  %v2773 = vadd.f32 %v2772, %v2641
  %v2774 = vadd.f32 %v2773, %v2642
  %v2775 = vadd.f32 %v2774, %v2643
  %v2776 = vadd.f32 %v2775, %v2644
  %v2777 = vadd.f32 %v2776, %v2645
  %v2778 = vadd.f32 %v2777, %v2646
  %v2779 = vadd.f32 %v2778, %v2647
  %v2780 = vadd.f32 %v2779, %v2648
  %v2781 = vadd.f32 %v2780, %v2649
  %v2782 = vadd.f32 %v2781, %v2650
  %v2783 = vadd.f32 %v2782, %v2651
  %v2784 = vadd.f32 %v2783, %v2652
  %v2785 = vadd.f32 %v2784, %v2653
  %v2786 = vadd.f32 %v2785, %v2654
  %v2787 = vadd.f32 %v2786, %v2655
  %v2788 = vadd.f32 %v2787, %v2656
  %v2789 = vadd.f32 %v2788, %v2657
  %v2790 = vadd.f32 %v2789, %v2658
  %v2791 = vadd.f32 %v2790, %v2659
  %v2792 = vadd.f32 %v2791, %v2660
  %v2793 = vadd.f32 %v2792, %v2661
  %v2794 = vadd.f32 %v2793, %v2662
  %v2795 = vadd.f32 %v2794, %v2663
  %v2796 = vadd.f32 %v2795, %v2664
  %v2797 = vadd.f32 %v2796, %v2665
  %v2798 = vadd.f32 %v2797, %v2666
  %v2799 = vadd.f32 %v2798, %v2667
  %v2800 = vadd.f32 %v2799, %v2668
  %v2801 = vadd.f32 %v2800, %v2669
  %v2802 = vadd.f32 %v2801, %v2670
  %v2803 = vadd.f32 %v2802, %v2671
  %v2804 = vadd.f32 %v2803, %v2672
  %v2805 = vadd.f32 %v2804, %v2673
  %v2806 = vadd.f32 %v2805, %v2674
  %v2807 = vadd.f32 %v2806, %v2675
  %v2808 = vadd.f32 %v2807, %v2676
  %v2809 = vadd.f32 %v2808, %v2677
  %v2810 = vadd.f32 %v2809, %v2678
  %v2811 = vadd.f32 %v2810, %v2679
  %v2812 = vadd.f32 %v2811, %v2680
  %v2813 = vadd.f32 %v2812, %v2681
  %v2814 = vadd.f32 %v2813, %v2682
  %v2815 = vadd.f32 %v2814, %v2683
  %v2816 = vadd.f32 %v2815, %v2684
  %v2817 = vadd.f32 %v2816, %v2685
  %v2818 = vadd.f32 %v2817, %v2686
  %v2819 = vadd.f32 %v2818, %v2687
  %v2820 = vadd.f32 %v2819, %v2688
  %v2821 = vadd.f32 %v2820, %v2689
  %v2822 = vadd.f32 %v2821, %v2690
  %v2823 = vadd.f32 %v2822, %v2691
  %v2824 = vadd.f32 %v2823, %v2692
  %v2825 = vadd.f32 %v2824, %v2693
  %v2826 = vadd.f32 %v2825, %v2694
  %v2827 = vadd.f32 %v2826, %v2695
  %v2828 = vadd.f32 %v2827, %v2696
  %v2829 = vadd.f32 %v2828, %v2697
  %v2830 = vadd.f32 %v2829, %v2698
  %v2831 = vadd.f32 %v2830, %v2699
  %v2832 = vadd.f32 %v2831, %v2700
  %v2833 = vadd.f32 %v2832, %v2701
  %v2834 = vadd.f32 %v2833, %v2702
  %v2835 = vadd.f32 %v2834, %v2703
  %v2836 = vadd.f32 %v2835, %v2704
  %v2837 = vadd.f32 %v2836, %v2705
  %v2838 = vadd.f32 %v2837, %v2706
  %v2839 = vadd.f32 %v2838, %v2707
  %v2840 = vadd.f32 %v2839, %v2708
  %v2841 = vadd.f32 %v2840, %v2709
  %v2842 = vadd.f32 %v2841, %v2710
  %v2843 = vadd.f32 %v2842, %v2711
  %v2844 = vadd.f32 %v2843, %v2712
  %v2845 = vadd.f32 %v2844, %v2713
  %v2846 = vadd.f32 %v2845, %v2714
  %v2847 = vadd.f32 %v2846, %v2715
  %v2848 = vadd.f32 %v2847, %v2716
  %v2849 = vadd.f32 %v2848, %v2717
  %v2850 = vadd.f32 %v2849, %v2718
  %v2851 = vadd.f32 %v2850, %v2719
  %vm2852 = vcmask 1041408
  %v2853 = vsel %vm2852, %v2720, 0.0
  %v2854 = vadd.f32 %v2851, %v2853
  %v2855 = vrot.slane %v2854, 4
  %v2856 = vadd.f32 %v2854, %v2855
  %v2857 = vrot.slane %v2856, 2
  %v2858 = vadd.f32 %v2856, %v2857
  %v2859 = vrot.slane %v2858, 1
  %v2860 = vadd.f32 %v2858, %v2859
  %v2861 = vmul.f32 %v2588, %v2588
  %v2862 = vmul.f32 %v2589, %v2589
  %v2863 = vmul.f32 %v2590, %v2590
  %v2864 = vmul.f32 %v2591, %v2591
  %v2865 = vmul.f32 %v2592, %v2592
  %v2866 = vmul.f32 %v2593, %v2593
  %v2867 = vmul.f32 %v2594, %v2594
  %v2868 = vmul.f32 %v2595, %v2595
  %v2869 = vmul.f32 %v2596, %v2596
  %v2870 = vmul.f32 %v2597, %v2597
  %v2871 = vmul.f32 %v2598, %v2598
  %v2872 = vmul.f32 %v2599, %v2599
  %v2873 = vmul.f32 %v2600, %v2600
  %v2874 = vmul.f32 %v2601, %v2601
  %v2875 = vmul.f32 %v2602, %v2602
  %v2876 = vmul.f32 %v2603, %v2603
  %v2877 = vmul.f32 %v2604, %v2604
  %v2878 = vmul.f32 %v2605, %v2605
  %v2879 = vmul.f32 %v2606, %v2606
  %v2880 = vmul.f32 %v2607, %v2607
  %v2881 = vmul.f32 %v2608, %v2608
  %v2882 = vmul.f32 %v2609, %v2609
  %v2883 = vmul.f32 %v2610, %v2610
  %v2884 = vmul.f32 %v2611, %v2611
  %v2885 = vmul.f32 %v2612, %v2612
  %v2886 = vmul.f32 %v2613, %v2613
  %v2887 = vmul.f32 %v2614, %v2614
  %v2888 = vmul.f32 %v2615, %v2615
  %v2889 = vmul.f32 %v2616, %v2616
  %v2890 = vmul.f32 %v2617, %v2617
  %v2891 = vmul.f32 %v2618, %v2618
  %v2892 = vmul.f32 %v2619, %v2619
  %v2893 = vmul.f32 %v2620, %v2620
  %v2894 = vmul.f32 %v2621, %v2621
  %v2895 = vmul.f32 %v2622, %v2622
  %v2896 = vmul.f32 %v2623, %v2623
  %v2897 = vmul.f32 %v2624, %v2624
  %v2898 = vmul.f32 %v2625, %v2625
  %v2899 = vmul.f32 %v2626, %v2626
  %v2900 = vmul.f32 %v2627, %v2627
  %v2901 = vmul.f32 %v2628, %v2628
  %v2902 = vmul.f32 %v2629, %v2629
  %v2903 = vmul.f32 %v2630, %v2630
  %v2904 = vmul.f32 %v2631, %v2631
  %v2905 = vmul.f32 %v2632, %v2632
  %v2906 = vmul.f32 %v2633, %v2633
  %v2907 = vmul.f32 %v2634, %v2634
  %v2908 = vmul.f32 %v2635, %v2635
  %v2909 = vmul.f32 %v2636, %v2636
  %v2910 = vmul.f32 %v2637, %v2637
  %v2911 = vmul.f32 %v2638, %v2638
  %v2912 = vmul.f32 %v2639, %v2639
  %v2913 = vmul.f32 %v2640, %v2640
  %v2914 = vmul.f32 %v2641, %v2641
  %v2915 = vmul.f32 %v2642, %v2642
  %v2916 = vmul.f32 %v2643, %v2643
  %v2917 = vmul.f32 %v2644, %v2644
  %v2918 = vmul.f32 %v2645, %v2645
  %v2919 = vmul.f32 %v2646, %v2646
  %v2920 = vmul.f32 %v2647, %v2647
  %v2921 = vmul.f32 %v2648, %v2648
  %v2922 = vmul.f32 %v2649, %v2649
  %v2923 = vmul.f32 %v2650, %v2650
  %v2924 = vmul.f32 %v2651, %v2651
  %v2925 = vmul.f32 %v2652, %v2652
  %v2926 = vmul.f32 %v2653, %v2653
  %v2927 = vmul.f32 %v2654, %v2654
  %v2928 = vmul.f32 %v2655, %v2655
  %v2929 = vmul.f32 %v2656, %v2656
  %v2930 = vmul.f32 %v2657, %v2657
  %v2931 = vmul.f32 %v2658, %v2658
  %v2932 = vmul.f32 %v2659, %v2659
  %v2933 = vmul.f32 %v2660, %v2660
  %v2934 = vmul.f32 %v2661, %v2661
  %v2935 = vmul.f32 %v2662, %v2662
  %v2936 = vmul.f32 %v2663, %v2663
  %v2937 = vmul.f32 %v2664, %v2664
  %v2938 = vmul.f32 %v2665, %v2665
  %v2939 = vmul.f32 %v2666, %v2666
  %v2940 = vmul.f32 %v2667, %v2667
  %v2941 = vmul.f32 %v2668, %v2668
  %v2942 = vmul.f32 %v2669, %v2669
  %v2943 = vmul.f32 %v2670, %v2670
  %v2944 = vmul.f32 %v2671, %v2671
  %v2945 = vmul.f32 %v2672, %v2672
  %v2946 = vmul.f32 %v2673, %v2673
  %v2947 = vmul.f32 %v2674, %v2674
  %v2948 = vmul.f32 %v2675, %v2675
  %v2949 = vmul.f32 %v2676, %v2676
  %v2950 = vmul.f32 %v2677, %v2677
  %v2951 = vmul.f32 %v2678, %v2678
  %v2952 = vmul.f32 %v2679, %v2679
  %v2953 = vmul.f32 %v2680, %v2680
  %v2954 = vmul.f32 %v2681, %v2681
  %v2955 = vmul.f32 %v2682, %v2682
  %v2956 = vmul.f32 %v2683, %v2683
  %v2957 = vmul.f32 %v2684, %v2684
  %v2958 = vmul.f32 %v2685, %v2685
  %v2959 = vmul.f32 %v2686, %v2686
  %v2960 = vmul.f32 %v2687, %v2687
  %v2961 = vmul.f32 %v2688, %v2688
  %v2962 = vmul.f32 %v2689, %v2689
  %v2963 = vmul.f32 %v2690, %v2690
  %v2964 = vmul.f32 %v2691, %v2691
  %v2965 = vmul.f32 %v2692, %v2692
  %v2966 = vmul.f32 %v2693, %v2693
  %v2967 = vmul.f32 %v2694, %v2694
  %v2968 = vmul.f32 %v2695, %v2695
  %v2969 = vmul.f32 %v2696, %v2696
  %v2970 = vmul.f32 %v2697, %v2697
  %v2971 = vmul.f32 %v2698, %v2698
  %v2972 = vmul.f32 %v2699, %v2699
  %v2973 = vmul.f32 %v2700, %v2700
  %v2974 = vmul.f32 %v2701, %v2701
  %v2975 = vmul.f32 %v2702, %v2702
  %v2976 = vmul.f32 %v2703, %v2703
  %v2977 = vmul.f32 %v2704, %v2704
  %v2978 = vmul.f32 %v2705, %v2705
  %v2979 = vmul.f32 %v2706, %v2706
  %v2980 = vmul.f32 %v2707, %v2707
  %v2981 = vmul.f32 %v2708, %v2708
  %v2982 = vmul.f32 %v2709, %v2709
  %v2983 = vmul.f32 %v2710, %v2710
  %v2984 = vmul.f32 %v2711, %v2711
  %v2985 = vmul.f32 %v2712, %v2712
  %v2986 = vmul.f32 %v2713, %v2713
  %v2987 = vmul.f32 %v2714, %v2714
  %v2988 = vmul.f32 %v2715, %v2715
  %v2989 = vmul.f32 %v2716, %v2716
  %v2990 = vmul.f32 %v2717, %v2717
  %v2991 = vmul.f32 %v2718, %v2718
  %v2992 = vmul.f32 %v2719, %v2719
  %v2993 = vmul.f32 %v2720, %v2720
  %v2994 = vadd.f32 %v2861, %v2862
  %v2995 = vadd.f32 %v2994, %v2863
  %v2996 = vadd.f32 %v2995, %v2864
  %v2997 = vadd.f32 %v2996, %v2865
  %v2998 = vadd.f32 %v2997, %v2866
  %v2999 = vadd.f32 %v2998, %v2867
  %v3000 = vadd.f32 %v2999, %v2868
  %v3001 = vadd.f32 %v3000, %v2869
  %v3002 = vadd.f32 %v3001, %v2870
  %v3003 = vadd.f32 %v3002, %v2871
  %v3004 = vadd.f32 %v3003, %v2872
  %v3005 = vadd.f32 %v3004, %v2873
  %v3006 = vadd.f32 %v3005, %v2874
  %v3007 = vadd.f32 %v3006, %v2875
  %v3008 = vadd.f32 %v3007, %v2876
  %v3009 = vadd.f32 %v3008, %v2877
  %v3010 = vadd.f32 %v3009, %v2878
  %v3011 = vadd.f32 %v3010, %v2879
  %v3012 = vadd.f32 %v3011, %v2880
  %v3013 = vadd.f32 %v3012, %v2881
  %v3014 = vadd.f32 %v3013, %v2882
  %v3015 = vadd.f32 %v3014, %v2883
  %v3016 = vadd.f32 %v3015, %v2884
  %v3017 = vadd.f32 %v3016, %v2885
  %v3018 = vadd.f32 %v3017, %v2886
  %v3019 = vadd.f32 %v3018, %v2887
  %v3020 = vadd.f32 %v3019, %v2888
  %v3021 = vadd.f32 %v3020, %v2889
  %v3022 = vadd.f32 %v3021, %v2890
  %v3023 = vadd.f32 %v3022, %v2891
  %v3024 = vadd.f32 %v3023, %v2892
  %v3025 = vadd.f32 %v3024, %v2893
  %v3026 = vadd.f32 %v3025, %v2894
  %v3027 = vadd.f32 %v3026, %v2895
  %v3028 = vadd.f32 %v3027, %v2896
  %v3029 = vadd.f32 %v3028, %v2897
  %v3030 = vadd.f32 %v3029, %v2898
  %v3031 = vadd.f32 %v3030, %v2899
  %v3032 = vadd.f32 %v3031, %v2900
  %v3033 = vadd.f32 %v3032, %v2901
  %v3034 = vadd.f32 %v3033, %v2902
  %v3035 = vadd.f32 %v3034, %v2903
  %v3036 = vadd.f32 %v3035, %v2904
  %v3037 = vadd.f32 %v3036, %v2905
  %v3038 = vadd.f32 %v3037, %v2906
  %v3039 = vadd.f32 %v3038, %v2907
  %v3040 = vadd.f32 %v3039, %v2908
  %v3041 = vadd.f32 %v3040, %v2909
  %v3042 = vadd.f32 %v3041, %v2910
  %v3043 = vadd.f32 %v3042, %v2911
  %v3044 = vadd.f32 %v3043, %v2912
  %v3045 = vadd.f32 %v3044, %v2913
  %v3046 = vadd.f32 %v3045, %v2914
  %v3047 = vadd.f32 %v3046, %v2915
  %v3048 = vadd.f32 %v3047, %v2916
  %v3049 = vadd.f32 %v3048, %v2917
  %v3050 = vadd.f32 %v3049, %v2918
  %v3051 = vadd.f32 %v3050, %v2919
  %v3052 = vadd.f32 %v3051, %v2920
  %v3053 = vadd.f32 %v3052, %v2921
  %v3054 = vadd.f32 %v3053, %v2922
  %v3055 = vadd.f32 %v3054, %v2923
  %v3056 = vadd.f32 %v3055, %v2924
  %v3057 = vadd.f32 %v3056, %v2925
  %v3058 = vadd.f32 %v3057, %v2926
  %v3059 = vadd.f32 %v3058, %v2927
  %v3060 = vadd.f32 %v3059, %v2928
  %v3061 = vadd.f32 %v3060, %v2929
  %v3062 = vadd.f32 %v3061, %v2930
  %v3063 = vadd.f32 %v3062, %v2931
  %v3064 = vadd.f32 %v3063, %v2932
  %v3065 = vadd.f32 %v3064, %v2933
  %v3066 = vadd.f32 %v3065, %v2934
  %v3067 = vadd.f32 %v3066, %v2935
  %v3068 = vadd.f32 %v3067, %v2936
  %v3069 = vadd.f32 %v3068, %v2937
  %v3070 = vadd.f32 %v3069, %v2938
  %v3071 = vadd.f32 %v3070, %v2939
  %v3072 = vadd.f32 %v3071, %v2940
  %v3073 = vadd.f32 %v3072, %v2941
  %v3074 = vadd.f32 %v3073, %v2942
  %v3075 = vadd.f32 %v3074, %v2943
  %v3076 = vadd.f32 %v3075, %v2944
  %v3077 = vadd.f32 %v3076, %v2945
  %v3078 = vadd.f32 %v3077, %v2946
  %v3079 = vadd.f32 %v3078, %v2947
  %v3080 = vadd.f32 %v3079, %v2948
  %v3081 = vadd.f32 %v3080, %v2949
  %v3082 = vadd.f32 %v3081, %v2950
  %v3083 = vadd.f32 %v3082, %v2951
  %v3084 = vadd.f32 %v3083, %v2952
  %v3085 = vadd.f32 %v3084, %v2953
  %v3086 = vadd.f32 %v3085, %v2954
  %v3087 = vadd.f32 %v3086, %v2955
  %v3088 = vadd.f32 %v3087, %v2956
  %v3089 = vadd.f32 %v3088, %v2957
  %v3090 = vadd.f32 %v3089, %v2958
  %v3091 = vadd.f32 %v3090, %v2959
  %v3092 = vadd.f32 %v3091, %v2960
  %v3093 = vadd.f32 %v3092, %v2961
  %v3094 = vadd.f32 %v3093, %v2962
  %v3095 = vadd.f32 %v3094, %v2963
  %v3096 = vadd.f32 %v3095, %v2964
  %v3097 = vadd.f32 %v3096, %v2965
  %v3098 = vadd.f32 %v3097, %v2966
  %v3099 = vadd.f32 %v3098, %v2967
  %v3100 = vadd.f32 %v3099, %v2968
  %v3101 = vadd.f32 %v3100, %v2969
  %v3102 = vadd.f32 %v3101, %v2970
  %v3103 = vadd.f32 %v3102, %v2971
  %v3104 = vadd.f32 %v3103, %v2972
  %v3105 = vadd.f32 %v3104, %v2973
  %v3106 = vadd.f32 %v3105, %v2974
  %v3107 = vadd.f32 %v3106, %v2975
  %v3108 = vadd.f32 %v3107, %v2976
  %v3109 = vadd.f32 %v3108, %v2977
  %v3110 = vadd.f32 %v3109, %v2978
  %v3111 = vadd.f32 %v3110, %v2979
  %v3112 = vadd.f32 %v3111, %v2980
  %v3113 = vadd.f32 %v3112, %v2981
  %v3114 = vadd.f32 %v3113, %v2982
  %v3115 = vadd.f32 %v3114, %v2983
  %v3116 = vadd.f32 %v3115, %v2984
  %v3117 = vadd.f32 %v3116, %v2985
  %v3118 = vadd.f32 %v3117, %v2986
  %v3119 = vadd.f32 %v3118, %v2987
  %v3120 = vadd.f32 %v3119, %v2988
  %v3121 = vadd.f32 %v3120, %v2989
  %v3122 = vadd.f32 %v3121, %v2990
  %v3123 = vadd.f32 %v3122, %v2991
  %v3124 = vadd.f32 %v3123, %v2992
  %v3125 = vsel %vm2852, %v2993, 0.0
  %v3126 = vadd.f32 %v3124, %v3125
  %v3127 = vrot.slane %v3126, 4
  %v3128 = vadd.f32 %v3126, %v3127
  %v3129 = vrot.slane %v3128, 2
  %v3130 = vadd.f32 %v3128, %v3129
  %v3131 = vrot.slane %v3130, 1
  %v3132 = vadd.f32 %v3130, %v3131
  %vm3133 = vcmp.eq.s32.totalorder %v2187, 0
  %vm3134 = vcmp.eq.s32.totalorder %v2187, 1
  %v3135 = vsel %vm3134, %v3132, 0.0
  %v3136 = vsel %vm3133, %v2860, %v3135
  %3137 = vst [vmem:[%s4] sm:$0xff] %v3136
  // Predicated region
  $region14: #{_lambda_.7} parent=0 // pred_check
    _
  $region15: #{_lambda_.7} parent=0 // pred_check_branch
    %3139 = sbr.rel (0) target = $region17
  $region16: #{_lambda_.7} parent=0 // pred_region
    _
  $region17: #{_lambda_.7} parent=0 // pred_fallthru
    _
  // Predicated region
  $region18: #{_lambda_.7} parent=0 // pred_check
    _
  $region19: #{_lambda_.7} parent=0 // pred_check_branch
    %3141 = sbr.rel (0) target = $region21
  $region20: #{_lambda_.7} parent=0 // pred_region
    _
  $region21: #{_lambda_.7} parent=0 // pred_fallthru
    _
  // Predicated region
  $region22: #{_lambda_.7} parent=0 // pred_check
    _
  $region23: #{_lambda_.7} parent=0 // pred_check_branch
    %3143 = sbr.rel (0) target = $region25
  $region24: #{_lambda_.7} parent=0 // pred_region
    _
  $region25: #{_lambda_.7} parent=0 // pred_fallthru
    _
  // Predicated region
  $region26: #{_lambda_.7} parent=0 // pred_check
    _
  $region27: #{_lambda_.7} parent=0 // pred_check_branch
    %3145 = sbr.rel (0) target = $region29
  $region28: #{_lambda_.7} parent=0 // pred_region
    _
  $region29: #{_lambda_.7} parent=0 // pred_fallthru
    _

// kernel: _lambda_.9
$region0: #{_lambda_.9}
  #allocation0 [shape = 'u32[]', space=smem, size = 0x4, offset = 0x4, fixed_abs, tag = 'smem constant byte address 0x4 - core index']
  #allocation1 [shape = 'u32[144,128]{1,0:T(1,128)}', space=vmem, size = 0x12000, scoped, tag = 'internal scratch']
  %s0 = inlined_call_operand.vmem [shape: bf16[200,512], index: 0, kind: input, shape index: {}]
  %s1 = inlined_call_operand.vmem [shape: bf16[512,128], index: 1, kind: input, shape index: {}]
  %s2 = inlined_call_operand.vmem [shape: f32[1,128], index: 2, kind: input, shape index: {}]
  %s3 = inlined_call_operand.vmem [shape: bf16[200,128], index: 3, kind: output, shape index: {0}]
  %s4 = inlined_call_operand.vmem [shape: f32[1,8,128], index: 4, kind: output, shape index: {1}]
  %5 = xla_tuple %s3, %s4
  %s6 = sld [smem:[#allocation0]]
  $region30: #{_lambda_.9} parent=0
    _
  %s8 = ssub.s32 1, %s6
  %s9 = scalar_select 0, %s8, %s6
  // Predicated region
  $region2: #{_lambda_.9} parent=0 // pred_check
    _
  $region3: #{_lambda_.9} parent=0 // pred_check_branch
    %11 = sbr.rel (0) target = $region5
  $region4: #{_lambda_.9} parent=0 // pred_region
    _
  $region5: #{_lambda_.9} parent=0 // pred_fallthru
    _
  // Predicated region
  $region6: #{_lambda_.9} parent=0 // pred_check
    _
  $region7: #{_lambda_.9} parent=0 // pred_check_branch
    %13 = sbr.rel (0) target = $region9
  $region8: #{_lambda_.9} parent=0 // pred_region
    _
  $region9: #{_lambda_.9} parent=0 // pred_fallthru
    _
  // Predicated region
  $region10: #{_lambda_.9} parent=0 // pred_check
    _
  $region11: #{_lambda_.9} parent=0 // pred_check_branch
    %15 = sbr.rel (0) target = $region13
  $region12: #{_lambda_.9} parent=0 // pred_region
    _
  $region13: #{_lambda_.9} parent=0 // pred_fallthru
    _
  %v17 = vld [vmem:[%s0] sm:$0xff]
  %v18 = vld [vmem:[%s0 + $0x8] sm:$0xff]
  %v19 = vld [vmem:[%s0 + $0x10] sm:$0xff]
  %v20 = vld [vmem:[%s0 + $0x18] sm:$0xff]
  %v21 = vld [vmem:[%s0 + $0x20] sm:$0xff]
  %v22 = vld [vmem:[%s0 + $0x28] sm:$0xff]
  %v23 = vld [vmem:[%s0 + $0x30] sm:$0xff]
  %v24 = vld [vmem:[%s0 + $0x38] sm:$0xff]
  %v25 = vld [vmem:[%s0 + $0x40] sm:$0xff]
  %v26 = vld [vmem:[%s0 + $0x48] sm:$0xff]
  %v27 = vld [vmem:[%s0 + $0x50] sm:$0xff]
  %v28 = vld [vmem:[%s0 + $0x58] sm:$0xff]
  %v29 = vld [vmem:[%s0 + $0x60] sm:$0xff]
  %v30 = vld [vmem:[%s0 + $0x68] sm:$0xff]
  %v31 = vld [vmem:[%s0 + $0x70] sm:$0xff]
  %v32 = vld [vmem:[%s0 + $0x78] sm:$0xff]
  %v33 = vld [vmem:[%s0 + $0x80] sm:$0xff]
  %v34 = vld [vmem:[%s0 + $0x88] sm:$0xff]
  %v35 = vld [vmem:[%s0 + $0x90] sm:$0xff]
  %v36 = vld [vmem:[%s0 + $0x98] sm:$0xff]
  %v37 = vld [vmem:[%s0 + $0xa0] sm:$0xff]
  %v38 = vld [vmem:[%s0 + $0xa8] sm:$0xff]
  %v39 = vld [vmem:[%s0 + $0xb0] sm:$0xff]
  %v40 = vld [vmem:[%s0 + $0xb8] sm:$0xff]
  %v41 = vld [vmem:[%s0 + $0xc0] sm:$0xff]
  %v42 = vld [vmem:[%s0 + $0xc8] sm:$0xff]
  %v43 = vld [vmem:[%s0 + $0xd0] sm:$0xff]
  %v44 = vld [vmem:[%s0 + $0xd8] sm:$0xff]
  %v45 = vld [vmem:[%s0 + $0xe0] sm:$0xff]
  %v46 = vld [vmem:[%s0 + $0xe8] sm:$0xff]
  %v47 = vld [vmem:[%s0 + $0xf0] sm:$0xff]
  %v48 = vld [vmem:[%s0 + $0xf8] sm:$0xff]
  %v49 = vld [vmem:[%s0 + $0x100] sm:$0xff]
  %v50 = vld [vmem:[%s0 + $0x108] sm:$0xff]
  %v51 = vld [vmem:[%s0 + $0x110] sm:$0xff]
  %v52 = vld [vmem:[%s0 + $0x118] sm:$0xff]
  %v53 = vld [vmem:[%s0 + $0x120] sm:$0xff]
  %v54 = vld [vmem:[%s0 + $0x128] sm:$0xff]
  %v55 = vld [vmem:[%s0 + $0x130] sm:$0xff]
  %v56 = vld [vmem:[%s0 + $0x138] sm:$0xff]
  %v57 = vld [vmem:[%s0 + $0x140] sm:$0xff]
  %v58 = vld [vmem:[%s0 + $0x148] sm:$0xff]
  %v59 = vld [vmem:[%s0 + $0x150] sm:$0xff]
  %v60 = vld [vmem:[%s0 + $0x158] sm:$0xff]
  %v61 = vld [vmem:[%s0 + $0x160] sm:$0xff]
  %v62 = vld [vmem:[%s0 + $0x168] sm:$0xff]
  %v63 = vld [vmem:[%s0 + $0x170] sm:$0xff]
  %v64 = vld [vmem:[%s0 + $0x178] sm:$0xff]
  %v65 = vld [vmem:[%s0 + $0x180] sm:$0xff]
  %v66 = vld [vmem:[%s0 + $0x188] sm:$0xff]
  %v67 = vld [vmem:[%s1] sm:$0xf]
  %v68 = vld [vmem:[%s1 + $0x4] sm:$0xf]
  %v69 = vld [vmem:[%s1 + $0x8] sm:$0xf]
  %v70 = vld [vmem:[%s1 + $0xc] sm:$0xf]
  %v71 = vld [vmem:[%s1 + $0x10] sm:$0xf]
  %v72 = vld [vmem:[%s1 + $0x14] sm:$0xf]
  %v73 = vld [vmem:[%s1 + $0x18] sm:$0xf]
  %v74 = vld [vmem:[%s1 + $0x1c] sm:$0xf]
  %v75 = vld [vmem:[%s1 + $0x20] sm:$0xf]
  %v76 = vld [vmem:[%s1 + $0x24] sm:$0xf]
  %v77 = vld [vmem:[%s1 + $0x28] sm:$0xf]
  %v78 = vld [vmem:[%s1 + $0x2c] sm:$0xf]
  %v79 = vld [vmem:[%s1 + $0x30] sm:$0xf]
  %v80 = vld [vmem:[%s1 + $0x34] sm:$0xf]
  %v81 = vld [vmem:[%s1 + $0x38] sm:$0xf]
  %v82 = vld [vmem:[%s1 + $0x3c] sm:$0xf]
  %v83 = vld [vmem:[%s1 + $0x40] sm:$0xf]
  %v84 = vld [vmem:[%s1 + $0x44] sm:$0xf]
  %v85 = vld [vmem:[%s1 + $0x48] sm:$0xf]
  %v86 = vld [vmem:[%s1 + $0x4c] sm:$0xf]
  %v87 = vld [vmem:[%s1 + $0x50] sm:$0xf]
  %v88 = vld [vmem:[%s1 + $0x54] sm:$0xf]
  %v89 = vld [vmem:[%s1 + $0x58] sm:$0xf]
  %v90 = vld [vmem:[%s1 + $0x5c] sm:$0xf]
  %v91 = vld [vmem:[%s1 + $0x60] sm:$0xf]
  %v92 = vld [vmem:[%s1 + $0x64] sm:$0xf]
  %v93 = vld [vmem:[%s1 + $0x68] sm:$0xf]
  %v94 = vld [vmem:[%s1 + $0x6c] sm:$0xf]
  %v95 = vld [vmem:[%s1 + $0x70] sm:$0xf]
  %v96 = vld [vmem:[%s1 + $0x74] sm:$0xf]
  %v97 = vld [vmem:[%s1 + $0x78] sm:$0xf]
  %v98 = vld [vmem:[%s1 + $0x7c] sm:$0xf]
  %v99 = vld [vmem:[%s1 + $0x80] sm:$0xf]
  %v100 = vld [vmem:[%s1 + $0x84] sm:$0xf]
  %v101 = vld [vmem:[%s1 + $0x88] sm:$0xf]
  %v102 = vld [vmem:[%s1 + $0x8c] sm:$0xf]
  %v103 = vld [vmem:[%s1 + $0x90] sm:$0xf]
  %v104 = vld [vmem:[%s1 + $0x94] sm:$0xf]
  %v105 = vld [vmem:[%s1 + $0x98] sm:$0xf]
  %v106 = vld [vmem:[%s1 + $0x9c] sm:$0xf]
  %v107 = vld [vmem:[%s1 + $0xa0] sm:$0xf]
  %v108 = vld [vmem:[%s1 + $0xa4] sm:$0xf]
  %v109 = vld [vmem:[%s1 + $0xa8] sm:$0xf]
  %v110 = vld [vmem:[%s1 + $0xac] sm:$0xf]
  %v111 = vld [vmem:[%s1 + $0xb0] sm:$0xf]
  %v112 = vld [vmem:[%s1 + $0xb4] sm:$0xf]
  %v113 = vld [vmem:[%s1 + $0xb8] sm:$0xf]
  %v114 = vld [vmem:[%s1 + $0xbc] sm:$0xf]
  %v115 = vld [vmem:[%s1 + $0xc0] sm:$0xf]
  %v116 = vld [vmem:[%s1 + $0xc4] sm:$0xf]
  %v117 = vld [vmem:[%s1 + $0xc8] sm:$0xf]
  %v118 = vld [vmem:[%s1 + $0xcc] sm:$0xf]
  %v119 = vld [vmem:[%s1 + $0xd0] sm:$0xf]
  %v120 = vld [vmem:[%s1 + $0xd4] sm:$0xf]
  %v121 = vld [vmem:[%s1 + $0xd8] sm:$0xf]
  %v122 = vld [vmem:[%s1 + $0xdc] sm:$0xf]
  %v123 = vld [vmem:[%s1 + $0xe0] sm:$0xf]
  %v124 = vld [vmem:[%s1 + $0xe4] sm:$0xf]
  %v125 = vld [vmem:[%s1 + $0xe8] sm:$0xf]
  %v126 = vld [vmem:[%s1 + $0xec] sm:$0xf]
  %v127 = vld [vmem:[%s1 + $0xf0] sm:$0xf]
  %v128 = vld [vmem:[%s1 + $0xf4] sm:$0xf]
  %v129 = vld [vmem:[%s1 + $0xf8] sm:$0xf]
  %v130 = vld [vmem:[%s1 + $0xfc] sm:$0xf]
  %v131 = vld [vmem:[%s2] sm:$0x1]
  %v133 = vlaneseq
  %v134 = vshrl.u32 %v133, 7
  %v135 = vsub.s32 0, %v134
  %v136 = vrot.slane %v131, %v135
  %v188 = vunpack.c.l.b16 %v17
  %v189 = vunpack.c.h.b16 %v17
  %v190 = vunpack.c.l.b16 %v18
  %v191 = vunpack.c.h.b16 %v18
  %v192 = vunpack.c.l.b16 %v19
  %v193 = vunpack.c.h.b16 %v19
  %v194 = vunpack.c.l.b16 %v20
  %v195 = vunpack.c.h.b16 %v20
  %v196 = vunpack.c.l.b16 %v21
  %v197 = vunpack.c.h.b16 %v21
  %v198 = vunpack.c.l.b16 %v22
  %v199 = vunpack.c.h.b16 %v22
  %v200 = vunpack.c.l.b16 %v23
  %v201 = vunpack.c.h.b16 %v23
  %v202 = vunpack.c.l.b16 %v24
  %v203 = vunpack.c.h.b16 %v24
  %v204 = vunpack.c.l.b16 %v25
  %v205 = vunpack.c.h.b16 %v25
  %v206 = vunpack.c.l.b16 %v26
  %v207 = vunpack.c.h.b16 %v26
  %v208 = vunpack.c.l.b16 %v27
  %v209 = vunpack.c.h.b16 %v27
  %v210 = vunpack.c.l.b16 %v28
  %v211 = vunpack.c.h.b16 %v28
  %v212 = vunpack.c.l.b16 %v29
  %v213 = vunpack.c.h.b16 %v29
  %v214 = vunpack.c.l.b16 %v30
  %v215 = vunpack.c.h.b16 %v30
  %v216 = vunpack.c.l.b16 %v31
  %v217 = vunpack.c.h.b16 %v31
  %v218 = vunpack.c.l.b16 %v32
  %v219 = vunpack.c.h.b16 %v32
  %v220 = vunpack.c.l.b16 %v33
  %v221 = vunpack.c.h.b16 %v33
  %v222 = vunpack.c.l.b16 %v34
  %v223 = vunpack.c.h.b16 %v34
  %v224 = vunpack.c.l.b16 %v35
  %v225 = vunpack.c.h.b16 %v35
  %v226 = vunpack.c.l.b16 %v36
  %v227 = vunpack.c.h.b16 %v36
  %v228 = vunpack.c.l.b16 %v37
  %v229 = vunpack.c.h.b16 %v37
  %v230 = vunpack.c.l.b16 %v38
  %v231 = vunpack.c.h.b16 %v38
  %v232 = vunpack.c.l.b16 %v39
  %v233 = vunpack.c.h.b16 %v39
  %v234 = vunpack.c.l.b16 %v40
  %v235 = vunpack.c.h.b16 %v40
  %v236 = vunpack.c.l.b16 %v41
  %v237 = vunpack.c.h.b16 %v41
  %v238 = vunpack.c.l.b16 %v42
  %v239 = vunpack.c.h.b16 %v42
  %v240 = vunpack.c.l.b16 %v43
  %v241 = vunpack.c.h.b16 %v43
  %v242 = vunpack.c.l.b16 %v44
  %v243 = vunpack.c.h.b16 %v44
  %v244 = vunpack.c.l.b16 %v45
  %v245 = vunpack.c.h.b16 %v45
  %v246 = vunpack.c.l.b16 %v46
  %v247 = vunpack.c.h.b16 %v46
  %v248 = vunpack.c.l.b16 %v47
  %v249 = vunpack.c.h.b16 %v47
  %v250 = vunpack.c.l.b16 %v48
  %v251 = vunpack.c.h.b16 %v48
  %v252 = vunpack.c.l.b16 %v49
  %v253 = vunpack.c.h.b16 %v49
  %v254 = vunpack.c.l.b16 %v50
  %v255 = vunpack.c.h.b16 %v50
  %v256 = vunpack.c.l.b16 %v51
  %v257 = vunpack.c.h.b16 %v51
  %v258 = vunpack.c.l.b16 %v52
  %v259 = vunpack.c.h.b16 %v52
  %v260 = vunpack.c.l.b16 %v53
  %v261 = vunpack.c.h.b16 %v53
  %v262 = vunpack.c.l.b16 %v54
  %v263 = vunpack.c.h.b16 %v54
  %v264 = vunpack.c.l.b16 %v55
  %v265 = vunpack.c.h.b16 %v55
  %v266 = vunpack.c.l.b16 %v56
  %v267 = vunpack.c.h.b16 %v56
  %v268 = vunpack.c.l.b16 %v57
  %v269 = vunpack.c.h.b16 %v57
  %v270 = vunpack.c.l.b16 %v58
  %v271 = vunpack.c.h.b16 %v58
  %v272 = vunpack.c.l.b16 %v59
  %v273 = vunpack.c.h.b16 %v59
  %v274 = vunpack.c.l.b16 %v60
  %v275 = vunpack.c.h.b16 %v60
  %v276 = vunpack.c.l.b16 %v61
  %v277 = vunpack.c.h.b16 %v61
  %v278 = vunpack.c.l.b16 %v62
  %v279 = vunpack.c.h.b16 %v62
  %v280 = vunpack.c.l.b16 %v63
  %v281 = vunpack.c.h.b16 %v63
  %v282 = vunpack.c.l.b16 %v64
  %v283 = vunpack.c.h.b16 %v64
  %v284 = vunpack.c.l.b16 %v65
  %v285 = vunpack.c.h.b16 %v65
  %v286 = vunpack.c.l.b16 %v66
  %v287 = vunpack.c.h.b16 %v66
  %v288 = vpack.c.b16 %v192, %v188
  %v289 = vpack.c.b16 %v193, %v189
  %v290 = vpack.c.b16 %v194, %v190
  %v291 = vpack.c.b16 %v195, %v191
  %v292 = vpack.c.b16 %v200, %v196
  %v293 = vpack.c.b16 %v201, %v197
  %v294 = vpack.c.b16 %v202, %v198
  %v295 = vpack.c.b16 %v203, %v199
  %v296 = vpack.c.b16 %v208, %v204
  %v297 = vpack.c.b16 %v209, %v205
  %v298 = vpack.c.b16 %v210, %v206
  %v299 = vpack.c.b16 %v211, %v207
  %v300 = vpack.c.b16 %v216, %v212
  %v301 = vpack.c.b16 %v217, %v213
  %v302 = vpack.c.b16 %v218, %v214
  %v303 = vpack.c.b16 %v219, %v215
  %v304 = vpack.c.b16 %v224, %v220
  %v305 = vpack.c.b16 %v225, %v221
  %v306 = vpack.c.b16 %v226, %v222
  %v307 = vpack.c.b16 %v227, %v223
  %v308 = vpack.c.b16 %v232, %v228
  %v309 = vpack.c.b16 %v233, %v229
  %v310 = vpack.c.b16 %v234, %v230
  %v311 = vpack.c.b16 %v235, %v231
  %v312 = vpack.c.b16 %v240, %v236
  %v313 = vpack.c.b16 %v241, %v237
  %v314 = vpack.c.b16 %v242, %v238
  %v315 = vpack.c.b16 %v243, %v239
  %v316 = vpack.c.b16 %v248, %v244
  %v317 = vpack.c.b16 %v249, %v245
  %v318 = vpack.c.b16 %v250, %v246
  %v319 = vpack.c.b16 %v251, %v247
  %v320 = vpack.c.b16 %v256, %v252
  %v321 = vpack.c.b16 %v257, %v253
  %v322 = vpack.c.b16 %v258, %v254
  %v323 = vpack.c.b16 %v259, %v255
  %v324 = vpack.c.b16 %v264, %v260
  %v325 = vpack.c.b16 %v265, %v261
  %v326 = vpack.c.b16 %v266, %v262
  %v327 = vpack.c.b16 %v267, %v263
  %v328 = vpack.c.b16 %v272, %v268
  %v329 = vpack.c.b16 %v273, %v269
  %v330 = vpack.c.b16 %v274, %v270
  %v331 = vpack.c.b16 %v275, %v271
  %v332 = vpack.c.b16 %v280, %v276
  %v333 = vpack.c.b16 %v281, %v277
  %v334 = vpack.c.b16 %v282, %v278
  %v335 = vpack.c.b16 %v283, %v279
  %v336 = vpack.c.b16 %v284, %v284
  %v337 = vpack.c.b16 %v285, %v285
  %v338 = vpack.c.b16 %v286, %v286
  %v339 = vpack.c.b16 %v287, %v287
  %v456 = vunpack.c.l.b16 %v67
  %v457 = vunpack.c.l.b16 %v68
  %v458 = vunpack.c.l.b16 %v69
  %v459 = vunpack.c.l.b16 %v70
  %v460 = vunpack.c.l.b16 %v71
  %v461 = vunpack.c.l.b16 %v72
  %v462 = vunpack.c.l.b16 %v73
  %v463 = vunpack.c.l.b16 %v74
  %v464 = vunpack.c.l.b16 %v75
  %v465 = vunpack.c.l.b16 %v76
  %v466 = vunpack.c.l.b16 %v77
  %v467 = vunpack.c.l.b16 %v78
  %v468 = vunpack.c.l.b16 %v79
  %v469 = vunpack.c.l.b16 %v80
  %v470 = vunpack.c.l.b16 %v81
  %v471 = vunpack.c.l.b16 %v82
  %v472 = vunpack.c.l.b16 %v83
  %v473 = vunpack.c.l.b16 %v84
  %v474 = vunpack.c.l.b16 %v85
  %v475 = vunpack.c.l.b16 %v86
  %v476 = vunpack.c.l.b16 %v87
  %v477 = vunpack.c.l.b16 %v88
  %v478 = vunpack.c.l.b16 %v89
  %v479 = vunpack.c.l.b16 %v90
  %v480 = vunpack.c.l.b16 %v91
  %v481 = vunpack.c.l.b16 %v92
  %v482 = vunpack.c.l.b16 %v93
  %v483 = vunpack.c.l.b16 %v94
  %v484 = vunpack.c.l.b16 %v95
  %v485 = vunpack.c.l.b16 %v96
  %v486 = vunpack.c.l.b16 %v97
  %v487 = vunpack.c.l.b16 %v98
  %v488 = vunpack.c.l.b16 %v99
  %v489 = vunpack.c.l.b16 %v100
  %v490 = vunpack.c.l.b16 %v101
  %v491 = vunpack.c.l.b16 %v102
  %v492 = vunpack.c.l.b16 %v103
  %v493 = vunpack.c.l.b16 %v104
  %v494 = vunpack.c.l.b16 %v105
  %v495 = vunpack.c.l.b16 %v106
  %v496 = vunpack.c.l.b16 %v107
  %v497 = vunpack.c.l.b16 %v108
  %v498 = vunpack.c.l.b16 %v109
  %v499 = vunpack.c.l.b16 %v110
  %v500 = vunpack.c.l.b16 %v111
  %v501 = vunpack.c.l.b16 %v112
  %v502 = vunpack.c.l.b16 %v113
  %v503 = vunpack.c.l.b16 %v114
  %v504 = vunpack.c.l.b16 %v115
  %v505 = vunpack.c.l.b16 %v116
  %v506 = vunpack.c.l.b16 %v117
  %v507 = vunpack.c.l.b16 %v118
  %v508 = vunpack.c.l.b16 %v119
  %v509 = vunpack.c.l.b16 %v120
  %v510 = vunpack.c.l.b16 %v121
  %v511 = vunpack.c.l.b16 %v122
  %v512 = vunpack.c.l.b16 %v123
  %v513 = vunpack.c.l.b16 %v124
  %v514 = vunpack.c.l.b16 %v125
  %v515 = vunpack.c.l.b16 %v126
  %v516 = vunpack.c.l.b16 %v127
  %v517 = vunpack.c.l.b16 %v128
  %v518 = vunpack.c.l.b16 %v129
  %v519 = vunpack.c.l.b16 %v130
  %v520 = vpack.c.b16 %v457, %v456
  %v521 = vpack.c.b16 %v459, %v458
  %v522 = vpack.c.b16 %v461, %v460
  %v523 = vpack.c.b16 %v463, %v462
  %v524 = vpack.c.b16 %v465, %v464
  %v525 = vpack.c.b16 %v467, %v466
  %v526 = vpack.c.b16 %v469, %v468
  %v527 = vpack.c.b16 %v471, %v470
  %v528 = vpack.c.b16 %v473, %v472
  %v529 = vpack.c.b16 %v475, %v474
  %v530 = vpack.c.b16 %v477, %v476
  %v531 = vpack.c.b16 %v479, %v478
  %v532 = vpack.c.b16 %v481, %v480
  %v533 = vpack.c.b16 %v483, %v482
  %v534 = vpack.c.b16 %v485, %v484
  %v535 = vpack.c.b16 %v487, %v486
  %v536 = vpack.c.b16 %v489, %v488
  %v537 = vpack.c.b16 %v491, %v490
  %v538 = vpack.c.b16 %v493, %v492
  %v539 = vpack.c.b16 %v495, %v494
  %v540 = vpack.c.b16 %v497, %v496
  %v541 = vpack.c.b16 %v499, %v498
  %v542 = vpack.c.b16 %v501, %v500
  %v543 = vpack.c.b16 %v503, %v502
  %v544 = vpack.c.b16 %v505, %v504
  %v545 = vpack.c.b16 %v507, %v506
  %v546 = vpack.c.b16 %v509, %v508
  %v547 = vpack.c.b16 %v511, %v510
  %v548 = vpack.c.b16 %v513, %v512
  %v549 = vpack.c.b16 %v515, %v514
  %v550 = vpack.c.b16 %v517, %v516
  %v551 = vpack.c.b16 %v519, %v518
  %584 = vmatprep.subr.bf16.mxu0 0
  %585 = vmatpush1.bf16.msra.mxu0 %v520
  %586 = vmatprep.subr.bf16.mxu0 0
  %587 = vmatpush1.bf16.msra.mxu0 %v521
  %588 = vmatprep.subr.bf16.mxu0 0
  %589 = vmatpush1.bf16.msra.mxu0 %v522
  %590 = vmatprep.subr.bf16.mxu0 0
  %591 = vmatpush1.bf16.msra.mxu0 %v523
  %592 = vmatprep.subr.bf16.mxu0 0
  %593 = vmatpush1.bf16.msra.mxu0 %v524
  %594 = vmatprep.subr.bf16.mxu0 0
  %595 = vmatpush1.bf16.msra.mxu0 %v525
  %596 = vmatprep.subr.bf16.mxu0 0
  %597 = vmatpush1.bf16.msra.mxu0 %v526
  %598 = vmatprep.subr.bf16.mxu0 0
  %599 = vmatpush1.bf16.msra.mxu0 %v527
  %600 = vmatprep.subr.bf16.mxu0 0
  %601 = vmatpush1.bf16.msra.mxu0 %v528
  %602 = vmatprep.subr.bf16.mxu0 0
  %603 = vmatpush1.bf16.msra.mxu0 %v529
  %604 = vmatprep.subr.bf16.mxu0 0
  %605 = vmatpush1.bf16.msra.mxu0 %v530
  %606 = vmatprep.subr.bf16.mxu0 0
  %607 = vmatpush1.bf16.msra.mxu0 %v531
  %608 = vmatprep.subr.bf16.mxu0 0
  %609 = vmatpush1.bf16.msra.mxu0 %v532
  %610 = vmatprep.subr.bf16.mxu0 0
  %611 = vmatpush1.bf16.msra.mxu0 %v533
  %612 = vmatprep.subr.bf16.mxu0 0
  %613 = vmatpush1.bf16.msra.mxu0 %v534
  %614 = vmatprep.subr.bf16.mxu0 0
  %615 = vmatpush1.bf16.msra.mxu0 %v535
  %616 = vmatprep.mubr.bf16.mxu0 %v289
  %617 = vmatmul.mubr.bf16.gmra.mrb[0].mxu0 %v288
  %v618 = vpop.f32.mrb[0].mxu0
  %v619 = vadd.f32 %v136, %v618
  %v620 = vpop.f32.mrb[0].mxu0
  %v621 = vpop.f32.mrb[0].mxu0
  %v622 = vadd.f32 %v136, %v621
  %v623 = vpop.f32.mrb[0].mxu0
  %624 = vmatprep.mubr.bf16.mxu0 %v293
  %625 = vmatmul.mubr.bf16.gmra.mrb[0].mxu0 %v292
  %v626 = vpop.f32.mrb[0].mxu0
  %v627 = vadd.f32 %v136, %v626
  %v628 = vpop.f32.mrb[0].mxu0
  %v629 = vpop.f32.mrb[0].mxu0
  %v630 = vadd.f32 %v136, %v629
  %v631 = vpop.f32.mrb[0].mxu0
  %632 = vmatprep.mubr.bf16.mxu0 %v297
  %633 = vmatmul.mubr.bf16.gmra.mrb[0].mxu0 %v296
  %v634 = vpop.f32.mrb[0].mxu0
  %v635 = vadd.f32 %v136, %v634
  %v636 = vpop.f32.mrb[0].mxu0
  %v637 = vpop.f32.mrb[0].mxu0
  %v638 = vadd.f32 %v136, %v637
  %v639 = vpop.f32.mrb[0].mxu0
  %640 = vmatprep.mubr.bf16.mxu0 %v301
  %641 = vmatmul.mubr.bf16.gmra.mrb[0].mxu0 %v300
  %v642 = vpop.f32.mrb[0].mxu0
  %v643 = vadd.f32 %v136, %v642
  %v644 = vpop.f32.mrb[0].mxu0
  %v645 = vpop.f32.mrb[0].mxu0
  %v646 = vadd.f32 %v136, %v645
  %v647 = vpop.f32.mrb[0].mxu0
  %648 = vmatprep.mubr.bf16.mxu0 %v305
  %649 = vmatmul.mubr.bf16.gmra.mrb[0].mxu0 %v304
  %v650 = vpop.f32.mrb[0].mxu0
  %v651 = vadd.f32 %v136, %v650
  %v652 = vpop.f32.mrb[0].mxu0
  %v653 = vpop.f32.mrb[0].mxu0
  %v654 = vadd.f32 %v136, %v653
  %v655 = vpop.f32.mrb[0].mxu0
  %656 = vmatprep.mubr.bf16.mxu0 %v309
  %657 = vmatmul.mubr.bf16.gmra.mrb[0].mxu0 %v308
  %v658 = vpop.f32.mrb[0].mxu0
  %v659 = vadd.f32 %v136, %v658
  %v660 = vpop.f32.mrb[0].mxu0
  %v661 = vpop.f32.mrb[0].mxu0
  %v662 = vadd.f32 %v136, %v661
  %v663 = vpop.f32.mrb[0].mxu0
  %664 = vmatprep.mubr.bf16.mxu0 %v313
  %665 = vmatmul.mubr.bf16.gmra.mrb[0].mxu0 %v312
  %v666 = vpop.f32.mrb[0].mxu0
  %v667 = vadd.f32 %v136, %v666
  %v668 = vpop.f32.mrb[0].mxu0
  %v669 = vpop.f32.mrb[0].mxu0
  %v670 = vadd.f32 %v136, %v669
  %v671 = vpop.f32.mrb[0].mxu0
  %672 = vmatprep.mubr.bf16.mxu0 %v317
  %673 = vmatmul.mubr.bf16.gmra.mrb[0].mxu0 %v316
  %v674 = vpop.f32.mrb[0].mxu0
  %v675 = vadd.f32 %v136, %v674
  %v676 = vpop.f32.mrb[0].mxu0
  %v677 = vpop.f32.mrb[0].mxu0
  %v678 = vadd.f32 %v136, %v677
  %v679 = vpop.f32.mrb[0].mxu0
  %680 = vmatprep.mubr.bf16.mxu0 %v321
  %681 = vmatmul.mubr.bf16.gmra.mrb[0].mxu0 %v320
  %v682 = vpop.f32.mrb[0].mxu0
  %v683 = vadd.f32 %v136, %v682
  %v684 = vpop.f32.mrb[0].mxu0
  %v685 = vpop.f32.mrb[0].mxu0
  %v686 = vadd.f32 %v136, %v685
  %v687 = vpop.f32.mrb[0].mxu0
  %688 = vmatprep.mubr.bf16.mxu0 %v325
  %689 = vmatmul.mubr.bf16.gmra.mrb[0].mxu0 %v324
  %v690 = vpop.f32.mrb[0].mxu0
  %v691 = vadd.f32 %v136, %v690
  %v692 = vpop.f32.mrb[0].mxu0
  %v693 = vpop.f32.mrb[0].mxu0
  %v694 = vadd.f32 %v136, %v693
  %v695 = vpop.f32.mrb[0].mxu0
  %696 = vmatprep.mubr.bf16.mxu0 %v329
  %697 = vmatmul.mubr.bf16.gmra.mrb[0].mxu0 %v328
  %v698 = vpop.f32.mrb[0].mxu0
  %v699 = vadd.f32 %v136, %v698
  %v700 = vpop.f32.mrb[0].mxu0
  %v701 = vpop.f32.mrb[0].mxu0
  %v702 = vadd.f32 %v136, %v701
  %v703 = vpop.f32.mrb[0].mxu0
  %704 = vmatprep.mubr.bf16.mxu0 %v333
  %705 = vmatmul.mubr.bf16.gmra.mrb[0].mxu0 %v332
  %v706 = vpop.f32.mrb[0].mxu0
  %v707 = vadd.f32 %v136, %v706
  %v708 = vpop.f32.mrb[0].mxu0
  %v709 = vpop.f32.mrb[0].mxu0
  %v710 = vadd.f32 %v136, %v709
  %v711 = vpop.f32.mrb[0].mxu0
  %712 = vmatprep.mubr.bf16.mxu0 %v337
  %713 = vmatmul.mubr.bf16.gmra.mrb[0].mxu0 %v336
  %v714 = vpop.f32.mrb[0].mxu0
  %v715 = vadd.f32 %v136, %v714
  %v716 = vpop.f32.mrb[0].mxu0
  %v717 = vpop.f32.mrb[0].mxu0
  %v718 = vpop.f32.mrb[0].mxu0
  %719 = vdwg.mxu0
  %720 = vmatprep.subr.bf16.mxu0 0
  %721 = vmatpush1.bf16.msra.mxu0 %v536
  %722 = vmatprep.subr.bf16.mxu0 0
  %723 = vmatpush1.bf16.msra.mxu0 %v537
  %724 = vmatprep.subr.bf16.mxu0 0
  %725 = vmatpush1.bf16.msra.mxu0 %v538
  %726 = vmatprep.subr.bf16.mxu0 0
  %727 = vmatpush1.bf16.msra.mxu0 %v539
  %728 = vmatprep.subr.bf16.mxu0 0
  %729 = vmatpush1.bf16.msra.mxu0 %v540
  %730 = vmatprep.subr.bf16.mxu0 0
  %731 = vmatpush1.bf16.msra.mxu0 %v541
  %732 = vmatprep.subr.bf16.mxu0 0
  %733 = vmatpush1.bf16.msra.mxu0 %v542
  %734 = vmatprep.subr.bf16.mxu0 0
  %735 = vmatpush1.bf16.msra.mxu0 %v543
  %736 = vmatprep.subr.bf16.mxu0 0
  %737 = vmatpush1.bf16.msra.mxu0 %v544
  %738 = vmatprep.subr.bf16.mxu0 0
  %739 = vmatpush1.bf16.msra.mxu0 %v545
  %740 = vmatprep.subr.bf16.mxu0 0
  %741 = vmatpush1.bf16.msra.mxu0 %v546
  %742 = vmatprep.subr.bf16.mxu0 0
  %743 = vmatpush1.bf16.msra.mxu0 %v547
  %744 = vmatprep.subr.bf16.mxu0 0
  %745 = vmatpush1.bf16.msra.mxu0 %v548
  %746 = vmatprep.subr.bf16.mxu0 0
  %747 = vmatpush1.bf16.msra.mxu0 %v549
  %748 = vmatprep.subr.bf16.mxu0 0
  %749 = vmatpush1.bf16.msra.mxu0 %v550
  %750 = vmatprep.subr.bf16.mxu0 0
  %751 = vmatpush1.bf16.msra.mxu0 %v551
  %752 = vmatprep.mubr.bf16.mxu0 %v291
  %753 = vmatmul.mubr.bf16.gmra.mrb[0].mxu0 %v290
  %v754 = vpop.f32.mrb[0].mxu0
  %v755 = vadd.f32 %v619, %v754
  %v756 = vpop.f32.mrb[0].mxu0
  %v757 = vpop.f32.mrb[0].mxu0
  %v758 = vadd.f32 %v622, %v757
  %v759 = vpop.f32.mrb[0].mxu0
  %760 = vmatprep.mubr.bf16.mxu0 %v295
  %761 = vmatmul.mubr.bf16.gmra.mrb[0].mxu0 %v294
  %v762 = vpop.f32.mrb[0].mxu0
  %v763 = vadd.f32 %v627, %v762
  %v764 = vpop.f32.mrb[0].mxu0
  %v765 = vpop.f32.mrb[0].mxu0
  %v766 = vadd.f32 %v630, %v765
  %v767 = vpop.f32.mrb[0].mxu0
  %768 = vmatprep.mubr.bf16.mxu0 %v299
  %769 = vmatmul.mubr.bf16.gmra.mrb[0].mxu0 %v298
  %v770 = vpop.f32.mrb[0].mxu0
  %v771 = vadd.f32 %v635, %v770
  %v772 = vpop.f32.mrb[0].mxu0
  %v773 = vpop.f32.mrb[0].mxu0
  %v774 = vadd.f32 %v638, %v773
  %v775 = vpop.f32.mrb[0].mxu0
  %776 = vmatprep.mubr.bf16.mxu0 %v303
  %777 = vmatmul.mubr.bf16.gmra.mrb[0].mxu0 %v302
  %v778 = vpop.f32.mrb[0].mxu0
  %v779 = vadd.f32 %v643, %v778
  %v780 = vpop.f32.mrb[0].mxu0
  %v781 = vpop.f32.mrb[0].mxu0
  %v782 = vadd.f32 %v646, %v781
  %v783 = vpop.f32.mrb[0].mxu0
  %784 = vmatprep.mubr.bf16.mxu0 %v307
  %785 = vmatmul.mubr.bf16.gmra.mrb[0].mxu0 %v306
  %v786 = vpop.f32.mrb[0].mxu0
  %v787 = vadd.f32 %v651, %v786
  %v788 = vpop.f32.mrb[0].mxu0
  %v789 = vpop.f32.mrb[0].mxu0
  %v790 = vadd.f32 %v654, %v789
  %v791 = vpop.f32.mrb[0].mxu0
  %792 = vmatprep.mubr.bf16.mxu0 %v311
  %793 = vmatmul.mubr.bf16.gmra.mrb[0].mxu0 %v310
  %v794 = vpop.f32.mrb[0].mxu0
  %v795 = vadd.f32 %v659, %v794
  %v796 = vpop.f32.mrb[0].mxu0
  %v797 = vpop.f32.mrb[0].mxu0
  %v798 = vadd.f32 %v662, %v797
  %v799 = vpop.f32.mrb[0].mxu0
  %800 = vmatprep.mubr.bf16.mxu0 %v315
  %801 = vmatmul.mubr.bf16.gmra.mrb[0].mxu0 %v314
  %v802 = vpop.f32.mrb[0].mxu0
  %v803 = vadd.f32 %v667, %v802
  %v804 = vpop.f32.mrb[0].mxu0
  %v805 = vpop.f32.mrb[0].mxu0
  %v806 = vadd.f32 %v670, %v805
  %v807 = vpop.f32.mrb[0].mxu0
  %808 = vmatprep.mubr.bf16.mxu0 %v319
  %809 = vmatmul.mubr.bf16.gmra.mrb[0].mxu0 %v318
  %v810 = vpop.f32.mrb[0].mxu0
  %v811 = vadd.f32 %v675, %v810
  %v812 = vpop.f32.mrb[0].mxu0
  %v813 = vpop.f32.mrb[0].mxu0
  %v814 = vadd.f32 %v678, %v813
  %v815 = vpop.f32.mrb[0].mxu0
  %816 = vmatprep.mubr.bf16.mxu0 %v323
  %817 = vmatmul.mubr.bf16.gmra.mrb[0].mxu0 %v322
  %v818 = vpop.f32.mrb[0].mxu0
  %v819 = vadd.f32 %v683, %v818
  %v820 = vpop.f32.mrb[0].mxu0
  %v821 = vpop.f32.mrb[0].mxu0
  %v822 = vadd.f32 %v686, %v821
  %v823 = vpop.f32.mrb[0].mxu0
  %824 = vmatprep.mubr.bf16.mxu0 %v327
  %825 = vmatmul.mubr.bf16.gmra.mrb[0].mxu0 %v326
  %v826 = vpop.f32.mrb[0].mxu0
  %v827 = vadd.f32 %v691, %v826
  %v828 = vpop.f32.mrb[0].mxu0
  %v829 = vpop.f32.mrb[0].mxu0
  %v830 = vadd.f32 %v694, %v829
  %v831 = vpop.f32.mrb[0].mxu0
  %832 = vmatprep.mubr.bf16.mxu0 %v331
  %833 = vmatmul.mubr.bf16.gmra.mrb[0].mxu0 %v330
  %v834 = vpop.f32.mrb[0].mxu0
  %v835 = vadd.f32 %v699, %v834
  %v836 = vpop.f32.mrb[0].mxu0
  %v837 = vpop.f32.mrb[0].mxu0
  %v838 = vadd.f32 %v702, %v837
  %v839 = vpop.f32.mrb[0].mxu0
  %840 = vmatprep.mubr.bf16.mxu0 %v335
  %841 = vmatmul.mubr.bf16.gmra.mrb[0].mxu0 %v334
  %v842 = vpop.f32.mrb[0].mxu0
  %v843 = vadd.f32 %v707, %v842
  %v844 = vpop.f32.mrb[0].mxu0
  %v845 = vpop.f32.mrb[0].mxu0
  %v846 = vadd.f32 %v710, %v845
  %v847 = vpop.f32.mrb[0].mxu0
  %848 = vmatprep.mubr.bf16.mxu0 %v339
  %849 = vmatmul.mubr.bf16.gmra.mrb[0].mxu0 %v338
  %v850 = vpop.f32.mrb[0].mxu0
  %v851 = vadd.f32 %v715, %v850
  %v852 = vpop.f32.mrb[0].mxu0
  %v853 = vpop.f32.mrb[0].mxu0
  %v854 = vpop.f32.mrb[0].mxu0
  %855 = vdwg.mxu0
  %v856 = vpack.c.bf16 %v758, %v755
  %v857 = vpack.c.bf16 %v766, %v763
  %v858 = vpack.c.bf16 %v774, %v771
  %v859 = vpack.c.bf16 %v782, %v779
  %v860 = vpack.c.bf16 %v790, %v787
  %v861 = vpack.c.bf16 %v798, %v795
  %v862 = vpack.c.bf16 %v806, %v803
  %v863 = vpack.c.bf16 %v814, %v811
  %v864 = vpack.c.bf16 %v822, %v819
  %v865 = vpack.c.bf16 %v830, %v827
  %v866 = vpack.c.bf16 %v838, %v835
  %v867 = vpack.c.bf16 %v846, %v843
  %v868 = vpack.c.bf16 %v851, %v851
  %v882 = vunpack.c.l.b16 %v856
  %v883 = vunpack.c.h.b16 %v856
  %v884 = vunpack.c.l.b16 %v857
  %v885 = vunpack.c.h.b16 %v857
  %v886 = vunpack.c.l.b16 %v858
  %v887 = vunpack.c.h.b16 %v858
  %v888 = vunpack.c.l.b16 %v859
  %v889 = vunpack.c.h.b16 %v859
  %v890 = vunpack.c.l.b16 %v860
  %v891 = vunpack.c.h.b16 %v860
  %v892 = vunpack.c.l.b16 %v861
  %v893 = vunpack.c.h.b16 %v861
  %v894 = vunpack.c.l.b16 %v862
  %v895 = vunpack.c.h.b16 %v862
  %v896 = vunpack.c.l.b16 %v863
  %v897 = vunpack.c.h.b16 %v863
  %v898 = vunpack.c.l.b16 %v864
  %v899 = vunpack.c.h.b16 %v864
  %v900 = vunpack.c.l.b16 %v865
  %v901 = vunpack.c.h.b16 %v865
  %v902 = vunpack.c.l.b16 %v866
  %v903 = vunpack.c.h.b16 %v866
  %v904 = vunpack.c.l.b16 %v867
  %v905 = vunpack.c.h.b16 %v867
  %v906 = vunpack.c.l.b16 %v868
  %v907 = vpack.c.b16 %v882, %v882
  %v908 = vpack.c.b16 %v883, %v883
  %v909 = vpack.c.b16 %v884, %v884
  %v910 = vpack.c.b16 %v885, %v885
  %v911 = vpack.c.b16 %v886, %v886
  %v912 = vpack.c.b16 %v887, %v887
  %v913 = vpack.c.b16 %v888, %v888
  %v914 = vpack.c.b16 %v889, %v889
  %v915 = vpack.c.b16 %v890, %v890
  %v916 = vpack.c.b16 %v891, %v891
  %v917 = vpack.c.b16 %v892, %v892
  %v918 = vpack.c.b16 %v893, %v893
  %v919 = vpack.c.b16 %v894, %v894
  %v920 = vpack.c.b16 %v895, %v895
  %v921 = vpack.c.b16 %v896, %v896
  %v922 = vpack.c.b16 %v897, %v897
  %v923 = vpack.c.b16 %v898, %v898
  %v924 = vpack.c.b16 %v899, %v899
  %v925 = vpack.c.b16 %v900, %v900
  %v926 = vpack.c.b16 %v901, %v901
  %v927 = vpack.c.b16 %v902, %v902
  %v928 = vpack.c.b16 %v903, %v903
  %v929 = vpack.c.b16 %v904, %v904
  %v930 = vpack.c.b16 %v905, %v905
  %v931 = vpack.c.b16 %v906, %v906
  %957 = vst [vmem:[%s3] sm:$0xf] %v907
  %958 = vst [vmem:[%s3 + $0x4] sm:$0xf] %v908
  %959 = vst [vmem:[%s3 + $0x8] sm:$0xf] %v909
  %960 = vst [vmem:[%s3 + $0xc] sm:$0xf] %v910
  %961 = vst [vmem:[%s3 + $0x10] sm:$0xf] %v911
  %962 = vst [vmem:[%s3 + $0x14] sm:$0xf] %v912
  %963 = vst [vmem:[%s3 + $0x18] sm:$0xf] %v913
  %964 = vst [vmem:[%s3 + $0x1c] sm:$0xf] %v914
  %965 = vst [vmem:[%s3 + $0x20] sm:$0xf] %v915
  %966 = vst [vmem:[%s3 + $0x24] sm:$0xf] %v916
  %967 = vst [vmem:[%s3 + $0x28] sm:$0xf] %v917
  %968 = vst [vmem:[%s3 + $0x2c] sm:$0xf] %v918
  %969 = vst [vmem:[%s3 + $0x30] sm:$0xf] %v919
  %970 = vst [vmem:[%s3 + $0x34] sm:$0xf] %v920
  %971 = vst [vmem:[%s3 + $0x38] sm:$0xf] %v921
  %972 = vst [vmem:[%s3 + $0x3c] sm:$0xf] %v922
  %973 = vst [vmem:[%s3 + $0x40] sm:$0xf] %v923
  %974 = vst [vmem:[%s3 + $0x44] sm:$0xf] %v924
  %975 = vst [vmem:[%s3 + $0x48] sm:$0xf] %v925
  %976 = vst [vmem:[%s3 + $0x4c] sm:$0xf] %v926
  %977 = vst [vmem:[%s3 + $0x50] sm:$0xf] %v927
  %978 = vst [vmem:[%s3 + $0x54] sm:$0xf] %v928
  %979 = vst [vmem:[%s3 + $0x58] sm:$0xf] %v929
  %980 = vst [vmem:[%s3 + $0x5c] sm:$0xf] %v930
  %981 = vst [vmem:[%s3 + $0x60] sm:$0xf] %v931
  %v982 = vlaneseq
  %v983 = vshrl.u32 %v982, 7
  %v984 = vadd.s32 %v983, 8
  %v985 = vadd.s32 %v983, 16
  %v986 = vadd.s32 %v983, 24
  %v987 = vadd.s32 %v983, 32
  %v988 = vadd.s32 %v983, 40
  %v989 = vadd.s32 %v983, 48
  %v990 = vadd.s32 %v983, 56
  %v991 = vadd.s32 %v983, 64
  %v992 = vadd.s32 %v983, 72
  %v993 = vadd.s32 %v983, 80
  %v994 = vadd.s32 %v983, 88
  %v995 = vadd.s32 %v983, 96
  %v996 = vadd.s32 %v983, 104
  %v997 = vadd.s32 %v983, 112
  %v998 = vadd.s32 %v983, 120
  %v999 = vadd.s32 %v983, 128
  %v1000 = vadd.s32 %v983, 136
  %v1001 = vadd.s32 %v983, 144
  %v1002 = vadd.s32 %v983, 152
  %v1003 = vadd.s32 %v983, 160
  %v1004 = vadd.s32 %v983, 168
  %v1005 = vadd.s32 %v983, 176
  %v1006 = vadd.s32 %v983, 184
  %v1007 = vadd.s32 %v983, 192
  %s1008 = smul.u32 0, 200
  %v1009 = vstv %s1008
  %v1010 = vadd.s32 %v983, %v1009
  %v1011 = vadd.s32 %v984, %v1009
  %v1012 = vadd.s32 %v985, %v1009
  %v1013 = vadd.s32 %v986, %v1009
  %v1014 = vadd.s32 %v987, %v1009
  %v1015 = vadd.s32 %v988, %v1009
  %v1016 = vadd.s32 %v989, %v1009
  %v1017 = vadd.s32 %v990, %v1009
  %v1018 = vadd.s32 %v991, %v1009
  %v1019 = vadd.s32 %v992, %v1009
  %v1020 = vadd.s32 %v993, %v1009
  %v1021 = vadd.s32 %v994, %v1009
  %v1022 = vadd.s32 %v995, %v1009
  %v1023 = vadd.s32 %v996, %v1009
  %v1024 = vadd.s32 %v997, %v1009
  %v1025 = vadd.s32 %v998, %v1009
  %v1026 = vadd.s32 %v999, %v1009
  %v1027 = vadd.s32 %v1000, %v1009
  %v1028 = vadd.s32 %v1001, %v1009
  %v1029 = vadd.s32 %v1002, %v1009
  %v1030 = vadd.s32 %v1003, %v1009
  %v1031 = vadd.s32 %v1004, %v1009
  %v1032 = vadd.s32 %v1005, %v1009
  %v1033 = vadd.s32 %v1006, %v1009
  %v1034 = vadd.s32 %v1007, %v1009
  %vm1035 = vcmp.lt.s32.totalorder %v1010, 200
  %vm1036 = vcmp.lt.s32.totalorder %v1011, 200
  %vm1037 = vcmp.lt.s32.totalorder %v1012, 200
  %vm1038 = vcmp.lt.s32.totalorder %v1013, 200
  %vm1039 = vcmp.lt.s32.totalorder %v1014, 200
  %vm1040 = vcmp.lt.s32.totalorder %v1015, 200
  %vm1041 = vcmp.lt.s32.totalorder %v1016, 200
  %vm1042 = vcmp.lt.s32.totalorder %v1017, 200
  %vm1043 = vcmp.lt.s32.totalorder %v1018, 200
  %vm1044 = vcmp.lt.s32.totalorder %v1019, 200
  %vm1045 = vcmp.lt.s32.totalorder %v1020, 200
  %vm1046 = vcmp.lt.s32.totalorder %v1021, 200
  %vm1047 = vcmp.lt.s32.totalorder %v1022, 200
  %vm1048 = vcmp.lt.s32.totalorder %v1023, 200
  %vm1049 = vcmp.lt.s32.totalorder %v1024, 200
  %vm1050 = vcmp.lt.s32.totalorder %v1025, 200
  %vm1051 = vcmp.lt.s32.totalorder %v1026, 200
  %vm1052 = vcmp.lt.s32.totalorder %v1027, 200
  %vm1053 = vcmp.lt.s32.totalorder %v1028, 200
  %vm1054 = vcmp.lt.s32.totalorder %v1029, 200
  %vm1055 = vcmp.lt.s32.totalorder %v1030, 200
  %vm1056 = vcmp.lt.s32.totalorder %v1031, 200
  %vm1057 = vcmp.lt.s32.totalorder %v1032, 200
  %vm1058 = vcmp.lt.s32.totalorder %v1033, 200
  %vm1059 = vcmp.lt.s32.totalorder %v1034, 200
  %v1060 = vsel %vm1035, %v755, 0.0
  %v1061 = vsel %vm1036, %v758, 0.0
  %v1062 = vsel %vm1037, %v763, 0.0
  %v1063 = vsel %vm1038, %v766, 0.0
  %v1064 = vsel %vm1039, %v771, 0.0
  %v1065 = vsel %vm1040, %v774, 0.0
  %v1066 = vsel %vm1041, %v779, 0.0
  %v1067 = vsel %vm1042, %v782, 0.0
  %v1068 = vsel %vm1043, %v787, 0.0
  %v1069 = vsel %vm1044, %v790, 0.0
  %v1070 = vsel %vm1045, %v795, 0.0
  %v1071 = vsel %vm1046, %v798, 0.0
  %v1072 = vsel %vm1047, %v803, 0.0
  %v1073 = vsel %vm1048, %v806, 0.0
  %v1074 = vsel %vm1049, %v811, 0.0
  %v1075 = vsel %vm1050, %v814, 0.0
  %v1076 = vsel %vm1051, %v819, 0.0
  %v1077 = vsel %vm1052, %v822, 0.0
  %v1078 = vsel %vm1053, %v827, 0.0
  %v1079 = vsel %vm1054, %v830, 0.0
  %v1080 = vsel %vm1055, %v835, 0.0
  %v1081 = vsel %vm1056, %v838, 0.0
  %v1082 = vsel %vm1057, %v843, 0.0
  %v1083 = vsel %vm1058, %v846, 0.0
  %v1084 = vsel %vm1059, %v851, 0.0
  %v1085 = vadd.f32 %v1060, %v1061
  %v1086 = vadd.f32 %v1085, %v1062
  %v1087 = vadd.f32 %v1086, %v1063
  %v1088 = vadd.f32 %v1087, %v1064
  %v1089 = vadd.f32 %v1088, %v1065
  %v1090 = vadd.f32 %v1089, %v1066
  %v1091 = vadd.f32 %v1090, %v1067
  %v1092 = vadd.f32 %v1091, %v1068
  %v1093 = vadd.f32 %v1092, %v1069
  %v1094 = vadd.f32 %v1093, %v1070
  %v1095 = vadd.f32 %v1094, %v1071
  %v1096 = vadd.f32 %v1095, %v1072
  %v1097 = vadd.f32 %v1096, %v1073
  %v1098 = vadd.f32 %v1097, %v1074
  %v1099 = vadd.f32 %v1098, %v1075
  %v1100 = vadd.f32 %v1099, %v1076
  %v1101 = vadd.f32 %v1100, %v1077
  %v1102 = vadd.f32 %v1101, %v1078
  %v1103 = vadd.f32 %v1102, %v1079
  %v1104 = vadd.f32 %v1103, %v1080
  %v1105 = vadd.f32 %v1104, %v1081
  %v1106 = vadd.f32 %v1105, %v1082
  %v1107 = vadd.f32 %v1106, %v1083
  %v1108 = vadd.f32 %v1107, %v1084
  %v1109 = vrot.slane %v1108, 4
  %v1110 = vadd.f32 %v1108, %v1109
  %v1111 = vrot.slane %v1110, 2
  %v1112 = vadd.f32 %v1110, %v1111
  %v1113 = vrot.slane %v1112, 1
  %v1114 = vadd.f32 %v1112, %v1113
  %v1115 = vmul.f32 %v1060, %v1060
  %v1116 = vmul.f32 %v1061, %v1061
  %v1117 = vmul.f32 %v1062, %v1062
  %v1118 = vmul.f32 %v1063, %v1063
  %v1119 = vmul.f32 %v1064, %v1064
  %v1120 = vmul.f32 %v1065, %v1065
  %v1121 = vmul.f32 %v1066, %v1066
  %v1122 = vmul.f32 %v1067, %v1067
  %v1123 = vmul.f32 %v1068, %v1068
  %v1124 = vmul.f32 %v1069, %v1069
  %v1125 = vmul.f32 %v1070, %v1070
  %v1126 = vmul.f32 %v1071, %v1071
  %v1127 = vmul.f32 %v1072, %v1072
  %v1128 = vmul.f32 %v1073, %v1073
  %v1129 = vmul.f32 %v1074, %v1074
  %v1130 = vmul.f32 %v1075, %v1075
  %v1131 = vmul.f32 %v1076, %v1076
  %v1132 = vmul.f32 %v1077, %v1077
  %v1133 = vmul.f32 %v1078, %v1078
  %v1134 = vmul.f32 %v1079, %v1079
  %v1135 = vmul.f32 %v1080, %v1080
  %v1136 = vmul.f32 %v1081, %v1081
  %v1137 = vmul.f32 %v1082, %v1082
  %v1138 = vmul.f32 %v1083, %v1083
  %v1139 = vmul.f32 %v1084, %v1084
  %v1140 = vadd.f32 %v1115, %v1116
  %v1141 = vadd.f32 %v1140, %v1117
  %v1142 = vadd.f32 %v1141, %v1118
  %v1143 = vadd.f32 %v1142, %v1119
  %v1144 = vadd.f32 %v1143, %v1120
  %v1145 = vadd.f32 %v1144, %v1121
  %v1146 = vadd.f32 %v1145, %v1122
  %v1147 = vadd.f32 %v1146, %v1123
  %v1148 = vadd.f32 %v1147, %v1124
  %v1149 = vadd.f32 %v1148, %v1125
  %v1150 = vadd.f32 %v1149, %v1126
  %v1151 = vadd.f32 %v1150, %v1127
  %v1152 = vadd.f32 %v1151, %v1128
  %v1153 = vadd.f32 %v1152, %v1129
  %v1154 = vadd.f32 %v1153, %v1130
  %v1155 = vadd.f32 %v1154, %v1131
  %v1156 = vadd.f32 %v1155, %v1132
  %v1157 = vadd.f32 %v1156, %v1133
  %v1158 = vadd.f32 %v1157, %v1134
  %v1159 = vadd.f32 %v1158, %v1135
  %v1160 = vadd.f32 %v1159, %v1136
  %v1161 = vadd.f32 %v1160, %v1137
  %v1162 = vadd.f32 %v1161, %v1138
  %v1163 = vadd.f32 %v1162, %v1139
  %v1164 = vrot.slane %v1163, 4
  %v1165 = vadd.f32 %v1163, %v1164
  %v1166 = vrot.slane %v1165, 2
  %v1167 = vadd.f32 %v1165, %v1166
  %v1168 = vrot.slane %v1167, 1
  %v1169 = vadd.f32 %v1167, %v1168
  %vm1170 = vcmp.eq.s32.totalorder %v983, 0
  %vm1171 = vcmp.eq.s32.totalorder %v983, 1
  %v1172 = vsel %vm1171, %v1169, 0.0
  %v1173 = vsel %vm1170, %v1114, %v1172
  %1174 = vst [vmem:[%s4] sm:$0xff] %v1173
  // Predicated region
  $region14: #{_lambda_.9} parent=0 // pred_check
    _
  $region15: #{_lambda_.9} parent=0 // pred_check_branch
    %1176 = sbr.rel (0) target = $region17
  $region16: #{_lambda_.9} parent=0 // pred_region
    _
  $region17: #{_lambda_.9} parent=0 // pred_fallthru
    _
  // Predicated region
  $region18: #{_lambda_.9} parent=0 // pred_check
    _
  $region19: #{_lambda_.9} parent=0 // pred_check_branch
    %1178 = sbr.rel (0) target = $region21
  $region20: #{_lambda_.9} parent=0 // pred_region
    _
  $region21: #{_lambda_.9} parent=0 // pred_fallthru
    _
  // Predicated region
  $region22: #{_lambda_.9} parent=0 // pred_check
    _
  $region23: #{_lambda_.9} parent=0 // pred_check_branch
    %1180 = sbr.rel (0) target = $region25
  $region24: #{_lambda_.9} parent=0 // pred_region
    _
  $region25: #{_lambda_.9} parent=0 // pred_fallthru
    _
  // Predicated region
  $region26: #{_lambda_.9} parent=0 // pred_check
    _
  $region27: #{_lambda_.9} parent=0 // pred_check_branch
    %1182 = sbr.rel (0) target = $region29
  $region28: #{_lambda_.9} parent=0 // pred_region
    _
  $region29: #{_lambda_.9} parent=0 // pred_fallthru
    _

// kernel: _lambda_.10
$region0: #{_lambda_.10}
  #allocation0 [shape = 'u32[]', space=smem, size = 0x4, offset = 0x4, fixed_abs, tag = 'smem constant byte address 0x4 - core index']
  #allocation1 [shape = 'u32[144,128]{1,0:T(1,128)}', space=vmem, size = 0x12000, scoped, tag = 'internal scratch']
  %s0 = inlined_call_operand.vmem [shape: bf16[200,128], index: 0, kind: input, shape index: {}]
  %s1 = inlined_call_operand.vmem [shape: f32[1,8,128], index: 1, kind: input, shape index: {}]
  %s2 = inlined_call_operand.vmem [shape: f32[1,128], index: 2, kind: input, shape index: {}]
  %s3 = inlined_call_operand.vmem [shape: f32[1,128], index: 3, kind: input, shape index: {}]
  %s4 = inlined_call_operand.vmem [shape: bf16[200,128], index: 4, kind: output, shape index: {}]
  %s5 = sld [smem:[#allocation0]]
  $region26: #{_lambda_.10} parent=0
    _
  %s7 = ssub.s32 1, %s5
  %s8 = scalar_select 0, %s7, %s5
  // Predicated region
  $region2: #{_lambda_.10} parent=0 // pred_check
    _
  $region3: #{_lambda_.10} parent=0 // pred_check_branch
    %10 = sbr.rel (0) target = $region5
  $region4: #{_lambda_.10} parent=0 // pred_region
    _
  $region5: #{_lambda_.10} parent=0 // pred_fallthru
    _
  // Predicated region
  $region6: #{_lambda_.10} parent=0 // pred_check
    _
  $region7: #{_lambda_.10} parent=0 // pred_check_branch
    %12 = sbr.rel (0) target = $region9
  $region8: #{_lambda_.10} parent=0 // pred_region
    _
  $region9: #{_lambda_.10} parent=0 // pred_fallthru
    _
  // Predicated region
  $region10: #{_lambda_.10} parent=0 // pred_check
    _
  $region11: #{_lambda_.10} parent=0 // pred_check_branch
    %14 = sbr.rel (0) target = $region13
  $region12: #{_lambda_.10} parent=0 // pred_region
    _
  $region13: #{_lambda_.10} parent=0 // pred_fallthru
    _
  // Predicated region
  $region14: #{_lambda_.10} parent=0 // pred_check
    _
  $region15: #{_lambda_.10} parent=0 // pred_check_branch
    %16 = sbr.rel (0) target = $region17
  $region16: #{_lambda_.10} parent=0 // pred_region
    _
  $region17: #{_lambda_.10} parent=0 // pred_fallthru
    _
  %v17 = vld [vmem:[%s1] sm:$0xff]
  %v18 = vadd.f32 %v17, 0.0
  %v19 = vmul.f32 %v18, 0.005
  %v20 = vmul.f32 %v19, %v19
  %v22 = vrot.slane %v20, 7
  %v24 = vsub.f32 %v19, %v22
  %v25 = vmax.f32 %v24, 0.0
  %v26 = vld [vmem:[%s2] sm:$0x1]
  %v27 = vadd.f32 %v25, 1e-05
  %v28 = vrsqrt.pop %v27
  %v31 = vunpack.c.l.s4 1966171168
  %v32 = vunpack.c.0.s8 %v31
  %v33 = vlaneseq
  %v34 = vshrl.u32 %v33, 7
  %v35 = vsub.s32 %v32, %v34
  %v36 = vrot.slane %v28, %v35
  %v37 = vcombine.high %v36, %v36
  %v39 = vunpack.c.l.s4 1966171168
  %v40 = vunpack.c.0.s8 %v39
  %v41 = vlaneseq
  %v42 = vshrl.u32 %v41, 7
  %v43 = vsub.s32 %v40, %v42
  %v44 = vrot.slane %v37, %v43
  %v46 = vmul.f32 %v26, %v44
  %v47 = vld [vmem:[%s3] sm:$0x1]
  %v48 = vmul.f32 %v19, %v46
  %v49 = vsub.f32 %v47, %v48
  %v50 = vld [vmem:[%s0] sm:$0xf]
  %v51 = vld [vmem:[%s0 + $0x4] sm:$0xf]
  %v52 = vld [vmem:[%s0 + $0x8] sm:$0xf]
  %v53 = vld [vmem:[%s0 + $0xc] sm:$0xf]
  %v54 = vld [vmem:[%s0 + $0x10] sm:$0xf]
  %v55 = vld [vmem:[%s0 + $0x14] sm:$0xf]
  %v56 = vld [vmem:[%s0 + $0x18] sm:$0xf]
  %v57 = vld [vmem:[%s0 + $0x1c] sm:$0xf]
  %v58 = vld [vmem:[%s0 + $0x20] sm:$0xf]
  %v59 = vld [vmem:[%s0 + $0x24] sm:$0xf]
  %v60 = vld [vmem:[%s0 + $0x28] sm:$0xf]
  %v61 = vld [vmem:[%s0 + $0x2c] sm:$0xf]
  %v62 = vld [vmem:[%s0 + $0x30] sm:$0xf]
  %v63 = vld [vmem:[%s0 + $0x34] sm:$0xf]
  %v64 = vld [vmem:[%s0 + $0x38] sm:$0xf]
  %v65 = vld [vmem:[%s0 + $0x3c] sm:$0xf]
  %v66 = vld [vmem:[%s0 + $0x40] sm:$0xf]
  %v67 = vld [vmem:[%s0 + $0x44] sm:$0xf]
  %v68 = vld [vmem:[%s0 + $0x48] sm:$0xf]
  %v69 = vld [vmem:[%s0 + $0x4c] sm:$0xf]
  %v70 = vld [vmem:[%s0 + $0x50] sm:$0xf]
  %v71 = vld [vmem:[%s0 + $0x54] sm:$0xf]
  %v72 = vld [vmem:[%s0 + $0x58] sm:$0xf]
  %v73 = vld [vmem:[%s0 + $0x5c] sm:$0xf]
  %v74 = vld [vmem:[%s0 + $0x60] sm:$0xf]
  %v75 = vunpack.c.l.bf16 %v50
  %v76 = vunpack.c.l.bf16 %v51
  %v77 = vunpack.c.l.bf16 %v52
  %v78 = vunpack.c.l.bf16 %v53
  %v79 = vunpack.c.l.bf16 %v54
  %v80 = vunpack.c.l.bf16 %v55
  %v81 = vunpack.c.l.bf16 %v56
  %v82 = vunpack.c.l.bf16 %v57
  %v83 = vunpack.c.l.bf16 %v58
  %v84 = vunpack.c.l.bf16 %v59
  %v85 = vunpack.c.l.bf16 %v60
  %v86 = vunpack.c.l.bf16 %v61
  %v87 = vunpack.c.l.bf16 %v62
  %v88 = vunpack.c.l.bf16 %v63
  %v89 = vunpack.c.l.bf16 %v64
  %v90 = vunpack.c.l.bf16 %v65
  %v91 = vunpack.c.l.bf16 %v66
  %v92 = vunpack.c.l.bf16 %v67
  %v93 = vunpack.c.l.bf16 %v68
  %v94 = vunpack.c.l.bf16 %v69
  %v95 = vunpack.c.l.bf16 %v70
  %v96 = vunpack.c.l.bf16 %v71
  %v97 = vunpack.c.l.bf16 %v72
  %v98 = vunpack.c.l.bf16 %v73
  %v99 = vunpack.c.l.bf16 %v74
  %v101 = vlaneseq
  %v102 = vshrl.u32 %v101, 7
  %v103 = vsub.s32 0, %v102
  %v104 = vrot.slane %v46, %v103
  %v106 = vmul.f32 %v75, %v104
  %v107 = vmul.f32 %v76, %v104
  %v108 = vmul.f32 %v77, %v104
  %v109 = vmul.f32 %v78, %v104
  %v110 = vmul.f32 %v79, %v104
  %v111 = vmul.f32 %v80, %v104
  %v112 = vmul.f32 %v81, %v104
  %v113 = vmul.f32 %v82, %v104
  %v114 = vmul.f32 %v83, %v104
  %v115 = vmul.f32 %v84, %v104
  %v116 = vmul.f32 %v85, %v104
  %v117 = vmul.f32 %v86, %v104
  %v118 = vmul.f32 %v87, %v104
  %v119 = vmul.f32 %v88, %v104
  %v120 = vmul.f32 %v89, %v104
  %v121 = vmul.f32 %v90, %v104
  %v122 = vmul.f32 %v91, %v104
  %v123 = vmul.f32 %v92, %v104
  %v124 = vmul.f32 %v93, %v104
  %v125 = vmul.f32 %v94, %v104
  %v126 = vmul.f32 %v95, %v104
  %v127 = vmul.f32 %v96, %v104
  %v128 = vmul.f32 %v97, %v104
  %v129 = vmul.f32 %v98, %v104
  %v130 = vmul.f32 %v99, %v104
  %v132 = vlaneseq
  %v133 = vshrl.u32 %v132, 7
  %v134 = vsub.s32 0, %v133
  %v135 = vrot.slane %v49, %v134
  %v137 = vadd.f32 %v106, %v135
  %v138 = vadd.f32 %v107, %v135
  %v139 = vadd.f32 %v108, %v135
  %v140 = vadd.f32 %v109, %v135
  %v141 = vadd.f32 %v110, %v135
  %v142 = vadd.f32 %v111, %v135
  %v143 = vadd.f32 %v112, %v135
  %v144 = vadd.f32 %v113, %v135
  %v145 = vadd.f32 %v114, %v135
  %v146 = vadd.f32 %v115, %v135
  %v147 = vadd.f32 %v116, %v135
  %v148 = vadd.f32 %v117, %v135
  %v149 = vadd.f32 %v118, %v135
  %v150 = vadd.f32 %v119, %v135
  %v151 = vadd.f32 %v120, %v135
  %v152 = vadd.f32 %v121, %v135
  %v153 = vadd.f32 %v122, %v135
  %v154 = vadd.f32 %v123, %v135
  %v155 = vadd.f32 %v124, %v135
  %v156 = vadd.f32 %v125, %v135
  %v157 = vadd.f32 %v126, %v135
  %v158 = vadd.f32 %v127, %v135
  %v159 = vadd.f32 %v128, %v135
  %v160 = vadd.f32 %v129, %v135
  %v161 = vadd.f32 %v130, %v135
  %v162 = vmax.f32 %v137, 0.0
  %v163 = vmax.f32 %v138, 0.0
  %v164 = vmax.f32 %v139, 0.0
  %v165 = vmax.f32 %v140, 0.0
  %v166 = vmax.f32 %v141, 0.0
  %v167 = vmax.f32 %v142, 0.0
  %v168 = vmax.f32 %v143, 0.0
  %v169 = vmax.f32 %v144, 0.0
  %v170 = vmax.f32 %v145, 0.0
  %v171 = vmax.f32 %v146, 0.0
  %v172 = vmax.f32 %v147, 0.0
  %v173 = vmax.f32 %v148, 0.0
  %v174 = vmax.f32 %v149, 0.0
  %v175 = vmax.f32 %v150, 0.0
  %v176 = vmax.f32 %v151, 0.0
  %v177 = vmax.f32 %v152, 0.0
  %v178 = vmax.f32 %v153, 0.0
  %v179 = vmax.f32 %v154, 0.0
  %v180 = vmax.f32 %v155, 0.0
  %v181 = vmax.f32 %v156, 0.0
  %v182 = vmax.f32 %v157, 0.0
  %v183 = vmax.f32 %v158, 0.0
  %v184 = vmax.f32 %v159, 0.0
  %v185 = vmax.f32 %v160, 0.0
  %v186 = vmax.f32 %v161, 0.0
  %v187 = vpack.c.bf16 %v163, %v162
  %v188 = vpack.c.bf16 %v165, %v164
  %v189 = vpack.c.bf16 %v167, %v166
  %v190 = vpack.c.bf16 %v169, %v168
  %v191 = vpack.c.bf16 %v171, %v170
  %v192 = vpack.c.bf16 %v173, %v172
  %v193 = vpack.c.bf16 %v175, %v174
  %v194 = vpack.c.bf16 %v177, %v176
  %v195 = vpack.c.bf16 %v179, %v178
  %v196 = vpack.c.bf16 %v181, %v180
  %v197 = vpack.c.bf16 %v183, %v182
  %v198 = vpack.c.bf16 %v185, %v184
  %v199 = vpack.c.bf16 %v186, %v186
  %v213 = vunpack.c.l.b16 %v187
  %v214 = vunpack.c.h.b16 %v187
  %v215 = vunpack.c.l.b16 %v188
  %v216 = vunpack.c.h.b16 %v188
  %v217 = vunpack.c.l.b16 %v189
  %v218 = vunpack.c.h.b16 %v189
  %v219 = vunpack.c.l.b16 %v190
  %v220 = vunpack.c.h.b16 %v190
  %v221 = vunpack.c.l.b16 %v191
  %v222 = vunpack.c.h.b16 %v191
  %v223 = vunpack.c.l.b16 %v192
  %v224 = vunpack.c.h.b16 %v192
  %v225 = vunpack.c.l.b16 %v193
  %v226 = vunpack.c.h.b16 %v193
  %v227 = vunpack.c.l.b16 %v194
  %v228 = vunpack.c.h.b16 %v194
  %v229 = vunpack.c.l.b16 %v195
  %v230 = vunpack.c.h.b16 %v195
  %v231 = vunpack.c.l.b16 %v196
  %v232 = vunpack.c.h.b16 %v196
  %v233 = vunpack.c.l.b16 %v197
  %v234 = vunpack.c.h.b16 %v197
  %v235 = vunpack.c.l.b16 %v198
  %v236 = vunpack.c.h.b16 %v198
  %v237 = vunpack.c.l.b16 %v199
  %v238 = vpack.c.b16 %v213, %v213
  %v239 = vpack.c.b16 %v214, %v214
  %v240 = vpack.c.b16 %v215, %v215
  %v241 = vpack.c.b16 %v216, %v216
  %v242 = vpack.c.b16 %v217, %v217
  %v243 = vpack.c.b16 %v218, %v218
  %v244 = vpack.c.b16 %v219, %v219
  %v245 = vpack.c.b16 %v220, %v220
  %v246 = vpack.c.b16 %v221, %v221
  %v247 = vpack.c.b16 %v222, %v222
  %v248 = vpack.c.b16 %v223, %v223
  %v249 = vpack.c.b16 %v224, %v224
  %v250 = vpack.c.b16 %v225, %v225
  %v251 = vpack.c.b16 %v226, %v226
  %v252 = vpack.c.b16 %v227, %v227
  %v253 = vpack.c.b16 %v228, %v228
  %v254 = vpack.c.b16 %v229, %v229
  %v255 = vpack.c.b16 %v230, %v230
  %v256 = vpack.c.b16 %v231, %v231
  %v257 = vpack.c.b16 %v232, %v232
  %v258 = vpack.c.b16 %v233, %v233
  %v259 = vpack.c.b16 %v234, %v234
  %v260 = vpack.c.b16 %v235, %v235
  %v261 = vpack.c.b16 %v236, %v236
  %v262 = vpack.c.b16 %v237, %v237
  %288 = vst [vmem:[%s4] sm:$0xf] %v238
  %289 = vst [vmem:[%s4 + $0x4] sm:$0xf] %v239
  %290 = vst [vmem:[%s4 + $0x8] sm:$0xf] %v240
  %291 = vst [vmem:[%s4 + $0xc] sm:$0xf] %v241
  %292 = vst [vmem:[%s4 + $0x10] sm:$0xf] %v242
  %293 = vst [vmem:[%s4 + $0x14] sm:$0xf] %v243
  %294 = vst [vmem:[%s4 + $0x18] sm:$0xf] %v244
  %295 = vst [vmem:[%s4 + $0x1c] sm:$0xf] %v245
  %296 = vst [vmem:[%s4 + $0x20] sm:$0xf] %v246
  %297 = vst [vmem:[%s4 + $0x24] sm:$0xf] %v247
  %298 = vst [vmem:[%s4 + $0x28] sm:$0xf] %v248
  %299 = vst [vmem:[%s4 + $0x2c] sm:$0xf] %v249
  %300 = vst [vmem:[%s4 + $0x30] sm:$0xf] %v250
  %301 = vst [vmem:[%s4 + $0x34] sm:$0xf] %v251
  %302 = vst [vmem:[%s4 + $0x38] sm:$0xf] %v252
  %303 = vst [vmem:[%s4 + $0x3c] sm:$0xf] %v253
  %304 = vst [vmem:[%s4 + $0x40] sm:$0xf] %v254
  %305 = vst [vmem:[%s4 + $0x44] sm:$0xf] %v255
  %306 = vst [vmem:[%s4 + $0x48] sm:$0xf] %v256
  %307 = vst [vmem:[%s4 + $0x4c] sm:$0xf] %v257
  %308 = vst [vmem:[%s4 + $0x50] sm:$0xf] %v258
  %309 = vst [vmem:[%s4 + $0x54] sm:$0xf] %v259
  %310 = vst [vmem:[%s4 + $0x58] sm:$0xf] %v260
  %311 = vst [vmem:[%s4 + $0x5c] sm:$0xf] %v261
  %312 = vst [vmem:[%s4 + $0x60] sm:$0xf] %v262
  // Predicated region
  $region18: #{_lambda_.10} parent=0 // pred_check
    _
  $region19: #{_lambda_.10} parent=0 // pred_check_branch
    %314 = sbr.rel (0) target = $region21
  $region20: #{_lambda_.10} parent=0 // pred_region
    _
  $region21: #{_lambda_.10} parent=0 // pred_fallthru
    _
  // Predicated region
  $region22: #{_lambda_.10} parent=0 // pred_check
    _
  $region23: #{_lambda_.10} parent=0 // pred_check_branch
    %316 = sbr.rel (0) target = $region25
  $region24: #{_lambda_.10} parent=0 // pred_region
    _
  $region25: #{_lambda_.10} parent=0 // pred_fallthru
    _

// kernel: _lambda_.12
$region0: #{_lambda_.12}
  #allocation0 [shape = 'u32[]', space=smem, size = 0x4, offset = 0x4, fixed_abs, tag = 'smem constant byte address 0x4 - core index']
  #allocation1 [shape = 'u32[144,128]{1,0:T(1,128)}', space=vmem, size = 0x12000, scoped, tag = 'internal scratch']
  %s0 = inlined_call_operand.vmem [shape: bf16[128,128], index: 0, kind: input, shape index: {}]
  %s1 = inlined_call_operand.vmem [shape: f32[1,8,128], index: 1, kind: input, shape index: {}]
  %s2 = inlined_call_operand.vmem [shape: f32[1,128], index: 2, kind: input, shape index: {}]
  %s3 = inlined_call_operand.vmem [shape: f32[1,128], index: 3, kind: input, shape index: {}]
  %s4 = inlined_call_operand.vmem [shape: bf16[128,128], index: 4, kind: output, shape index: {}]
  %s5 = sld [smem:[#allocation0]]
  $region26: #{_lambda_.12} parent=0
    _
  %s7 = ssub.s32 1, %s5
  %s8 = scalar_select 0, %s7, %s5
  // Predicated region
  $region2: #{_lambda_.12} parent=0 // pred_check
    _
  $region3: #{_lambda_.12} parent=0 // pred_check_branch
    %10 = sbr.rel (0) target = $region5
  $region4: #{_lambda_.12} parent=0 // pred_region
    _
  $region5: #{_lambda_.12} parent=0 // pred_fallthru
    _
  // Predicated region
  $region6: #{_lambda_.12} parent=0 // pred_check
    _
  $region7: #{_lambda_.12} parent=0 // pred_check_branch
    %12 = sbr.rel (0) target = $region9
  $region8: #{_lambda_.12} parent=0 // pred_region
    _
  $region9: #{_lambda_.12} parent=0 // pred_fallthru
    _
  // Predicated region
  $region10: #{_lambda_.12} parent=0 // pred_check
    _
  $region11: #{_lambda_.12} parent=0 // pred_check_branch
    %14 = sbr.rel (0) target = $region13
  $region12: #{_lambda_.12} parent=0 // pred_region
    _
  $region13: #{_lambda_.12} parent=0 // pred_fallthru
    _
  // Predicated region
  $region14: #{_lambda_.12} parent=0 // pred_check
    _
  $region15: #{_lambda_.12} parent=0 // pred_check_branch
    %16 = sbr.rel (0) target = $region17
  $region16: #{_lambda_.12} parent=0 // pred_region
    _
  $region17: #{_lambda_.12} parent=0 // pred_fallthru
    _
  %v17 = vld [vmem:[%s1] sm:$0xff]
  %v18 = vadd.f32 %v17, 0.0
  %v19 = vmul.f32 %v18, 0.0078125
  %v20 = vmul.f32 %v19, %v19
  %v22 = vrot.slane %v20, 7
  %v24 = vsub.f32 %v19, %v22
  %v25 = vmax.f32 %v24, 0.0
  %v26 = vld [vmem:[%s2] sm:$0x1]
  %v27 = vadd.f32 %v25, 1e-05
  %v28 = vrsqrt.pop %v27
  %v31 = vunpack.c.l.s4 1966171168
  %v32 = vunpack.c.0.s8 %v31
  %v33 = vlaneseq
  %v34 = vshrl.u32 %v33, 7
  %v35 = vsub.s32 %v32, %v34
  %v36 = vrot.slane %v28, %v35
  %v37 = vcombine.high %v36, %v36
  %v39 = vunpack.c.l.s4 1966171168
  %v40 = vunpack.c.0.s8 %v39
  %v41 = vlaneseq
  %v42 = vshrl.u32 %v41, 7
  %v43 = vsub.s32 %v40, %v42
  %v44 = vrot.slane %v37, %v43
  %v46 = vmul.f32 %v26, %v44
  %v47 = vld [vmem:[%s3] sm:$0x1]
  %v48 = vmul.f32 %v19, %v46
  %v49 = vsub.f32 %v47, %v48
  %v50 = vld [vmem:[%s0] sm:$0xf]
  %v51 = vld [vmem:[%s0 + $0x4] sm:$0xf]
  %v52 = vld [vmem:[%s0 + $0x8] sm:$0xf]
  %v53 = vld [vmem:[%s0 + $0xc] sm:$0xf]
  %v54 = vld [vmem:[%s0 + $0x10] sm:$0xf]
  %v55 = vld [vmem:[%s0 + $0x14] sm:$0xf]
  %v56 = vld [vmem:[%s0 + $0x18] sm:$0xf]
  %v57 = vld [vmem:[%s0 + $0x1c] sm:$0xf]
  %v58 = vld [vmem:[%s0 + $0x20] sm:$0xf]
  %v59 = vld [vmem:[%s0 + $0x24] sm:$0xf]
  %v60 = vld [vmem:[%s0 + $0x28] sm:$0xf]
  %v61 = vld [vmem:[%s0 + $0x2c] sm:$0xf]
  %v62 = vld [vmem:[%s0 + $0x30] sm:$0xf]
  %v63 = vld [vmem:[%s0 + $0x34] sm:$0xf]
  %v64 = vld [vmem:[%s0 + $0x38] sm:$0xf]
  %v65 = vld [vmem:[%s0 + $0x3c] sm:$0xf]
  %v66 = vunpack.c.l.bf16 %v50
  %v67 = vunpack.c.l.bf16 %v51
  %v68 = vunpack.c.l.bf16 %v52
  %v69 = vunpack.c.l.bf16 %v53
  %v70 = vunpack.c.l.bf16 %v54
  %v71 = vunpack.c.l.bf16 %v55
  %v72 = vunpack.c.l.bf16 %v56
  %v73 = vunpack.c.l.bf16 %v57
  %v74 = vunpack.c.l.bf16 %v58
  %v75 = vunpack.c.l.bf16 %v59
  %v76 = vunpack.c.l.bf16 %v60
  %v77 = vunpack.c.l.bf16 %v61
  %v78 = vunpack.c.l.bf16 %v62
  %v79 = vunpack.c.l.bf16 %v63
  %v80 = vunpack.c.l.bf16 %v64
  %v81 = vunpack.c.l.bf16 %v65
  %v83 = vlaneseq
  %v84 = vshrl.u32 %v83, 7
  %v85 = vsub.s32 0, %v84
  %v86 = vrot.slane %v46, %v85
  %v88 = vmul.f32 %v66, %v86
  %v89 = vmul.f32 %v67, %v86
  %v90 = vmul.f32 %v68, %v86
  %v91 = vmul.f32 %v69, %v86
  %v92 = vmul.f32 %v70, %v86
  %v93 = vmul.f32 %v71, %v86
  %v94 = vmul.f32 %v72, %v86
  %v95 = vmul.f32 %v73, %v86
  %v96 = vmul.f32 %v74, %v86
  %v97 = vmul.f32 %v75, %v86
  %v98 = vmul.f32 %v76, %v86
  %v99 = vmul.f32 %v77, %v86
  %v100 = vmul.f32 %v78, %v86
  %v101 = vmul.f32 %v79, %v86
  %v102 = vmul.f32 %v80, %v86
  %v103 = vmul.f32 %v81, %v86
  %v105 = vlaneseq
  %v106 = vshrl.u32 %v105, 7
  %v107 = vsub.s32 0, %v106
  %v108 = vrot.slane %v49, %v107
  %v110 = vadd.f32 %v88, %v108
  %v111 = vadd.f32 %v89, %v108
  %v112 = vadd.f32 %v90, %v108
  %v113 = vadd.f32 %v91, %v108
  %v114 = vadd.f32 %v92, %v108
  %v115 = vadd.f32 %v93, %v108
  %v116 = vadd.f32 %v94, %v108
  %v117 = vadd.f32 %v95, %v108
  %v118 = vadd.f32 %v96, %v108
  %v119 = vadd.f32 %v97, %v108
  %v120 = vadd.f32 %v98, %v108
  %v121 = vadd.f32 %v99, %v108
  %v122 = vadd.f32 %v100, %v108
  %v123 = vadd.f32 %v101, %v108
  %v124 = vadd.f32 %v102, %v108
  %v125 = vadd.f32 %v103, %v108
  %v126 = vmax.f32 %v110, 0.0
  %v127 = vmax.f32 %v111, 0.0
  %v128 = vmax.f32 %v112, 0.0
  %v129 = vmax.f32 %v113, 0.0
  %v130 = vmax.f32 %v114, 0.0
  %v131 = vmax.f32 %v115, 0.0
  %v132 = vmax.f32 %v116, 0.0
  %v133 = vmax.f32 %v117, 0.0
  %v134 = vmax.f32 %v118, 0.0
  %v135 = vmax.f32 %v119, 0.0
  %v136 = vmax.f32 %v120, 0.0
  %v137 = vmax.f32 %v121, 0.0
  %v138 = vmax.f32 %v122, 0.0
  %v139 = vmax.f32 %v123, 0.0
  %v140 = vmax.f32 %v124, 0.0
  %v141 = vmax.f32 %v125, 0.0
  %v142 = vpack.c.bf16 %v127, %v126
  %v143 = vpack.c.bf16 %v129, %v128
  %v144 = vpack.c.bf16 %v131, %v130
  %v145 = vpack.c.bf16 %v133, %v132
  %v146 = vpack.c.bf16 %v135, %v134
  %v147 = vpack.c.bf16 %v137, %v136
  %v148 = vpack.c.bf16 %v139, %v138
  %v149 = vpack.c.bf16 %v141, %v140
  %v158 = vunpack.c.l.b16 %v142
  %v159 = vunpack.c.h.b16 %v142
  %v160 = vunpack.c.l.b16 %v143
  %v161 = vunpack.c.h.b16 %v143
  %v162 = vunpack.c.l.b16 %v144
  %v163 = vunpack.c.h.b16 %v144
  %v164 = vunpack.c.l.b16 %v145
  %v165 = vunpack.c.h.b16 %v145
  %v166 = vunpack.c.l.b16 %v146
  %v167 = vunpack.c.h.b16 %v146
  %v168 = vunpack.c.l.b16 %v147
  %v169 = vunpack.c.h.b16 %v147
  %v170 = vunpack.c.l.b16 %v148
  %v171 = vunpack.c.h.b16 %v148
  %v172 = vunpack.c.l.b16 %v149
  %v173 = vunpack.c.h.b16 %v149
  %v174 = vpack.c.b16 %v158, %v158
  %v175 = vpack.c.b16 %v159, %v159
  %v176 = vpack.c.b16 %v160, %v160
  %v177 = vpack.c.b16 %v161, %v161
  %v178 = vpack.c.b16 %v162, %v162
  %v179 = vpack.c.b16 %v163, %v163
  %v180 = vpack.c.b16 %v164, %v164
  %v181 = vpack.c.b16 %v165, %v165
  %v182 = vpack.c.b16 %v166, %v166
  %v183 = vpack.c.b16 %v167, %v167
  %v184 = vpack.c.b16 %v168, %v168
  %v185 = vpack.c.b16 %v169, %v169
  %v186 = vpack.c.b16 %v170, %v170
  %v187 = vpack.c.b16 %v171, %v171
  %v188 = vpack.c.b16 %v172, %v172
  %v189 = vpack.c.b16 %v173, %v173
  %206 = vst [vmem:[%s4] sm:$0xf] %v174
  %207 = vst [vmem:[%s4 + $0x4] sm:$0xf] %v175
  %208 = vst [vmem:[%s4 + $0x8] sm:$0xf] %v176
  %209 = vst [vmem:[%s4 + $0xc] sm:$0xf] %v177
  %210 = vst [vmem:[%s4 + $0x10] sm:$0xf] %v178
  %211 = vst [vmem:[%s4 + $0x14] sm:$0xf] %v179
  %212 = vst [vmem:[%s4 + $0x18] sm:$0xf] %v180
  %213 = vst [vmem:[%s4 + $0x1c] sm:$0xf] %v181
  %214 = vst [vmem:[%s4 + $0x20] sm:$0xf] %v182
  %215 = vst [vmem:[%s4 + $0x24] sm:$0xf] %v183
  %216 = vst [vmem:[%s4 + $0x28] sm:$0xf] %v184
  %217 = vst [vmem:[%s4 + $0x2c] sm:$0xf] %v185
  %218 = vst [vmem:[%s4 + $0x30] sm:$0xf] %v186
  %219 = vst [vmem:[%s4 + $0x34] sm:$0xf] %v187
  %220 = vst [vmem:[%s4 + $0x38] sm:$0xf] %v188
  %221 = vst [vmem:[%s4 + $0x3c] sm:$0xf] %v189
  // Predicated region
  $region18: #{_lambda_.12} parent=0 // pred_check
    _
  $region19: #{_lambda_.12} parent=0 // pred_check_branch
    %223 = sbr.rel (0) target = $region21
  $region20: #{_lambda_.12} parent=0 // pred_region
    _
  $region21: #{_lambda_.12} parent=0 // pred_fallthru
    _
  // Predicated region
  $region22: #{_lambda_.12} parent=0 // pred_check
    _
  $region23: #{_lambda_.12} parent=0 // pred_check_branch
    %225 = sbr.rel (0) target = $region25
  $region24: #{_lambda_.12} parent=0 // pred_region
    _
  $region25: #{_lambda_.12} parent=0 // pred_fallthru
    _

// kernel: _lambda_.11
$region0: #{_lambda_.11}
  #allocation0 [shape = 'u32[]', space=smem, size = 0x4, offset = 0x4, fixed_abs, tag = 'smem constant byte address 0x4 - core index']
  #allocation1 [shape = 'u32[144,128]{1,0:T(1,128)}', space=vmem, size = 0x12000, scoped, tag = 'internal scratch']
  %s0 = inlined_call_operand.vmem [shape: bf16[128,640], index: 0, kind: input, shape index: {}]
  %s1 = inlined_call_operand.vmem [shape: bf16[640,128], index: 1, kind: input, shape index: {}]
  %s2 = inlined_call_operand.vmem [shape: f32[1,128], index: 2, kind: input, shape index: {}]
  %s3 = inlined_call_operand.vmem [shape: bf16[128,128], index: 3, kind: output, shape index: {0}]
  %s4 = inlined_call_operand.vmem [shape: f32[1,8,128], index: 4, kind: output, shape index: {1}]
  %5 = xla_tuple %s3, %s4
  %s6 = sld [smem:[#allocation0]]
  $region30: #{_lambda_.11} parent=0
    _
  %s8 = ssub.s32 1, %s6
  %s9 = scalar_select 0, %s8, %s6
  // Predicated region
  $region2: #{_lambda_.11} parent=0 // pred_check
    _
  $region3: #{_lambda_.11} parent=0 // pred_check_branch
    %11 = sbr.rel (0) target = $region5
  $region4: #{_lambda_.11} parent=0 // pred_region
    _
  $region5: #{_lambda_.11} parent=0 // pred_fallthru
    _
  // Predicated region
  $region6: #{_lambda_.11} parent=0 // pred_check
    _
  $region7: #{_lambda_.11} parent=0 // pred_check_branch
    %13 = sbr.rel (0) target = $region9
  $region8: #{_lambda_.11} parent=0 // pred_region
    _
  $region9: #{_lambda_.11} parent=0 // pred_fallthru
    _
  // Predicated region
  $region10: #{_lambda_.11} parent=0 // pred_check
    _
  $region11: #{_lambda_.11} parent=0 // pred_check_branch
    %15 = sbr.rel (0) target = $region13
  $region12: #{_lambda_.11} parent=0 // pred_region
    _
  $region13: #{_lambda_.11} parent=0 // pred_fallthru
    _
  %v17 = vld [vmem:[%s0] sm:$0xff]
  %v18 = vld [vmem:[%s0 + $0x8] sm:$0xff]
  %v19 = vld [vmem:[%s0 + $0x10] sm:$0xf]
  %v20 = vld [vmem:[%s0 + $0x14] sm:$0xff]
  %v21 = vld [vmem:[%s0 + $0x1c] sm:$0xff]
  %v22 = vld [vmem:[%s0 + $0x24] sm:$0xf]
  %v23 = vld [vmem:[%s0 + $0x28] sm:$0xff]
  %v24 = vld [vmem:[%s0 + $0x30] sm:$0xff]
  %v25 = vld [vmem:[%s0 + $0x38] sm:$0xf]
  %v26 = vld [vmem:[%s0 + $0x3c] sm:$0xff]
  %v27 = vld [vmem:[%s0 + $0x44] sm:$0xff]
  %v28 = vld [vmem:[%s0 + $0x4c] sm:$0xf]
  %v29 = vld [vmem:[%s0 + $0x50] sm:$0xff]
  %v30 = vld [vmem:[%s0 + $0x58] sm:$0xff]
  %v31 = vld [vmem:[%s0 + $0x60] sm:$0xf]
  %v32 = vld [vmem:[%s0 + $0x64] sm:$0xff]
  %v33 = vld [vmem:[%s0 + $0x6c] sm:$0xff]
  %v34 = vld [vmem:[%s0 + $0x74] sm:$0xf]
  %v35 = vld [vmem:[%s0 + $0x78] sm:$0xff]
  %v36 = vld [vmem:[%s0 + $0x80] sm:$0xff]
  %v37 = vld [vmem:[%s0 + $0x88] sm:$0xf]
  %v38 = vld [vmem:[%s0 + $0x8c] sm:$0xff]
  %v39 = vld [vmem:[%s0 + $0x94] sm:$0xff]
  %v40 = vld [vmem:[%s0 + $0x9c] sm:$0xf]
  %v41 = vld [vmem:[%s0 + $0xa0] sm:$0xff]
  %v42 = vld [vmem:[%s0 + $0xa8] sm:$0xff]
  %v43 = vld [vmem:[%s0 + $0xb0] sm:$0xf]
  %v44 = vld [vmem:[%s0 + $0xb4] sm:$0xff]
  %v45 = vld [vmem:[%s0 + $0xbc] sm:$0xff]
  %v46 = vld [vmem:[%s0 + $0xc4] sm:$0xf]
  %v47 = vld [vmem:[%s0 + $0xc8] sm:$0xff]
  %v48 = vld [vmem:[%s0 + $0xd0] sm:$0xff]
  %v49 = vld [vmem:[%s0 + $0xd8] sm:$0xf]
  %v50 = vld [vmem:[%s0 + $0xdc] sm:$0xff]
  %v51 = vld [vmem:[%s0 + $0xe4] sm:$0xff]
  %v52 = vld [vmem:[%s0 + $0xec] sm:$0xf]
  %v53 = vld [vmem:[%s0 + $0xf0] sm:$0xff]
  %v54 = vld [vmem:[%s0 + $0xf8] sm:$0xff]
  %v55 = vld [vmem:[%s0 + $0x100] sm:$0xf]
  %v56 = vld [vmem:[%s0 + $0x104] sm:$0xff]
  %v57 = vld [vmem:[%s0 + $0x10c] sm:$0xff]
  %v58 = vld [vmem:[%s0 + $0x114] sm:$0xf]
  %v59 = vld [vmem:[%s0 + $0x118] sm:$0xff]
  %v60 = vld [vmem:[%s0 + $0x120] sm:$0xff]
  %v61 = vld [vmem:[%s0 + $0x128] sm:$0xf]
  %v62 = vld [vmem:[%s0 + $0x12c] sm:$0xff]
  %v63 = vld [vmem:[%s0 + $0x134] sm:$0xff]
  %v64 = vld [vmem:[%s0 + $0x13c] sm:$0xf]
  %v65 = vld [vmem:[%s1] sm:$0xf]
  %v66 = vld [vmem:[%s1 + $0x4] sm:$0xf]
  %v67 = vld [vmem:[%s1 + $0x8] sm:$0xf]
  %v68 = vld [vmem:[%s1 + $0xc] sm:$0xf]
  %v69 = vld [vmem:[%s1 + $0x10] sm:$0xf]
  %v70 = vld [vmem:[%s1 + $0x14] sm:$0xf]
  %v71 = vld [vmem:[%s1 + $0x18] sm:$0xf]
  %v72 = vld [vmem:[%s1 + $0x1c] sm:$0xf]
  %v73 = vld [vmem:[%s1 + $0x20] sm:$0xf]
  %v74 = vld [vmem:[%s1 + $0x24] sm:$0xf]
  %v75 = vld [vmem:[%s1 + $0x28] sm:$0xf]
  %v76 = vld [vmem:[%s1 + $0x2c] sm:$0xf]
  %v77 = vld [vmem:[%s1 + $0x30] sm:$0xf]
  %v78 = vld [vmem:[%s1 + $0x34] sm:$0xf]
  %v79 = vld [vmem:[%s1 + $0x38] sm:$0xf]
  %v80 = vld [vmem:[%s1 + $0x3c] sm:$0xf]
  %v81 = vld [vmem:[%s1 + $0x40] sm:$0xf]
  %v82 = vld [vmem:[%s1 + $0x44] sm:$0xf]
  %v83 = vld [vmem:[%s1 + $0x48] sm:$0xf]
  %v84 = vld [vmem:[%s1 + $0x4c] sm:$0xf]
  %v85 = vld [vmem:[%s1 + $0x50] sm:$0xf]
  %v86 = vld [vmem:[%s1 + $0x54] sm:$0xf]
  %v87 = vld [vmem:[%s1 + $0x58] sm:$0xf]
  %v88 = vld [vmem:[%s1 + $0x5c] sm:$0xf]
  %v89 = vld [vmem:[%s1 + $0x60] sm:$0xf]
  %v90 = vld [vmem:[%s1 + $0x64] sm:$0xf]
  %v91 = vld [vmem:[%s1 + $0x68] sm:$0xf]
  %v92 = vld [vmem:[%s1 + $0x6c] sm:$0xf]
  %v93 = vld [vmem:[%s1 + $0x70] sm:$0xf]
  %v94 = vld [vmem:[%s1 + $0x74] sm:$0xf]
  %v95 = vld [vmem:[%s1 + $0x78] sm:$0xf]
  %v96 = vld [vmem:[%s1 + $0x7c] sm:$0xf]
  %v97 = vld [vmem:[%s1 + $0x80] sm:$0xf]
  %v98 = vld [vmem:[%s1 + $0x84] sm:$0xf]
  %v99 = vld [vmem:[%s1 + $0x88] sm:$0xf]
  %v100 = vld [vmem:[%s1 + $0x8c] sm:$0xf]
  %v101 = vld [vmem:[%s1 + $0x90] sm:$0xf]
  %v102 = vld [vmem:[%s1 + $0x94] sm:$0xf]
  %v103 = vld [vmem:[%s1 + $0x98] sm:$0xf]
  %v104 = vld [vmem:[%s1 + $0x9c] sm:$0xf]
  %v105 = vld [vmem:[%s1 + $0xa0] sm:$0xf]
  %v106 = vld [vmem:[%s1 + $0xa4] sm:$0xf]
  %v107 = vld [vmem:[%s1 + $0xa8] sm:$0xf]
  %v108 = vld [vmem:[%s1 + $0xac] sm:$0xf]
  %v109 = vld [vmem:[%s1 + $0xb0] sm:$0xf]
  %v110 = vld [vmem:[%s1 + $0xb4] sm:$0xf]
  %v111 = vld [vmem:[%s1 + $0xb8] sm:$0xf]
  %v112 = vld [vmem:[%s1 + $0xbc] sm:$0xf]
  %v113 = vld [vmem:[%s1 + $0xc0] sm:$0xf]
  %v114 = vld [vmem:[%s1 + $0xc4] sm:$0xf]
  %v115 = vld [vmem:[%s1 + $0xc8] sm:$0xf]
  %v116 = vld [vmem:[%s1 + $0xcc] sm:$0xf]
  %v117 = vld [vmem:[%s1 + $0xd0] sm:$0xf]
  %v118 = vld [vmem:[%s1 + $0xd4] sm:$0xf]
  %v119 = vld [vmem:[%s1 + $0xd8] sm:$0xf]
  %v120 = vld [vmem:[%s1 + $0xdc] sm:$0xf]
  %v121 = vld [vmem:[%s1 + $0xe0] sm:$0xf]
  %v122 = vld [vmem:[%s1 + $0xe4] sm:$0xf]
  %v123 = vld [vmem:[%s1 + $0xe8] sm:$0xf]
  %v124 = vld [vmem:[%s1 + $0xec] sm:$0xf]
  %v125 = vld [vmem:[%s1 + $0xf0] sm:$0xf]
  %v126 = vld [vmem:[%s1 + $0xf4] sm:$0xf]
  %v127 = vld [vmem:[%s1 + $0xf8] sm:$0xf]
  %v128 = vld [vmem:[%s1 + $0xfc] sm:$0xf]
  %v129 = vld [vmem:[%s1 + $0x100] sm:$0xf]
  %v130 = vld [vmem:[%s1 + $0x104] sm:$0xf]
  %v131 = vld [vmem:[%s1 + $0x108] sm:$0xf]
  %v132 = vld [vmem:[%s1 + $0x10c] sm:$0xf]
  %v133 = vld [vmem:[%s1 + $0x110] sm:$0xf]
  %v134 = vld [vmem:[%s1 + $0x114] sm:$0xf]
  %v135 = vld [vmem:[%s1 + $0x118] sm:$0xf]
  %v136 = vld [vmem:[%s1 + $0x11c] sm:$0xf]
  %v137 = vld [vmem:[%s1 + $0x120] sm:$0xf]
  %v138 = vld [vmem:[%s1 + $0x124] sm:$0xf]
  %v139 = vld [vmem:[%s1 + $0x128] sm:$0xf]
  %v140 = vld [vmem:[%s1 + $0x12c] sm:$0xf]
  %v141 = vld [vmem:[%s1 + $0x130] sm:$0xf]
  %v142 = vld [vmem:[%s1 + $0x134] sm:$0xf]
  %v143 = vld [vmem:[%s1 + $0x138] sm:$0xf]
  %v144 = vld [vmem:[%s1 + $0x13c] sm:$0xf]
  %v145 = vld [vmem:[%s2] sm:$0x1]
  %v147 = vlaneseq
  %v148 = vshrl.u32 %v147, 7
  %v149 = vsub.s32 0, %v148
  %v150 = vrot.slane %v145, %v149
  %v200 = vunpack.c.l.b16 %v17
  %v201 = vunpack.c.h.b16 %v17
  %v202 = vunpack.c.l.b16 %v18
  %v203 = vunpack.c.h.b16 %v18
  %v204 = vunpack.c.l.b16 %v19
  %v205 = vunpack.c.l.b16 %v20
  %v206 = vunpack.c.h.b16 %v20
  %v207 = vunpack.c.l.b16 %v21
  %v208 = vunpack.c.h.b16 %v21
  %v209 = vunpack.c.l.b16 %v22
  %v210 = vunpack.c.l.b16 %v23
  %v211 = vunpack.c.h.b16 %v23
  %v212 = vunpack.c.l.b16 %v24
  %v213 = vunpack.c.h.b16 %v24
  %v214 = vunpack.c.l.b16 %v25
  %v215 = vunpack.c.l.b16 %v26
  %v216 = vunpack.c.h.b16 %v26
  %v217 = vunpack.c.l.b16 %v27
  %v218 = vunpack.c.h.b16 %v27
  %v219 = vunpack.c.l.b16 %v28
  %v220 = vunpack.c.l.b16 %v29
  %v221 = vunpack.c.h.b16 %v29
  %v222 = vunpack.c.l.b16 %v30
  %v223 = vunpack.c.h.b16 %v30
  %v224 = vunpack.c.l.b16 %v31
  %v225 = vunpack.c.l.b16 %v32
  %v226 = vunpack.c.h.b16 %v32
  %v227 = vunpack.c.l.b16 %v33
  %v228 = vunpack.c.h.b16 %v33
  %v229 = vunpack.c.l.b16 %v34
  %v230 = vunpack.c.l.b16 %v35
  %v231 = vunpack.c.h.b16 %v35
  %v232 = vunpack.c.l.b16 %v36
  %v233 = vunpack.c.h.b16 %v36
  %v234 = vunpack.c.l.b16 %v37
  %v235 = vunpack.c.l.b16 %v38
  %v236 = vunpack.c.h.b16 %v38
  %v237 = vunpack.c.l.b16 %v39
  %v238 = vunpack.c.h.b16 %v39
  %v239 = vunpack.c.l.b16 %v40
  %v240 = vunpack.c.l.b16 %v41
  %v241 = vunpack.c.h.b16 %v41
  %v242 = vunpack.c.l.b16 %v42
  %v243 = vunpack.c.h.b16 %v42
  %v244 = vunpack.c.l.b16 %v43
  %v245 = vunpack.c.l.b16 %v44
  %v246 = vunpack.c.h.b16 %v44
  %v247 = vunpack.c.l.b16 %v45
  %v248 = vunpack.c.h.b16 %v45
  %v249 = vunpack.c.l.b16 %v46
  %v250 = vunpack.c.l.b16 %v47
  %v251 = vunpack.c.h.b16 %v47
  %v252 = vunpack.c.l.b16 %v48
  %v253 = vunpack.c.h.b16 %v48
  %v254 = vunpack.c.l.b16 %v49
  %v255 = vunpack.c.l.b16 %v50
  %v256 = vunpack.c.h.b16 %v50
  %v257 = vunpack.c.l.b16 %v51
  %v258 = vunpack.c.h.b16 %v51
  %v259 = vunpack.c.l.b16 %v52
  %v260 = vunpack.c.l.b16 %v53
  %v261 = vunpack.c.h.b16 %v53
  %v262 = vunpack.c.l.b16 %v54
  %v263 = vunpack.c.h.b16 %v54
  %v264 = vunpack.c.l.b16 %v55
  %v265 = vunpack.c.l.b16 %v56
  %v266 = vunpack.c.h.b16 %v56
  %v267 = vunpack.c.l.b16 %v57
  %v268 = vunpack.c.h.b16 %v57
  %v269 = vunpack.c.l.b16 %v58
  %v270 = vunpack.c.l.b16 %v59
  %v271 = vunpack.c.h.b16 %v59
  %v272 = vunpack.c.l.b16 %v60
  %v273 = vunpack.c.h.b16 %v60
  %v274 = vunpack.c.l.b16 %v61
  %v275 = vunpack.c.l.b16 %v62
  %v276 = vunpack.c.h.b16 %v62
  %v277 = vunpack.c.l.b16 %v63
  %v278 = vunpack.c.h.b16 %v63
  %v279 = vunpack.c.l.b16 %v64
  %v280 = vpack.c.b16 %v205, %v200
  %v281 = vpack.c.b16 %v206, %v201
  %v282 = vpack.c.b16 %v207, %v202
  %v283 = vpack.c.b16 %v208, %v203
  %v284 = vpack.c.b16 %v209, %v204
  %v285 = vpack.c.b16 %v215, %v210
  %v286 = vpack.c.b16 %v216, %v211
  %v287 = vpack.c.b16 %v217, %v212
  %v288 = vpack.c.b16 %v218, %v213
  %v289 = vpack.c.b16 %v219, %v214
  %v290 = vpack.c.b16 %v225, %v220
  %v291 = vpack.c.b16 %v226, %v221
  %v292 = vpack.c.b16 %v227, %v222
  %v293 = vpack.c.b16 %v228, %v223
  %v294 = vpack.c.b16 %v229, %v224
  %v295 = vpack.c.b16 %v235, %v230
  %v296 = vpack.c.b16 %v236, %v231
  %v297 = vpack.c.b16 %v237, %v232
  %v298 = vpack.c.b16 %v238, %v233
  %v299 = vpack.c.b16 %v239, %v234
  %v300 = vpack.c.b16 %v245, %v240
  %v301 = vpack.c.b16 %v246, %v241
  %v302 = vpack.c.b16 %v247, %v242
  %v303 = vpack.c.b16 %v248, %v243
  %v304 = vpack.c.b16 %v249, %v244
  %v305 = vpack.c.b16 %v255, %v250
  %v306 = vpack.c.b16 %v256, %v251
  %v307 = vpack.c.b16 %v257, %v252
  %v308 = vpack.c.b16 %v258, %v253
  %v309 = vpack.c.b16 %v259, %v254
  %v310 = vpack.c.b16 %v265, %v260
  %v311 = vpack.c.b16 %v266, %v261
  %v312 = vpack.c.b16 %v267, %v262
  %v313 = vpack.c.b16 %v268, %v263
  %v314 = vpack.c.b16 %v269, %v264
  %v315 = vpack.c.b16 %v275, %v270
  %v316 = vpack.c.b16 %v276, %v271
  %v317 = vpack.c.b16 %v277, %v272
  %v318 = vpack.c.b16 %v278, %v273
  %v319 = vpack.c.b16 %v279, %v274
  %v440 = vunpack.c.l.b16 %v65
  %v441 = vunpack.c.l.b16 %v66
  %v442 = vunpack.c.l.b16 %v67
  %v443 = vunpack.c.l.b16 %v68
  %v444 = vunpack.c.l.b16 %v69
  %v445 = vunpack.c.l.b16 %v70
  %v446 = vunpack.c.l.b16 %v71
  %v447 = vunpack.c.l.b16 %v72
  %v448 = vunpack.c.l.b16 %v73
  %v449 = vunpack.c.l.b16 %v74
  %v450 = vunpack.c.l.b16 %v75
  %v451 = vunpack.c.l.b16 %v76
  %v452 = vunpack.c.l.b16 %v77
  %v453 = vunpack.c.l.b16 %v78
  %v454 = vunpack.c.l.b16 %v79
  %v455 = vunpack.c.l.b16 %v80
  %v456 = vunpack.c.l.b16 %v81
  %v457 = vunpack.c.l.b16 %v82
  %v458 = vunpack.c.l.b16 %v83
  %v459 = vunpack.c.l.b16 %v84
  %v460 = vunpack.c.l.b16 %v85
  %v461 = vunpack.c.l.b16 %v86
  %v462 = vunpack.c.l.b16 %v87
  %v463 = vunpack.c.l.b16 %v88
  %v464 = vunpack.c.l.b16 %v89
  %v465 = vunpack.c.l.b16 %v90
  %v466 = vunpack.c.l.b16 %v91
  %v467 = vunpack.c.l.b16 %v92
  %v468 = vunpack.c.l.b16 %v93
  %v469 = vunpack.c.l.b16 %v94
  %v470 = vunpack.c.l.b16 %v95
  %v471 = vunpack.c.l.b16 %v96
  %v472 = vunpack.c.l.b16 %v97
  %v473 = vunpack.c.l.b16 %v98
  %v474 = vunpack.c.l.b16 %v99
  %v475 = vunpack.c.l.b16 %v100
  %v476 = vunpack.c.l.b16 %v101
  %v477 = vunpack.c.l.b16 %v102
  %v478 = vunpack.c.l.b16 %v103
  %v479 = vunpack.c.l.b16 %v104
  %v480 = vunpack.c.l.b16 %v105
  %v481 = vunpack.c.l.b16 %v106
  %v482 = vunpack.c.l.b16 %v107
  %v483 = vunpack.c.l.b16 %v108
  %v484 = vunpack.c.l.b16 %v109
  %v485 = vunpack.c.l.b16 %v110
  %v486 = vunpack.c.l.b16 %v111
  %v487 = vunpack.c.l.b16 %v112
  %v488 = vunpack.c.l.b16 %v113
  %v489 = vunpack.c.l.b16 %v114
  %v490 = vunpack.c.l.b16 %v115
  %v491 = vunpack.c.l.b16 %v116
  %v492 = vunpack.c.l.b16 %v117
  %v493 = vunpack.c.l.b16 %v118
  %v494 = vunpack.c.l.b16 %v119
  %v495 = vunpack.c.l.b16 %v120
  %v496 = vunpack.c.l.b16 %v121
  %v497 = vunpack.c.l.b16 %v122
  %v498 = vunpack.c.l.b16 %v123
  %v499 = vunpack.c.l.b16 %v124
  %v500 = vunpack.c.l.b16 %v125
  %v501 = vunpack.c.l.b16 %v126
  %v502 = vunpack.c.l.b16 %v127
  %v503 = vunpack.c.l.b16 %v128
  %v504 = vunpack.c.l.b16 %v129
  %v505 = vunpack.c.l.b16 %v130
  %v506 = vunpack.c.l.b16 %v131
  %v507 = vunpack.c.l.b16 %v132
  %v508 = vunpack.c.l.b16 %v133
  %v509 = vunpack.c.l.b16 %v134
  %v510 = vunpack.c.l.b16 %v135
  %v511 = vunpack.c.l.b16 %v136
  %v512 = vunpack.c.l.b16 %v137
  %v513 = vunpack.c.l.b16 %v138
  %v514 = vunpack.c.l.b16 %v139
  %v515 = vunpack.c.l.b16 %v140
  %v516 = vunpack.c.l.b16 %v141
  %v517 = vunpack.c.l.b16 %v142
  %v518 = vunpack.c.l.b16 %v143
  %v519 = vunpack.c.l.b16 %v144
  %v520 = vpack.c.b16 %v441, %v440
  %v521 = vpack.c.b16 %v443, %v442
  %v522 = vpack.c.b16 %v445, %v444
  %v523 = vpack.c.b16 %v447, %v446
  %v524 = vpack.c.b16 %v449, %v448
  %v525 = vpack.c.b16 %v451, %v450
  %v526 = vpack.c.b16 %v453, %v452
  %v527 = vpack.c.b16 %v455, %v454
  %v528 = vpack.c.b16 %v457, %v456
  %v529 = vpack.c.b16 %v459, %v458
  %v530 = vpack.c.b16 %v461, %v460
  %v531 = vpack.c.b16 %v463, %v462
  %v532 = vpack.c.b16 %v465, %v464
  %v533 = vpack.c.b16 %v467, %v466
  %v534 = vpack.c.b16 %v469, %v468
  %v535 = vpack.c.b16 %v471, %v470
  %v536 = vpack.c.b16 %v473, %v472
  %v537 = vpack.c.b16 %v475, %v474
  %v538 = vpack.c.b16 %v477, %v476
  %v539 = vpack.c.b16 %v479, %v478
  %v540 = vpack.c.b16 %v481, %v480
  %v541 = vpack.c.b16 %v483, %v482
  %v542 = vpack.c.b16 %v485, %v484
  %v543 = vpack.c.b16 %v487, %v486
  %v544 = vpack.c.b16 %v489, %v488
  %v545 = vpack.c.b16 %v491, %v490
  %v546 = vpack.c.b16 %v493, %v492
  %v547 = vpack.c.b16 %v495, %v494
  %v548 = vpack.c.b16 %v497, %v496
  %v549 = vpack.c.b16 %v499, %v498
  %v550 = vpack.c.b16 %v501, %v500
  %v551 = vpack.c.b16 %v503, %v502
  %v552 = vpack.c.b16 %v505, %v504
  %v553 = vpack.c.b16 %v507, %v506
  %v554 = vpack.c.b16 %v509, %v508
  %v555 = vpack.c.b16 %v511, %v510
  %v556 = vpack.c.b16 %v513, %v512
  %v557 = vpack.c.b16 %v515, %v514
  %v558 = vpack.c.b16 %v517, %v516
  %v559 = vpack.c.b16 %v519, %v518
  %600 = vmatprep.subr.bf16.mxu0 0
  %601 = vmatpush1.bf16.msra.mxu0 %v520
  %602 = vmatprep.subr.bf16.mxu0 0
  %603 = vmatpush1.bf16.msra.mxu0 %v521
  %604 = vmatprep.subr.bf16.mxu0 0
  %605 = vmatpush1.bf16.msra.mxu0 %v522
  %606 = vmatprep.subr.bf16.mxu0 0
  %607 = vmatpush1.bf16.msra.mxu0 %v523
  %608 = vmatprep.subr.bf16.mxu0 0
  %609 = vmatpush1.bf16.msra.mxu0 %v524
  %610 = vmatprep.subr.bf16.mxu0 0
  %611 = vmatpush1.bf16.msra.mxu0 %v525
  %612 = vmatprep.subr.bf16.mxu0 0
  %613 = vmatpush1.bf16.msra.mxu0 %v526
  %614 = vmatprep.subr.bf16.mxu0 0
  %615 = vmatpush1.bf16.msra.mxu0 %v527
  %616 = vmatprep.subr.bf16.mxu0 0
  %617 = vmatpush1.bf16.msra.mxu0 %v528
  %618 = vmatprep.subr.bf16.mxu0 0
  %619 = vmatpush1.bf16.msra.mxu0 %v529
  %620 = vmatprep.subr.bf16.mxu0 0
  %621 = vmatpush1.bf16.msra.mxu0 %v530
  %622 = vmatprep.subr.bf16.mxu0 0
  %623 = vmatpush1.bf16.msra.mxu0 %v531
  %624 = vmatprep.subr.bf16.mxu0 0
  %625 = vmatpush1.bf16.msra.mxu0 %v532
  %626 = vmatprep.subr.bf16.mxu0 0
  %627 = vmatpush1.bf16.msra.mxu0 %v533
  %628 = vmatprep.subr.bf16.mxu0 0
  %629 = vmatpush1.bf16.msra.mxu0 %v534
  %630 = vmatprep.subr.bf16.mxu0 0
  %631 = vmatpush1.bf16.msra.mxu0 %v535
  %632 = vmatprep.mubr.bf16.mxu0 %v281
  %633 = vmatmul.mubr.bf16.gmra.mrb[0].mxu0 %v280
  %v634 = vpop.f32.mrb[0].mxu0
  %v635 = vadd.f32 %v150, %v634
  %v636 = vpop.f32.mrb[0].mxu0
  %v637 = vpop.f32.mrb[0].mxu0
  %v638 = vadd.f32 %v150, %v637
  %v639 = vpop.f32.mrb[0].mxu0
  %640 = vmatprep.mubr.bf16.mxu0 %v286
  %641 = vmatmul.mubr.bf16.gmra.mrb[0].mxu0 %v285
  %v642 = vpop.f32.mrb[0].mxu0
  %v643 = vadd.f32 %v150, %v642
  %v644 = vpop.f32.mrb[0].mxu0
  %v645 = vpop.f32.mrb[0].mxu0
  %v646 = vadd.f32 %v150, %v645
  %v647 = vpop.f32.mrb[0].mxu0
  %648 = vmatprep.mubr.bf16.mxu0 %v291
  %649 = vmatmul.mubr.bf16.gmra.mrb[0].mxu0 %v290
  %v650 = vpop.f32.mrb[0].mxu0
  %v651 = vadd.f32 %v150, %v650
  %v652 = vpop.f32.mrb[0].mxu0
  %v653 = vpop.f32.mrb[0].mxu0
  %v654 = vadd.f32 %v150, %v653
  %v655 = vpop.f32.mrb[0].mxu0
  %656 = vmatprep.mubr.bf16.mxu0 %v296
  %657 = vmatmul.mubr.bf16.gmra.mrb[0].mxu0 %v295
  %v658 = vpop.f32.mrb[0].mxu0
  %v659 = vadd.f32 %v150, %v658
  %v660 = vpop.f32.mrb[0].mxu0
  %v661 = vpop.f32.mrb[0].mxu0
  %v662 = vadd.f32 %v150, %v661
  %v663 = vpop.f32.mrb[0].mxu0
  %664 = vmatprep.mubr.bf16.mxu0 %v301
  %665 = vmatmul.mubr.bf16.gmra.mrb[0].mxu0 %v300
  %v666 = vpop.f32.mrb[0].mxu0
  %v667 = vadd.f32 %v150, %v666
  %v668 = vpop.f32.mrb[0].mxu0
  %v669 = vpop.f32.mrb[0].mxu0
  %v670 = vadd.f32 %v150, %v669
  %v671 = vpop.f32.mrb[0].mxu0
  %672 = vmatprep.mubr.bf16.mxu0 %v306
  %673 = vmatmul.mubr.bf16.gmra.mrb[0].mxu0 %v305
  %v674 = vpop.f32.mrb[0].mxu0
  %v675 = vadd.f32 %v150, %v674
  %v676 = vpop.f32.mrb[0].mxu0
  %v677 = vpop.f32.mrb[0].mxu0
  %v678 = vadd.f32 %v150, %v677
  %v679 = vpop.f32.mrb[0].mxu0
  %680 = vmatprep.mubr.bf16.mxu0 %v311
  %681 = vmatmul.mubr.bf16.gmra.mrb[0].mxu0 %v310
  %v682 = vpop.f32.mrb[0].mxu0
  %v683 = vadd.f32 %v150, %v682
  %v684 = vpop.f32.mrb[0].mxu0
  %v685 = vpop.f32.mrb[0].mxu0
  %v686 = vadd.f32 %v150, %v685
  %v687 = vpop.f32.mrb[0].mxu0
  %688 = vmatprep.mubr.bf16.mxu0 %v316
  %689 = vmatmul.mubr.bf16.gmra.mrb[0].mxu0 %v315
  %v690 = vpop.f32.mrb[0].mxu0
  %v691 = vadd.f32 %v150, %v690
  %v692 = vpop.f32.mrb[0].mxu0
  %v693 = vpop.f32.mrb[0].mxu0
  %v694 = vadd.f32 %v150, %v693
  %v695 = vpop.f32.mrb[0].mxu0
  %696 = vdwg.mxu0
  %697 = vmatprep.subr.bf16.mxu0 0
  %698 = vmatpush1.bf16.msra.mxu0 %v536
  %699 = vmatprep.subr.bf16.mxu0 0
  %700 = vmatpush1.bf16.msra.mxu0 %v537
  %701 = vmatprep.subr.bf16.mxu0 0
  %702 = vmatpush1.bf16.msra.mxu0 %v538
  %703 = vmatprep.subr.bf16.mxu0 0
  %704 = vmatpush1.bf16.msra.mxu0 %v539
  %705 = vmatprep.subr.bf16.mxu0 0
  %706 = vmatpush1.bf16.msra.mxu0 %v540
  %707 = vmatprep.subr.bf16.mxu0 0
  %708 = vmatpush1.bf16.msra.mxu0 %v541
  %709 = vmatprep.subr.bf16.mxu0 0
  %710 = vmatpush1.bf16.msra.mxu0 %v542
  %711 = vmatprep.subr.bf16.mxu0 0
  %712 = vmatpush1.bf16.msra.mxu0 %v543
  %713 = vmatprep.subr.bf16.mxu0 0
  %714 = vmatpush1.bf16.msra.mxu0 %v544
  %715 = vmatprep.subr.bf16.mxu0 0
  %716 = vmatpush1.bf16.msra.mxu0 %v545
  %717 = vmatprep.subr.bf16.mxu0 0
  %718 = vmatpush1.bf16.msra.mxu0 %v546
  %719 = vmatprep.subr.bf16.mxu0 0
  %720 = vmatpush1.bf16.msra.mxu0 %v547
  %721 = vmatprep.subr.bf16.mxu0 0
  %722 = vmatpush1.bf16.msra.mxu0 %v548
  %723 = vmatprep.subr.bf16.mxu0 0
  %724 = vmatpush1.bf16.msra.mxu0 %v549
  %725 = vmatprep.subr.bf16.mxu0 0
  %726 = vmatpush1.bf16.msra.mxu0 %v550
  %727 = vmatprep.subr.bf16.mxu0 0
  %728 = vmatpush1.bf16.msra.mxu0 %v551
  %729 = vmatprep.mubr.bf16.mxu0 %v283
  %730 = vmatmul.mubr.bf16.gmra.mrb[0].mxu0 %v282
  %v731 = vpop.f32.mrb[0].mxu0
  %v732 = vadd.f32 %v635, %v731
  %v733 = vpop.f32.mrb[0].mxu0
  %v734 = vpop.f32.mrb[0].mxu0
  %v735 = vadd.f32 %v638, %v734
  %v736 = vpop.f32.mrb[0].mxu0
  %737 = vmatprep.mubr.bf16.mxu0 %v288
  %738 = vmatmul.mubr.bf16.gmra.mrb[0].mxu0 %v287
  %v739 = vpop.f32.mrb[0].mxu0
  %v740 = vadd.f32 %v643, %v739
  %v741 = vpop.f32.mrb[0].mxu0
  %v742 = vpop.f32.mrb[0].mxu0
  %v743 = vadd.f32 %v646, %v742
  %v744 = vpop.f32.mrb[0].mxu0
  %745 = vmatprep.mubr.bf16.mxu0 %v293
  %746 = vmatmul.mubr.bf16.gmra.mrb[0].mxu0 %v292
  %v747 = vpop.f32.mrb[0].mxu0
  %v748 = vadd.f32 %v651, %v747
  %v749 = vpop.f32.mrb[0].mxu0
  %v750 = vpop.f32.mrb[0].mxu0
  %v751 = vadd.f32 %v654, %v750
  %v752 = vpop.f32.mrb[0].mxu0
  %753 = vmatprep.mubr.bf16.mxu0 %v298
  %754 = vmatmul.mubr.bf16.gmra.mrb[0].mxu0 %v297
  %v755 = vpop.f32.mrb[0].mxu0
  %v756 = vadd.f32 %v659, %v755
  %v757 = vpop.f32.mrb[0].mxu0
  %v758 = vpop.f32.mrb[0].mxu0
  %v759 = vadd.f32 %v662, %v758
  %v760 = vpop.f32.mrb[0].mxu0
  %761 = vmatprep.mubr.bf16.mxu0 %v303
  %762 = vmatmul.mubr.bf16.gmra.mrb[0].mxu0 %v302
  %v763 = vpop.f32.mrb[0].mxu0
  %v764 = vadd.f32 %v667, %v763
  %v765 = vpop.f32.mrb[0].mxu0
  %v766 = vpop.f32.mrb[0].mxu0
  %v767 = vadd.f32 %v670, %v766
  %v768 = vpop.f32.mrb[0].mxu0
  %769 = vmatprep.mubr.bf16.mxu0 %v308
  %770 = vmatmul.mubr.bf16.gmra.mrb[0].mxu0 %v307
  %v771 = vpop.f32.mrb[0].mxu0
  %v772 = vadd.f32 %v675, %v771
  %v773 = vpop.f32.mrb[0].mxu0
  %v774 = vpop.f32.mrb[0].mxu0
  %v775 = vadd.f32 %v678, %v774
  %v776 = vpop.f32.mrb[0].mxu0
  %777 = vmatprep.mubr.bf16.mxu0 %v313
  %778 = vmatmul.mubr.bf16.gmra.mrb[0].mxu0 %v312
  %v779 = vpop.f32.mrb[0].mxu0
  %v780 = vadd.f32 %v683, %v779
  %v781 = vpop.f32.mrb[0].mxu0
  %v782 = vpop.f32.mrb[0].mxu0
  %v783 = vadd.f32 %v686, %v782
  %v784 = vpop.f32.mrb[0].mxu0
  %785 = vmatprep.mubr.bf16.mxu0 %v318
  %786 = vmatmul.mubr.bf16.gmra.mrb[0].mxu0 %v317
  %v787 = vpop.f32.mrb[0].mxu0
  %v788 = vadd.f32 %v691, %v787
  %v789 = vpop.f32.mrb[0].mxu0
  %v790 = vpop.f32.mrb[0].mxu0
  %v791 = vadd.f32 %v694, %v790
  %v792 = vpop.f32.mrb[0].mxu0
  %793 = vdwg.mxu0
  %794 = vmatprep.subr.bf16.mxu0 0
  %795 = vmatpush1.bf16.msra.mxu0 %v552
  %796 = vmatprep.subr.bf16.mxu0 0
  %797 = vmatpush1.bf16.msra.mxu0 %v553
  %798 = vmatprep.subr.bf16.mxu0 0
  %799 = vmatpush1.bf16.msra.mxu0 %v554
  %800 = vmatprep.subr.bf16.mxu0 0
  %801 = vmatpush1.bf16.msra.mxu0 %v555
  %802 = vmatprep.subr.bf16.mxu0 0
  %803 = vmatpush1.bf16.msra.mxu0 %v556
  %804 = vmatprep.subr.bf16.mxu0 0
  %805 = vmatpush1.bf16.msra.mxu0 %v557
  %806 = vmatprep.subr.bf16.mxu0 0
  %807 = vmatpush1.bf16.msra.mxu0 %v558
  %808 = vmatprep.subr.bf16.mxu0 0
  %809 = vmatpush1.bf16.msra.mxu0 %v559
  %810 = vmatprep.subr.bf16.mxu0 0
  %811 = vmatpush1.bf16.msra.mxu0 0
  %812 = vmatprep.subr.bf16.mxu0 0
  %813 = vmatpush1.bf16.msra.mxu0 0
  %814 = vmatprep.subr.bf16.mxu0 0
  %815 = vmatpush1.bf16.msra.mxu0 0
  %816 = vmatprep.subr.bf16.mxu0 0
  %817 = vmatpush1.bf16.msra.mxu0 0
  %818 = vmatprep.subr.bf16.mxu0 0
  %819 = vmatpush1.bf16.msra.mxu0 0
  %820 = vmatprep.subr.bf16.mxu0 0
  %821 = vmatpush1.bf16.msra.mxu0 0
  %822 = vmatprep.subr.bf16.mxu0 0
  %823 = vmatpush1.bf16.msra.mxu0 0
  %824 = vmatprep.subr.bf16.mxu0 0
  %825 = vmatpush1.bf16.msra.mxu0 0
  %826 = vmatprep.mubr.bf16.mxu0 0
  %827 = vmatmul.mubr.bf16.gmra.mrb[0].mxu0 %v284
  %v828 = vpop.f32.mrb[0].mxu0
  %v829 = vadd.f32 %v732, %v828
  %v830 = vpop.f32.mrb[0].mxu0
  %v831 = vpop.f32.mrb[0].mxu0
  %v832 = vadd.f32 %v735, %v831
  %v833 = vpop.f32.mrb[0].mxu0
  %834 = vmatprep.mubr.bf16.mxu0 0
  %835 = vmatmul.mubr.bf16.gmra.mrb[0].mxu0 %v289
  %v836 = vpop.f32.mrb[0].mxu0
  %v837 = vadd.f32 %v740, %v836
  %v838 = vpop.f32.mrb[0].mxu0
  %v839 = vpop.f32.mrb[0].mxu0
  %v840 = vadd.f32 %v743, %v839
  %v841 = vpop.f32.mrb[0].mxu0
  %842 = vmatprep.mubr.bf16.mxu0 0
  %843 = vmatmul.mubr.bf16.gmra.mrb[0].mxu0 %v294
  %v844 = vpop.f32.mrb[0].mxu0
  %v845 = vadd.f32 %v748, %v844
  %v846 = vpop.f32.mrb[0].mxu0
  %v847 = vpop.f32.mrb[0].mxu0
  %v848 = vadd.f32 %v751, %v847
  %v849 = vpop.f32.mrb[0].mxu0
  %850 = vmatprep.mubr.bf16.mxu0 0
  %851 = vmatmul.mubr.bf16.gmra.mrb[0].mxu0 %v299
  %v852 = vpop.f32.mrb[0].mxu0
  %v853 = vadd.f32 %v756, %v852
  %v854 = vpop.f32.mrb[0].mxu0
  %v855 = vpop.f32.mrb[0].mxu0
  %v856 = vadd.f32 %v759, %v855
  %v857 = vpop.f32.mrb[0].mxu0
  %858 = vmatprep.mubr.bf16.mxu0 0
  %859 = vmatmul.mubr.bf16.gmra.mrb[0].mxu0 %v304
  %v860 = vpop.f32.mrb[0].mxu0
  %v861 = vadd.f32 %v764, %v860
  %v862 = vpop.f32.mrb[0].mxu0
  %v863 = vpop.f32.mrb[0].mxu0
  %v864 = vadd.f32 %v767, %v863
  %v865 = vpop.f32.mrb[0].mxu0
  %866 = vmatprep.mubr.bf16.mxu0 0
  %867 = vmatmul.mubr.bf16.gmra.mrb[0].mxu0 %v309
  %v868 = vpop.f32.mrb[0].mxu0
  %v869 = vadd.f32 %v772, %v868
  %v870 = vpop.f32.mrb[0].mxu0
  %v871 = vpop.f32.mrb[0].mxu0
  %v872 = vadd.f32 %v775, %v871
  %v873 = vpop.f32.mrb[0].mxu0
  %874 = vmatprep.mubr.bf16.mxu0 0
  %875 = vmatmul.mubr.bf16.gmra.mrb[0].mxu0 %v314
  %v876 = vpop.f32.mrb[0].mxu0
  %v877 = vadd.f32 %v780, %v876
  %v878 = vpop.f32.mrb[0].mxu0
  %v879 = vpop.f32.mrb[0].mxu0
  %v880 = vadd.f32 %v783, %v879
  %v881 = vpop.f32.mrb[0].mxu0
  %882 = vmatprep.mubr.bf16.mxu0 0
  %883 = vmatmul.mubr.bf16.gmra.mrb[0].mxu0 %v319
  %v884 = vpop.f32.mrb[0].mxu0
  %v885 = vadd.f32 %v788, %v884
  %v886 = vpop.f32.mrb[0].mxu0
  %v887 = vpop.f32.mrb[0].mxu0
  %v888 = vadd.f32 %v791, %v887
  %v889 = vpop.f32.mrb[0].mxu0
  %890 = vdwg.mxu0
  %v891 = vpack.c.bf16 %v832, %v829
  %v892 = vpack.c.bf16 %v840, %v837
  %v893 = vpack.c.bf16 %v848, %v845
  %v894 = vpack.c.bf16 %v856, %v853
  %v895 = vpack.c.bf16 %v864, %v861
  %v896 = vpack.c.bf16 %v872, %v869
  %v897 = vpack.c.bf16 %v880, %v877
  %v898 = vpack.c.bf16 %v888, %v885
  %v907 = vunpack.c.l.b16 %v891
  %v908 = vunpack.c.h.b16 %v891
  %v909 = vunpack.c.l.b16 %v892
  %v910 = vunpack.c.h.b16 %v892
  %v911 = vunpack.c.l.b16 %v893
  %v912 = vunpack.c.h.b16 %v893
  %v913 = vunpack.c.l.b16 %v894
  %v914 = vunpack.c.h.b16 %v894
  %v915 = vunpack.c.l.b16 %v895
  %v916 = vunpack.c.h.b16 %v895
  %v917 = vunpack.c.l.b16 %v896
  %v918 = vunpack.c.h.b16 %v896
  %v919 = vunpack.c.l.b16 %v897
  %v920 = vunpack.c.h.b16 %v897
  %v921 = vunpack.c.l.b16 %v898
  %v922 = vunpack.c.h.b16 %v898
  %v923 = vpack.c.b16 %v907, %v907
  %v924 = vpack.c.b16 %v908, %v908
  %v925 = vpack.c.b16 %v909, %v909
  %v926 = vpack.c.b16 %v910, %v910
  %v927 = vpack.c.b16 %v911, %v911
  %v928 = vpack.c.b16 %v912, %v912
  %v929 = vpack.c.b16 %v913, %v913
  %v930 = vpack.c.b16 %v914, %v914
  %v931 = vpack.c.b16 %v915, %v915
  %v932 = vpack.c.b16 %v916, %v916
  %v933 = vpack.c.b16 %v917, %v917
  %v934 = vpack.c.b16 %v918, %v918
  %v935 = vpack.c.b16 %v919, %v919
  %v936 = vpack.c.b16 %v920, %v920
  %v937 = vpack.c.b16 %v921, %v921
  %v938 = vpack.c.b16 %v922, %v922
  %955 = vst [vmem:[%s3] sm:$0xf] %v923
  %956 = vst [vmem:[%s3 + $0x4] sm:$0xf] %v924
  %957 = vst [vmem:[%s3 + $0x8] sm:$0xf] %v925
  %958 = vst [vmem:[%s3 + $0xc] sm:$0xf] %v926
  %959 = vst [vmem:[%s3 + $0x10] sm:$0xf] %v927
  %960 = vst [vmem:[%s3 + $0x14] sm:$0xf] %v928
  %961 = vst [vmem:[%s3 + $0x18] sm:$0xf] %v929
  %962 = vst [vmem:[%s3 + $0x1c] sm:$0xf] %v930
  %963 = vst [vmem:[%s3 + $0x20] sm:$0xf] %v931
  %964 = vst [vmem:[%s3 + $0x24] sm:$0xf] %v932
  %965 = vst [vmem:[%s3 + $0x28] sm:$0xf] %v933
  %966 = vst [vmem:[%s3 + $0x2c] sm:$0xf] %v934
  %967 = vst [vmem:[%s3 + $0x30] sm:$0xf] %v935
  %968 = vst [vmem:[%s3 + $0x34] sm:$0xf] %v936
  %969 = vst [vmem:[%s3 + $0x38] sm:$0xf] %v937
  %970 = vst [vmem:[%s3 + $0x3c] sm:$0xf] %v938
  %v971 = vlaneseq
  %v972 = vshrl.u32 %v971, 7
  %v973 = vadd.s32 %v972, 8
  %v974 = vadd.s32 %v972, 16
  %v975 = vadd.s32 %v972, 24
  %v976 = vadd.s32 %v972, 32
  %v977 = vadd.s32 %v972, 40
  %v978 = vadd.s32 %v972, 48
  %v979 = vadd.s32 %v972, 56
  %v980 = vadd.s32 %v972, 64
  %v981 = vadd.s32 %v972, 72
  %v982 = vadd.s32 %v972, 80
  %v983 = vadd.s32 %v972, 88
  %v984 = vadd.s32 %v972, 96
  %v985 = vadd.s32 %v972, 104
  %v986 = vadd.s32 %v972, 112
  %v987 = vadd.s32 %v972, 120
  %s988 = smul.u32 0, 128
  %v989 = vstv %s988
  %v990 = vadd.s32 %v972, %v989
  %v991 = vadd.s32 %v973, %v989
  %v992 = vadd.s32 %v974, %v989
  %v993 = vadd.s32 %v975, %v989
  %v994 = vadd.s32 %v976, %v989
  %v995 = vadd.s32 %v977, %v989
  %v996 = vadd.s32 %v978, %v989
  %v997 = vadd.s32 %v979, %v989
  %v998 = vadd.s32 %v980, %v989
  %v999 = vadd.s32 %v981, %v989
  %v1000 = vadd.s32 %v982, %v989
  %v1001 = vadd.s32 %v983, %v989
  %v1002 = vadd.s32 %v984, %v989
  %v1003 = vadd.s32 %v985, %v989
  %v1004 = vadd.s32 %v986, %v989
  %v1005 = vadd.s32 %v987, %v989
  %vm1006 = vcmp.lt.s32.totalorder %v990, 128
  %vm1007 = vcmp.lt.s32.totalorder %v991, 128
  %vm1008 = vcmp.lt.s32.totalorder %v992, 128
  %vm1009 = vcmp.lt.s32.totalorder %v993, 128
  %vm1010 = vcmp.lt.s32.totalorder %v994, 128
  %vm1011 = vcmp.lt.s32.totalorder %v995, 128
  %vm1012 = vcmp.lt.s32.totalorder %v996, 128
  %vm1013 = vcmp.lt.s32.totalorder %v997, 128
  %vm1014 = vcmp.lt.s32.totalorder %v998, 128
  %vm1015 = vcmp.lt.s32.totalorder %v999, 128
  %vm1016 = vcmp.lt.s32.totalorder %v1000, 128
  %vm1017 = vcmp.lt.s32.totalorder %v1001, 128
  %vm1018 = vcmp.lt.s32.totalorder %v1002, 128
  %vm1019 = vcmp.lt.s32.totalorder %v1003, 128
  %vm1020 = vcmp.lt.s32.totalorder %v1004, 128
  %vm1021 = vcmp.lt.s32.totalorder %v1005, 128
  %v1022 = vsel %vm1006, %v829, 0.0
  %v1023 = vsel %vm1007, %v832, 0.0
  %v1024 = vsel %vm1008, %v837, 0.0
  %v1025 = vsel %vm1009, %v840, 0.0
  %v1026 = vsel %vm1010, %v845, 0.0
  %v1027 = vsel %vm1011, %v848, 0.0
  %v1028 = vsel %vm1012, %v853, 0.0
  %v1029 = vsel %vm1013, %v856, 0.0
  %v1030 = vsel %vm1014, %v861, 0.0
  %v1031 = vsel %vm1015, %v864, 0.0
  %v1032 = vsel %vm1016, %v869, 0.0
  %v1033 = vsel %vm1017, %v872, 0.0
  %v1034 = vsel %vm1018, %v877, 0.0
  %v1035 = vsel %vm1019, %v880, 0.0
  %v1036 = vsel %vm1020, %v885, 0.0
  %v1037 = vsel %vm1021, %v888, 0.0
  %v1038 = vadd.f32 %v1022, %v1023
  %v1039 = vadd.f32 %v1038, %v1024
  %v1040 = vadd.f32 %v1039, %v1025
  %v1041 = vadd.f32 %v1040, %v1026
  %v1042 = vadd.f32 %v1041, %v1027
  %v1043 = vadd.f32 %v1042, %v1028
  %v1044 = vadd.f32 %v1043, %v1029
  %v1045 = vadd.f32 %v1044, %v1030
  %v1046 = vadd.f32 %v1045, %v1031
  %v1047 = vadd.f32 %v1046, %v1032
  %v1048 = vadd.f32 %v1047, %v1033
  %v1049 = vadd.f32 %v1048, %v1034
  %v1050 = vadd.f32 %v1049, %v1035
  %v1051 = vadd.f32 %v1050, %v1036
  %v1052 = vadd.f32 %v1051, %v1037
  %v1053 = vrot.slane %v1052, 4
  %v1054 = vadd.f32 %v1052, %v1053
  %v1055 = vrot.slane %v1054, 2
  %v1056 = vadd.f32 %v1054, %v1055
  %v1057 = vrot.slane %v1056, 1
  %v1058 = vadd.f32 %v1056, %v1057
  %v1059 = vmul.f32 %v1022, %v1022
  %v1060 = vmul.f32 %v1023, %v1023
  %v1061 = vmul.f32 %v1024, %v1024
  %v1062 = vmul.f32 %v1025, %v1025
  %v1063 = vmul.f32 %v1026, %v1026
  %v1064 = vmul.f32 %v1027, %v1027
  %v1065 = vmul.f32 %v1028, %v1028
  %v1066 = vmul.f32 %v1029, %v1029
  %v1067 = vmul.f32 %v1030, %v1030
  %v1068 = vmul.f32 %v1031, %v1031
  %v1069 = vmul.f32 %v1032, %v1032
  %v1070 = vmul.f32 %v1033, %v1033
  %v1071 = vmul.f32 %v1034, %v1034
  %v1072 = vmul.f32 %v1035, %v1035
  %v1073 = vmul.f32 %v1036, %v1036
  %v1074 = vmul.f32 %v1037, %v1037
  %v1075 = vadd.f32 %v1059, %v1060
  %v1076 = vadd.f32 %v1075, %v1061
  %v1077 = vadd.f32 %v1076, %v1062
  %v1078 = vadd.f32 %v1077, %v1063
  %v1079 = vadd.f32 %v1078, %v1064
  %v1080 = vadd.f32 %v1079, %v1065
  %v1081 = vadd.f32 %v1080, %v1066
  %v1082 = vadd.f32 %v1081, %v1067
  %v1083 = vadd.f32 %v1082, %v1068
  %v1084 = vadd.f32 %v1083, %v1069
  %v1085 = vadd.f32 %v1084, %v1070
  %v1086 = vadd.f32 %v1085, %v1071
  %v1087 = vadd.f32 %v1086, %v1072
  %v1088 = vadd.f32 %v1087, %v1073
  %v1089 = vadd.f32 %v1088, %v1074
  %v1090 = vrot.slane %v1089, 4
  %v1091 = vadd.f32 %v1089, %v1090
  %v1092 = vrot.slane %v1091, 2
  %v1093 = vadd.f32 %v1091, %v1092
  %v1094 = vrot.slane %v1093, 1
  %v1095 = vadd.f32 %v1093, %v1094
  %vm1096 = vcmp.eq.s32.totalorder %v972, 0
  %vm1097 = vcmp.eq.s32.totalorder %v972, 1
  %v1098 = vsel %vm1097, %v1095, 0.0
  %v1099 = vsel %vm1096, %v1058, %v1098
  %1100 = vst [vmem:[%s4] sm:$0xff] %v1099
  // Predicated region
  $region14: #{_lambda_.11} parent=0 // pred_check
    _
  $region15: #{_lambda_.11} parent=0 // pred_check_branch
    %1102 = sbr.rel (0) target = $region17
  $region16: #{_lambda_.11} parent=0 // pred_region
    _
  $region17: #{_lambda_.11} parent=0 // pred_fallthru
    _
  // Predicated region
  $region18: #{_lambda_.11} parent=0 // pred_check
    _
  $region19: #{_lambda_.11} parent=0 // pred_check_branch
    %1104 = sbr.rel (0) target = $region21
  $region20: #{_lambda_.11} parent=0 // pred_region
    _
  $region21: #{_lambda_.11} parent=0 // pred_fallthru
    _
  // Predicated region
  $region22: #{_lambda_.11} parent=0 // pred_check
    _
  $region23: #{_lambda_.11} parent=0 // pred_check_branch
    %1106 = sbr.rel (0) target = $region25
  $region24: #{_lambda_.11} parent=0 // pred_region
    _
  $region25: #{_lambda_.11} parent=0 // pred_fallthru
    _
  // Predicated region
  $region26: #{_lambda_.11} parent=0 // pred_check
    _
  $region27: #{_lambda_.11} parent=0 // pred_check_branch
    %1108 = sbr.rel (0) target = $region29
  $region28: #{_lambda_.11} parent=0 // pred_region
    _
  $region29: #{_lambda_.11} parent=0 // pred_fallthru
    _

// kernel: _lambda_.13
$region0: #{_lambda_.13}
  #allocation0 [shape = 'u32[]', space=smem, size = 0x4, offset = 0x4, fixed_abs, tag = 'smem constant byte address 0x4 - core index']
  #allocation1 [shape = 'u32[144,128]{1,0:T(1,128)}', space=vmem, size = 0x12000, scoped, tag = 'internal scratch']
  #allocation2 [shape = 'f32[2,512]{1,0:T(2,128)}', space=vmem, size = 0x1000, scoped, tag = 'scratch operand']
  %s0 = inlined_call_operand.vmem [shape: bf16[2,4096], index: 0, kind: input, shape index: {}]
  %s1 = inlined_call_operand.vmem [shape: bf16[4096,512], index: 1, kind: input, shape index: {}]
  %s2 = inlined_call_operand.vmem [shape: f32[1,512], index: 2, kind: input, shape index: {}]
  %s3 = inlined_call_operand.vmem [shape: bf16[512,256], index: 3, kind: input, shape index: {}]
  %s4 = inlined_call_operand.vmem [shape: f32[1,256], index: 4, kind: input, shape index: {}]
  %s5 = inlined_call_operand.vmem [shape: bf16[256,128], index: 5, kind: input, shape index: {}]
  %s6 = inlined_call_operand.vmem [shape: f32[1,128], index: 6, kind: input, shape index: {}]
  %s7 = inlined_call_operand.hbm [shape: f32[2,128], index: 7, kind: output, shape index: {}]
  %s8 = sld [smem:[#allocation0]]
  $region69: #{_lambda_.13} parent=0
    _
  %s10 = ssub.s32 1, %s8
  %s11 = scalar_select 0, %s10, %s8
  $region1: #{_lambda_.13} parent=0
    #allocation3 [shape = 'u8[1024]{0}', space=vmem, size = 0x400, scoped, tag = 'output window, operand 0, single buffered']
    #allocation4 [shape = 's32[2]{0}', space=sflag, size = 0x8, scoped, tag = 'scoped memory for _lambda_.13']
    %12 = vsyncpa [#allocation4], 0
    loop: start=0, step=1, limit=6
    $region2: #{_lambda_.13} parent=1 // loop_pre_header
      _
    $region3: #{_lambda_.13} parent=1 // loop_header
      %s14 = sphi 0, %s18
      %p15 = scmp.ge.s32.totalorder %s14, 6
      %s22 = sphi 0, %s22
      %s24 = sphi 0, %s22
      %s25 = sphi 0, %s24
      %s39 = sphi 0, %s25
      %s45 = sphi 0, %s47
      %s48 = sphi 0, %s45
      %s49 = sphi 0, %s48
      %s65 = sphi 0, %s49
      %s69 = sphi 0, %s69
      %s71 = sphi 0, %s69
      %s72 = sphi 0, %s71
      %s86 = sphi 0, %s72
      %s90 = sphi 0, %s90
      %s92 = sphi 0, %s90
      %s93 = sphi 0, %s92
      %s107 = sphi 0, %s93
      %s111 = sphi 0, %s111
      %s113 = sphi 0, %s111
      %s114 = sphi 0, %s113
      %s128 = sphi 0, %s114
      %s132 = sphi 0, %s132
      %s134 = sphi 0, %s132
      %s135 = sphi 0, %s134
      %s149 = sphi 0, %s135
      %s153 = sphi 0, %s153
      %s155 = sphi 0, %s153
      %s156 = sphi 0, %s155
      %s170 = sphi 0, %s156
      %s174 = sphi 0, %s174
      %s176 = sphi 0, %s174
      %s177 = sphi 0, %s176
      %s191 = sphi 0, %s177
    $region4: #{_lambda_.13} parent=1 // loop_header_branch
      %17 = sbr.rel (%p15) target = $region8
    $region5: #{_lambda_.13} parent=1 // loop_body
      %s19 = ssub.s32 %s14, 1
      %s20 = ssub.s32 %s14, 2
      %s21 = sadd.s32 %s14, 1
      %s23 = sadd.s32 %s22, 1
      %p26 = scmp.eq.s32.totalorder %s14, 3
      %p27 = scmp.ne.s32.totalorder %s22, %s24
      %p28 = scmp.eq.s32.totalorder %s14, 0
      %p29 = por %p27, %p28
      %p30 = scmp.ne.s32.totalorder %s22, %s24
      %p31 = scmp.eq.s32.totalorder %s19, 3
      %p32 = por %p30, %p31
      %p33 = scmp.ne.s32.totalorder %s24, %s25
      %p34 = scmp.eq.s32.totalorder %s19, 0
      %p35 = por %p33, %p34
      %p36 = scmp.ne.s32.totalorder %s24, %s25
      %p37 = scmp.eq.s32.totalorder %s20, 3
      %p38 = por %p36, %p37
      %p40 = scmp.ne.s32.totalorder %s25, %s39
      %p41 = scmp.eq.s32.totalorder %s20, 0
      %p42 = por %p40, %p41
      %s43 = ssub.s32 %s14, %s21
      %p44 = scmp.eq.s32.totalorder %s43, 0
      %s46 = sadd.s32 %s45, 1
      %s47 = scalar_select %p44, %s45, %s46
      %p50 = pneg %p44
      %p51 = scmp.eq.s32.totalorder %s14, 3
      %p52 = por %p50, %p51
      %p53 = scmp.ne.s32.totalorder %s45, %s48
      %p54 = scmp.eq.s32.totalorder %s14, 0
      %p55 = por %p53, %p54
      %p56 = scmp.ne.s32.totalorder %s45, %s48
      %p57 = scmp.eq.s32.totalorder %s19, 3
      %p58 = por %p56, %p57
      %p59 = scmp.ne.s32.totalorder %s48, %s49
      %p60 = scmp.eq.s32.totalorder %s19, 0
      %p61 = por %p59, %p60
      %p62 = scmp.ne.s32.totalorder %s48, %s49
      %p63 = scmp.eq.s32.totalorder %s20, 3
      %p64 = por %p62, %p63
      %p66 = scmp.ne.s32.totalorder %s49, %s65
      %p67 = scmp.eq.s32.totalorder %s20, 0
      %p68 = por %p66, %p67
      %s70 = sadd.s32 %s69, 1
      %p73 = scmp.eq.s32.totalorder %s14, 3
      %p74 = scmp.ne.s32.totalorder %s69, %s71
      %p75 = scmp.eq.s32.totalorder %s14, 0
      %p76 = por %p74, %p75
      %p77 = scmp.ne.s32.totalorder %s69, %s71
      %p78 = scmp.eq.s32.totalorder %s19, 3
      %p79 = por %p77, %p78
      %p80 = scmp.ne.s32.totalorder %s71, %s72
      %p81 = scmp.eq.s32.totalorder %s19, 0
      %p82 = por %p80, %p81
      %p83 = scmp.ne.s32.totalorder %s71, %s72
      %p84 = scmp.eq.s32.totalorder %s20, 3
      %p85 = por %p83, %p84
      %p87 = scmp.ne.s32.totalorder %s72, %s86
      %p88 = scmp.eq.s32.totalorder %s20, 0
      %p89 = por %p87, %p88
      %s91 = sadd.s32 %s90, 1
      %p94 = scmp.eq.s32.totalorder %s14, 3
      %p95 = scmp.ne.s32.totalorder %s90, %s92
      %p96 = scmp.eq.s32.totalorder %s14, 0
      %p97 = por %p95, %p96
      %p98 = scmp.ne.s32.totalorder %s90, %s92
      %p99 = scmp.eq.s32.totalorder %s19, 3
      %p100 = por %p98, %p99
      %p101 = scmp.ne.s32.totalorder %s92, %s93
      %p102 = scmp.eq.s32.totalorder %s19, 0
      %p103 = por %p101, %p102
      %p104 = scmp.ne.s32.totalorder %s92, %s93
      %p105 = scmp.eq.s32.totalorder %s20, 3
      %p106 = por %p104, %p105
      %p108 = scmp.ne.s32.totalorder %s93, %s107
      %p109 = scmp.eq.s32.totalorder %s20, 0
      %p110 = por %p108, %p109
      %s112 = sadd.s32 %s111, 1
      %p115 = scmp.eq.s32.totalorder %s14, 3
      %p116 = scmp.ne.s32.totalorder %s111, %s113
      %p117 = scmp.eq.s32.totalorder %s14, 0
      %p118 = por %p116, %p117
      %p119 = scmp.ne.s32.totalorder %s111, %s113
      %p120 = scmp.eq.s32.totalorder %s19, 3
      %p121 = por %p119, %p120
      %p122 = scmp.ne.s32.totalorder %s113, %s114
      %p123 = scmp.eq.s32.totalorder %s19, 0
      %p124 = por %p122, %p123
      %p125 = scmp.ne.s32.totalorder %s113, %s114
      %p126 = scmp.eq.s32.totalorder %s20, 3
      %p127 = por %p125, %p126
      %p129 = scmp.ne.s32.totalorder %s114, %s128
      %p130 = scmp.eq.s32.totalorder %s20, 0
      %p131 = por %p129, %p130
      %s133 = sadd.s32 %s132, 1
      %p136 = scmp.eq.s32.totalorder %s14, 3
      %p137 = scmp.ne.s32.totalorder %s132, %s134
      %p138 = scmp.eq.s32.totalorder %s14, 0
      %p139 = por %p137, %p138
      %p140 = scmp.ne.s32.totalorder %s132, %s134
      %p141 = scmp.eq.s32.totalorder %s19, 3
      %p142 = por %p140, %p141
      %p143 = scmp.ne.s32.totalorder %s134, %s135
      %p144 = scmp.eq.s32.totalorder %s19, 0
      %p145 = por %p143, %p144
      %p146 = scmp.ne.s32.totalorder %s134, %s135
      %p147 = scmp.eq.s32.totalorder %s20, 3
      %p148 = por %p146, %p147
      %p150 = scmp.ne.s32.totalorder %s135, %s149
      %p151 = scmp.eq.s32.totalorder %s20, 0
      %p152 = por %p150, %p151
      %s154 = sadd.s32 %s153, 1
      %p157 = scmp.eq.s32.totalorder %s14, 3
      %p158 = scmp.ne.s32.totalorder %s153, %s155
      %p159 = scmp.eq.s32.totalorder %s14, 0
      %p160 = por %p158, %p159
      %p161 = scmp.ne.s32.totalorder %s153, %s155
      %p162 = scmp.eq.s32.totalorder %s19, 3
      %p163 = por %p161, %p162
      %p164 = scmp.ne.s32.totalorder %s155, %s156
      %p165 = scmp.eq.s32.totalorder %s19, 0
      %p166 = por %p164, %p165
      %p167 = scmp.ne.s32.totalorder %s155, %s156
      %p168 = scmp.eq.s32.totalorder %s20, 3
      %p169 = por %p167, %p168
      %p171 = scmp.ne.s32.totalorder %s156, %s170
      %p172 = scmp.eq.s32.totalorder %s20, 0
      %p173 = por %p171, %p172
      %s175 = sadd.s32 %s174, 1
      %p178 = scmp.eq.s32.totalorder %s14, 3
      %p179 = scmp.ne.s32.totalorder %s174, %s176
      %p180 = scmp.eq.s32.totalorder %s14, 0
      %p181 = por %p179, %p180
      %p182 = scmp.ne.s32.totalorder %s174, %s176
      %p183 = scmp.eq.s32.totalorder %s19, 3
      %p184 = por %p182, %p183
      %p185 = scmp.ne.s32.totalorder %s176, %s177
      %p186 = scmp.eq.s32.totalorder %s19, 0
      %p187 = por %p185, %p186
      %p188 = scmp.ne.s32.totalorder %s176, %s177
      %p189 = scmp.eq.s32.totalorder %s20, 3
      %p190 = por %p188, %p189
      %p192 = scmp.ne.s32.totalorder %s177, %s191
      %p193 = scmp.eq.s32.totalorder %s20, 0
      %p194 = por %p192, %p193
      %p195 = scmp.le.s32.totalorder 1, %s14
      %p196 = scmp.lt.s32.totalorder %s14, 5
      %p197 = pnand %p195, %p196
      %p198 = pneg %p197
      // Predicated region
      $region9: #{_lambda_.13} parent=5 // pred_check
        _
      $region10: #{_lambda_.13} parent=5 // pred_check_branch
        %200 = sbr.rel (%p197) target = $region12
      $region11: #{_lambda_.13} parent=5 // pred_region
        %s201 = ssub.s32 %s14, 1
        // Predicated region
        $region13: #{_lambda_.13} parent=11 // pred_check
          %p202 = pneg %p35
        $region14: #{_lambda_.13} parent=11 // pred_check_branch
          %204 = sbr.rel (%p202) target = $region16
        $region15: #{_lambda_.13} parent=11 // pred_region
          _
        $region16: #{_lambda_.13} parent=11 // pred_fallthru
          _
        // Predicated region
        $region17: #{_lambda_.13} parent=11 // pred_check
          %p205 = pneg %p82
        $region18: #{_lambda_.13} parent=11 // pred_check_branch
          %207 = sbr.rel (%p205) target = $region20
        $region19: #{_lambda_.13} parent=11 // pred_region
          _
        $region20: #{_lambda_.13} parent=11 // pred_fallthru
          _
        // Predicated region
        $region21: #{_lambda_.13} parent=11 // pred_check
          %p208 = pneg %p103
        $region22: #{_lambda_.13} parent=11 // pred_check_branch
          %210 = sbr.rel (%p208) target = $region24
        $region23: #{_lambda_.13} parent=11 // pred_region
          _
        $region24: #{_lambda_.13} parent=11 // pred_fallthru
          _
        // Predicated region
        $region25: #{_lambda_.13} parent=11 // pred_check
          %p211 = pneg %p124
        $region26: #{_lambda_.13} parent=11 // pred_check_branch
          %213 = sbr.rel (%p211) target = $region28
        $region27: #{_lambda_.13} parent=11 // pred_region
          _
        $region28: #{_lambda_.13} parent=11 // pred_fallthru
          _
        // Predicated region
        $region29: #{_lambda_.13} parent=11 // pred_check
          %p214 = pneg %p145
        $region30: #{_lambda_.13} parent=11 // pred_check_branch
          %216 = sbr.rel (%p214) target = $region32
        $region31: #{_lambda_.13} parent=11 // pred_region
          _
        $region32: #{_lambda_.13} parent=11 // pred_fallthru
          _
        // Predicated region
        $region33: #{_lambda_.13} parent=11 // pred_check
          %p217 = pneg %p166
        $region34: #{_lambda_.13} parent=11 // pred_check_branch
          %219 = sbr.rel (%p217) target = $region36
        $region35: #{_lambda_.13} parent=11 // pred_region
          _
        $region36: #{_lambda_.13} parent=11 // pred_fallthru
          _
      $region12: #{_lambda_.13} parent=5 // pred_fallthru
        _
      %p220 = scmp.lt.s32.totalorder %s14, 4
      // Predicated region
      $region37: #{_lambda_.13} parent=5 // pred_check
        %p221 = pneg %p220
      $region38: #{_lambda_.13} parent=5 // pred_check_branch
        %223 = sbr.rel (%p221) target = $region40
      $region39: #{_lambda_.13} parent=5 // pred_region
        // Predicated region
        $region41: #{_lambda_.13} parent=39 // pred_check
          %p224 = pneg %p55
        $region42: #{_lambda_.13} parent=39 // pred_check_branch
          %226 = sbr.rel (%p224) target = $region44
        $region43: #{_lambda_.13} parent=39 // pred_region
          %s227 = smul.u32 128, %s14
          %p228 = scmp.lt.s32.totalorder %s227, 511
          %s229 = scalar_select %p228, %s227, 511
          %s230 = smul.addr %s229, 4
          %s231 = smul.addr %s230, 4
          %s232 = scalar_lea.vmem %s1, %s231
          %s233 = smul.u32 128, %s14
        $region44: #{_lambda_.13} parent=39 // pred_fallthru
          _
      $region40: #{_lambda_.13} parent=5 // pred_fallthru
        _
      %p234 = scmp.le.s32.totalorder 1, %s14
      %p235 = scmp.lt.s32.totalorder %s14, 5
      %p236 = pnand %p234, %p235
      %p237 = pneg %p236
      // Predicated region
      $region45: #{_lambda_.13} parent=5 // pred_check
        _
      $region46: #{_lambda_.13} parent=5 // pred_check_branch
        %239 = sbr.rel (%p236) target = $region48
      $region47: #{_lambda_.13} parent=5 // pred_region
        %s240 = ssub.s32 %s14, 1
        %p241 = pneg %p35
        %p242 = pneg %p32
        %s243 = smul.u32 128, %s19
        %p244 = scmp.lt.s32.totalorder %s243, 511
        %s245 = scalar_select %p244, %s243, 511
        %s246 = smul.addr %s245, 4
        %s247 = smul.addr %s246, 4
        %s248 = scalar_lea.vmem %s1, %s247
        %p249 = pneg %p61
        %p250 = pneg %p58
        %p251 = pneg %p82
        %p252 = pneg %p79
        %p253 = pneg %p103
        %p254 = pneg %p100
        %p255 = pneg %p124
        %p256 = pneg %p121
        %p257 = pneg %p145
        %p258 = pneg %p142
        %p259 = pneg %p166
        %p260 = pneg %p163
        %p261 = pneg %p187
        %p262 = pneg %p184
        %s263 = smul.u32 128, %s19
        %p264 = scmp.lt.s32.totalorder %s263, 511
        %s265 = scalar_select %p264, %s263, 511
        %s266 = smul.addr %s265, 4
        %s267 = smul.addr %s266, 4
        %s268 = scalar_lea.vmem %s1, %s267
        %s269 = smul.u32 128, %s19
        %p271 = scmp.eq.s32.totalorder %s19, 0
        // Predicated region
        $region49: #{_lambda_.13} parent=47 // pred_check
          %p272 = pneg %p271
        $region50: #{_lambda_.13} parent=47 // pred_check_branch
          %274 = sbr.rel (%p272) target = $region52
        $region51: #{_lambda_.13} parent=47 // pred_region
          %275 = vst [vmem:[#allocation2] sm:$0xff] 0.0
        $region52: #{_lambda_.13} parent=47 // pred_fallthru
          _
        %s276 = smul.u32 %s19, 1024
        %v277 = vld [vmem:[#allocation2] sm:$0xff]
        %s278 = sshra.s32 %s276, 7
        %s279 = sand.u32 %s276, 127
        %s280 = scalar_lea.vmem %s0, %s278
        %v281 = vld [vmem:[%s280] sm:$0xff]
        %v282 = vld [vmem:[%s268] sm:$0xff]
        %v283 = vld [vmem:[%s268 + $0x8] sm:$0xff]
        %v284 = vld [vmem:[%s268 + $0x10] sm:$0xff]
        %v285 = vld [vmem:[%s268 + $0x18] sm:$0xff]
        %v286 = vld [vmem:[%s268 + $0x20] sm:$0xff]
        %v287 = vld [vmem:[%s268 + $0x28] sm:$0xff]
        %v288 = vld [vmem:[%s268 + $0x30] sm:$0xff]
        %v289 = vld [vmem:[%s268 + $0x38] sm:$0xff]
        %v290 = vld [vmem:[%s268 + $0x40] sm:$0xff]
        %v291 = vld [vmem:[%s268 + $0x48] sm:$0xff]
        %v292 = vld [vmem:[%s268 + $0x50] sm:$0xff]
        %v293 = vld [vmem:[%s268 + $0x58] sm:$0xff]
        %v294 = vld [vmem:[%s268 + $0x60] sm:$0xff]
        %v295 = vld [vmem:[%s268 + $0x68] sm:$0xff]
        %v296 = vld [vmem:[%s268 + $0x70] sm:$0xff]
        %v297 = vld [vmem:[%s268 + $0x78] sm:$0xff]
        %v298 = vld [vmem:[%s268 + $0x80] sm:$0xff]
        %v299 = vld [vmem:[%s268 + $0x88] sm:$0xff]
        %v300 = vld [vmem:[%s268 + $0x90] sm:$0xff]
        %v301 = vld [vmem:[%s268 + $0x98] sm:$0xff]
        %v302 = vld [vmem:[%s268 + $0xa0] sm:$0xff]
        %v303 = vld [vmem:[%s268 + $0xa8] sm:$0xff]
        %v304 = vld [vmem:[%s268 + $0xb0] sm:$0xff]
        %v305 = vld [vmem:[%s268 + $0xb8] sm:$0xff]
        %v306 = vld [vmem:[%s268 + $0xc0] sm:$0xff]
        %v307 = vld [vmem:[%s268 + $0xc8] sm:$0xff]
        %v308 = vld [vmem:[%s268 + $0xd0] sm:$0xff]
        %v309 = vld [vmem:[%s268 + $0xd8] sm:$0xff]
        %v310 = vld [vmem:[%s268 + $0xe0] sm:$0xff]
        %v311 = vld [vmem:[%s268 + $0xe8] sm:$0xff]
        %v312 = vld [vmem:[%s268 + $0xf0] sm:$0xff]
        %v313 = vld [vmem:[%s268 + $0xf8] sm:$0xff]
        %v314 = vld [vmem:[%s268 + $0x100] sm:$0xff]
        %v315 = vld [vmem:[%s268 + $0x108] sm:$0xff]
        %v316 = vld [vmem:[%s268 + $0x110] sm:$0xff]
        %v317 = vld [vmem:[%s268 + $0x118] sm:$0xff]
        %v318 = vld [vmem:[%s268 + $0x120] sm:$0xff]
        %v319 = vld [vmem:[%s268 + $0x128] sm:$0xff]
        %v320 = vld [vmem:[%s268 + $0x130] sm:$0xff]
        %v321 = vld [vmem:[%s268 + $0x138] sm:$0xff]
        %v322 = vld [vmem:[%s268 + $0x140] sm:$0xff]
        %v323 = vld [vmem:[%s268 + $0x148] sm:$0xff]
        %v324 = vld [vmem:[%s268 + $0x150] sm:$0xff]
        %v325 = vld [vmem:[%s268 + $0x158] sm:$0xff]
        %v326 = vld [vmem:[%s268 + $0x160] sm:$0xff]
        %v327 = vld [vmem:[%s268 + $0x168] sm:$0xff]
        %v328 = vld [vmem:[%s268 + $0x170] sm:$0xff]
        %v329 = vld [vmem:[%s268 + $0x178] sm:$0xff]
        %v330 = vld [vmem:[%s268 + $0x180] sm:$0xff]
        %v331 = vld [vmem:[%s268 + $0x188] sm:$0xff]
        %v332 = vld [vmem:[%s268 + $0x190] sm:$0xff]
        %v333 = vld [vmem:[%s268 + $0x198] sm:$0xff]
        %v334 = vld [vmem:[%s268 + $0x1a0] sm:$0xff]
        %v335 = vld [vmem:[%s268 + $0x1a8] sm:$0xff]
        %v336 = vld [vmem:[%s268 + $0x1b0] sm:$0xff]
        %v337 = vld [vmem:[%s268 + $0x1b8] sm:$0xff]
        %v338 = vld [vmem:[%s268 + $0x1c0] sm:$0xff]
        %v339 = vld [vmem:[%s268 + $0x1c8] sm:$0xff]
        %v340 = vld [vmem:[%s268 + $0x1d0] sm:$0xff]
        %v341 = vld [vmem:[%s268 + $0x1d8] sm:$0xff]
        %v342 = vld [vmem:[%s268 + $0x1e0] sm:$0xff]
        %v343 = vld [vmem:[%s268 + $0x1e8] sm:$0xff]
        %v344 = vld [vmem:[%s268 + $0x1f0] sm:$0xff]
        %v345 = vld [vmem:[%s268 + $0x1f8] sm:$0xff]
        %v346 = vld [vmem:[%s268 + $0x200] sm:$0xff]
        %v347 = vld [vmem:[%s268 + $0x208] sm:$0xff]
        %v348 = vld [vmem:[%s268 + $0x210] sm:$0xff]
        %v349 = vld [vmem:[%s268 + $0x218] sm:$0xff]
        %v350 = vld [vmem:[%s268 + $0x220] sm:$0xff]
        %v351 = vld [vmem:[%s268 + $0x228] sm:$0xff]
        %v352 = vld [vmem:[%s268 + $0x230] sm:$0xff]
        %v353 = vld [vmem:[%s268 + $0x238] sm:$0xff]
        %v354 = vld [vmem:[%s268 + $0x240] sm:$0xff]
        %v355 = vld [vmem:[%s268 + $0x248] sm:$0xff]
        %v356 = vld [vmem:[%s268 + $0x250] sm:$0xff]
        %v357 = vld [vmem:[%s268 + $0x258] sm:$0xff]
        %v358 = vld [vmem:[%s268 + $0x260] sm:$0xff]
        %v359 = vld [vmem:[%s268 + $0x268] sm:$0xff]
        %v360 = vld [vmem:[%s268 + $0x270] sm:$0xff]
        %v361 = vld [vmem:[%s268 + $0x278] sm:$0xff]
        %v362 = vld [vmem:[%s268 + $0x280] sm:$0xff]
        %v363 = vld [vmem:[%s268 + $0x288] sm:$0xff]
        %v364 = vld [vmem:[%s268 + $0x290] sm:$0xff]
        %v365 = vld [vmem:[%s268 + $0x298] sm:$0xff]
        %v366 = vld [vmem:[%s268 + $0x2a0] sm:$0xff]
        %v367 = vld [vmem:[%s268 + $0x2a8] sm:$0xff]
        %v368 = vld [vmem:[%s268 + $0x2b0] sm:$0xff]
        %v369 = vld [vmem:[%s268 + $0x2b8] sm:$0xff]
        %v370 = vld [vmem:[%s268 + $0x2c0] sm:$0xff]
        %v371 = vld [vmem:[%s268 + $0x2c8] sm:$0xff]
        %v372 = vld [vmem:[%s268 + $0x2d0] sm:$0xff]
        %v373 = vld [vmem:[%s268 + $0x2d8] sm:$0xff]
        %v374 = vld [vmem:[%s268 + $0x2e0] sm:$0xff]
        %v375 = vld [vmem:[%s268 + $0x2e8] sm:$0xff]
        %v376 = vld [vmem:[%s268 + $0x2f0] sm:$0xff]
        %v377 = vld [vmem:[%s268 + $0x2f8] sm:$0xff]
        %v378 = vld [vmem:[%s268 + $0x300] sm:$0xff]
        %v379 = vld [vmem:[%s268 + $0x308] sm:$0xff]
        %v380 = vld [vmem:[%s268 + $0x310] sm:$0xff]
        %v381 = vld [vmem:[%s268 + $0x318] sm:$0xff]
        %v382 = vld [vmem:[%s268 + $0x320] sm:$0xff]
        %v383 = vld [vmem:[%s268 + $0x328] sm:$0xff]
        %v384 = vld [vmem:[%s268 + $0x330] sm:$0xff]
        %v385 = vld [vmem:[%s268 + $0x338] sm:$0xff]
        %v386 = vld [vmem:[%s268 + $0x340] sm:$0xff]
        %v387 = vld [vmem:[%s268 + $0x348] sm:$0xff]
        %v388 = vld [vmem:[%s268 + $0x350] sm:$0xff]
        %v389 = vld [vmem:[%s268 + $0x358] sm:$0xff]
        %v390 = vld [vmem:[%s268 + $0x360] sm:$0xff]
        %v391 = vld [vmem:[%s268 + $0x368] sm:$0xff]
        %v392 = vld [vmem:[%s268 + $0x370] sm:$0xff]
        %v393 = vld [vmem:[%s268 + $0x378] sm:$0xff]
        %v394 = vld [vmem:[%s268 + $0x380] sm:$0xff]
        %v395 = vld [vmem:[%s268 + $0x388] sm:$0xff]
        %v396 = vld [vmem:[%s268 + $0x390] sm:$0xff]
        %v397 = vld [vmem:[%s268 + $0x398] sm:$0xff]
        %v398 = vld [vmem:[%s268 + $0x3a0] sm:$0xff]
        %v399 = vld [vmem:[%s268 + $0x3a8] sm:$0xff]
        %v400 = vld [vmem:[%s268 + $0x3b0] sm:$0xff]
        %v401 = vld [vmem:[%s268 + $0x3b8] sm:$0xff]
        %v402 = vld [vmem:[%s268 + $0x3c0] sm:$0xff]
        %v403 = vld [vmem:[%s268 + $0x3c8] sm:$0xff]
        %v404 = vld [vmem:[%s268 + $0x3d0] sm:$0xff]
        %v405 = vld [vmem:[%s268 + $0x3d8] sm:$0xff]
        %v406 = vld [vmem:[%s268 + $0x3e0] sm:$0xff]
        %v407 = vld [vmem:[%s268 + $0x3e8] sm:$0xff]
        %v408 = vld [vmem:[%s268 + $0x3f0] sm:$0xff]
        %v409 = vld [vmem:[%s268 + $0x3f8] sm:$0xff]
        %v410 = vld [vmem:[%s268 + $0x400] sm:$0xff]
        %v411 = vld [vmem:[%s268 + $0x408] sm:$0xff]
        %v412 = vld [vmem:[%s268 + $0x410] sm:$0xff]
        %v413 = vld [vmem:[%s268 + $0x418] sm:$0xff]
        %v414 = vld [vmem:[%s268 + $0x420] sm:$0xff]
        %v415 = vld [vmem:[%s268 + $0x428] sm:$0xff]
        %v416 = vld [vmem:[%s268 + $0x430] sm:$0xff]
        %v417 = vld [vmem:[%s268 + $0x438] sm:$0xff]
        %v418 = vld [vmem:[%s268 + $0x440] sm:$0xff]
        %v419 = vld [vmem:[%s268 + $0x448] sm:$0xff]
        %v420 = vld [vmem:[%s268 + $0x450] sm:$0xff]
        %v421 = vld [vmem:[%s268 + $0x458] sm:$0xff]
        %v422 = vld [vmem:[%s268 + $0x460] sm:$0xff]
        %v423 = vld [vmem:[%s268 + $0x468] sm:$0xff]
        %v424 = vld [vmem:[%s268 + $0x470] sm:$0xff]
        %v425 = vld [vmem:[%s268 + $0x478] sm:$0xff]
        %v426 = vld [vmem:[%s268 + $0x480] sm:$0xff]
        %v427 = vld [vmem:[%s268 + $0x488] sm:$0xff]
        %v428 = vld [vmem:[%s268 + $0x490] sm:$0xff]
        %v429 = vld [vmem:[%s268 + $0x498] sm:$0xff]
        %v430 = vld [vmem:[%s268 + $0x4a0] sm:$0xff]
        %v431 = vld [vmem:[%s268 + $0x4a8] sm:$0xff]
        %v432 = vld [vmem:[%s268 + $0x4b0] sm:$0xff]
        %v433 = vld [vmem:[%s268 + $0x4b8] sm:$0xff]
        %v434 = vld [vmem:[%s268 + $0x4c0] sm:$0xff]
        %v435 = vld [vmem:[%s268 + $0x4c8] sm:$0xff]
        %v436 = vld [vmem:[%s268 + $0x4d0] sm:$0xff]
        %v437 = vld [vmem:[%s268 + $0x4d8] sm:$0xff]
        %v438 = vld [vmem:[%s268 + $0x4e0] sm:$0xff]
        %v439 = vld [vmem:[%s268 + $0x4e8] sm:$0xff]
        %v440 = vld [vmem:[%s268 + $0x4f0] sm:$0xff]
        %v441 = vld [vmem:[%s268 + $0x4f8] sm:$0xff]
        %v442 = vld [vmem:[%s268 + $0x500] sm:$0xff]
        %v443 = vld [vmem:[%s268 + $0x508] sm:$0xff]
        %v444 = vld [vmem:[%s268 + $0x510] sm:$0xff]
        %v445 = vld [vmem:[%s268 + $0x518] sm:$0xff]
        %v446 = vld [vmem:[%s268 + $0x520] sm:$0xff]
        %v447 = vld [vmem:[%s268 + $0x528] sm:$0xff]
        %v448 = vld [vmem:[%s268 + $0x530] sm:$0xff]
        %v449 = vld [vmem:[%s268 + $0x538] sm:$0xff]
        %v450 = vld [vmem:[%s268 + $0x540] sm:$0xff]
        %v451 = vld [vmem:[%s268 + $0x548] sm:$0xff]
        %v452 = vld [vmem:[%s268 + $0x550] sm:$0xff]
        %v453 = vld [vmem:[%s268 + $0x558] sm:$0xff]
        %v454 = vld [vmem:[%s268 + $0x560] sm:$0xff]
        %v455 = vld [vmem:[%s268 + $0x568] sm:$0xff]
        %v456 = vld [vmem:[%s268 + $0x570] sm:$0xff]
        %v457 = vld [vmem:[%s268 + $0x578] sm:$0xff]
        %v458 = vld [vmem:[%s268 + $0x580] sm:$0xff]
        %v459 = vld [vmem:[%s268 + $0x588] sm:$0xff]
        %v460 = vld [vmem:[%s268 + $0x590] sm:$0xff]
        %v461 = vld [vmem:[%s268 + $0x598] sm:$0xff]
        %v462 = vld [vmem:[%s268 + $0x5a0] sm:$0xff]
        %v463 = vld [vmem:[%s268 + $0x5a8] sm:$0xff]
        %v464 = vld [vmem:[%s268 + $0x5b0] sm:$0xff]
        %v465 = vld [vmem:[%s268 + $0x5b8] sm:$0xff]
        %v466 = vld [vmem:[%s268 + $0x5c0] sm:$0xff]
        %v467 = vld [vmem:[%s268 + $0x5c8] sm:$0xff]
        %v468 = vld [vmem:[%s268 + $0x5d0] sm:$0xff]
        %v469 = vld [vmem:[%s268 + $0x5d8] sm:$0xff]
        %v470 = vld [vmem:[%s268 + $0x5e0] sm:$0xff]
        %v471 = vld [vmem:[%s268 + $0x5e8] sm:$0xff]
        %v472 = vld [vmem:[%s268 + $0x5f0] sm:$0xff]
        %v473 = vld [vmem:[%s268 + $0x5f8] sm:$0xff]
        %v474 = vld [vmem:[%s268 + $0x600] sm:$0xff]
        %v475 = vld [vmem:[%s268 + $0x608] sm:$0xff]
        %v476 = vld [vmem:[%s268 + $0x610] sm:$0xff]
        %v477 = vld [vmem:[%s268 + $0x618] sm:$0xff]
        %v478 = vld [vmem:[%s268 + $0x620] sm:$0xff]
        %v479 = vld [vmem:[%s268 + $0x628] sm:$0xff]
        %v480 = vld [vmem:[%s268 + $0x630] sm:$0xff]
        %v481 = vld [vmem:[%s268 + $0x638] sm:$0xff]
        %v482 = vld [vmem:[%s268 + $0x640] sm:$0xff]
        %v483 = vld [vmem:[%s268 + $0x648] sm:$0xff]
        %v484 = vld [vmem:[%s268 + $0x650] sm:$0xff]
        %v485 = vld [vmem:[%s268 + $0x658] sm:$0xff]
        %v486 = vld [vmem:[%s268 + $0x660] sm:$0xff]
        %v487 = vld [vmem:[%s268 + $0x668] sm:$0xff]
        %v488 = vld [vmem:[%s268 + $0x670] sm:$0xff]
        %v489 = vld [vmem:[%s268 + $0x678] sm:$0xff]
        %v490 = vld [vmem:[%s268 + $0x680] sm:$0xff]
        %v491 = vld [vmem:[%s268 + $0x688] sm:$0xff]
        %v492 = vld [vmem:[%s268 + $0x690] sm:$0xff]
        %v493 = vld [vmem:[%s268 + $0x698] sm:$0xff]
        %v494 = vld [vmem:[%s268 + $0x6a0] sm:$0xff]
        %v495 = vld [vmem:[%s268 + $0x6a8] sm:$0xff]
        %v496 = vld [vmem:[%s268 + $0x6b0] sm:$0xff]
        %v497 = vld [vmem:[%s268 + $0x6b8] sm:$0xff]
        %v498 = vld [vmem:[%s268 + $0x6c0] sm:$0xff]
        %v499 = vld [vmem:[%s268 + $0x6c8] sm:$0xff]
        %v500 = vld [vmem:[%s268 + $0x6d0] sm:$0xff]
        %v501 = vld [vmem:[%s268 + $0x6d8] sm:$0xff]
        %v502 = vld [vmem:[%s268 + $0x6e0] sm:$0xff]
        %v503 = vld [vmem:[%s268 + $0x6e8] sm:$0xff]
        %v504 = vld [vmem:[%s268 + $0x6f0] sm:$0xff]
        %v505 = vld [vmem:[%s268 + $0x6f8] sm:$0xff]
        %v506 = vld [vmem:[%s268 + $0x700] sm:$0xff]
        %v507 = vld [vmem:[%s268 + $0x708] sm:$0xff]
        %v508 = vld [vmem:[%s268 + $0x710] sm:$0xff]
        %v509 = vld [vmem:[%s268 + $0x718] sm:$0xff]
        %v510 = vld [vmem:[%s268 + $0x720] sm:$0xff]
        %v511 = vld [vmem:[%s268 + $0x728] sm:$0xff]
        %v512 = vld [vmem:[%s268 + $0x730] sm:$0xff]
        %v513 = vld [vmem:[%s268 + $0x738] sm:$0xff]
        %v514 = vld [vmem:[%s268 + $0x740] sm:$0xff]
        %v515 = vld [vmem:[%s268 + $0x748] sm:$0xff]
        %v516 = vld [vmem:[%s268 + $0x750] sm:$0xff]
        %v517 = vld [vmem:[%s268 + $0x758] sm:$0xff]
        %v518 = vld [vmem:[%s268 + $0x760] sm:$0xff]
        %v519 = vld [vmem:[%s268 + $0x768] sm:$0xff]
        %v520 = vld [vmem:[%s268 + $0x770] sm:$0xff]
        %v521 = vld [vmem:[%s268 + $0x778] sm:$0xff]
        %v522 = vld [vmem:[%s268 + $0x780] sm:$0xff]
        %v523 = vld [vmem:[%s268 + $0x788] sm:$0xff]
        %v524 = vld [vmem:[%s268 + $0x790] sm:$0xff]
        %v525 = vld [vmem:[%s268 + $0x798] sm:$0xff]
        %v526 = vld [vmem:[%s268 + $0x7a0] sm:$0xff]
        %v527 = vld [vmem:[%s268 + $0x7a8] sm:$0xff]
        %v528 = vld [vmem:[%s268 + $0x7b0] sm:$0xff]
        %v529 = vld [vmem:[%s268 + $0x7b8] sm:$0xff]
        %v530 = vld [vmem:[%s268 + $0x7c0] sm:$0xff]
        %v531 = vld [vmem:[%s268 + $0x7c8] sm:$0xff]
        %v532 = vld [vmem:[%s268 + $0x7d0] sm:$0xff]
        %v533 = vld [vmem:[%s268 + $0x7d8] sm:$0xff]
        %v534 = vld [vmem:[%s268 + $0x7e0] sm:$0xff]
        %v535 = vld [vmem:[%s268 + $0x7e8] sm:$0xff]
        %v536 = vld [vmem:[%s268 + $0x7f0] sm:$0xff]
        %v537 = vld [vmem:[%s268 + $0x7f8] sm:$0xff]
        %v539 = vcombine.high %v281, %v281
        %v541 = vunpack.c.l.s4 1966171168
        %v542 = vunpack.c.0.s8 %v541
        %v543 = vlaneseq
        %v544 = vshrl.u32 %v543, 7
        %v545 = vsub.s32 %v542, %v544
        %v546 = vrot.slane %v281, %v545
        %v548 = vunpack.c.l.s4 1966171168
        %v549 = vunpack.c.0.s8 %v548
        %v550 = vlaneseq
        %v551 = vshrl.u32 %v550, 7
        %v552 = vsub.s32 %v549, %v551
        %v553 = vrot.slane %v539, %v552
        %v554 = vcombine.high %v546, %v546
        %v555 = vcombine.high %v553, %v553
        %v557 = vunpack.c.l.s4 1966171168
        %v558 = vunpack.c.0.s8 %v557
        %v559 = vlaneseq
        %v560 = vshrl.u32 %v559, 7
        %v561 = vsub.s32 %v558, %v560
        %v562 = vrot.slane %v546, %v561
        %v564 = vunpack.c.l.s4 1966171168
        %v565 = vunpack.c.0.s8 %v564
        %v566 = vlaneseq
        %v567 = vshrl.u32 %v566, 7
        %v568 = vsub.s32 %v565, %v567
        %v569 = vrot.slane %v553, %v568
        %v571 = vunpack.c.l.s4 1966171168
        %v572 = vunpack.c.0.s8 %v571
        %v573 = vlaneseq
        %v574 = vshrl.u32 %v573, 7
        %v575 = vsub.s32 %v572, %v574
        %v576 = vrot.slane %v554, %v575
        %v578 = vunpack.c.l.s4 1966171168
        %v579 = vunpack.c.0.s8 %v578
        %v580 = vlaneseq
        %v581 = vshrl.u32 %v580, 7
        %v582 = vsub.s32 %v579, %v581
        %v583 = vrot.slane %v555, %v582
        %v584 = vcombine.high %v562, %v562
        %v585 = vcombine.high %v569, %v569
        %v586 = vcombine.high %v576, %v576
        %v587 = vcombine.high %v583, %v583
        %v852 = vunpack.c.l.b16 %v282
        %v853 = vunpack.c.h.b16 %v282
        %v854 = vunpack.c.l.b16 %v283
        %v855 = vunpack.c.h.b16 %v283
        %v856 = vunpack.c.l.b16 %v284
        %v857 = vunpack.c.h.b16 %v284
        %v858 = vunpack.c.l.b16 %v285
        %v859 = vunpack.c.h.b16 %v285
        %v860 = vunpack.c.l.b16 %v286
        %v861 = vunpack.c.h.b16 %v286
        %v862 = vunpack.c.l.b16 %v287
        %v863 = vunpack.c.h.b16 %v287
        %v864 = vunpack.c.l.b16 %v288
        %v865 = vunpack.c.h.b16 %v288
        %v866 = vunpack.c.l.b16 %v289
        %v867 = vunpack.c.h.b16 %v289
        %v868 = vunpack.c.l.b16 %v290
        %v869 = vunpack.c.h.b16 %v290
        %v870 = vunpack.c.l.b16 %v291
        %v871 = vunpack.c.h.b16 %v291
        %v872 = vunpack.c.l.b16 %v292
        %v873 = vunpack.c.h.b16 %v292
        %v874 = vunpack.c.l.b16 %v293
        %v875 = vunpack.c.h.b16 %v293
        %v876 = vunpack.c.l.b16 %v294
        %v877 = vunpack.c.h.b16 %v294
        %v878 = vunpack.c.l.b16 %v295
        %v879 = vunpack.c.h.b16 %v295
        %v880 = vunpack.c.l.b16 %v296
        %v881 = vunpack.c.h.b16 %v296
        %v882 = vunpack.c.l.b16 %v297
        %v883 = vunpack.c.h.b16 %v297
        %v884 = vunpack.c.l.b16 %v298
        %v885 = vunpack.c.h.b16 %v298
        %v886 = vunpack.c.l.b16 %v299
        %v887 = vunpack.c.h.b16 %v299
        %v888 = vunpack.c.l.b16 %v300
        %v889 = vunpack.c.h.b16 %v300
        %v890 = vunpack.c.l.b16 %v301
        %v891 = vunpack.c.h.b16 %v301
        %v892 = vunpack.c.l.b16 %v302
        %v893 = vunpack.c.h.b16 %v302
        %v894 = vunpack.c.l.b16 %v303
        %v895 = vunpack.c.h.b16 %v303
        %v896 = vunpack.c.l.b16 %v304
        %v897 = vunpack.c.h.b16 %v304
        %v898 = vunpack.c.l.b16 %v305
        %v899 = vunpack.c.h.b16 %v305
        %v900 = vunpack.c.l.b16 %v306
        %v901 = vunpack.c.h.b16 %v306
        %v902 = vunpack.c.l.b16 %v307
        %v903 = vunpack.c.h.b16 %v307
        %v904 = vunpack.c.l.b16 %v308
        %v905 = vunpack.c.h.b16 %v308
        %v906 = vunpack.c.l.b16 %v309
        %v907 = vunpack.c.h.b16 %v309
        %v908 = vunpack.c.l.b16 %v310
        %v909 = vunpack.c.h.b16 %v310
        %v910 = vunpack.c.l.b16 %v311
        %v911 = vunpack.c.h.b16 %v311
        %v912 = vunpack.c.l.b16 %v312
        %v913 = vunpack.c.h.b16 %v312
        %v914 = vunpack.c.l.b16 %v313
        %v915 = vunpack.c.h.b16 %v313
        %v916 = vunpack.c.l.b16 %v314
        %v917 = vunpack.c.h.b16 %v314
        %v918 = vunpack.c.l.b16 %v315
        %v919 = vunpack.c.h.b16 %v315
        %v920 = vunpack.c.l.b16 %v316
        %v921 = vunpack.c.h.b16 %v316
        %v922 = vunpack.c.l.b16 %v317
        %v923 = vunpack.c.h.b16 %v317
        %v924 = vunpack.c.l.b16 %v318
        %v925 = vunpack.c.h.b16 %v318
        %v926 = vunpack.c.l.b16 %v319
        %v927 = vunpack.c.h.b16 %v319
        %v928 = vunpack.c.l.b16 %v320
        %v929 = vunpack.c.h.b16 %v320
        %v930 = vunpack.c.l.b16 %v321
        %v931 = vunpack.c.h.b16 %v321
        %v932 = vunpack.c.l.b16 %v322
        %v933 = vunpack.c.h.b16 %v322
        %v934 = vunpack.c.l.b16 %v323
        %v935 = vunpack.c.h.b16 %v323
        %v936 = vunpack.c.l.b16 %v324
        %v937 = vunpack.c.h.b16 %v324
        %v938 = vunpack.c.l.b16 %v325
        %v939 = vunpack.c.h.b16 %v325
        %v940 = vunpack.c.l.b16 %v326
        %v941 = vunpack.c.h.b16 %v326
        %v942 = vunpack.c.l.b16 %v327
        %v943 = vunpack.c.h.b16 %v327
        %v944 = vunpack.c.l.b16 %v328
        %v945 = vunpack.c.h.b16 %v328
        %v946 = vunpack.c.l.b16 %v329
        %v947 = vunpack.c.h.b16 %v329
        %v948 = vunpack.c.l.b16 %v330
        %v949 = vunpack.c.h.b16 %v330
        %v950 = vunpack.c.l.b16 %v331
        %v951 = vunpack.c.h.b16 %v331
        %v952 = vunpack.c.l.b16 %v332
        %v953 = vunpack.c.h.b16 %v332
        %v954 = vunpack.c.l.b16 %v333
        %v955 = vunpack.c.h.b16 %v333
        %v956 = vunpack.c.l.b16 %v334
        %v957 = vunpack.c.h.b16 %v334
        %v958 = vunpack.c.l.b16 %v335
        %v959 = vunpack.c.h.b16 %v335
        %v960 = vunpack.c.l.b16 %v336
        %v961 = vunpack.c.h.b16 %v336
        %v962 = vunpack.c.l.b16 %v337
        %v963 = vunpack.c.h.b16 %v337
        %v964 = vunpack.c.l.b16 %v338
        %v965 = vunpack.c.h.b16 %v338
        %v966 = vunpack.c.l.b16 %v339
        %v967 = vunpack.c.h.b16 %v339
        %v968 = vunpack.c.l.b16 %v340
        %v969 = vunpack.c.h.b16 %v340
        %v970 = vunpack.c.l.b16 %v341
        %v971 = vunpack.c.h.b16 %v341
        %v972 = vunpack.c.l.b16 %v342
        %v973 = vunpack.c.h.b16 %v342
        %v974 = vunpack.c.l.b16 %v343
        %v975 = vunpack.c.h.b16 %v343
        %v976 = vunpack.c.l.b16 %v344
        %v977 = vunpack.c.h.b16 %v344
        %v978 = vunpack.c.l.b16 %v345
        %v979 = vunpack.c.h.b16 %v345
        %v980 = vunpack.c.l.b16 %v346
        %v981 = vunpack.c.h.b16 %v346
        %v982 = vunpack.c.l.b16 %v347
        %v983 = vunpack.c.h.b16 %v347
        %v984 = vunpack.c.l.b16 %v348
        %v985 = vunpack.c.h.b16 %v348
        %v986 = vunpack.c.l.b16 %v349
        %v987 = vunpack.c.h.b16 %v349
        %v988 = vunpack.c.l.b16 %v350
        %v989 = vunpack.c.h.b16 %v350
        %v990 = vunpack.c.l.b16 %v351
        %v991 = vunpack.c.h.b16 %v351
        %v992 = vunpack.c.l.b16 %v352
        %v993 = vunpack.c.h.b16 %v352
        %v994 = vunpack.c.l.b16 %v353
        %v995 = vunpack.c.h.b16 %v353
        %v996 = vunpack.c.l.b16 %v354
        %v997 = vunpack.c.h.b16 %v354
        %v998 = vunpack.c.l.b16 %v355
        %v999 = vunpack.c.h.b16 %v355
        %v1000 = vunpack.c.l.b16 %v356
        %v1001 = vunpack.c.h.b16 %v356
        %v1002 = vunpack.c.l.b16 %v357
        %v1003 = vunpack.c.h.b16 %v357
        %v1004 = vunpack.c.l.b16 %v358
        %v1005 = vunpack.c.h.b16 %v358
        %v1006 = vunpack.c.l.b16 %v359
        %v1007 = vunpack.c.h.b16 %v359
        %v1008 = vunpack.c.l.b16 %v360
        %v1009 = vunpack.c.h.b16 %v360
        %v1010 = vunpack.c.l.b16 %v361
        %v1011 = vunpack.c.h.b16 %v361
        %v1012 = vunpack.c.l.b16 %v362
        %v1013 = vunpack.c.h.b16 %v362
        %v1014 = vunpack.c.l.b16 %v363
        %v1015 = vunpack.c.h.b16 %v363
        %v1016 = vunpack.c.l.b16 %v364
        %v1017 = vunpack.c.h.b16 %v364
        %v1018 = vunpack.c.l.b16 %v365
        %v1019 = vunpack.c.h.b16 %v365
        %v1020 = vunpack.c.l.b16 %v366
        %v1021 = vunpack.c.h.b16 %v366
        %v1022 = vunpack.c.l.b16 %v367
        %v1023 = vunpack.c.h.b16 %v367
        %v1024 = vunpack.c.l.b16 %v368
        %v1025 = vunpack.c.h.b16 %v368
        %v1026 = vunpack.c.l.b16 %v369
        %v1027 = vunpack.c.h.b16 %v369
        %v1028 = vunpack.c.l.b16 %v370
        %v1029 = vunpack.c.h.b16 %v370
        %v1030 = vunpack.c.l.b16 %v371
        %v1031 = vunpack.c.h.b16 %v371
        %v1032 = vunpack.c.l.b16 %v372
        %v1033 = vunpack.c.h.b16 %v372
        %v1034 = vunpack.c.l.b16 %v373
        %v1035 = vunpack.c.h.b16 %v373
        %v1036 = vunpack.c.l.b16 %v374
        %v1037 = vunpack.c.h.b16 %v374
        %v1038 = vunpack.c.l.b16 %v375
        %v1039 = vunpack.c.h.b16 %v375
        %v1040 = vunpack.c.l.b16 %v376
        %v1041 = vunpack.c.h.b16 %v376
        %v1042 = vunpack.c.l.b16 %v377
        %v1043 = vunpack.c.h.b16 %v377
        %v1044 = vunpack.c.l.b16 %v378
        %v1045 = vunpack.c.h.b16 %v378
        %v1046 = vunpack.c.l.b16 %v379
        %v1047 = vunpack.c.h.b16 %v379
        %v1048 = vunpack.c.l.b16 %v380
        %v1049 = vunpack.c.h.b16 %v380
        %v1050 = vunpack.c.l.b16 %v381
        %v1051 = vunpack.c.h.b16 %v381
        %v1052 = vunpack.c.l.b16 %v382
        %v1053 = vunpack.c.h.b16 %v382
        %v1054 = vunpack.c.l.b16 %v383
        %v1055 = vunpack.c.h.b16 %v383
        %v1056 = vunpack.c.l.b16 %v384
        %v1057 = vunpack.c.h.b16 %v384
        %v1058 = vunpack.c.l.b16 %v385
        %v1059 = vunpack.c.h.b16 %v385
        %v1060 = vunpack.c.l.b16 %v386
        %v1061 = vunpack.c.h.b16 %v386
        %v1062 = vunpack.c.l.b16 %v387
        %v1063 = vunpack.c.h.b16 %v387
        %v1064 = vunpack.c.l.b16 %v388
        %v1065 = vunpack.c.h.b16 %v388
        %v1066 = vunpack.c.l.b16 %v389
        %v1067 = vunpack.c.h.b16 %v389
        %v1068 = vunpack.c.l.b16 %v390
        %v1069 = vunpack.c.h.b16 %v390
        %v1070 = vunpack.c.l.b16 %v391
        %v1071 = vunpack.c.h.b16 %v391
        %v1072 = vunpack.c.l.b16 %v392
        %v1073 = vunpack.c.h.b16 %v392
        %v1074 = vunpack.c.l.b16 %v393
        %v1075 = vunpack.c.h.b16 %v393
        %v1076 = vunpack.c.l.b16 %v394
        %v1077 = vunpack.c.h.b16 %v394
        %v1078 = vunpack.c.l.b16 %v395
        %v1079 = vunpack.c.h.b16 %v395
        %v1080 = vunpack.c.l.b16 %v396
        %v1081 = vunpack.c.h.b16 %v396
        %v1082 = vunpack.c.l.b16 %v397
        %v1083 = vunpack.c.h.b16 %v397
        %v1084 = vunpack.c.l.b16 %v398
        %v1085 = vunpack.c.h.b16 %v398
        %v1086 = vunpack.c.l.b16 %v399
        %v1087 = vunpack.c.h.b16 %v399
        %v1088 = vunpack.c.l.b16 %v400
        %v1089 = vunpack.c.h.b16 %v400
        %v1090 = vunpack.c.l.b16 %v401
        %v1091 = vunpack.c.h.b16 %v401
        %v1092 = vunpack.c.l.b16 %v402
        %v1093 = vunpack.c.h.b16 %v402
        %v1094 = vunpack.c.l.b16 %v403
        %v1095 = vunpack.c.h.b16 %v403
        %v1096 = vunpack.c.l.b16 %v404
        %v1097 = vunpack.c.h.b16 %v404
        %v1098 = vunpack.c.l.b16 %v405
        %v1099 = vunpack.c.h.b16 %v405
        %v1100 = vunpack.c.l.b16 %v406
        %v1101 = vunpack.c.h.b16 %v406
        %v1102 = vunpack.c.l.b16 %v407
        %v1103 = vunpack.c.h.b16 %v407
        %v1104 = vunpack.c.l.b16 %v408
        %v1105 = vunpack.c.h.b16 %v408
        %v1106 = vunpack.c.l.b16 %v409
        %v1107 = vunpack.c.h.b16 %v409
        %v1108 = vunpack.c.l.b16 %v410
        %v1109 = vunpack.c.h.b16 %v410
        %v1110 = vunpack.c.l.b16 %v411
        %v1111 = vunpack.c.h.b16 %v411
        %v1112 = vunpack.c.l.b16 %v412
        %v1113 = vunpack.c.h.b16 %v412
        %v1114 = vunpack.c.l.b16 %v413
        %v1115 = vunpack.c.h.b16 %v413
        %v1116 = vunpack.c.l.b16 %v414
        %v1117 = vunpack.c.h.b16 %v414
        %v1118 = vunpack.c.l.b16 %v415
        %v1119 = vunpack.c.h.b16 %v415
        %v1120 = vunpack.c.l.b16 %v416
        %v1121 = vunpack.c.h.b16 %v416
        %v1122 = vunpack.c.l.b16 %v417
        %v1123 = vunpack.c.h.b16 %v417
        %v1124 = vunpack.c.l.b16 %v418
        %v1125 = vunpack.c.h.b16 %v418
        %v1126 = vunpack.c.l.b16 %v419
        %v1127 = vunpack.c.h.b16 %v419
        %v1128 = vunpack.c.l.b16 %v420
        %v1129 = vunpack.c.h.b16 %v420
        %v1130 = vunpack.c.l.b16 %v421
        %v1131 = vunpack.c.h.b16 %v421
        %v1132 = vunpack.c.l.b16 %v422
        %v1133 = vunpack.c.h.b16 %v422
        %v1134 = vunpack.c.l.b16 %v423
        %v1135 = vunpack.c.h.b16 %v423
        %v1136 = vunpack.c.l.b16 %v424
        %v1137 = vunpack.c.h.b16 %v424
        %v1138 = vunpack.c.l.b16 %v425
        %v1139 = vunpack.c.h.b16 %v425
        %v1140 = vunpack.c.l.b16 %v426
        %v1141 = vunpack.c.h.b16 %v426
        %v1142 = vunpack.c.l.b16 %v427
        %v1143 = vunpack.c.h.b16 %v427
        %v1144 = vunpack.c.l.b16 %v428
        %v1145 = vunpack.c.h.b16 %v428
        %v1146 = vunpack.c.l.b16 %v429
        %v1147 = vunpack.c.h.b16 %v429
        %v1148 = vunpack.c.l.b16 %v430
        %v1149 = vunpack.c.h.b16 %v430
        %v1150 = vunpack.c.l.b16 %v431
        %v1151 = vunpack.c.h.b16 %v431
        %v1152 = vunpack.c.l.b16 %v432
        %v1153 = vunpack.c.h.b16 %v432
        %v1154 = vunpack.c.l.b16 %v433
        %v1155 = vunpack.c.h.b16 %v433
        %v1156 = vunpack.c.l.b16 %v434
        %v1157 = vunpack.c.h.b16 %v434
        %v1158 = vunpack.c.l.b16 %v435
        %v1159 = vunpack.c.h.b16 %v435
        %v1160 = vunpack.c.l.b16 %v436
        %v1161 = vunpack.c.h.b16 %v436
        %v1162 = vunpack.c.l.b16 %v437
        %v1163 = vunpack.c.h.b16 %v437
        %v1164 = vunpack.c.l.b16 %v438
        %v1165 = vunpack.c.h.b16 %v438
        %v1166 = vunpack.c.l.b16 %v439
        %v1167 = vunpack.c.h.b16 %v439
        %v1168 = vunpack.c.l.b16 %v440
        %v1169 = vunpack.c.h.b16 %v440
        %v1170 = vunpack.c.l.b16 %v441
        %v1171 = vunpack.c.h.b16 %v441
        %v1172 = vunpack.c.l.b16 %v442
        %v1173 = vunpack.c.h.b16 %v442
        %v1174 = vunpack.c.l.b16 %v443
        %v1175 = vunpack.c.h.b16 %v443
        %v1176 = vunpack.c.l.b16 %v444
        %v1177 = vunpack.c.h.b16 %v444
        %v1178 = vunpack.c.l.b16 %v445
        %v1179 = vunpack.c.h.b16 %v445
        %v1180 = vunpack.c.l.b16 %v446
        %v1181 = vunpack.c.h.b16 %v446
        %v1182 = vunpack.c.l.b16 %v447
        %v1183 = vunpack.c.h.b16 %v447
        %v1184 = vunpack.c.l.b16 %v448
        %v1185 = vunpack.c.h.b16 %v448
        %v1186 = vunpack.c.l.b16 %v449
        %v1187 = vunpack.c.h.b16 %v449
        %v1188 = vunpack.c.l.b16 %v450
        %v1189 = vunpack.c.h.b16 %v450
        %v1190 = vunpack.c.l.b16 %v451
        %v1191 = vunpack.c.h.b16 %v451
        %v1192 = vunpack.c.l.b16 %v452
        %v1193 = vunpack.c.h.b16 %v452
        %v1194 = vunpack.c.l.b16 %v453
        %v1195 = vunpack.c.h.b16 %v453
        %v1196 = vunpack.c.l.b16 %v454
        %v1197 = vunpack.c.h.b16 %v454
        %v1198 = vunpack.c.l.b16 %v455
        %v1199 = vunpack.c.h.b16 %v455
        %v1200 = vunpack.c.l.b16 %v456
        %v1201 = vunpack.c.h.b16 %v456
        %v1202 = vunpack.c.l.b16 %v457
        %v1203 = vunpack.c.h.b16 %v457
        %v1204 = vunpack.c.l.b16 %v458
        %v1205 = vunpack.c.h.b16 %v458
        %v1206 = vunpack.c.l.b16 %v459
        %v1207 = vunpack.c.h.b16 %v459
        %v1208 = vunpack.c.l.b16 %v460
        %v1209 = vunpack.c.h.b16 %v460
        %v1210 = vunpack.c.l.b16 %v461
        %v1211 = vunpack.c.h.b16 %v461
        %v1212 = vunpack.c.l.b16 %v462
        %v1213 = vunpack.c.h.b16 %v462
        %v1214 = vunpack.c.l.b16 %v463
        %v1215 = vunpack.c.h.b16 %v463
        %v1216 = vunpack.c.l.b16 %v464
        %v1217 = vunpack.c.h.b16 %v464
        %v1218 = vunpack.c.l.b16 %v465
        %v1219 = vunpack.c.h.b16 %v465
        %v1220 = vunpack.c.l.b16 %v466
        %v1221 = vunpack.c.h.b16 %v466
        %v1222 = vunpack.c.l.b16 %v467
        %v1223 = vunpack.c.h.b16 %v467
        %v1224 = vunpack.c.l.b16 %v468
        %v1225 = vunpack.c.h.b16 %v468
        %v1226 = vunpack.c.l.b16 %v469
        %v1227 = vunpack.c.h.b16 %v469
        %v1228 = vunpack.c.l.b16 %v470
        %v1229 = vunpack.c.h.b16 %v470
        %v1230 = vunpack.c.l.b16 %v471
        %v1231 = vunpack.c.h.b16 %v471
        %v1232 = vunpack.c.l.b16 %v472
        %v1233 = vunpack.c.h.b16 %v472
        %v1234 = vunpack.c.l.b16 %v473
        %v1235 = vunpack.c.h.b16 %v473
        %v1236 = vunpack.c.l.b16 %v474
        %v1237 = vunpack.c.h.b16 %v474
        %v1238 = vunpack.c.l.b16 %v475
        %v1239 = vunpack.c.h.b16 %v475
        %v1240 = vunpack.c.l.b16 %v476
        %v1241 = vunpack.c.h.b16 %v476
        %v1242 = vunpack.c.l.b16 %v477
        %v1243 = vunpack.c.h.b16 %v477
        %v1244 = vunpack.c.l.b16 %v478
        %v1245 = vunpack.c.h.b16 %v478
        %v1246 = vunpack.c.l.b16 %v479
        %v1247 = vunpack.c.h.b16 %v479
        %v1248 = vunpack.c.l.b16 %v480
        %v1249 = vunpack.c.h.b16 %v480
        %v1250 = vunpack.c.l.b16 %v481
        %v1251 = vunpack.c.h.b16 %v481
        %v1252 = vunpack.c.l.b16 %v482
        %v1253 = vunpack.c.h.b16 %v482
        %v1254 = vunpack.c.l.b16 %v483
        %v1255 = vunpack.c.h.b16 %v483
        %v1256 = vunpack.c.l.b16 %v484
        %v1257 = vunpack.c.h.b16 %v484
        %v1258 = vunpack.c.l.b16 %v485
        %v1259 = vunpack.c.h.b16 %v485
        %v1260 = vunpack.c.l.b16 %v486
        %v1261 = vunpack.c.h.b16 %v486
        %v1262 = vunpack.c.l.b16 %v487
        %v1263 = vunpack.c.h.b16 %v487
        %v1264 = vunpack.c.l.b16 %v488
        %v1265 = vunpack.c.h.b16 %v488
        %v1266 = vunpack.c.l.b16 %v489
        %v1267 = vunpack.c.h.b16 %v489
        %v1268 = vunpack.c.l.b16 %v490
        %v1269 = vunpack.c.h.b16 %v490
        %v1270 = vunpack.c.l.b16 %v491
        %v1271 = vunpack.c.h.b16 %v491
        %v1272 = vunpack.c.l.b16 %v492
        %v1273 = vunpack.c.h.b16 %v492
        %v1274 = vunpack.c.l.b16 %v493
        %v1275 = vunpack.c.h.b16 %v493
        %v1276 = vunpack.c.l.b16 %v494
        %v1277 = vunpack.c.h.b16 %v494
        %v1278 = vunpack.c.l.b16 %v495
        %v1279 = vunpack.c.h.b16 %v495
        %v1280 = vunpack.c.l.b16 %v496
        %v1281 = vunpack.c.h.b16 %v496
        %v1282 = vunpack.c.l.b16 %v497
        %v1283 = vunpack.c.h.b16 %v497
        %v1284 = vunpack.c.l.b16 %v498
        %v1285 = vunpack.c.h.b16 %v498
        %v1286 = vunpack.c.l.b16 %v499
        %v1287 = vunpack.c.h.b16 %v499
        %v1288 = vunpack.c.l.b16 %v500
        %v1289 = vunpack.c.h.b16 %v500
        %v1290 = vunpack.c.l.b16 %v501
        %v1291 = vunpack.c.h.b16 %v501
        %v1292 = vunpack.c.l.b16 %v502
        %v1293 = vunpack.c.h.b16 %v502
        %v1294 = vunpack.c.l.b16 %v503
        %v1295 = vunpack.c.h.b16 %v503
        %v1296 = vunpack.c.l.b16 %v504
        %v1297 = vunpack.c.h.b16 %v504
        %v1298 = vunpack.c.l.b16 %v505
        %v1299 = vunpack.c.h.b16 %v505
        %v1300 = vunpack.c.l.b16 %v506
        %v1301 = vunpack.c.h.b16 %v506
        %v1302 = vunpack.c.l.b16 %v507
        %v1303 = vunpack.c.h.b16 %v507
        %v1304 = vunpack.c.l.b16 %v508
        %v1305 = vunpack.c.h.b16 %v508
        %v1306 = vunpack.c.l.b16 %v509
        %v1307 = vunpack.c.h.b16 %v509
        %v1308 = vunpack.c.l.b16 %v510
        %v1309 = vunpack.c.h.b16 %v510
        %v1310 = vunpack.c.l.b16 %v511
        %v1311 = vunpack.c.h.b16 %v511
        %v1312 = vunpack.c.l.b16 %v512
        %v1313 = vunpack.c.h.b16 %v512
        %v1314 = vunpack.c.l.b16 %v513
        %v1315 = vunpack.c.h.b16 %v513
        %v1316 = vunpack.c.l.b16 %v514
        %v1317 = vunpack.c.h.b16 %v514
        %v1318 = vunpack.c.l.b16 %v515
        %v1319 = vunpack.c.h.b16 %v515
        %v1320 = vunpack.c.l.b16 %v516
        %v1321 = vunpack.c.h.b16 %v516
        %v1322 = vunpack.c.l.b16 %v517
        %v1323 = vunpack.c.h.b16 %v517
        %v1324 = vunpack.c.l.b16 %v518
        %v1325 = vunpack.c.h.b16 %v518
        %v1326 = vunpack.c.l.b16 %v519
        %v1327 = vunpack.c.h.b16 %v519
        %v1328 = vunpack.c.l.b16 %v520
        %v1329 = vunpack.c.h.b16 %v520
        %v1330 = vunpack.c.l.b16 %v521
        %v1331 = vunpack.c.h.b16 %v521
        %v1332 = vunpack.c.l.b16 %v522
        %v1333 = vunpack.c.h.b16 %v522
        %v1334 = vunpack.c.l.b16 %v523
        %v1335 = vunpack.c.h.b16 %v523
        %v1336 = vunpack.c.l.b16 %v524
        %v1337 = vunpack.c.h.b16 %v524
        %v1338 = vunpack.c.l.b16 %v525
        %v1339 = vunpack.c.h.b16 %v525
        %v1340 = vunpack.c.l.b16 %v526
        %v1341 = vunpack.c.h.b16 %v526
        %v1342 = vunpack.c.l.b16 %v527
        %v1343 = vunpack.c.h.b16 %v527
        %v1344 = vunpack.c.l.b16 %v528
        %v1345 = vunpack.c.h.b16 %v528
        %v1346 = vunpack.c.l.b16 %v529
        %v1347 = vunpack.c.h.b16 %v529
        %v1348 = vunpack.c.l.b16 %v530
        %v1349 = vunpack.c.h.b16 %v530
        %v1350 = vunpack.c.l.b16 %v531
        %v1351 = vunpack.c.h.b16 %v531
        %v1352 = vunpack.c.l.b16 %v532
        %v1353 = vunpack.c.h.b16 %v532
        %v1354 = vunpack.c.l.b16 %v533
        %v1355 = vunpack.c.h.b16 %v533
        %v1356 = vunpack.c.l.b16 %v534
        %v1357 = vunpack.c.h.b16 %v534
        %v1358 = vunpack.c.l.b16 %v535
        %v1359 = vunpack.c.h.b16 %v535
        %v1360 = vunpack.c.l.b16 %v536
        %v1361 = vunpack.c.h.b16 %v536
        %v1362 = vunpack.c.l.b16 %v537
        %v1363 = vunpack.c.h.b16 %v537
        %v1364 = vpack.c.b16 %v856, %v852
        %v1365 = vpack.c.b16 %v857, %v853
        %v1366 = vpack.c.b16 %v858, %v854
        %v1367 = vpack.c.b16 %v859, %v855
        %v1368 = vpack.c.b16 %v864, %v860
        %v1369 = vpack.c.b16 %v865, %v861
        %v1370 = vpack.c.b16 %v866, %v862
        %v1371 = vpack.c.b16 %v867, %v863
        %v1372 = vpack.c.b16 %v872, %v868
        %v1373 = vpack.c.b16 %v873, %v869
        %v1374 = vpack.c.b16 %v874, %v870
        %v1375 = vpack.c.b16 %v875, %v871
        %v1376 = vpack.c.b16 %v880, %v876
        %v1377 = vpack.c.b16 %v881, %v877
        %v1378 = vpack.c.b16 %v882, %v878
        %v1379 = vpack.c.b16 %v883, %v879
        %v1380 = vpack.c.b16 %v888, %v884
        %v1381 = vpack.c.b16 %v889, %v885
        %v1382 = vpack.c.b16 %v890, %v886
        %v1383 = vpack.c.b16 %v891, %v887
        %v1384 = vpack.c.b16 %v896, %v892
        %v1385 = vpack.c.b16 %v897, %v893
        %v1386 = vpack.c.b16 %v898, %v894
        %v1387 = vpack.c.b16 %v899, %v895
        %v1388 = vpack.c.b16 %v904, %v900
        %v1389 = vpack.c.b16 %v905, %v901
        %v1390 = vpack.c.b16 %v906, %v902
        %v1391 = vpack.c.b16 %v907, %v903
        %v1392 = vpack.c.b16 %v912, %v908
        %v1393 = vpack.c.b16 %v913, %v909
        %v1394 = vpack.c.b16 %v914, %v910
        %v1395 = vpack.c.b16 %v915, %v911
        %v1396 = vpack.c.b16 %v920, %v916
        %v1397 = vpack.c.b16 %v921, %v917
        %v1398 = vpack.c.b16 %v922, %v918
        %v1399 = vpack.c.b16 %v923, %v919
        %v1400 = vpack.c.b16 %v928, %v924
        %v1401 = vpack.c.b16 %v929, %v925
        %v1402 = vpack.c.b16 %v930, %v926
        %v1403 = vpack.c.b16 %v931, %v927
        %v1404 = vpack.c.b16 %v936, %v932
        %v1405 = vpack.c.b16 %v937, %v933
        %v1406 = vpack.c.b16 %v938, %v934
        %v1407 = vpack.c.b16 %v939, %v935
        %v1408 = vpack.c.b16 %v944, %v940
        %v1409 = vpack.c.b16 %v945, %v941
        %v1410 = vpack.c.b16 %v946, %v942
        %v1411 = vpack.c.b16 %v947, %v943
        %v1412 = vpack.c.b16 %v952, %v948
        %v1413 = vpack.c.b16 %v953, %v949
        %v1414 = vpack.c.b16 %v954, %v950
        %v1415 = vpack.c.b16 %v955, %v951
        %v1416 = vpack.c.b16 %v960, %v956
        %v1417 = vpack.c.b16 %v961, %v957
        %v1418 = vpack.c.b16 %v962, %v958
        %v1419 = vpack.c.b16 %v963, %v959
        %v1420 = vpack.c.b16 %v968, %v964
        %v1421 = vpack.c.b16 %v969, %v965
        %v1422 = vpack.c.b16 %v970, %v966
        %v1423 = vpack.c.b16 %v971, %v967
        %v1424 = vpack.c.b16 %v976, %v972
        %v1425 = vpack.c.b16 %v977, %v973
        %v1426 = vpack.c.b16 %v978, %v974
        %v1427 = vpack.c.b16 %v979, %v975
        %v1428 = vpack.c.b16 %v984, %v980
        %v1429 = vpack.c.b16 %v985, %v981
        %v1430 = vpack.c.b16 %v986, %v982
        %v1431 = vpack.c.b16 %v987, %v983
        %v1432 = vpack.c.b16 %v992, %v988
        %v1433 = vpack.c.b16 %v993, %v989
        %v1434 = vpack.c.b16 %v994, %v990
        %v1435 = vpack.c.b16 %v995, %v991
        %v1436 = vpack.c.b16 %v1000, %v996
        %v1437 = vpack.c.b16 %v1001, %v997
        %v1438 = vpack.c.b16 %v1002, %v998
        %v1439 = vpack.c.b16 %v1003, %v999
        %v1440 = vpack.c.b16 %v1008, %v1004
        %v1441 = vpack.c.b16 %v1009, %v1005
        %v1442 = vpack.c.b16 %v1010, %v1006
        %v1443 = vpack.c.b16 %v1011, %v1007
        %v1444 = vpack.c.b16 %v1016, %v1012
        %v1445 = vpack.c.b16 %v1017, %v1013
        %v1446 = vpack.c.b16 %v1018, %v1014
        %v1447 = vpack.c.b16 %v1019, %v1015
        %v1448 = vpack.c.b16 %v1024, %v1020
        %v1449 = vpack.c.b16 %v1025, %v1021
        %v1450 = vpack.c.b16 %v1026, %v1022
        %v1451 = vpack.c.b16 %v1027, %v1023
        %v1452 = vpack.c.b16 %v1032, %v1028
        %v1453 = vpack.c.b16 %v1033, %v1029
        %v1454 = vpack.c.b16 %v1034, %v1030
        %v1455 = vpack.c.b16 %v1035, %v1031
        %v1456 = vpack.c.b16 %v1040, %v1036
        %v1457 = vpack.c.b16 %v1041, %v1037
        %v1458 = vpack.c.b16 %v1042, %v1038
        %v1459 = vpack.c.b16 %v1043, %v1039
        %v1460 = vpack.c.b16 %v1048, %v1044
        %v1461 = vpack.c.b16 %v1049, %v1045
        %v1462 = vpack.c.b16 %v1050, %v1046
        %v1463 = vpack.c.b16 %v1051, %v1047
        %v1464 = vpack.c.b16 %v1056, %v1052
        %v1465 = vpack.c.b16 %v1057, %v1053
        %v1466 = vpack.c.b16 %v1058, %v1054
        %v1467 = vpack.c.b16 %v1059, %v1055
        %v1468 = vpack.c.b16 %v1064, %v1060
        %v1469 = vpack.c.b16 %v1065, %v1061
        %v1470 = vpack.c.b16 %v1066, %v1062
        %v1471 = vpack.c.b16 %v1067, %v1063
        %v1472 = vpack.c.b16 %v1072, %v1068
        %v1473 = vpack.c.b16 %v1073, %v1069
        %v1474 = vpack.c.b16 %v1074, %v1070
        %v1475 = vpack.c.b16 %v1075, %v1071
        %v1476 = vpack.c.b16 %v1080, %v1076
        %v1477 = vpack.c.b16 %v1081, %v1077
        %v1478 = vpack.c.b16 %v1082, %v1078
        %v1479 = vpack.c.b16 %v1083, %v1079
        %v1480 = vpack.c.b16 %v1088, %v1084
        %v1481 = vpack.c.b16 %v1089, %v1085
        %v1482 = vpack.c.b16 %v1090, %v1086
        %v1483 = vpack.c.b16 %v1091, %v1087
        %v1484 = vpack.c.b16 %v1096, %v1092
        %v1485 = vpack.c.b16 %v1097, %v1093
        %v1486 = vpack.c.b16 %v1098, %v1094
        %v1487 = vpack.c.b16 %v1099, %v1095
        %v1488 = vpack.c.b16 %v1104, %v1100
        %v1489 = vpack.c.b16 %v1105, %v1101
        %v1490 = vpack.c.b16 %v1106, %v1102
        %v1491 = vpack.c.b16 %v1107, %v1103
        %v1492 = vpack.c.b16 %v1112, %v1108
        %v1493 = vpack.c.b16 %v1113, %v1109
        %v1494 = vpack.c.b16 %v1114, %v1110
        %v1495 = vpack.c.b16 %v1115, %v1111
        %v1496 = vpack.c.b16 %v1120, %v1116
        %v1497 = vpack.c.b16 %v1121, %v1117
        %v1498 = vpack.c.b16 %v1122, %v1118
        %v1499 = vpack.c.b16 %v1123, %v1119
        %v1500 = vpack.c.b16 %v1128, %v1124
        %v1501 = vpack.c.b16 %v1129, %v1125
        %v1502 = vpack.c.b16 %v1130, %v1126
        %v1503 = vpack.c.b16 %v1131, %v1127
        %v1504 = vpack.c.b16 %v1136, %v1132
        %v1505 = vpack.c.b16 %v1137, %v1133
        %v1506 = vpack.c.b16 %v1138, %v1134
        %v1507 = vpack.c.b16 %v1139, %v1135
        %v1508 = vpack.c.b16 %v1144, %v1140
        %v1509 = vpack.c.b16 %v1145, %v1141
        %v1510 = vpack.c.b16 %v1146, %v1142
        %v1511 = vpack.c.b16 %v1147, %v1143
        %v1512 = vpack.c.b16 %v1152, %v1148
        %v1513 = vpack.c.b16 %v1153, %v1149
        %v1514 = vpack.c.b16 %v1154, %v1150
        %v1515 = vpack.c.b16 %v1155, %v1151
        %v1516 = vpack.c.b16 %v1160, %v1156
        %v1517 = vpack.c.b16 %v1161, %v1157
        %v1518 = vpack.c.b16 %v1162, %v1158
        %v1519 = vpack.c.b16 %v1163, %v1159
        %v1520 = vpack.c.b16 %v1168, %v1164
        %v1521 = vpack.c.b16 %v1169, %v1165
        %v1522 = vpack.c.b16 %v1170, %v1166
        %v1523 = vpack.c.b16 %v1171, %v1167
        %v1524 = vpack.c.b16 %v1176, %v1172
        %v1525 = vpack.c.b16 %v1177, %v1173
        %v1526 = vpack.c.b16 %v1178, %v1174
        %v1527 = vpack.c.b16 %v1179, %v1175
        %v1528 = vpack.c.b16 %v1184, %v1180
        %v1529 = vpack.c.b16 %v1185, %v1181
        %v1530 = vpack.c.b16 %v1186, %v1182
        %v1531 = vpack.c.b16 %v1187, %v1183
        %v1532 = vpack.c.b16 %v1192, %v1188
        %v1533 = vpack.c.b16 %v1193, %v1189
        %v1534 = vpack.c.b16 %v1194, %v1190
        %v1535 = vpack.c.b16 %v1195, %v1191
        %v1536 = vpack.c.b16 %v1200, %v1196
        %v1537 = vpack.c.b16 %v1201, %v1197
        %v1538 = vpack.c.b16 %v1202, %v1198
        %v1539 = vpack.c.b16 %v1203, %v1199
        %v1540 = vpack.c.b16 %v1208, %v1204
        %v1541 = vpack.c.b16 %v1209, %v1205
        %v1542 = vpack.c.b16 %v1210, %v1206
        %v1543 = vpack.c.b16 %v1211, %v1207
        %v1544 = vpack.c.b16 %v1216, %v1212
        %v1545 = vpack.c.b16 %v1217, %v1213
        %v1546 = vpack.c.b16 %v1218, %v1214
        %v1547 = vpack.c.b16 %v1219, %v1215
        %v1548 = vpack.c.b16 %v1224, %v1220
        %v1549 = vpack.c.b16 %v1225, %v1221
        %v1550 = vpack.c.b16 %v1226, %v1222
        %v1551 = vpack.c.b16 %v1227, %v1223
        %v1552 = vpack.c.b16 %v1232, %v1228
        %v1553 = vpack.c.b16 %v1233, %v1229
        %v1554 = vpack.c.b16 %v1234, %v1230
        %v1555 = vpack.c.b16 %v1235, %v1231
        %v1556 = vpack.c.b16 %v1240, %v1236
        %v1557 = vpack.c.b16 %v1241, %v1237
        %v1558 = vpack.c.b16 %v1242, %v1238
        %v1559 = vpack.c.b16 %v1243, %v1239
        %v1560 = vpack.c.b16 %v1248, %v1244
        %v1561 = vpack.c.b16 %v1249, %v1245
        %v1562 = vpack.c.b16 %v1250, %v1246
        %v1563 = vpack.c.b16 %v1251, %v1247
        %v1564 = vpack.c.b16 %v1256, %v1252
        %v1565 = vpack.c.b16 %v1257, %v1253
        %v1566 = vpack.c.b16 %v1258, %v1254
        %v1567 = vpack.c.b16 %v1259, %v1255
        %v1568 = vpack.c.b16 %v1264, %v1260
        %v1569 = vpack.c.b16 %v1265, %v1261
        %v1570 = vpack.c.b16 %v1266, %v1262
        %v1571 = vpack.c.b16 %v1267, %v1263
        %v1572 = vpack.c.b16 %v1272, %v1268
        %v1573 = vpack.c.b16 %v1273, %v1269
        %v1574 = vpack.c.b16 %v1274, %v1270
        %v1575 = vpack.c.b16 %v1275, %v1271
        %v1576 = vpack.c.b16 %v1280, %v1276
        %v1577 = vpack.c.b16 %v1281, %v1277
        %v1578 = vpack.c.b16 %v1282, %v1278
        %v1579 = vpack.c.b16 %v1283, %v1279
        %v1580 = vpack.c.b16 %v1288, %v1284
        %v1581 = vpack.c.b16 %v1289, %v1285
        %v1582 = vpack.c.b16 %v1290, %v1286
        %v1583 = vpack.c.b16 %v1291, %v1287
        %v1584 = vpack.c.b16 %v1296, %v1292
        %v1585 = vpack.c.b16 %v1297, %v1293
        %v1586 = vpack.c.b16 %v1298, %v1294
        %v1587 = vpack.c.b16 %v1299, %v1295
        %v1588 = vpack.c.b16 %v1304, %v1300
        %v1589 = vpack.c.b16 %v1305, %v1301
        %v1590 = vpack.c.b16 %v1306, %v1302
        %v1591 = vpack.c.b16 %v1307, %v1303
        %v1592 = vpack.c.b16 %v1312, %v1308
        %v1593 = vpack.c.b16 %v1313, %v1309
        %v1594 = vpack.c.b16 %v1314, %v1310
        %v1595 = vpack.c.b16 %v1315, %v1311
        %v1596 = vpack.c.b16 %v1320, %v1316
        %v1597 = vpack.c.b16 %v1321, %v1317
        %v1598 = vpack.c.b16 %v1322, %v1318
        %v1599 = vpack.c.b16 %v1323, %v1319
        %v1600 = vpack.c.b16 %v1328, %v1324
        %v1601 = vpack.c.b16 %v1329, %v1325
        %v1602 = vpack.c.b16 %v1330, %v1326
        %v1603 = vpack.c.b16 %v1331, %v1327
        %v1604 = vpack.c.b16 %v1336, %v1332
        %v1605 = vpack.c.b16 %v1337, %v1333
        %v1606 = vpack.c.b16 %v1338, %v1334
        %v1607 = vpack.c.b16 %v1339, %v1335
        %v1608 = vpack.c.b16 %v1344, %v1340
        %v1609 = vpack.c.b16 %v1345, %v1341
        %v1610 = vpack.c.b16 %v1346, %v1342
        %v1611 = vpack.c.b16 %v1347, %v1343
        %v1612 = vpack.c.b16 %v1352, %v1348
        %v1613 = vpack.c.b16 %v1353, %v1349
        %v1614 = vpack.c.b16 %v1354, %v1350
        %v1615 = vpack.c.b16 %v1355, %v1351
        %v1616 = vpack.c.b16 %v1360, %v1356
        %v1617 = vpack.c.b16 %v1361, %v1357
        %v1618 = vpack.c.b16 %v1362, %v1358
        %v1619 = vpack.c.b16 %v1363, %v1359
        %1876 = vmatprep.subr.bf16.mxu0 %v1365
        %1877 = vmatpush1.bf16.msra.mxu0 %v1364
        %1878 = vmatprep.subr.bf16.mxu0 %v1369
        %1879 = vmatpush1.bf16.msra.mxu0 %v1368
        %1880 = vmatprep.subr.bf16.mxu0 %v1373
        %1881 = vmatpush1.bf16.msra.mxu0 %v1372
        %1882 = vmatprep.subr.bf16.mxu0 %v1377
        %1883 = vmatpush1.bf16.msra.mxu0 %v1376
        %1884 = vmatprep.subr.bf16.mxu0 %v1381
        %1885 = vmatpush1.bf16.msra.mxu0 %v1380
        %1886 = vmatprep.subr.bf16.mxu0 %v1385
        %1887 = vmatpush1.bf16.msra.mxu0 %v1384
        %1888 = vmatprep.subr.bf16.mxu0 %v1389
        %1889 = vmatpush1.bf16.msra.mxu0 %v1388
        %1890 = vmatprep.subr.bf16.mxu0 %v1393
        %1891 = vmatpush1.bf16.msra.mxu0 %v1392
        %1892 = vmatprep.subr.bf16.mxu0 %v1397
        %1893 = vmatpush1.bf16.msra.mxu0 %v1396
        %1894 = vmatprep.subr.bf16.mxu0 %v1401
        %1895 = vmatpush1.bf16.msra.mxu0 %v1400
        %1896 = vmatprep.subr.bf16.mxu0 %v1405
        %1897 = vmatpush1.bf16.msra.mxu0 %v1404
        %1898 = vmatprep.subr.bf16.mxu0 %v1409
        %1899 = vmatpush1.bf16.msra.mxu0 %v1408
        %1900 = vmatprep.subr.bf16.mxu0 %v1413
        %1901 = vmatpush1.bf16.msra.mxu0 %v1412
        %1902 = vmatprep.subr.bf16.mxu0 %v1417
        %1903 = vmatpush1.bf16.msra.mxu0 %v1416
        %1904 = vmatprep.subr.bf16.mxu0 %v1421
        %1905 = vmatpush1.bf16.msra.mxu0 %v1420
        %1906 = vmatprep.subr.bf16.mxu0 %v1425
        %1907 = vmatpush1.bf16.msra.mxu0 %v1424
        %1908 = vmatprep.mubr.bf16.mxu0 %v576
        %1909 = vmatmul.mubr.bf16.gmra.mrb[0].mxu0 %v562
        %v1910 = vpop.f32.mrb[0].mxu0
        %v1911 = vadd.f32 0.0, %v1910
        %v1912 = vpop.f32.mrb[0].mxu0
        %v1913 = vadd.f32 0.0, %v1912
        %v1914 = vpop.f32.mrb[0].mxu0
        %v1915 = vpop.f32.mrb[0].mxu0
        %1916 = vdwg.mxu0
        %1917 = vmatprep.subr.bf16.mxu0 %v1429
        %1918 = vmatpush1.bf16.msra.mxu0 %v1428
        %1919 = vmatprep.subr.bf16.mxu0 %v1433
        %1920 = vmatpush1.bf16.msra.mxu0 %v1432
        %1921 = vmatprep.subr.bf16.mxu0 %v1437
        %1922 = vmatpush1.bf16.msra.mxu0 %v1436
        %1923 = vmatprep.subr.bf16.mxu0 %v1441
        %1924 = vmatpush1.bf16.msra.mxu0 %v1440
        %1925 = vmatprep.subr.bf16.mxu0 %v1445
        %1926 = vmatpush1.bf16.msra.mxu0 %v1444
        %1927 = vmatprep.subr.bf16.mxu0 %v1449
        %1928 = vmatpush1.bf16.msra.mxu0 %v1448
        %1929 = vmatprep.subr.bf16.mxu0 %v1453
        %1930 = vmatpush1.bf16.msra.mxu0 %v1452
        %1931 = vmatprep.subr.bf16.mxu0 %v1457
        %1932 = vmatpush1.bf16.msra.mxu0 %v1456
        %1933 = vmatprep.subr.bf16.mxu0 %v1461
        %1934 = vmatpush1.bf16.msra.mxu0 %v1460
        %1935 = vmatprep.subr.bf16.mxu0 %v1465
        %1936 = vmatpush1.bf16.msra.mxu0 %v1464
        %1937 = vmatprep.subr.bf16.mxu0 %v1469
        %1938 = vmatpush1.bf16.msra.mxu0 %v1468
        %1939 = vmatprep.subr.bf16.mxu0 %v1473
        %1940 = vmatpush1.bf16.msra.mxu0 %v1472
        %1941 = vmatprep.subr.bf16.mxu0 %v1477
        %1942 = vmatpush1.bf16.msra.mxu0 %v1476
        %1943 = vmatprep.subr.bf16.mxu0 %v1481
        %1944 = vmatpush1.bf16.msra.mxu0 %v1480
        %1945 = vmatprep.subr.bf16.mxu0 %v1485
        %1946 = vmatpush1.bf16.msra.mxu0 %v1484
        %1947 = vmatprep.subr.bf16.mxu0 %v1489
        %1948 = vmatpush1.bf16.msra.mxu0 %v1488
        %1949 = vmatprep.mubr.bf16.mxu0 %v586
        %1950 = vmatmul.mubr.bf16.gmra.mrb[0].mxu0 %v584
        %v1951 = vpop.f32.mrb[0].mxu0
        %v1952 = vadd.f32 %v1911, %v1951
        %v1953 = vpop.f32.mrb[0].mxu0
        %v1954 = vadd.f32 %v1913, %v1953
        %v1955 = vpop.f32.mrb[0].mxu0
        %v1956 = vpop.f32.mrb[0].mxu0
        %1957 = vdwg.mxu0
        %1958 = vmatprep.subr.bf16.mxu0 %v1493
        %1959 = vmatpush1.bf16.msra.mxu0 %v1492
        %1960 = vmatprep.subr.bf16.mxu0 %v1497
        %1961 = vmatpush1.bf16.msra.mxu0 %v1496
        %1962 = vmatprep.subr.bf16.mxu0 %v1501
        %1963 = vmatpush1.bf16.msra.mxu0 %v1500
        %1964 = vmatprep.subr.bf16.mxu0 %v1505
        %1965 = vmatpush1.bf16.msra.mxu0 %v1504
        %1966 = vmatprep.subr.bf16.mxu0 %v1509
        %1967 = vmatpush1.bf16.msra.mxu0 %v1508
        %1968 = vmatprep.subr.bf16.mxu0 %v1513
        %1969 = vmatpush1.bf16.msra.mxu0 %v1512
        %1970 = vmatprep.subr.bf16.mxu0 %v1517
        %1971 = vmatpush1.bf16.msra.mxu0 %v1516
        %1972 = vmatprep.subr.bf16.mxu0 %v1521
        %1973 = vmatpush1.bf16.msra.mxu0 %v1520
        %1974 = vmatprep.subr.bf16.mxu0 %v1525
        %1975 = vmatpush1.bf16.msra.mxu0 %v1524
        %1976 = vmatprep.subr.bf16.mxu0 %v1529
        %1977 = vmatpush1.bf16.msra.mxu0 %v1528
        %1978 = vmatprep.subr.bf16.mxu0 %v1533
        %1979 = vmatpush1.bf16.msra.mxu0 %v1532
        %1980 = vmatprep.subr.bf16.mxu0 %v1537
        %1981 = vmatpush1.bf16.msra.mxu0 %v1536
        %1982 = vmatprep.subr.bf16.mxu0 %v1541
        %1983 = vmatpush1.bf16.msra.mxu0 %v1540
        %1984 = vmatprep.subr.bf16.mxu0 %v1545
        %1985 = vmatpush1.bf16.msra.mxu0 %v1544
        %1986 = vmatprep.subr.bf16.mxu0 %v1549
        %1987 = vmatpush1.bf16.msra.mxu0 %v1548
        %1988 = vmatprep.subr.bf16.mxu0 %v1553
        %1989 = vmatpush1.bf16.msra.mxu0 %v1552
        %1990 = vmatprep.mubr.bf16.mxu0 %v583
        %1991 = vmatmul.mubr.bf16.gmra.mrb[0].mxu0 %v569
        %v1992 = vpop.f32.mrb[0].mxu0
        %v1993 = vadd.f32 %v1952, %v1992
        %v1994 = vpop.f32.mrb[0].mxu0
        %v1995 = vadd.f32 %v1954, %v1994
        %v1996 = vpop.f32.mrb[0].mxu0
        %v1997 = vpop.f32.mrb[0].mxu0
        %1998 = vdwg.mxu0
        %1999 = vmatprep.subr.bf16.mxu0 %v1557
        %2000 = vmatpush1.bf16.msra.mxu0 %v1556
        %2001 = vmatprep.subr.bf16.mxu0 %v1561
        %2002 = vmatpush1.bf16.msra.mxu0 %v1560
        %2003 = vmatprep.subr.bf16.mxu0 %v1565
        %2004 = vmatpush1.bf16.msra.mxu0 %v1564
        %2005 = vmatprep.subr.bf16.mxu0 %v1569
        %2006 = vmatpush1.bf16.msra.mxu0 %v1568
        %2007 = vmatprep.subr.bf16.mxu0 %v1573
        %2008 = vmatpush1.bf16.msra.mxu0 %v1572
        %2009 = vmatprep.subr.bf16.mxu0 %v1577
        %2010 = vmatpush1.bf16.msra.mxu0 %v1576
        %2011 = vmatprep.subr.bf16.mxu0 %v1581
        %2012 = vmatpush1.bf16.msra.mxu0 %v1580
        %2013 = vmatprep.subr.bf16.mxu0 %v1585
        %2014 = vmatpush1.bf16.msra.mxu0 %v1584
        %2015 = vmatprep.subr.bf16.mxu0 %v1589
        %2016 = vmatpush1.bf16.msra.mxu0 %v1588
        %2017 = vmatprep.subr.bf16.mxu0 %v1593
        %2018 = vmatpush1.bf16.msra.mxu0 %v1592
        %2019 = vmatprep.subr.bf16.mxu0 %v1597
        %2020 = vmatpush1.bf16.msra.mxu0 %v1596
        %2021 = vmatprep.subr.bf16.mxu0 %v1601
        %2022 = vmatpush1.bf16.msra.mxu0 %v1600
        %2023 = vmatprep.subr.bf16.mxu0 %v1605
        %2024 = vmatpush1.bf16.msra.mxu0 %v1604
        %2025 = vmatprep.subr.bf16.mxu0 %v1609
        %2026 = vmatpush1.bf16.msra.mxu0 %v1608
        %2027 = vmatprep.subr.bf16.mxu0 %v1613
        %2028 = vmatpush1.bf16.msra.mxu0 %v1612
        %2029 = vmatprep.subr.bf16.mxu0 %v1617
        %2030 = vmatpush1.bf16.msra.mxu0 %v1616
        %2031 = vmatprep.mubr.bf16.mxu0 %v587
        %2032 = vmatmul.mubr.bf16.gmra.mrb[0].mxu0 %v585
        %v2033 = vpop.f32.mrb[0].mxu0
        %v2034 = vadd.f32 %v1993, %v2033
        %v2035 = vpop.f32.mrb[0].mxu0
        %v2036 = vadd.f32 %v1995, %v2035
        %v2037 = vpop.f32.mrb[0].mxu0
        %v2038 = vpop.f32.mrb[0].mxu0
        %2039 = vdwg.mxu0
        %2040 = vmatprep.subr.bf16.mxu0 %v1367
        %2041 = vmatpush1.bf16.msra.mxu0 %v1366
        %2042 = vmatprep.subr.bf16.mxu0 %v1371
        %2043 = vmatpush1.bf16.msra.mxu0 %v1370
        %2044 = vmatprep.subr.bf16.mxu0 %v1375
        %2045 = vmatpush1.bf16.msra.mxu0 %v1374
        %2046 = vmatprep.subr.bf16.mxu0 %v1379
        %2047 = vmatpush1.bf16.msra.mxu0 %v1378
        %2048 = vmatprep.subr.bf16.mxu0 %v1383
        %2049 = vmatpush1.bf16.msra.mxu0 %v1382
        %2050 = vmatprep.subr.bf16.mxu0 %v1387
        %2051 = vmatpush1.bf16.msra.mxu0 %v1386
        %2052 = vmatprep.subr.bf16.mxu0 %v1391
        %2053 = vmatpush1.bf16.msra.mxu0 %v1390
        %2054 = vmatprep.subr.bf16.mxu0 %v1395
        %2055 = vmatpush1.bf16.msra.mxu0 %v1394
        %2056 = vmatprep.subr.bf16.mxu0 %v1399
        %2057 = vmatpush1.bf16.msra.mxu0 %v1398
        %2058 = vmatprep.subr.bf16.mxu0 %v1403
        %2059 = vmatpush1.bf16.msra.mxu0 %v1402
        %2060 = vmatprep.subr.bf16.mxu0 %v1407
        %2061 = vmatpush1.bf16.msra.mxu0 %v1406
        %2062 = vmatprep.subr.bf16.mxu0 %v1411
        %2063 = vmatpush1.bf16.msra.mxu0 %v1410
        %2064 = vmatprep.subr.bf16.mxu0 %v1415
        %2065 = vmatpush1.bf16.msra.mxu0 %v1414
        %2066 = vmatprep.subr.bf16.mxu0 %v1419
        %2067 = vmatpush1.bf16.msra.mxu0 %v1418
        %2068 = vmatprep.subr.bf16.mxu0 %v1423
        %2069 = vmatpush1.bf16.msra.mxu0 %v1422
        %2070 = vmatprep.subr.bf16.mxu0 %v1427
        %2071 = vmatpush1.bf16.msra.mxu0 %v1426
        %2072 = vmatprep.mubr.bf16.mxu0 %v576
        %2073 = vmatmul.mubr.bf16.gmra.mrb[0].mxu0 %v562
        %v2074 = vpop.f32.mrb[0].mxu0
        %v2075 = vadd.f32 0.0, %v2074
        %v2076 = vpop.f32.mrb[0].mxu0
        %v2077 = vadd.f32 0.0, %v2076
        %v2078 = vpop.f32.mrb[0].mxu0
        %v2079 = vpop.f32.mrb[0].mxu0
        %2080 = vdwg.mxu0
        %2081 = vmatprep.subr.bf16.mxu0 %v1431
        %2082 = vmatpush1.bf16.msra.mxu0 %v1430
        %2083 = vmatprep.subr.bf16.mxu0 %v1435
        %2084 = vmatpush1.bf16.msra.mxu0 %v1434
        %2085 = vmatprep.subr.bf16.mxu0 %v1439
        %2086 = vmatpush1.bf16.msra.mxu0 %v1438
        %2087 = vmatprep.subr.bf16.mxu0 %v1443
        %2088 = vmatpush1.bf16.msra.mxu0 %v1442
        %2089 = vmatprep.subr.bf16.mxu0 %v1447
        %2090 = vmatpush1.bf16.msra.mxu0 %v1446
        %2091 = vmatprep.subr.bf16.mxu0 %v1451
        %2092 = vmatpush1.bf16.msra.mxu0 %v1450
        %2093 = vmatprep.subr.bf16.mxu0 %v1455
        %2094 = vmatpush1.bf16.msra.mxu0 %v1454
        %2095 = vmatprep.subr.bf16.mxu0 %v1459
        %2096 = vmatpush1.bf16.msra.mxu0 %v1458
        %2097 = vmatprep.subr.bf16.mxu0 %v1463
        %2098 = vmatpush1.bf16.msra.mxu0 %v1462
        %2099 = vmatprep.subr.bf16.mxu0 %v1467
        %2100 = vmatpush1.bf16.msra.mxu0 %v1466
        %2101 = vmatprep.subr.bf16.mxu0 %v1471
        %2102 = vmatpush1.bf16.msra.mxu0 %v1470
        %2103 = vmatprep.subr.bf16.mxu0 %v1475
        %2104 = vmatpush1.bf16.msra.mxu0 %v1474
        %2105 = vmatprep.subr.bf16.mxu0 %v1479
        %2106 = vmatpush1.bf16.msra.mxu0 %v1478
        %2107 = vmatprep.subr.bf16.mxu0 %v1483
        %2108 = vmatpush1.bf16.msra.mxu0 %v1482
        %2109 = vmatprep.subr.bf16.mxu0 %v1487
        %2110 = vmatpush1.bf16.msra.mxu0 %v1486
        %2111 = vmatprep.subr.bf16.mxu0 %v1491
        %2112 = vmatpush1.bf16.msra.mxu0 %v1490
        %2113 = vmatprep.mubr.bf16.mxu0 %v586
        %2114 = vmatmul.mubr.bf16.gmra.mrb[0].mxu0 %v584
        %v2115 = vpop.f32.mrb[0].mxu0
        %v2116 = vadd.f32 %v2075, %v2115
        %v2117 = vpop.f32.mrb[0].mxu0
        %v2118 = vadd.f32 %v2077, %v2117
        %v2119 = vpop.f32.mrb[0].mxu0
        %v2120 = vpop.f32.mrb[0].mxu0
        %2121 = vdwg.mxu0
        %2122 = vmatprep.subr.bf16.mxu0 %v1495
        %2123 = vmatpush1.bf16.msra.mxu0 %v1494
        %2124 = vmatprep.subr.bf16.mxu0 %v1499
        %2125 = vmatpush1.bf16.msra.mxu0 %v1498
        %2126 = vmatprep.subr.bf16.mxu0 %v1503
        %2127 = vmatpush1.bf16.msra.mxu0 %v1502
        %2128 = vmatprep.subr.bf16.mxu0 %v1507
        %2129 = vmatpush1.bf16.msra.mxu0 %v1506
        %2130 = vmatprep.subr.bf16.mxu0 %v1511
        %2131 = vmatpush1.bf16.msra.mxu0 %v1510
        %2132 = vmatprep.subr.bf16.mxu0 %v1515
        %2133 = vmatpush1.bf16.msra.mxu0 %v1514
        %2134 = vmatprep.subr.bf16.mxu0 %v1519
        %2135 = vmatpush1.bf16.msra.mxu0 %v1518
        %2136 = vmatprep.subr.bf16.mxu0 %v1523
        %2137 = vmatpush1.bf16.msra.mxu0 %v1522
        %2138 = vmatprep.subr.bf16.mxu0 %v1527
        %2139 = vmatpush1.bf16.msra.mxu0 %v1526
        %2140 = vmatprep.subr.bf16.mxu0 %v1531
        %2141 = vmatpush1.bf16.msra.mxu0 %v1530
        %2142 = vmatprep.subr.bf16.mxu0 %v1535
        %2143 = vmatpush1.bf16.msra.mxu0 %v1534
        %2144 = vmatprep.subr.bf16.mxu0 %v1539
        %2145 = vmatpush1.bf16.msra.mxu0 %v1538
        %2146 = vmatprep.subr.bf16.mxu0 %v1543
        %2147 = vmatpush1.bf16.msra.mxu0 %v1542
        %2148 = vmatprep.subr.bf16.mxu0 %v1547
        %2149 = vmatpush1.bf16.msra.mxu0 %v1546
        %2150 = vmatprep.subr.bf16.mxu0 %v1551
        %2151 = vmatpush1.bf16.msra.mxu0 %v1550
        %2152 = vmatprep.subr.bf16.mxu0 %v1555
        %2153 = vmatpush1.bf16.msra.mxu0 %v1554
        %2154 = vmatprep.mubr.bf16.mxu0 %v583
        %2155 = vmatmul.mubr.bf16.gmra.mrb[0].mxu0 %v569
        %v2156 = vpop.f32.mrb[0].mxu0
        %v2157 = vadd.f32 %v2116, %v2156
        %v2158 = vpop.f32.mrb[0].mxu0
        %v2159 = vadd.f32 %v2118, %v2158
        %v2160 = vpop.f32.mrb[0].mxu0
        %v2161 = vpop.f32.mrb[0].mxu0
        %2162 = vdwg.mxu0
        %2163 = vmatprep.subr.bf16.mxu0 %v1559
        %2164 = vmatpush1.bf16.msra.mxu0 %v1558
        %2165 = vmatprep.subr.bf16.mxu0 %v1563
        %2166 = vmatpush1.bf16.msra.mxu0 %v1562
        %2167 = vmatprep.subr.bf16.mxu0 %v1567
        %2168 = vmatpush1.bf16.msra.mxu0 %v1566
        %2169 = vmatprep.subr.bf16.mxu0 %v1571
        %2170 = vmatpush1.bf16.msra.mxu0 %v1570
        %2171 = vmatprep.subr.bf16.mxu0 %v1575
        %2172 = vmatpush1.bf16.msra.mxu0 %v1574
        %2173 = vmatprep.subr.bf16.mxu0 %v1579
        %2174 = vmatpush1.bf16.msra.mxu0 %v1578
        %2175 = vmatprep.subr.bf16.mxu0 %v1583
        %2176 = vmatpush1.bf16.msra.mxu0 %v1582
        %2177 = vmatprep.subr.bf16.mxu0 %v1587
        %2178 = vmatpush1.bf16.msra.mxu0 %v1586
        %2179 = vmatprep.subr.bf16.mxu0 %v1591
        %2180 = vmatpush1.bf16.msra.mxu0 %v1590
        %2181 = vmatprep.subr.bf16.mxu0 %v1595
        %2182 = vmatpush1.bf16.msra.mxu0 %v1594
        %2183 = vmatprep.subr.bf16.mxu0 %v1599
        %2184 = vmatpush1.bf16.msra.mxu0 %v1598
        %2185 = vmatprep.subr.bf16.mxu0 %v1603
        %2186 = vmatpush1.bf16.msra.mxu0 %v1602
        %2187 = vmatprep.subr.bf16.mxu0 %v1607
        %2188 = vmatpush1.bf16.msra.mxu0 %v1606
        %2189 = vmatprep.subr.bf16.mxu0 %v1611
        %2190 = vmatpush1.bf16.msra.mxu0 %v1610
        %2191 = vmatprep.subr.bf16.mxu0 %v1615
        %2192 = vmatpush1.bf16.msra.mxu0 %v1614
        %2193 = vmatprep.subr.bf16.mxu0 %v1619
        %2194 = vmatpush1.bf16.msra.mxu0 %v1618
        %2195 = vmatprep.mubr.bf16.mxu0 %v587
        %2196 = vmatmul.mubr.bf16.gmra.mrb[0].mxu0 %v585
        %v2197 = vpop.f32.mrb[0].mxu0
        %v2198 = vadd.f32 %v2157, %v2197
        %v2199 = vpop.f32.mrb[0].mxu0
        %v2200 = vadd.f32 %v2159, %v2199
        %v2201 = vpop.f32.mrb[0].mxu0
        %v2202 = vpop.f32.mrb[0].mxu0
        %2203 = vdwg.mxu0
        %v2208 = vcombine.low %v2034, %v2036
        %v2209 = vcombine.low %v2198, %v2200
        %v2211 = vunpack.c.l.s4 1983009808
        %v2212 = vunpack.c.0.s8 %v2211
        %v2213 = vlaneseq
        %v2214 = vshrl.u32 %v2213, 7
        %v2215 = vsub.s32 %v2212, %v2214
        %v2216 = vrot.slane %v2208, %v2215
        %v2218 = vunpack.c.l.s4 1983009808
        %v2219 = vunpack.c.0.s8 %v2218
        %v2220 = vlaneseq
        %v2221 = vshrl.u32 %v2220, 7
        %v2222 = vsub.s32 %v2219, %v2221
        %v2223 = vrot.slane %v2209, %v2222
        %v2224 = vcombine.low %v2216, %v2223
        %v2226 = vadd.f32 %v277, %v2224
        %2227 = vst [vmem:[#allocation2] sm:$0xff] %v2226
        %p2228 = scmp.eq.s32.totalorder %s19, 3
        // Predicated region
        $region53: #{_lambda_.13} parent=47 // pred_check
          %p2229 = pneg %p2228
        $region54: #{_lambda_.13} parent=47 // pred_check_branch
          %2231 = sbr.rel (%p2229) target = $region56
        $region55: #{_lambda_.13} parent=47 // pred_region
          %v2232 = vld [vmem:[#allocation2] sm:$0xff]
          %v2233 = vld [vmem:[%s2] sm:$0xf]
          %v2235 = vlaneseq
          %v2236 = vshrl.u32 %v2235, 7
          %v2237 = vsub.s32 0, %v2236
          %v2238 = vrot.slane %v2233, %v2237
          %v2239 = vlaneseq
          %v2240 = vshrl.u32 %v2239, 7
          %v2241 = vsub.s32 1, %v2240
          %v2242 = vrot.slane %v2233, %v2241
          %v2243 = vlaneseq
          %v2244 = vshrl.u32 %v2243, 7
          %v2245 = vsub.s32 2, %v2244
          %v2246 = vrot.slane %v2233, %v2245
          %v2247 = vlaneseq
          %v2248 = vshrl.u32 %v2247, 7
          %v2249 = vsub.s32 3, %v2248
          %v2250 = vrot.slane %v2233, %v2249
          %v2251 = vcombine.low %v2238, %v2242
          %v2252 = vcombine.low %v2246, %v2250
          %v2254 = vunpack.c.l.s4 1983009808
          %v2255 = vunpack.c.0.s8 %v2254
          %v2256 = vlaneseq
          %v2257 = vshrl.u32 %v2256, 7
          %v2258 = vsub.s32 %v2255, %v2257
          %v2259 = vrot.slane %v2251, %v2258
          %v2261 = vunpack.c.l.s4 1983009808
          %v2262 = vunpack.c.0.s8 %v2261
          %v2263 = vlaneseq
          %v2264 = vshrl.u32 %v2263, 7
          %v2265 = vsub.s32 %v2262, %v2264
          %v2266 = vrot.slane %v2252, %v2265
          %v2267 = vcombine.low %v2259, %v2266
          %v2269 = vadd.f32 %v2232, %v2267
          %v2270 = vmax.f32 %v2269, 0.0
          %v2272 = vcombine.high %v2270, %v2270
          %v2274 = vunpack.c.l.s4 1983009808
          %v2275 = vunpack.c.0.s8 %v2274
          %v2276 = vlaneseq
          %v2277 = vshrl.u32 %v2276, 7
          %v2278 = vsub.s32 %v2275, %v2277
          %v2279 = vrot.slane %v2270, %v2278
          %v2281 = vunpack.c.l.s4 1983009808
          %v2282 = vunpack.c.0.s8 %v2281
          %v2283 = vlaneseq
          %v2284 = vshrl.u32 %v2283, 7
          %v2285 = vsub.s32 %v2282, %v2284
          %v2286 = vrot.slane %v2272, %v2285
          %v2287 = vcombine.high %v2279, %v2279
          %v2288 = vcombine.high %v2286, %v2286
          %v2293 = vpack.c.bf16 %v2279, %v2279
          %v2294 = vpack.c.bf16 %v2287, %v2287
          %v2295 = vpack.c.bf16 %v2286, %v2286
          %v2296 = vpack.c.bf16 %v2288, %v2288
          %v2297 = vld [vmem:[%s3] sm:$0xff]
          %v2298 = vld [vmem:[%s3 + $0x8] sm:$0xff]
          %v2299 = vld [vmem:[%s3 + $0x10] sm:$0xff]
          %v2300 = vld [vmem:[%s3 + $0x18] sm:$0xff]
          %v2301 = vld [vmem:[%s3 + $0x20] sm:$0xff]
          %v2302 = vld [vmem:[%s3 + $0x28] sm:$0xff]
          %v2303 = vld [vmem:[%s3 + $0x30] sm:$0xff]
          %v2304 = vld [vmem:[%s3 + $0x38] sm:$0xff]
          %v2305 = vld [vmem:[%s3 + $0x40] sm:$0xff]
          %v2306 = vld [vmem:[%s3 + $0x48] sm:$0xff]
          %v2307 = vld [vmem:[%s3 + $0x50] sm:$0xff]
          %v2308 = vld [vmem:[%s3 + $0x58] sm:$0xff]
          %v2309 = vld [vmem:[%s3 + $0x60] sm:$0xff]
          %v2310 = vld [vmem:[%s3 + $0x68] sm:$0xff]
          %v2311 = vld [vmem:[%s3 + $0x70] sm:$0xff]
          %v2312 = vld [vmem:[%s3 + $0x78] sm:$0xff]
          %v2313 = vld [vmem:[%s3 + $0x80] sm:$0xff]
          %v2314 = vld [vmem:[%s3 + $0x88] sm:$0xff]
          %v2315 = vld [vmem:[%s3 + $0x90] sm:$0xff]
          %v2316 = vld [vmem:[%s3 + $0x98] sm:$0xff]
          %v2317 = vld [vmem:[%s3 + $0xa0] sm:$0xff]
          %v2318 = vld [vmem:[%s3 + $0xa8] sm:$0xff]
          %v2319 = vld [vmem:[%s3 + $0xb0] sm:$0xff]
          %v2320 = vld [vmem:[%s3 + $0xb8] sm:$0xff]
          %v2321 = vld [vmem:[%s3 + $0xc0] sm:$0xff]
          %v2322 = vld [vmem:[%s3 + $0xc8] sm:$0xff]
          %v2323 = vld [vmem:[%s3 + $0xd0] sm:$0xff]
          %v2324 = vld [vmem:[%s3 + $0xd8] sm:$0xff]
          %v2325 = vld [vmem:[%s3 + $0xe0] sm:$0xff]
          %v2326 = vld [vmem:[%s3 + $0xe8] sm:$0xff]
          %v2327 = vld [vmem:[%s3 + $0xf0] sm:$0xff]
          %v2328 = vld [vmem:[%s3 + $0xf8] sm:$0xff]
          %v2329 = vld [vmem:[%s3 + $0x100] sm:$0xff]
          %v2330 = vld [vmem:[%s3 + $0x108] sm:$0xff]
          %v2331 = vld [vmem:[%s3 + $0x110] sm:$0xff]
          %v2332 = vld [vmem:[%s3 + $0x118] sm:$0xff]
          %v2333 = vld [vmem:[%s3 + $0x120] sm:$0xff]
          %v2334 = vld [vmem:[%s3 + $0x128] sm:$0xff]
          %v2335 = vld [vmem:[%s3 + $0x130] sm:$0xff]
          %v2336 = vld [vmem:[%s3 + $0x138] sm:$0xff]
          %v2337 = vld [vmem:[%s3 + $0x140] sm:$0xff]
          %v2338 = vld [vmem:[%s3 + $0x148] sm:$0xff]
          %v2339 = vld [vmem:[%s3 + $0x150] sm:$0xff]
          %v2340 = vld [vmem:[%s3 + $0x158] sm:$0xff]
          %v2341 = vld [vmem:[%s3 + $0x160] sm:$0xff]
          %v2342 = vld [vmem:[%s3 + $0x168] sm:$0xff]
          %v2343 = vld [vmem:[%s3 + $0x170] sm:$0xff]
          %v2344 = vld [vmem:[%s3 + $0x178] sm:$0xff]
          %v2345 = vld [vmem:[%s3 + $0x180] sm:$0xff]
          %v2346 = vld [vmem:[%s3 + $0x188] sm:$0xff]
          %v2347 = vld [vmem:[%s3 + $0x190] sm:$0xff]
          %v2348 = vld [vmem:[%s3 + $0x198] sm:$0xff]
          %v2349 = vld [vmem:[%s3 + $0x1a0] sm:$0xff]
          %v2350 = vld [vmem:[%s3 + $0x1a8] sm:$0xff]
          %v2351 = vld [vmem:[%s3 + $0x1b0] sm:$0xff]
          %v2352 = vld [vmem:[%s3 + $0x1b8] sm:$0xff]
          %v2353 = vld [vmem:[%s3 + $0x1c0] sm:$0xff]
          %v2354 = vld [vmem:[%s3 + $0x1c8] sm:$0xff]
          %v2355 = vld [vmem:[%s3 + $0x1d0] sm:$0xff]
          %v2356 = vld [vmem:[%s3 + $0x1d8] sm:$0xff]
          %v2357 = vld [vmem:[%s3 + $0x1e0] sm:$0xff]
          %v2358 = vld [vmem:[%s3 + $0x1e8] sm:$0xff]
          %v2359 = vld [vmem:[%s3 + $0x1f0] sm:$0xff]
          %v2360 = vld [vmem:[%s3 + $0x1f8] sm:$0xff]
          %v2361 = vld [vmem:[%s4] sm:$0x3]
          %v2363 = vlaneseq
          %v2364 = vshrl.u32 %v2363, 7
          %v2365 = vsub.s32 0, %v2364
          %v2366 = vrot.slane %v2361, %v2365
          %v2367 = vlaneseq
          %v2368 = vshrl.u32 %v2367, 7
          %v2369 = vsub.s32 1, %v2368
          %v2370 = vrot.slane %v2361, %v2369
          %v2437 = vunpack.c.l.b16 %v2297
          %v2438 = vunpack.c.h.b16 %v2297
          %v2439 = vunpack.c.l.b16 %v2298
          %v2440 = vunpack.c.h.b16 %v2298
          %v2441 = vunpack.c.l.b16 %v2299
          %v2442 = vunpack.c.h.b16 %v2299
          %v2443 = vunpack.c.l.b16 %v2300
          %v2444 = vunpack.c.h.b16 %v2300
          %v2445 = vunpack.c.l.b16 %v2301
          %v2446 = vunpack.c.h.b16 %v2301
          %v2447 = vunpack.c.l.b16 %v2302
          %v2448 = vunpack.c.h.b16 %v2302
          %v2449 = vunpack.c.l.b16 %v2303
          %v2450 = vunpack.c.h.b16 %v2303
          %v2451 = vunpack.c.l.b16 %v2304
          %v2452 = vunpack.c.h.b16 %v2304
          %v2453 = vunpack.c.l.b16 %v2305
          %v2454 = vunpack.c.h.b16 %v2305
          %v2455 = vunpack.c.l.b16 %v2306
          %v2456 = vunpack.c.h.b16 %v2306
          %v2457 = vunpack.c.l.b16 %v2307
          %v2458 = vunpack.c.h.b16 %v2307
          %v2459 = vunpack.c.l.b16 %v2308
          %v2460 = vunpack.c.h.b16 %v2308
          %v2461 = vunpack.c.l.b16 %v2309
          %v2462 = vunpack.c.h.b16 %v2309
          %v2463 = vunpack.c.l.b16 %v2310
          %v2464 = vunpack.c.h.b16 %v2310
          %v2465 = vunpack.c.l.b16 %v2311
          %v2466 = vunpack.c.h.b16 %v2311
          %v2467 = vunpack.c.l.b16 %v2312
          %v2468 = vunpack.c.h.b16 %v2312
          %v2469 = vunpack.c.l.b16 %v2313
          %v2470 = vunpack.c.h.b16 %v2313
          %v2471 = vunpack.c.l.b16 %v2314
          %v2472 = vunpack.c.h.b16 %v2314
          %v2473 = vunpack.c.l.b16 %v2315
          %v2474 = vunpack.c.h.b16 %v2315
          %v2475 = vunpack.c.l.b16 %v2316
          %v2476 = vunpack.c.h.b16 %v2316
          %v2477 = vunpack.c.l.b16 %v2317
          %v2478 = vunpack.c.h.b16 %v2317
          %v2479 = vunpack.c.l.b16 %v2318
          %v2480 = vunpack.c.h.b16 %v2318
          %v2481 = vunpack.c.l.b16 %v2319
          %v2482 = vunpack.c.h.b16 %v2319
          %v2483 = vunpack.c.l.b16 %v2320
          %v2484 = vunpack.c.h.b16 %v2320
          %v2485 = vunpack.c.l.b16 %v2321
          %v2486 = vunpack.c.h.b16 %v2321
          %v2487 = vunpack.c.l.b16 %v2322
          %v2488 = vunpack.c.h.b16 %v2322
          %v2489 = vunpack.c.l.b16 %v2323
          %v2490 = vunpack.c.h.b16 %v2323
          %v2491 = vunpack.c.l.b16 %v2324
          %v2492 = vunpack.c.h.b16 %v2324
          %v2493 = vunpack.c.l.b16 %v2325
          %v2494 = vunpack.c.h.b16 %v2325
          %v2495 = vunpack.c.l.b16 %v2326
          %v2496 = vunpack.c.h.b16 %v2326
          %v2497 = vunpack.c.l.b16 %v2327
          %v2498 = vunpack.c.h.b16 %v2327
          %v2499 = vunpack.c.l.b16 %v2328
          %v2500 = vunpack.c.h.b16 %v2328
          %v2501 = vunpack.c.l.b16 %v2329
          %v2502 = vunpack.c.h.b16 %v2329
          %v2503 = vunpack.c.l.b16 %v2330
          %v2504 = vunpack.c.h.b16 %v2330
          %v2505 = vunpack.c.l.b16 %v2331
          %v2506 = vunpack.c.h.b16 %v2331
          %v2507 = vunpack.c.l.b16 %v2332
          %v2508 = vunpack.c.h.b16 %v2332
          %v2509 = vunpack.c.l.b16 %v2333
          %v2510 = vunpack.c.h.b16 %v2333
          %v2511 = vunpack.c.l.b16 %v2334
          %v2512 = vunpack.c.h.b16 %v2334
          %v2513 = vunpack.c.l.b16 %v2335
          %v2514 = vunpack.c.h.b16 %v2335
          %v2515 = vunpack.c.l.b16 %v2336
          %v2516 = vunpack.c.h.b16 %v2336
          %v2517 = vunpack.c.l.b16 %v2337
          %v2518 = vunpack.c.h.b16 %v2337
          %v2519 = vunpack.c.l.b16 %v2338
          %v2520 = vunpack.c.h.b16 %v2338
          %v2521 = vunpack.c.l.b16 %v2339
          %v2522 = vunpack.c.h.b16 %v2339
          %v2523 = vunpack.c.l.b16 %v2340
          %v2524 = vunpack.c.h.b16 %v2340
          %v2525 = vunpack.c.l.b16 %v2341
          %v2526 = vunpack.c.h.b16 %v2341
          %v2527 = vunpack.c.l.b16 %v2342
          %v2528 = vunpack.c.h.b16 %v2342
          %v2529 = vunpack.c.l.b16 %v2343
          %v2530 = vunpack.c.h.b16 %v2343
          %v2531 = vunpack.c.l.b16 %v2344
          %v2532 = vunpack.c.h.b16 %v2344
          %v2533 = vunpack.c.l.b16 %v2345
          %v2534 = vunpack.c.h.b16 %v2345
          %v2535 = vunpack.c.l.b16 %v2346
          %v2536 = vunpack.c.h.b16 %v2346
          %v2537 = vunpack.c.l.b16 %v2347
          %v2538 = vunpack.c.h.b16 %v2347
          %v2539 = vunpack.c.l.b16 %v2348
          %v2540 = vunpack.c.h.b16 %v2348
          %v2541 = vunpack.c.l.b16 %v2349
          %v2542 = vunpack.c.h.b16 %v2349
          %v2543 = vunpack.c.l.b16 %v2350
          %v2544 = vunpack.c.h.b16 %v2350
          %v2545 = vunpack.c.l.b16 %v2351
          %v2546 = vunpack.c.h.b16 %v2351
          %v2547 = vunpack.c.l.b16 %v2352
          %v2548 = vunpack.c.h.b16 %v2352
          %v2549 = vunpack.c.l.b16 %v2353
          %v2550 = vunpack.c.h.b16 %v2353
          %v2551 = vunpack.c.l.b16 %v2354
          %v2552 = vunpack.c.h.b16 %v2354
          %v2553 = vunpack.c.l.b16 %v2355
          %v2554 = vunpack.c.h.b16 %v2355
          %v2555 = vunpack.c.l.b16 %v2356
          %v2556 = vunpack.c.h.b16 %v2356
          %v2557 = vunpack.c.l.b16 %v2357
          %v2558 = vunpack.c.h.b16 %v2357
          %v2559 = vunpack.c.l.b16 %v2358
          %v2560 = vunpack.c.h.b16 %v2358
          %v2561 = vunpack.c.l.b16 %v2359
          %v2562 = vunpack.c.h.b16 %v2359
          %v2563 = vunpack.c.l.b16 %v2360
          %v2564 = vunpack.c.h.b16 %v2360
          %v2565 = vpack.c.b16 %v2439, %v2437
          %v2566 = vpack.c.b16 %v2440, %v2438
          %v2567 = vpack.c.b16 %v2443, %v2441
          %v2568 = vpack.c.b16 %v2444, %v2442
          %v2569 = vpack.c.b16 %v2447, %v2445
          %v2570 = vpack.c.b16 %v2448, %v2446
          %v2571 = vpack.c.b16 %v2451, %v2449
          %v2572 = vpack.c.b16 %v2452, %v2450
          %v2573 = vpack.c.b16 %v2455, %v2453
          %v2574 = vpack.c.b16 %v2456, %v2454
          %v2575 = vpack.c.b16 %v2459, %v2457
          %v2576 = vpack.c.b16 %v2460, %v2458
          %v2577 = vpack.c.b16 %v2463, %v2461
          %v2578 = vpack.c.b16 %v2464, %v2462
          %v2579 = vpack.c.b16 %v2467, %v2465
          %v2580 = vpack.c.b16 %v2468, %v2466
          %v2581 = vpack.c.b16 %v2471, %v2469
          %v2582 = vpack.c.b16 %v2472, %v2470
          %v2583 = vpack.c.b16 %v2475, %v2473
          %v2584 = vpack.c.b16 %v2476, %v2474
          %v2585 = vpack.c.b16 %v2479, %v2477
          %v2586 = vpack.c.b16 %v2480, %v2478
          %v2587 = vpack.c.b16 %v2483, %v2481
          %v2588 = vpack.c.b16 %v2484, %v2482
          %v2589 = vpack.c.b16 %v2487, %v2485
          %v2590 = vpack.c.b16 %v2488, %v2486
          %v2591 = vpack.c.b16 %v2491, %v2489
          %v2592 = vpack.c.b16 %v2492, %v2490
          %v2593 = vpack.c.b16 %v2495, %v2493
          %v2594 = vpack.c.b16 %v2496, %v2494
          %v2595 = vpack.c.b16 %v2499, %v2497
          %v2596 = vpack.c.b16 %v2500, %v2498
          %v2597 = vpack.c.b16 %v2503, %v2501
          %v2598 = vpack.c.b16 %v2504, %v2502
          %v2599 = vpack.c.b16 %v2507, %v2505
          %v2600 = vpack.c.b16 %v2508, %v2506
          %v2601 = vpack.c.b16 %v2511, %v2509
          %v2602 = vpack.c.b16 %v2512, %v2510
          %v2603 = vpack.c.b16 %v2515, %v2513
          %v2604 = vpack.c.b16 %v2516, %v2514
          %v2605 = vpack.c.b16 %v2519, %v2517
          %v2606 = vpack.c.b16 %v2520, %v2518
          %v2607 = vpack.c.b16 %v2523, %v2521
          %v2608 = vpack.c.b16 %v2524, %v2522
          %v2609 = vpack.c.b16 %v2527, %v2525
          %v2610 = vpack.c.b16 %v2528, %v2526
          %v2611 = vpack.c.b16 %v2531, %v2529
          %v2612 = vpack.c.b16 %v2532, %v2530
          %v2613 = vpack.c.b16 %v2535, %v2533
          %v2614 = vpack.c.b16 %v2536, %v2534
          %v2615 = vpack.c.b16 %v2539, %v2537
          %v2616 = vpack.c.b16 %v2540, %v2538
          %v2617 = vpack.c.b16 %v2543, %v2541
          %v2618 = vpack.c.b16 %v2544, %v2542
          %v2619 = vpack.c.b16 %v2547, %v2545
          %v2620 = vpack.c.b16 %v2548, %v2546
          %v2621 = vpack.c.b16 %v2551, %v2549
          %v2622 = vpack.c.b16 %v2552, %v2550
          %v2623 = vpack.c.b16 %v2555, %v2553
          %v2624 = vpack.c.b16 %v2556, %v2554
          %v2625 = vpack.c.b16 %v2559, %v2557
          %v2626 = vpack.c.b16 %v2560, %v2558
          %v2627 = vpack.c.b16 %v2563, %v2561
          %v2628 = vpack.c.b16 %v2564, %v2562
          %2693 = vmatprep.subr.bf16.mxu0 %v2566
          %2694 = vmatpush1.bf16.msra.mxu0 %v2565
          %2695 = vmatprep.subr.bf16.mxu0 %v2568
          %2696 = vmatpush1.bf16.msra.mxu0 %v2567
          %2697 = vmatprep.subr.bf16.mxu0 %v2570
          %2698 = vmatpush1.bf16.msra.mxu0 %v2569
          %2699 = vmatprep.subr.bf16.mxu0 %v2572
          %2700 = vmatpush1.bf16.msra.mxu0 %v2571
          %2701 = vmatprep.subr.bf16.mxu0 %v2574
          %2702 = vmatpush1.bf16.msra.mxu0 %v2573
          %2703 = vmatprep.subr.bf16.mxu0 %v2576
          %2704 = vmatpush1.bf16.msra.mxu0 %v2575
          %2705 = vmatprep.subr.bf16.mxu0 %v2578
          %2706 = vmatpush1.bf16.msra.mxu0 %v2577
          %2707 = vmatprep.subr.bf16.mxu0 %v2580
          %2708 = vmatpush1.bf16.msra.mxu0 %v2579
          %2709 = vmatprep.subr.bf16.mxu0 %v2582
          %2710 = vmatpush1.bf16.msra.mxu0 %v2581
          %2711 = vmatprep.subr.bf16.mxu0 %v2584
          %2712 = vmatpush1.bf16.msra.mxu0 %v2583
          %2713 = vmatprep.subr.bf16.mxu0 %v2586
          %2714 = vmatpush1.bf16.msra.mxu0 %v2585
          %2715 = vmatprep.subr.bf16.mxu0 %v2588
          %2716 = vmatpush1.bf16.msra.mxu0 %v2587
          %2717 = vmatprep.subr.bf16.mxu0 %v2590
          %2718 = vmatpush1.bf16.msra.mxu0 %v2589
          %2719 = vmatprep.subr.bf16.mxu0 %v2592
          %2720 = vmatpush1.bf16.msra.mxu0 %v2591
          %2721 = vmatprep.subr.bf16.mxu0 %v2594
          %2722 = vmatpush1.bf16.msra.mxu0 %v2593
          %2723 = vmatprep.subr.bf16.mxu0 %v2596
          %2724 = vmatpush1.bf16.msra.mxu0 %v2595
          %2725 = vmatprep.mubr.bf16.mxu0 %v2294
          %2726 = vmatmul.mubr.bf16.gmra.mrb[0].mxu0 %v2293
          %v2727 = vpop.f32.mrb[0].mxu0
          %v2728 = vadd.f32 %v2366, %v2727
          %v2729 = vpop.f32.mrb[0].mxu0
          %v2730 = vadd.f32 %v2370, %v2729
          %v2731 = vpop.f32.mrb[0].mxu0
          %v2732 = vpop.f32.mrb[0].mxu0
          %2733 = vdwg.mxu0
          %2734 = vmatprep.subr.bf16.mxu0 %v2598
          %2735 = vmatpush1.bf16.msra.mxu0 %v2597
          %2736 = vmatprep.subr.bf16.mxu0 %v2600
          %2737 = vmatpush1.bf16.msra.mxu0 %v2599
          %2738 = vmatprep.subr.bf16.mxu0 %v2602
          %2739 = vmatpush1.bf16.msra.mxu0 %v2601
          %2740 = vmatprep.subr.bf16.mxu0 %v2604
          %2741 = vmatpush1.bf16.msra.mxu0 %v2603
          %2742 = vmatprep.subr.bf16.mxu0 %v2606
          %2743 = vmatpush1.bf16.msra.mxu0 %v2605
          %2744 = vmatprep.subr.bf16.mxu0 %v2608
          %2745 = vmatpush1.bf16.msra.mxu0 %v2607
          %2746 = vmatprep.subr.bf16.mxu0 %v2610
          %2747 = vmatpush1.bf16.msra.mxu0 %v2609
          %2748 = vmatprep.subr.bf16.mxu0 %v2612
          %2749 = vmatpush1.bf16.msra.mxu0 %v2611
          %2750 = vmatprep.subr.bf16.mxu0 %v2614
          %2751 = vmatpush1.bf16.msra.mxu0 %v2613
          %2752 = vmatprep.subr.bf16.mxu0 %v2616
          %2753 = vmatpush1.bf16.msra.mxu0 %v2615
          %2754 = vmatprep.subr.bf16.mxu0 %v2618
          %2755 = vmatpush1.bf16.msra.mxu0 %v2617
          %2756 = vmatprep.subr.bf16.mxu0 %v2620
          %2757 = vmatpush1.bf16.msra.mxu0 %v2619
          %2758 = vmatprep.subr.bf16.mxu0 %v2622
          %2759 = vmatpush1.bf16.msra.mxu0 %v2621
          %2760 = vmatprep.subr.bf16.mxu0 %v2624
          %2761 = vmatpush1.bf16.msra.mxu0 %v2623
          %2762 = vmatprep.subr.bf16.mxu0 %v2626
          %2763 = vmatpush1.bf16.msra.mxu0 %v2625
          %2764 = vmatprep.subr.bf16.mxu0 %v2628
          %2765 = vmatpush1.bf16.msra.mxu0 %v2627
          %2766 = vmatprep.mubr.bf16.mxu0 %v2296
          %2767 = vmatmul.mubr.bf16.gmra.mrb[0].mxu0 %v2295
          %v2768 = vpop.f32.mrb[0].mxu0
          %v2769 = vadd.f32 %v2728, %v2768
          %v2770 = vpop.f32.mrb[0].mxu0
          %v2771 = vadd.f32 %v2730, %v2770
          %v2772 = vpop.f32.mrb[0].mxu0
          %v2773 = vpop.f32.mrb[0].mxu0
          %2774 = vdwg.mxu0
          %v2775 = vmax.f32 %v2769, 0.0
          %v2776 = vmax.f32 %v2771, 0.0
          %v2777 = vpack.c.bf16 %v2775, %v2775
          %v2778 = vpack.c.bf16 %v2776, %v2776
          %v2779 = vld [vmem:[%s5] sm:$0xf]
          %v2780 = vld [vmem:[%s5 + $0x4] sm:$0xf]
          %v2781 = vld [vmem:[%s5 + $0x8] sm:$0xf]
          %v2782 = vld [vmem:[%s5 + $0xc] sm:$0xf]
          %v2783 = vld [vmem:[%s5 + $0x10] sm:$0xf]
          %v2784 = vld [vmem:[%s5 + $0x14] sm:$0xf]
          %v2785 = vld [vmem:[%s5 + $0x18] sm:$0xf]
          %v2786 = vld [vmem:[%s5 + $0x1c] sm:$0xf]
          %v2787 = vld [vmem:[%s5 + $0x20] sm:$0xf]
          %v2788 = vld [vmem:[%s5 + $0x24] sm:$0xf]
          %v2789 = vld [vmem:[%s5 + $0x28] sm:$0xf]
          %v2790 = vld [vmem:[%s5 + $0x2c] sm:$0xf]
          %v2791 = vld [vmem:[%s5 + $0x30] sm:$0xf]
          %v2792 = vld [vmem:[%s5 + $0x34] sm:$0xf]
          %v2793 = vld [vmem:[%s5 + $0x38] sm:$0xf]
          %v2794 = vld [vmem:[%s5 + $0x3c] sm:$0xf]
          %v2795 = vld [vmem:[%s5 + $0x40] sm:$0xf]
          %v2796 = vld [vmem:[%s5 + $0x44] sm:$0xf]
          %v2797 = vld [vmem:[%s5 + $0x48] sm:$0xf]
          %v2798 = vld [vmem:[%s5 + $0x4c] sm:$0xf]
          %v2799 = vld [vmem:[%s5 + $0x50] sm:$0xf]
          %v2800 = vld [vmem:[%s5 + $0x54] sm:$0xf]
          %v2801 = vld [vmem:[%s5 + $0x58] sm:$0xf]
          %v2802 = vld [vmem:[%s5 + $0x5c] sm:$0xf]
          %v2803 = vld [vmem:[%s5 + $0x60] sm:$0xf]
          %v2804 = vld [vmem:[%s5 + $0x64] sm:$0xf]
          %v2805 = vld [vmem:[%s5 + $0x68] sm:$0xf]
          %v2806 = vld [vmem:[%s5 + $0x6c] sm:$0xf]
          %v2807 = vld [vmem:[%s5 + $0x70] sm:$0xf]
          %v2808 = vld [vmem:[%s5 + $0x74] sm:$0xf]
          %v2809 = vld [vmem:[%s5 + $0x78] sm:$0xf]
          %v2810 = vld [vmem:[%s5 + $0x7c] sm:$0xf]
          %v2811 = vld [vmem:[%s6] sm:$0x1]
          %v2813 = vlaneseq
          %v2814 = vshrl.u32 %v2813, 7
          %v2815 = vsub.s32 0, %v2814
          %v2816 = vrot.slane %v2811, %v2815
          %v2850 = vunpack.c.l.b16 %v2779
          %v2851 = vunpack.c.l.b16 %v2780
          %v2852 = vunpack.c.l.b16 %v2781
          %v2853 = vunpack.c.l.b16 %v2782
          %v2854 = vunpack.c.l.b16 %v2783
          %v2855 = vunpack.c.l.b16 %v2784
          %v2856 = vunpack.c.l.b16 %v2785
          %v2857 = vunpack.c.l.b16 %v2786
          %v2858 = vunpack.c.l.b16 %v2787
          %v2859 = vunpack.c.l.b16 %v2788
          %v2860 = vunpack.c.l.b16 %v2789
          %v2861 = vunpack.c.l.b16 %v2790
          %v2862 = vunpack.c.l.b16 %v2791
          %v2863 = vunpack.c.l.b16 %v2792
          %v2864 = vunpack.c.l.b16 %v2793
          %v2865 = vunpack.c.l.b16 %v2794
          %v2866 = vunpack.c.l.b16 %v2795
          %v2867 = vunpack.c.l.b16 %v2796
          %v2868 = vunpack.c.l.b16 %v2797
          %v2869 = vunpack.c.l.b16 %v2798
          %v2870 = vunpack.c.l.b16 %v2799
          %v2871 = vunpack.c.l.b16 %v2800
          %v2872 = vunpack.c.l.b16 %v2801
          %v2873 = vunpack.c.l.b16 %v2802
          %v2874 = vunpack.c.l.b16 %v2803
          %v2875 = vunpack.c.l.b16 %v2804
          %v2876 = vunpack.c.l.b16 %v2805
          %v2877 = vunpack.c.l.b16 %v2806
          %v2878 = vunpack.c.l.b16 %v2807
          %v2879 = vunpack.c.l.b16 %v2808
          %v2880 = vunpack.c.l.b16 %v2809
          %v2881 = vunpack.c.l.b16 %v2810
          %v2882 = vpack.c.b16 %v2851, %v2850
          %v2883 = vpack.c.b16 %v2853, %v2852
          %v2884 = vpack.c.b16 %v2855, %v2854
          %v2885 = vpack.c.b16 %v2857, %v2856
          %v2886 = vpack.c.b16 %v2859, %v2858
          %v2887 = vpack.c.b16 %v2861, %v2860
          %v2888 = vpack.c.b16 %v2863, %v2862
          %v2889 = vpack.c.b16 %v2865, %v2864
          %v2890 = vpack.c.b16 %v2867, %v2866
          %v2891 = vpack.c.b16 %v2869, %v2868
          %v2892 = vpack.c.b16 %v2871, %v2870
          %v2893 = vpack.c.b16 %v2873, %v2872
          %v2894 = vpack.c.b16 %v2875, %v2874
          %v2895 = vpack.c.b16 %v2877, %v2876
          %v2896 = vpack.c.b16 %v2879, %v2878
          %v2897 = vpack.c.b16 %v2881, %v2880
          %2914 = vmatprep.subr.bf16.mxu0 0
          %2915 = vmatpush1.bf16.msra.mxu0 %v2882
          %2916 = vmatprep.subr.bf16.mxu0 0
          %2917 = vmatpush1.bf16.msra.mxu0 %v2883
          %2918 = vmatprep.subr.bf16.mxu0 0
          %2919 = vmatpush1.bf16.msra.mxu0 %v2884
          %2920 = vmatprep.subr.bf16.mxu0 0
          %2921 = vmatpush1.bf16.msra.mxu0 %v2885
          %2922 = vmatprep.subr.bf16.mxu0 0
          %2923 = vmatpush1.bf16.msra.mxu0 %v2886
          %2924 = vmatprep.subr.bf16.mxu0 0
          %2925 = vmatpush1.bf16.msra.mxu0 %v2887
          %2926 = vmatprep.subr.bf16.mxu0 0
          %2927 = vmatpush1.bf16.msra.mxu0 %v2888
          %2928 = vmatprep.subr.bf16.mxu0 0
          %2929 = vmatpush1.bf16.msra.mxu0 %v2889
          %2930 = vmatprep.subr.bf16.mxu0 0
          %2931 = vmatpush1.bf16.msra.mxu0 %v2890
          %2932 = vmatprep.subr.bf16.mxu0 0
          %2933 = vmatpush1.bf16.msra.mxu0 %v2891
          %2934 = vmatprep.subr.bf16.mxu0 0
          %2935 = vmatpush1.bf16.msra.mxu0 %v2892
          %2936 = vmatprep.subr.bf16.mxu0 0
          %2937 = vmatpush1.bf16.msra.mxu0 %v2893
          %2938 = vmatprep.subr.bf16.mxu0 0
          %2939 = vmatpush1.bf16.msra.mxu0 %v2894
          %2940 = vmatprep.subr.bf16.mxu0 0
          %2941 = vmatpush1.bf16.msra.mxu0 %v2895
          %2942 = vmatprep.subr.bf16.mxu0 0
          %2943 = vmatpush1.bf16.msra.mxu0 %v2896
          %2944 = vmatprep.subr.bf16.mxu0 0
          %2945 = vmatpush1.bf16.msra.mxu0 %v2897
          %2946 = vmatprep.mubr.bf16.mxu0 %v2778
          %2947 = vmatmul.mubr.bf16.gmra.mrb[0].mxu0 %v2777
          %v2948 = vpop.f32.mrb[0].mxu0
          %v2949 = vadd.f32 %v2816, %v2948
          %v2950 = vpop.f32.mrb[0].mxu0
          %v2951 = vpop.f32.mrb[0].mxu0
          %v2952 = vpop.f32.mrb[0].mxu0
          %2953 = vdwg.mxu0
          %2954 = vst [vmem:[#allocation3] sm:$0x3] %v2949
        $region56: #{_lambda_.13} parent=47 // pred_fallthru
          _
        // Predicated region
        $region57: #{_lambda_.13} parent=47 // pred_check
          %p2955 = pneg %p184
        $region58: #{_lambda_.13} parent=47 // pred_check_branch
          %2957 = sbr.rel (%p2955) target = $region60
        $region59: #{_lambda_.13} parent=47 // pred_region
          %s2959 = ssub.s32 32, 32
          %2960 = vsyncadd [#allocation4], %s2959
          %s2962 = sshll.u32 [#allocation3], 4
          %s2963 = int_to_ptr.vmem [resolvable:$true] %s2962
          %2965 = dma.vmem_to_hbm [thread:$0]  %s2963, 32, %s7, [#allocation4]
        $region60: #{_lambda_.13} parent=47 // pred_fallthru
          _
        // Predicated region
        $region61: #{_lambda_.13} parent=47 // pred_check
          %p2966 = pneg %p184
        $region62: #{_lambda_.13} parent=47 // pred_check_branch
          %2968 = sbr.rel (%p2966) target = $region64
        $region63: #{_lambda_.13} parent=47 // pred_region
          %2969 = dma.done [#allocation4], 32
        $region64: #{_lambda_.13} parent=47 // pred_fallthru
          _
      $region48: #{_lambda_.13} parent=5 // pred_fallthru
        _
      %p2970 = scmp.le.s32.totalorder 2, %s14
      // Predicated region
      $region65: #{_lambda_.13} parent=5 // pred_check
        %p2971 = pneg %p2970
      $region66: #{_lambda_.13} parent=5 // pred_check_branch
        %2973 = sbr.rel (%p2971) target = $region68
      $region67: #{_lambda_.13} parent=5 // pred_region
        %s2974 = ssub.s32 %s14, 2
      $region68: #{_lambda_.13} parent=5 // pred_fallthru
        _
    $region6: #{_lambda_.13} parent=1 // loop_footer
      %s18 = sadd.s32 1, %s14
    $region7: #{_lambda_.13} parent=1 // loop_footer_branch
      %13 = sbr.rel target = $region3
    $region8: #{_lambda_.13} parent=1 // loop_exit
      _
    %2975 = vsyncpa [#allocation4], 1
    %s2976 = scalar_lea.sflag [#allocation4], 1
    %2977 = vsyncpa %s2976, 1

</llo_original>
